<compile_context>
chip_gen: v7x
topology: tpu7x:2x2x1
jax: 0.10.0
libtpu: 0.0.40
codegen_flags: <defaults>
</compile_context>

<pallas_src>
import jax
import jax.numpy as jnp
from jax import lax
from jax.experimental import pallas as pl
from jax.experimental.pallas import tpu as pltpu

EXPANSION = 4
BN_EPS = 1e-5


def _fold_bn(gamma, beta, mean, var, eps=BN_EPS):
    scale = gamma / jnp.sqrt(var + eps)
    bias = beta - mean * scale
    return scale.reshape(1, -1), bias.reshape(1, -1)


# ----------------------------------------------------------------------------
# Fused bottleneck kernel
# ----------------------------------------------------------------------------
def _make_kernel(stride, downsample, nb, H, W, Hout, Wout):
    def kernel(x_ref, w1_ref, s1_ref, b1_ref, w2_ref, s2_ref, b2_ref,
               w3_ref, s3_ref, b3_ref, *rest):
        if downsample:
            wd_ref, sd_ref, bd_ref, o_ref, pad_ref, col_ref = rest
        else:
            o_ref, pad_ref, col_ref = rest

        Cin = x_ref.shape[3]
        C = w1_ref.shape[1]
        M_in = nb * H * W
        M_out = nb * Hout * Wout
        cd = pad_ref.dtype                       # matmul operand dtype

        # ---- 1x1 conv + BN + ReLU over the whole batch block (M = nb*H*W) ---
        x2d = x_ref[...].reshape(M_in, Cin)
        y1 = jnp.dot(x2d, w1_ref[...], preferred_element_type=jnp.float32)
        y1 = jnp.maximum(y1 * s1_ref[...] + b1_ref[...], 0.0)

        # ---- zero only the 4 padding border strips (interior is rewritten) --
        pad_ref[:, pl.ds(0, 1), :, :] = jnp.zeros((nb, 1, W + 2, C), cd)
        pad_ref[:, pl.ds(H + 1, 1), :, :] = jnp.zeros((nb, 1, W + 2, C), cd)
        pad_ref[:, :, pl.ds(0, 1), :] = jnp.zeros((nb, H + 2, 1, C), cd)
        pad_ref[:, :, pl.ds(W + 1, 1), :] = jnp.zeros((nb, H + 2, 1, C), cd)

        # ---- stash y1 into the padded interior (single store) ---------------
        pad_ref[:, pl.ds(1, H), pl.ds(1, W), :] = y1.astype(cd).reshape(nb, H, W, C)

        # ---- im2col: gather the 9 (strided) taps into one (M_out, 9*C) slab -
        for kh in range(3):
            for kw in range(3):
                if stride == 1:
                    patch = pad_ref[:, pl.ds(kh, Hout), pl.ds(kw, Wout), :]
                else:
                    patch = pad_ref[:, pl.ds(kh, Hout, stride),
                                    pl.ds(kw, Wout, stride), :]
                col_ref[:, pl.ds((kh * 3 + kw) * C, C)] = patch.reshape(M_out, C)

        # ---- 3x3 conv as ONE matmul with K = 9*C, then BN + ReLU ------------
        y2 = jnp.dot(col_ref[...], w2_ref[...], preferred_element_type=jnp.float32)
        y2 = jnp.maximum(y2 * s2_ref[...] + b2_ref[...], 0.0)

        # ---- final 1x1 conv + BN --------------------------------------------
        y3 = jnp.dot(y2.astype(cd), w3_ref[...], preferred_element_type=jnp.float32)
        y3 = y3 * s3_ref[...] + b3_ref[...]

        # ---- identity / downsample branch, fused (no extra HBM round trip) --
        if downsample:
            if stride == 1:
                xs = x2d
            else:
                xs = x_ref[:, pl.ds(0, Hout, stride), pl.ds(0, Wout, stride), :]
                xs = xs.reshape(M_out, Cin)
            ident = jnp.dot(xs, wd_ref[...], preferred_element_type=jnp.float32)
            ident = ident * sd_ref[...] + bd_ref[...]
        else:
            ident = x2d.astype(jnp.float32)      # requires Cin == C4, stride == 1

        o_ref[...] = jnp.maximum(y3 + ident, 0.0).astype(o_ref.dtype)

    return kernel


def _pick_batch_block(N, H, W, Cin, C, C4, stride, itemsize,
                      vmem_budget=8 * 1024 * 1024):
    """Largest divisor of N whose per-step working set fits a VMEM budget."""
    Hout = (H - 1) // stride + 1
    Wout = (W - 1) // stride + 1

    def vmem_bytes(nb):
        x_b = 2 * nb * H * W * Cin * itemsize          # double-buffered input
        o_b = 2 * nb * Hout * Wout * C4 * 4            # double-buffered f32 out
        pad_b = nb * (H + 2) * (W + 2) * C * itemsize  # padded scratch
        col_b = nb * Hout * Wout * 9 * C * itemsize    # im2col scratch
        return x_b + o_b + pad_b + col_b

    for nb in range(N, 0, -1):
        if N % nb == 0 and vmem_bytes(nb) <= vmem_budget:
            return nb
    return 1


def bottleneck_forward(x_nchw, params, stride=1, downsample=False,
                       compute_dtype=jnp.bfloat16, batch_block=None):
    x = jnp.transpose(x_nchw, (0, 2, 3, 1))            # NCHW -> NHWC
    N, H, W, Cin = x.shape
    C = params["w1"].shape[1]
    C4 = params["w3"].shape[1]
    Hout = (H - 1) // stride + 1
    Wout = (W - 1) // stride + 1

    if not downsample:
        assert stride == 1 and Cin == C4, \
            "identity path requires Cin == out_chs*4 and stride == 1"

    cd = compute_dtype
    itemsize = jnp.dtype(cd).itemsize
    nb = batch_block or _pick_batch_block(N, H, W, Cin, C, C4, stride, itemsize)
    assert N % nb == 0

    x = x.astype(cd)
    w1 = params["w1"].astype(cd)
    w2 = params["w2_flat"].astype(cd)
    w3 = params["w3"].astype(cd)

    in_specs = [
        pl.BlockSpec((nb, H, W, Cin), lambda g: (g, 0, 0, 0)),
        pl.BlockSpec((Cin, C), lambda g: (0, 0)),
        pl.BlockSpec((1, C), lambda g: (0, 0)),
        pl.BlockSpec((1, C), lambda g: (0, 0)),
        pl.BlockSpec((9 * C, C), lambda g: (0, 0)),
        pl.BlockSpec((1, C), lambda g: (0, 0)),
        pl.BlockSpec((1, C), lambda g: (0, 0)),
        pl.BlockSpec((C, C4), lambda g: (0, 0)),
        pl.BlockSpec((1, C4), lambda g: (0, 0)),
        pl.BlockSpec((1, C4), lambda g: (0, 0)),
    ]
    args = [x, w1, params["s1"], params["b1"], w2, params["s2"], params["b2"],
            w3, params["s3"], params["b3"]]
    if downsample:
        in_specs += [pl.BlockSpec((Cin, C4), lambda g: (0, 0)),
                     pl.BlockSpec((1, C4), lambda g: (0, 0)),
                     pl.BlockSpec((1, C4), lambda g: (0, 0))]
        args += [params["wd"].astype(cd), params["sd"], params["bd"]]

    out2d = pl.pallas_call(
        _make_kernel(stride, downsample, nb, H, W, Hout, Wout),
        out_shape=jax.ShapeDtypeStruct((N * Hout * Wout, C4), jnp.float32),
        grid=(N // nb,),
        in_specs=in_specs,
        out_specs=pl.BlockSpec((nb * Hout * Wout, C4), lambda g: (g, 0)),
        scratch_shapes=[pltpu.VMEM((nb, H + 2, W + 2, C), cd),
                        pltpu.VMEM((nb * Hout * Wout, 9 * C), cd)],
        compiler_params=pltpu.CompilerParams(dimension_semantics=("parallel",)),
    )(*args)

    out = out2d.reshape(N, Hout, Wout, C4)             # free (row-major) reshape
    return jnp.transpose(out, (0, 3, 1, 2))            # back to NCHW


# ----------------------------------------------------------------------------
# Deterministic parameter init (shapes per bottleneck.__init__)
# ----------------------------------------------------------------------------
def init_params(key, in_chs, out_chs):
    C = out_chs
    C4 = out_chs * EXPANSION
    ks = jax.random.split(key, 8)

    def bn(k, c):
        k1, k2, k3, k4 = jax.random.split(k, 4)
        gamma = 1.0 + 0.1 * jax.random.normal(k1, (c,), jnp.float32)
        beta = 0.1 * jax.random.normal(k2, (c,), jnp.float32)
        mean = 0.1 * jax.random.normal(k3, (c,), jnp.float32)
        var = 0.5 + jax.random.uniform(k4, (c,), jnp.float32)
        return _fold_bn(gamma, beta, mean, var)

    w1 = 0.2 * jax.random.normal(ks[0], (in_chs, C), jnp.float32)        # 1x1
    w2 = 0.2 * jax.random.normal(ks[1], (3, 3, C, C), jnp.float32)       # HWIO
    w3 = 0.2 * jax.random.normal(ks[2], (C, C4), jnp.float32)            # 1x1
    wd = 0.2 * jax.random.normal(ks[3], (in_chs, C4), jnp.float32)       # 1x1 down
    s1, b1 = bn(ks[4], C)
    s2, b2 = bn(ks[5], C)
    s3, b3 = bn(ks[6], C4)
    sd, bd = bn(ks[7], C4)
    return dict(w1=w1, s1=s1, b1=b1,
                w2_flat=w2.reshape(9 * C, C), w2_hwio=w2, s2=s2, b2=b2,
                w3=w3, s3=s3, b3=b3,
                wd=wd, sd=sd, bd=bd)


# ----------------------------------------------------------------------------
# Pure-JAX reference (for correctness check). conv_dtype mirrors the kernel's
# matmul operand dtype (f32 or bf16), with f32 accumulation + f32 BN, so the
# comparison stays tight in both modes.
# ----------------------------------------------------------------------------
def ref_forward(x_nchw, params, stride=1, downsample=False,
                conv_dtype=jnp.float32):
    x = jnp.transpose(x_nchw, (0, 2, 3, 1)).astype(jnp.float32)
    cd = conv_dtype

    def conv(v, w_hwio, s=1, p=0):
        return lax.conv_general_dilated(
            v.astype(cd), w_hwio.astype(cd), (s, s), [(p, p), (p, p)],
            dimension_numbers=("NHWC", "HWIO", "NHWC"),
            preferred_element_type=jnp.float32)

    def bn(v, sc, bi):
        return v * sc.reshape(1, 1, 1, -1) + bi.reshape(1, 1, 1, -1)

    y = jax.nn.relu(bn(conv(x, params["w1"][None, None]), params["s1"], params["b1"]))
    y = jax.nn.relu(bn(conv(y, params["w2_hwio"], s=stride, p=1), params["s2"], params["b2"]))
    y = bn(conv(y, params["w3"][None, None]), params["s3"], params["b3"])
    if downsample:
        identity = bn(conv(x, params["wd"][None, None], s=stride),
                      params["sd"], params["bd"])
    else:
        identity = x.astype(cd).astype(jnp.float32)
    out = jax.nn.relu(y + identity)
    return jnp.transpose(out, (0, 3, 1, 2))


if __name__ == "__main__":
    key = jax.random.PRNGKey(0)
    k_x, k_p, k_x2, k_p2 = jax.random.split(key, 4)

    # ---- config 1: downsample branch (in_chs != out_chs*4), stride=1 --------
    N, in_chs, out_chs, HW = 2, 8, 8, 16
    x = jax.random.normal(k_x, (N, in_chs, HW, HW), jnp.float32)   # NCHW
    params = init_params(k_p, in_chs, out_chs)

    # f32 matmul operands: tight check against the f32 reference.
    y = bottleneck_forward(x, params, stride=1, downsample=True,
                           compute_dtype=jnp.float32)
    y = jax.block_until_ready(y)
    y_ref = ref_forward(x, params, stride=1, downsample=True,
                        conv_dtype=jnp.float32)
    assert y.shape == (N, out_chs * EXPANSION, HW, HW), y.shape
    err = float(jnp.max(jnp.abs(y - y_ref)))
    assert err < 1e-4, f"f32 max abs err {err}"

    # bf16 matmul operands (f32 accumulation), vs. bf16-consistent reference.
    y = bottleneck_forward(x, params, stride=1, downsample=True,
                           compute_dtype=jnp.bfloat16)
    y = jax.block_until_ready(y)
    y_ref = ref_forward(x, params, stride=1, downsample=True,
                        conv_dtype=jnp.bfloat16)
    err = float(jnp.max(jnp.abs(y - y_ref)))
    assert err < 2e-3, f"bf16 max abs err {err}"

    # ---- config 2: plain identity path (in_chs == out_chs*4), stride=1 ------
    in2, out2 = 32, 8
    x2 = jax.random.normal(k_x2, (N, in2, HW, HW), jnp.float32)
    params2 = init_params(k_p2, in2, out2)
    y2 = bottleneck_forward(x2, params2, stride=1, downsample=False,
                            compute_dtype=jnp.bfloat16)
    y2 = jax.block_until_ready(y2)
    y2_ref = ref_forward(x2, params2, stride=1, downsample=False,
                         conv_dtype=jnp.bfloat16)
    assert y2.shape == (N, out2 * EXPANSION, HW, HW), y2.shape
    err2 = float(jnp.max(jnp.abs(y2 - y2_ref)))
    assert err2 < 2e-3, f"identity-path max abs err {err2}"

    print("KERNEL_OK")
</pallas_src>

<mosaic_0001>
module attributes {stable_mosaic.version = 11 : i64} {
  func.func @kernel(%arg0: i32, %arg1: memref<2x16x16x8xf32, #tpu.memory_space<vmem>>, %arg2: memref<8x8xf32, #tpu.memory_space<vmem>>, %arg3: memref<1x8xf32, #tpu.memory_space<vmem>>, %arg4: memref<1x8xf32, #tpu.memory_space<vmem>>, %arg5: memref<72x8xf32, #tpu.memory_space<vmem>>, %arg6: memref<1x8xf32, #tpu.memory_space<vmem>>, %arg7: memref<1x8xf32, #tpu.memory_space<vmem>>, %arg8: memref<8x32xf32, #tpu.memory_space<vmem>>, %arg9: memref<1x32xf32, #tpu.memory_space<vmem>>, %arg10: memref<1x32xf32, #tpu.memory_space<vmem>>, %arg11: memref<8x32xf32, #tpu.memory_space<vmem>>, %arg12: memref<1x32xf32, #tpu.memory_space<vmem>>, %arg13: memref<1x32xf32, #tpu.memory_space<vmem>>, %arg14: memref<512x32xf32, #tpu.memory_space<vmem>>, %arg15: memref<2x18x18x8xf32, #tpu.memory_space<vmem>>, %arg16: memref<512x72xf32, #tpu.memory_space<vmem>>) attributes {dimension_semantics = [#tpu.dimension_semantics<parallel>], iteration_bounds = array<i64: 1>, scalar_prefetch = 0 : i64, scratch_operands = 2 : i64, tpu.core_type = #tpu.core_type<tc>, window_params = [{transform_indices = @transform_0, window_bounds = array<i64: 2, 16, 16, 8>}, {pipeline_mode = #tpu.pipeline_mode<synchronous>, transform_indices = @transform_1, window_bounds = array<i64: 8, 8>}, {pipeline_mode = #tpu.pipeline_mode<synchronous>, transform_indices = @transform_2, window_bounds = array<i64: 1, 8>}, {pipeline_mode = #tpu.pipeline_mode<synchronous>, transform_indices = @transform_3, window_bounds = array<i64: 1, 8>}, {pipeline_mode = #tpu.pipeline_mode<synchronous>, transform_indices = @transform_4, window_bounds = array<i64: 72, 8>}, {pipeline_mode = #tpu.pipeline_mode<synchronous>, transform_indices = @transform_5, window_bounds = array<i64: 1, 8>}, {pipeline_mode = #tpu.pipeline_mode<synchronous>, transform_indices = @transform_6, window_bounds = array<i64: 1, 8>}, {pipeline_mode = #tpu.pipeline_mode<synchronous>, transform_indices = @transform_7, window_bounds = array<i64: 8, 32>}, {pipeline_mode = #tpu.pipeline_mode<synchronous>, transform_indices = @transform_8, window_bounds = array<i64: 1, 32>}, {pipeline_mode = #tpu.pipeline_mode<synchronous>, transform_indices = @transform_9, window_bounds = array<i64: 1, 32>}, {pipeline_mode = #tpu.pipeline_mode<synchronous>, transform_indices = @transform_10, window_bounds = array<i64: 8, 32>}, {pipeline_mode = #tpu.pipeline_mode<synchronous>, transform_indices = @transform_11, window_bounds = array<i64: 1, 32>}, {pipeline_mode = #tpu.pipeline_mode<synchronous>, transform_indices = @transform_12, window_bounds = array<i64: 1, 32>}, {transform_indices = @transform_13, window_bounds = array<i64: 512, 32>}]} {
    %c0 = arith.constant 0 : index
    %c0_0 = arith.constant 0 : index
    %c0_1 = arith.constant 0 : index
    %c0_2 = arith.constant 0 : index
    %0 = vector.load %arg1[%c0, %c0_0, %c0_1, %c0_2] : memref<2x16x16x8xf32, #tpu.memory_space<vmem>>, vector<2x16x16x8xf32>
    %1 = vector.shape_cast %0 : vector<2x16x16x8xf32> to vector<512x8xf32>
    %c0_3 = arith.constant 0 : index
    %c0_4 = arith.constant 0 : index
    %2 = vector.load %arg2[%c0_3, %c0_4] : memref<8x8xf32, #tpu.memory_space<vmem>>, vector<8x8xf32>
    %cst = arith.constant dense<0.000000e+00> : vector<512x8xf32>
    %3 = tpu.matmul %1, %2, %cst {dimension_numbers = #tpu.dot_dimension_numbers<[1], [0], [0], [1], [0, 0, 1, 1], [], []>} : vector<512x8xf32>, vector<8x8xf32>, vector<512x8xf32> -> vector<512x8xf32>
    %c0_5 = arith.constant 0 : index
    %c0_6 = arith.constant 0 : index
    %4 = vector.load %arg3[%c0_5, %c0_6] : memref<1x8xf32, #tpu.memory_space<vmem>>, vector<1x8xf32>
    %5 = vector.broadcast %4 : vector<1x8xf32> to vector<512x8xf32>
    %6 = arith.mulf %3, %5 : vector<512x8xf32>
    %c0_7 = arith.constant 0 : index
    %c0_8 = arith.constant 0 : index
    %7 = vector.load %arg4[%c0_7, %c0_8] : memref<1x8xf32, #tpu.memory_space<vmem>>, vector<1x8xf32>
    %8 = vector.broadcast %7 : vector<1x8xf32> to vector<512x8xf32>
    %9 = arith.addf %6, %8 : vector<512x8xf32>
    %cst_9 = arith.constant 0.000000e+00 : f32
    %10 = vector.broadcast %cst_9 : f32 to vector<512x8xf32>
    %11 = arith.maximumf %9, %10 : vector<512x8xf32>
    %cst_10 = arith.constant 0.000000e+00 : f32
    %12 = vector.broadcast %cst_10 : f32 to vector<2x1x18x8xf32>
    %c0_11 = arith.constant 0 : index
    %c0_12 = arith.constant 0 : index
    %c0_13 = arith.constant 0 : index
    %c0_14 = arith.constant 0 : index
    %13 = vector.load %arg15[%c0_11, %c0_12, %c0_13, %c0_14] : memref<2x18x18x8xf32, #tpu.memory_space<vmem>>, vector<2x1x18x8xf32>
    tpu.vector_store %arg15[%c0_11, %c0_12, %c0_13, %c0_14], %12 {strides = array<i32>} : memref<2x18x18x8xf32, #tpu.memory_space<vmem>>, vector<2x1x18x8xf32>,
    %cst_15 = arith.constant 0.000000e+00 : f32
    %14 = vector.broadcast %cst_15 : f32 to vector<2x1x18x8xf32>
    %c0_16 = arith.constant 0 : index
    %c17 = arith.constant 17 : index
    %c0_17 = arith.constant 0 : index
    %c0_18 = arith.constant 0 : index
    %15 = vector.load %arg15[%c0_16, %c17, %c0_17, %c0_18] : memref<2x18x18x8xf32, #tpu.memory_space<vmem>>, vector<2x1x18x8xf32>
    tpu.vector_store %arg15[%c0_16, %c17, %c0_17, %c0_18], %14 {strides = array<i32>} : memref<2x18x18x8xf32, #tpu.memory_space<vmem>>, vector<2x1x18x8xf32>,
    %cst_19 = arith.constant 0.000000e+00 : f32
    %16 = vector.broadcast %cst_19 : f32 to vector<2x18x1x8xf32>
    %c0_20 = arith.constant 0 : index
    %c0_21 = arith.constant 0 : index
    %c0_22 = arith.constant 0 : index
    %c0_23 = arith.constant 0 : index
    %17 = vector.load %arg15[%c0_20, %c0_21, %c0_22, %c0_23] : memref<2x18x18x8xf32, #tpu.memory_space<vmem>>, vector<2x18x1x8xf32>
    tpu.vector_store %arg15[%c0_20, %c0_21, %c0_22, %c0_23], %16 {strides = array<i32>} : memref<2x18x18x8xf32, #tpu.memory_space<vmem>>, vector<2x18x1x8xf32>,
    %cst_24 = arith.constant 0.000000e+00 : f32
    %18 = vector.broadcast %cst_24 : f32 to vector<2x18x1x8xf32>
    %c0_25 = arith.constant 0 : index
    %c0_26 = arith.constant 0 : index
    %c17_27 = arith.constant 17 : index
    %c0_28 = arith.constant 0 : index
    %19 = vector.load %arg15[%c0_25, %c0_26, %c17_27, %c0_28] : memref<2x18x18x8xf32, #tpu.memory_space<vmem>>, vector<2x18x1x8xf32>
    tpu.vector_store %arg15[%c0_25, %c0_26, %c17_27, %c0_28], %18 {strides = array<i32>} : memref<2x18x18x8xf32, #tpu.memory_space<vmem>>, vector<2x18x1x8xf32>,
    %20 = vector.shape_cast %11 : vector<512x8xf32> to vector<2x16x16x8xf32>
    %c0_29 = arith.constant 0 : index
    %c1 = arith.constant 1 : index
    %c1_30 = arith.constant 1 : index
    %c0_31 = arith.constant 0 : index
    %21 = vector.load %arg15[%c0_29, %c1, %c1_30, %c0_31] : memref<2x18x18x8xf32, #tpu.memory_space<vmem>>, vector<2x16x16x8xf32>
    tpu.vector_store %arg15[%c0_29, %c1, %c1_30, %c0_31], %20 {strides = array<i32>} : memref<2x18x18x8xf32, #tpu.memory_space<vmem>>, vector<2x16x16x8xf32>,
    %c0_32 = arith.constant 0 : index
    %c0_33 = arith.constant 0 : index
    %c0_34 = arith.constant 0 : index
    %c0_35 = arith.constant 0 : index
    %22 = vector.load %arg15[%c0_32, %c0_33, %c0_34, %c0_35] : memref<2x18x18x8xf32, #tpu.memory_space<vmem>>, vector<2x16x16x8xf32>
    %23 = vector.shape_cast %22 : vector<2x16x16x8xf32> to vector<512x8xf32>
    %c0_36 = arith.constant 0 : index
    %c0_37 = arith.constant 0 : index
    %24 = vector.load %arg16[%c0_36, %c0_37] : memref<512x72xf32, #tpu.memory_space<vmem>>, vector<512x8xf32>
    tpu.vector_store %arg16[%c0_36, %c0_37], %23 {strides = array<i32>} : memref<512x72xf32, #tpu.memory_space<vmem>>, vector<512x8xf32>,
    %c0_38 = arith.constant 0 : index
    %c0_39 = arith.constant 0 : index
    %c1_40 = arith.constant 1 : index
    %c0_41 = arith.constant 0 : index
    %25 = vector.load %arg15[%c0_38, %c0_39, %c1_40, %c0_41] : memref<2x18x18x8xf32, #tpu.memory_space<vmem>>, vector<2x16x16x8xf32>
    %26 = vector.shape_cast %25 : vector<2x16x16x8xf32> to vector<512x8xf32>
    %c0_42 = arith.constant 0 : index
    %c8 = arith.constant 8 : index
    %27 = vector.load %arg16[%c0_42, %c8] : memref<512x72xf32, #tpu.memory_space<vmem>>, vector<512x8xf32>
    tpu.vector_store %arg16[%c0_42, %c8], %26 {strides = array<i32>} : memref<512x72xf32, #tpu.memory_space<vmem>>, vector<512x8xf32>,
    %c0_43 = arith.constant 0 : index
    %c0_44 = arith.constant 0 : index
    %c2 = arith.constant 2 : index
    %c0_45 = arith.constant 0 : index
    %28 = vector.load %arg15[%c0_43, %c0_44, %c2, %c0_45] : memref<2x18x18x8xf32, #tpu.memory_space<vmem>>, vector<2x16x16x8xf32>
    %29 = vector.shape_cast %28 : vector<2x16x16x8xf32> to vector<512x8xf32>
    %c0_46 = arith.constant 0 : index
    %c16 = arith.constant 16 : index
    %30 = vector.load %arg16[%c0_46, %c16] : memref<512x72xf32, #tpu.memory_space<vmem>>, vector<512x8xf32>
    tpu.vector_store %arg16[%c0_46, %c16], %29 {strides = array<i32>} : memref<512x72xf32, #tpu.memory_space<vmem>>, vector<512x8xf32>,
    %c0_47 = arith.constant 0 : index
    %c1_48 = arith.constant 1 : index
    %c0_49 = arith.constant 0 : index
    %c0_50 = arith.constant 0 : index
    %31 = vector.load %arg15[%c0_47, %c1_48, %c0_49, %c0_50] : memref<2x18x18x8xf32, #tpu.memory_space<vmem>>, vector<2x16x16x8xf32>
    %32 = vector.shape_cast %31 : vector<2x16x16x8xf32> to vector<512x8xf32>
    %c0_51 = arith.constant 0 : index
    %c24 = arith.constant 24 : index
    %33 = vector.load %arg16[%c0_51, %c24] : memref<512x72xf32, #tpu.memory_space<vmem>>, vector<512x8xf32>
    tpu.vector_store %arg16[%c0_51, %c24], %32 {strides = array<i32>} : memref<512x72xf32, #tpu.memory_space<vmem>>, vector<512x8xf32>,
    %c0_52 = arith.constant 0 : index
    %c1_53 = arith.constant 1 : index
    %c1_54 = arith.constant 1 : index
    %c0_55 = arith.constant 0 : index
    %34 = vector.load %arg15[%c0_52, %c1_53, %c1_54, %c0_55] : memref<2x18x18x8xf32, #tpu.memory_space<vmem>>, vector<2x16x16x8xf32>
    %35 = vector.shape_cast %34 : vector<2x16x16x8xf32> to vector<512x8xf32>
    %c0_56 = arith.constant 0 : index
    %c32 = arith.constant 32 : index
    %36 = vector.load %arg16[%c0_56, %c32] : memref<512x72xf32, #tpu.memory_space<vmem>>, vector<512x8xf32>
    tpu.vector_store %arg16[%c0_56, %c32], %35 {strides = array<i32>} : memref<512x72xf32, #tpu.memory_space<vmem>>, vector<512x8xf32>,
    %c0_57 = arith.constant 0 : index
    %c1_58 = arith.constant 1 : index
    %c2_59 = arith.constant 2 : index
    %c0_60 = arith.constant 0 : index
    %37 = vector.load %arg15[%c0_57, %c1_58, %c2_59, %c0_60] : memref<2x18x18x8xf32, #tpu.memory_space<vmem>>, vector<2x16x16x8xf32>
    %38 = vector.shape_cast %37 : vector<2x16x16x8xf32> to vector<512x8xf32>
    %c0_61 = arith.constant 0 : index
    %c40 = arith.constant 40 : index
    %39 = vector.load %arg16[%c0_61, %c40] : memref<512x72xf32, #tpu.memory_space<vmem>>, vector<512x8xf32>
    tpu.vector_store %arg16[%c0_61, %c40], %38 {strides = array<i32>} : memref<512x72xf32, #tpu.memory_space<vmem>>, vector<512x8xf32>,
    %c0_62 = arith.constant 0 : index
    %c2_63 = arith.constant 2 : index
    %c0_64 = arith.constant 0 : index
    %c0_65 = arith.constant 0 : index
    %40 = vector.load %arg15[%c0_62, %c2_63, %c0_64, %c0_65] : memref<2x18x18x8xf32, #tpu.memory_space<vmem>>, vector<2x16x16x8xf32>
    %41 = vector.shape_cast %40 : vector<2x16x16x8xf32> to vector<512x8xf32>
    %c0_66 = arith.constant 0 : index
    %c48 = arith.constant 48 : index
    %42 = vector.load %arg16[%c0_66, %c48] : memref<512x72xf32, #tpu.memory_space<vmem>>, vector<512x8xf32>
    tpu.vector_store %arg16[%c0_66, %c48], %41 {strides = array<i32>} : memref<512x72xf32, #tpu.memory_space<vmem>>, vector<512x8xf32>,
    %c0_67 = arith.constant 0 : index
    %c2_68 = arith.constant 2 : index
    %c1_69 = arith.constant 1 : index
    %c0_70 = arith.constant 0 : index
    %43 = vector.load %arg15[%c0_67, %c2_68, %c1_69, %c0_70] : memref<2x18x18x8xf32, #tpu.memory_space<vmem>>, vector<2x16x16x8xf32>
    %44 = vector.shape_cast %43 : vector<2x16x16x8xf32> to vector<512x8xf32>
    %c0_71 = arith.constant 0 : index
    %c56 = arith.constant 56 : index
    %45 = vector.load %arg16[%c0_71, %c56] : memref<512x72xf32, #tpu.memory_space<vmem>>, vector<512x8xf32>
    tpu.vector_store %arg16[%c0_71, %c56], %44 {strides = array<i32>} : memref<512x72xf32, #tpu.memory_space<vmem>>, vector<512x8xf32>,
    %c0_72 = arith.constant 0 : index
    %c2_73 = arith.constant 2 : index
    %c2_74 = arith.constant 2 : index
    %c0_75 = arith.constant 0 : index
    %46 = vector.load %arg15[%c0_72, %c2_73, %c2_74, %c0_75] : memref<2x18x18x8xf32, #tpu.memory_space<vmem>>, vector<2x16x16x8xf32>
    %47 = vector.shape_cast %46 : vector<2x16x16x8xf32> to vector<512x8xf32>
    %c0_76 = arith.constant 0 : index
    %c64 = arith.constant 64 : index
    %48 = vector.load %arg16[%c0_76, %c64] : memref<512x72xf32, #tpu.memory_space<vmem>>, vector<512x8xf32>
    tpu.vector_store %arg16[%c0_76, %c64], %47 {strides = array<i32>} : memref<512x72xf32, #tpu.memory_space<vmem>>, vector<512x8xf32>,
    %c0_77 = arith.constant 0 : index
    %c0_78 = arith.constant 0 : index
    %49 = vector.load %arg16[%c0_77, %c0_78] : memref<512x72xf32, #tpu.memory_space<vmem>>, vector<512x72xf32>
    %c0_79 = arith.constant 0 : index
    %c0_80 = arith.constant 0 : index
    %50 = vector.load %arg5[%c0_79, %c0_80] : memref<72x8xf32, #tpu.memory_space<vmem>>, vector<72x8xf32>
    %cst_81 = arith.constant dense<0.000000e+00> : vector<512x8xf32>
    %51 = tpu.matmul %49, %50, %cst_81 {dimension_numbers = #tpu.dot_dimension_numbers<[1], [0], [0], [1], [0, 0, 1, 1], [], []>} : vector<512x72xf32>, vector<72x8xf32>, vector<512x8xf32> -> vector<512x8xf32>
    %c0_82 = arith.constant 0 : index
    %c0_83 = arith.constant 0 : index
    %52 = vector.load %arg6[%c0_82, %c0_83] : memref<1x8xf32, #tpu.memory_space<vmem>>, vector<1x8xf32>
    %53 = vector.broadcast %52 : vector<1x8xf32> to vector<512x8xf32>
    %54 = arith.mulf %51, %53 : vector<512x8xf32>
    %c0_84 = arith.constant 0 : index
    %c0_85 = arith.constant 0 : index
    %55 = vector.load %arg7[%c0_84, %c0_85] : memref<1x8xf32, #tpu.memory_space<vmem>>, vector<1x8xf32>
    %56 = vector.broadcast %55 : vector<1x8xf32> to vector<512x8xf32>
    %57 = arith.addf %54, %56 : vector<512x8xf32>
    %cst_86 = arith.constant 0.000000e+00 : f32
    %58 = vector.broadcast %cst_86 : f32 to vector<512x8xf32>
    %59 = arith.maximumf %57, %58 : vector<512x8xf32>
    %c0_87 = arith.constant 0 : index
    %c0_88 = arith.constant 0 : index
    %60 = vector.load %arg8[%c0_87, %c0_88] : memref<8x32xf32, #tpu.memory_space<vmem>>, vector<8x32xf32>
    %cst_89 = arith.constant dense<0.000000e+00> : vector<512x32xf32>
    %61 = tpu.matmul %59, %60, %cst_89 {dimension_numbers = #tpu.dot_dimension_numbers<[1], [0], [0], [1], [0, 0, 1, 1], [], []>} : vector<512x8xf32>, vector<8x32xf32>, vector<512x32xf32> -> vector<512x32xf32>
    %c0_90 = arith.constant 0 : index
    %c0_91 = arith.constant 0 : index
    %62 = vector.load %arg9[%c0_90, %c0_91] : memref<1x32xf32, #tpu.memory_space<vmem>>, vector<1x32xf32>
    %63 = vector.broadcast %62 : vector<1x32xf32> to vector<512x32xf32>
    %64 = arith.mulf %61, %63 : vector<512x32xf32>
    %c0_92 = arith.constant 0 : index
    %c0_93 = arith.constant 0 : index
    %65 = vector.load %arg10[%c0_92, %c0_93] : memref<1x32xf32, #tpu.memory_space<vmem>>, vector<1x32xf32>
    %66 = vector.broadcast %65 : vector<1x32xf32> to vector<512x32xf32>
    %67 = arith.addf %64, %66 : vector<512x32xf32>
    %c0_94 = arith.constant 0 : index
    %c0_95 = arith.constant 0 : index
    %68 = vector.load %arg11[%c0_94, %c0_95] : memref<8x32xf32, #tpu.memory_space<vmem>>, vector<8x32xf32>
    %cst_96 = arith.constant dense<0.000000e+00> : vector<512x32xf32>
    %69 = tpu.matmul %1, %68, %cst_96 {dimension_numbers = #tpu.dot_dimension_numbers<[1], [0], [0], [1], [0, 0, 1, 1], [], []>} : vector<512x8xf32>, vector<8x32xf32>, vector<512x32xf32> -> vector<512x32xf32>
    %c0_97 = arith.constant 0 : index
    %c0_98 = arith.constant 0 : index
    %70 = vector.load %arg12[%c0_97, %c0_98] : memref<1x32xf32, #tpu.memory_space<vmem>>, vector<1x32xf32>
    %71 = vector.broadcast %70 : vector<1x32xf32> to vector<512x32xf32>
    %72 = arith.mulf %69, %71 : vector<512x32xf32>
    %c0_99 = arith.constant 0 : index
    %c0_100 = arith.constant 0 : index
    %73 = vector.load %arg13[%c0_99, %c0_100] : memref<1x32xf32, #tpu.memory_space<vmem>>, vector<1x32xf32>
    %74 = vector.broadcast %73 : vector<1x32xf32> to vector<512x32xf32>
    %75 = arith.addf %72, %74 : vector<512x32xf32>
    %76 = arith.addf %67, %75 : vector<512x32xf32>
    %cst_101 = arith.constant 0.000000e+00 : f32
    %77 = vector.broadcast %cst_101 : f32 to vector<512x32xf32>
    %78 = arith.maximumf %76, %77 : vector<512x32xf32>
    %c0_102 = arith.constant 0 : index
    %c0_103 = arith.constant 0 : index
    %79 = vector.load %arg14[%c0_102, %c0_103] : memref<512x32xf32, #tpu.memory_space<vmem>>, vector<512x32xf32>
    tpu.vector_store %arg14[%c0_102, %c0_103], %78 {strides = array<i32>} : memref<512x32xf32, #tpu.memory_space<vmem>>, vector<512x32xf32>,
    return
  }
  func.func @transform_0(%arg0: i32) -> (i32, i32, i32, i32) {
    %c0_i32 = arith.constant 0 : i32
    %c0_i32_0 = arith.constant 0 : i32
    %c0_i32_1 = arith.constant 0 : i32
    %c0_i32_2 = arith.constant 0 : i32
    return %arg0, %c0_i32, %c0_i32_0, %c0_i32_1 : i32, i32, i32, i32
  }
  func.func @transform_1(%arg0: i32) -> (i32, i32) {
    %c0_i32 = arith.constant 0 : i32
    %c0_i32_0 = arith.constant 0 : i32
    %c0_i32_1 = arith.constant 0 : i32
    return %c0_i32, %c0_i32_0 : i32, i32
  }
  func.func @transform_2(%arg0: i32) -> (i32, i32) {
    %c0_i32 = arith.constant 0 : i32
    %c0_i32_0 = arith.constant 0 : i32
    %c0_i32_1 = arith.constant 0 : i32
    return %c0_i32, %c0_i32_0 : i32, i32
  }
  func.func @transform_3(%arg0: i32) -> (i32, i32) {
    %c0_i32 = arith.constant 0 : i32
    %c0_i32_0 = arith.constant 0 : i32
    %c0_i32_1 = arith.constant 0 : i32
    return %c0_i32, %c0_i32_0 : i32, i32
  }
  func.func @transform_4(%arg0: i32) -> (i32, i32) {
    %c0_i32 = arith.constant 0 : i32
    %c0_i32_0 = arith.constant 0 : i32
    %c0_i32_1 = arith.constant 0 : i32
    return %c0_i32, %c0_i32_0 : i32, i32
  }
  func.func @transform_5(%arg0: i32) -> (i32, i32) {
    %c0_i32 = arith.constant 0 : i32
    %c0_i32_0 = arith.constant 0 : i32
    %c0_i32_1 = arith.constant 0 : i32
    return %c0_i32, %c0_i32_0 : i32, i32
  }
  func.func @transform_6(%arg0: i32) -> (i32, i32) {
    %c0_i32 = arith.constant 0 : i32
    %c0_i32_0 = arith.constant 0 : i32
    %c0_i32_1 = arith.constant 0 : i32
    return %c0_i32, %c0_i32_0 : i32, i32
  }
  func.func @transform_7(%arg0: i32) -> (i32, i32) {
    %c0_i32 = arith.constant 0 : i32
    %c0_i32_0 = arith.constant 0 : i32
    %c0_i32_1 = arith.constant 0 : i32
    return %c0_i32, %c0_i32_0 : i32, i32
  }
  func.func @transform_8(%arg0: i32) -> (i32, i32) {
    %c0_i32 = arith.constant 0 : i32
    %c0_i32_0 = arith.constant 0 : i32
    %c0_i32_1 = arith.constant 0 : i32
    return %c0_i32, %c0_i32_0 : i32, i32
  }
  func.func @transform_9(%arg0: i32) -> (i32, i32) {
    %c0_i32 = arith.constant 0 : i32
    %c0_i32_0 = arith.constant 0 : i32
    %c0_i32_1 = arith.constant 0 : i32
    return %c0_i32, %c0_i32_0 : i32, i32
  }
  func.func @transform_10(%arg0: i32) -> (i32, i32) {
    %c0_i32 = arith.constant 0 : i32
    %c0_i32_0 = arith.constant 0 : i32
    %c0_i32_1 = arith.constant 0 : i32
    return %c0_i32, %c0_i32_0 : i32, i32
  }
  func.func @transform_11(%arg0: i32) -> (i32, i32) {
    %c0_i32 = arith.constant 0 : i32
    %c0_i32_0 = arith.constant 0 : i32
    %c0_i32_1 = arith.constant 0 : i32
    return %c0_i32, %c0_i32_0 : i32, i32
  }
  func.func @transform_12(%arg0: i32) -> (i32, i32) {
    %c0_i32 = arith.constant 0 : i32
    %c0_i32_0 = arith.constant 0 : i32
    %c0_i32_1 = arith.constant 0 : i32
    return %c0_i32, %c0_i32_0 : i32, i32
  }
  func.func @transform_13(%arg0: i32) -> (i32, i32) {
    %c0_i32 = arith.constant 0 : i32
    %c0_i32_0 = arith.constant 0 : i32
    return %arg0, %c0_i32 : i32, i32
  }
}

</mosaic_0001>

<llo_original>
// kernel: tpu_custom_call.1
$region0: #{tpu_custom_call.1}
  #allocation0 [shape = 'u32[]', space=smem, size = 0x4, offset = 0x4, fixed_abs, tag = 'smem constant byte address 0x4 - core index']
  #allocation1 [shape = 'u32[144,128]{1,0:T(1,128)}', space=vmem, size = 0x12000, scoped, tag = 'internal scratch']
  #allocation2 [shape = 'f32[2,18,18,8]{3,2,1,0:T(8,128)}', space=vmem, size = 0x6c000, scoped, tag = 'scratch operand']
  #allocation3 [shape = 'f32[512,72]{1,0:T(8,128)}', space=vmem, size = 0x40000, scoped, tag = 'scratch operand']
  %s0 = inlined_call_operand.vmem [shape: f32[2,16,16,8], index: 0, kind: input, shape index: {}]
  %s1 = inlined_call_operand.vmem [shape: f32[8,8], index: 1, kind: input, shape index: {}]
  %s2 = inlined_call_operand.vmem [shape: f32[1,8], index: 2, kind: input, shape index: {}]
  %s3 = inlined_call_operand.vmem [shape: f32[1,8], index: 3, kind: input, shape index: {}]
  %s4 = inlined_call_operand.vmem [shape: f32[72,8], index: 4, kind: input, shape index: {}]
  %s5 = inlined_call_operand.vmem [shape: f32[1,8], index: 5, kind: input, shape index: {}]
  %s6 = inlined_call_operand.vmem [shape: f32[1,8], index: 6, kind: input, shape index: {}]
  %s7 = inlined_call_operand.vmem [shape: f32[8,32], index: 7, kind: input, shape index: {}]
  %s8 = inlined_call_operand.vmem [shape: f32[1,32], index: 8, kind: input, shape index: {}]
  %s9 = inlined_call_operand.vmem [shape: f32[1,32], index: 9, kind: input, shape index: {}]
  %s10 = inlined_call_operand.vmem [shape: f32[8,32], index: 10, kind: input, shape index: {}]
  %s11 = inlined_call_operand.vmem [shape: f32[1,32], index: 11, kind: input, shape index: {}]
  %s12 = inlined_call_operand.vmem [shape: f32[1,32], index: 12, kind: input, shape index: {}]
  %s13 = inlined_call_operand.vmem [shape: f32[512,32], index: 13, kind: output, shape index: {}]
  %s14 = sld [smem:[#allocation0]]
  $region62: #{tpu_custom_call.1} parent=0
    _
  %s16 = ssub.s32 1, %s14
  %s17 = scalar_select 0, %s16, %s14
  // Predicated region
  $region2: #{tpu_custom_call.1} parent=0 // pred_check
    _
  $region3: #{tpu_custom_call.1} parent=0 // pred_check_branch
    %19 = sbr.rel (0) target = $region5
  $region4: #{tpu_custom_call.1} parent=0 // pred_region
    _
  $region5: #{tpu_custom_call.1} parent=0 // pred_fallthru
    _
  // Predicated region
  $region6: #{tpu_custom_call.1} parent=0 // pred_check
    _
  $region7: #{tpu_custom_call.1} parent=0 // pred_check_branch
    %21 = sbr.rel (0) target = $region9
  $region8: #{tpu_custom_call.1} parent=0 // pred_region
    _
  $region9: #{tpu_custom_call.1} parent=0 // pred_fallthru
    _
  // Predicated region
  $region10: #{tpu_custom_call.1} parent=0 // pred_check
    _
  $region11: #{tpu_custom_call.1} parent=0 // pred_check_branch
    %23 = sbr.rel (0) target = $region13
  $region12: #{tpu_custom_call.1} parent=0 // pred_region
    _
  $region13: #{tpu_custom_call.1} parent=0 // pred_fallthru
    _
  // Predicated region
  $region14: #{tpu_custom_call.1} parent=0 // pred_check
    _
  $region15: #{tpu_custom_call.1} parent=0 // pred_check_branch
    %25 = sbr.rel (0) target = $region17
  $region16: #{tpu_custom_call.1} parent=0 // pred_region
    _
  $region17: #{tpu_custom_call.1} parent=0 // pred_fallthru
    _
  // Predicated region
  $region18: #{tpu_custom_call.1} parent=0 // pred_check
    _
  $region19: #{tpu_custom_call.1} parent=0 // pred_check_branch
    %27 = sbr.rel (0) target = $region21
  $region20: #{tpu_custom_call.1} parent=0 // pred_region
    _
  $region21: #{tpu_custom_call.1} parent=0 // pred_fallthru
    _
  // Predicated region
  $region22: #{tpu_custom_call.1} parent=0 // pred_check
    _
  $region23: #{tpu_custom_call.1} parent=0 // pred_check_branch
    %29 = sbr.rel (0) target = $region25
  $region24: #{tpu_custom_call.1} parent=0 // pred_region
    _
  $region25: #{tpu_custom_call.1} parent=0 // pred_fallthru
    _
  // Predicated region
  $region26: #{tpu_custom_call.1} parent=0 // pred_check
    _
  $region27: #{tpu_custom_call.1} parent=0 // pred_check_branch
    %31 = sbr.rel (0) target = $region29
  $region28: #{tpu_custom_call.1} parent=0 // pred_region
    _
  $region29: #{tpu_custom_call.1} parent=0 // pred_fallthru
    _
  // Predicated region
  $region30: #{tpu_custom_call.1} parent=0 // pred_check
    _
  $region31: #{tpu_custom_call.1} parent=0 // pred_check_branch
    %33 = sbr.rel (0) target = $region33
  $region32: #{tpu_custom_call.1} parent=0 // pred_region
    _
  $region33: #{tpu_custom_call.1} parent=0 // pred_fallthru
    _
  // Predicated region
  $region34: #{tpu_custom_call.1} parent=0 // pred_check
    _
  $region35: #{tpu_custom_call.1} parent=0 // pred_check_branch
    %35 = sbr.rel (0) target = $region37
  $region36: #{tpu_custom_call.1} parent=0 // pred_region
    _
  $region37: #{tpu_custom_call.1} parent=0 // pred_fallthru
    _
  // Predicated region
  $region38: #{tpu_custom_call.1} parent=0 // pred_check
    _
  $region39: #{tpu_custom_call.1} parent=0 // pred_check_branch
    %37 = sbr.rel (0) target = $region41
  $region40: #{tpu_custom_call.1} parent=0 // pred_region
    _
  $region41: #{tpu_custom_call.1} parent=0 // pred_fallthru
    _
  // Predicated region
  $region42: #{tpu_custom_call.1} parent=0 // pred_check
    _
  $region43: #{tpu_custom_call.1} parent=0 // pred_check_branch
    %39 = sbr.rel (0) target = $region45
  $region44: #{tpu_custom_call.1} parent=0 // pred_region
    _
  $region45: #{tpu_custom_call.1} parent=0 // pred_fallthru
    _
  // Predicated region
  $region46: #{tpu_custom_call.1} parent=0 // pred_check
    _
  $region47: #{tpu_custom_call.1} parent=0 // pred_check_branch
    %41 = sbr.rel (0) target = $region49
  $region48: #{tpu_custom_call.1} parent=0 // pred_region
    _
  $region49: #{tpu_custom_call.1} parent=0 // pred_fallthru
    _
  // Predicated region
  $region50: #{tpu_custom_call.1} parent=0 // pred_check
    _
  $region51: #{tpu_custom_call.1} parent=0 // pred_check_branch
    %43 = sbr.rel (0) target = $region53
  $region52: #{tpu_custom_call.1} parent=0 // pred_region
    _
  $region53: #{tpu_custom_call.1} parent=0 // pred_fallthru
    _
  %v44 = vld [vmem:[%s0] sm:$0xff]
  %v45 = vld [vmem:[%s0 + $0x8] sm:$0xff]
  %v46 = vld [vmem:[%s0 + $0x10] sm:$0xff]
  %v47 = vld [vmem:[%s0 + $0x18] sm:$0xff]
  %v48 = vld [vmem:[%s0 + $0x20] sm:$0xff]
  %v49 = vld [vmem:[%s0 + $0x28] sm:$0xff]
  %v50 = vld [vmem:[%s0 + $0x30] sm:$0xff]
  %v51 = vld [vmem:[%s0 + $0x38] sm:$0xff]
  %v52 = vld [vmem:[%s0 + $0x40] sm:$0xff]
  %v53 = vld [vmem:[%s0 + $0x48] sm:$0xff]
  %v54 = vld [vmem:[%s0 + $0x50] sm:$0xff]
  %v55 = vld [vmem:[%s0 + $0x58] sm:$0xff]
  %v56 = vld [vmem:[%s0 + $0x60] sm:$0xff]
  %v57 = vld [vmem:[%s0 + $0x68] sm:$0xff]
  %v58 = vld [vmem:[%s0 + $0x70] sm:$0xff]
  %v59 = vld [vmem:[%s0 + $0x78] sm:$0xff]
  %v60 = vld [vmem:[%s0 + $0x80] sm:$0xff]
  %v61 = vld [vmem:[%s0 + $0x88] sm:$0xff]
  %v62 = vld [vmem:[%s0 + $0x90] sm:$0xff]
  %v63 = vld [vmem:[%s0 + $0x98] sm:$0xff]
  %v64 = vld [vmem:[%s0 + $0xa0] sm:$0xff]
  %v65 = vld [vmem:[%s0 + $0xa8] sm:$0xff]
  %v66 = vld [vmem:[%s0 + $0xb0] sm:$0xff]
  %v67 = vld [vmem:[%s0 + $0xb8] sm:$0xff]
  %v68 = vld [vmem:[%s0 + $0xc0] sm:$0xff]
  %v69 = vld [vmem:[%s0 + $0xc8] sm:$0xff]
  %v70 = vld [vmem:[%s0 + $0xd0] sm:$0xff]
  %v71 = vld [vmem:[%s0 + $0xd8] sm:$0xff]
  %v72 = vld [vmem:[%s0 + $0xe0] sm:$0xff]
  %v73 = vld [vmem:[%s0 + $0xe8] sm:$0xff]
  %v74 = vld [vmem:[%s0 + $0xf0] sm:$0xff]
  %v75 = vld [vmem:[%s0 + $0xf8] sm:$0xff]
  %v76 = vld [vmem:[%s0 + $0x100] sm:$0xff]
  %v77 = vld [vmem:[%s0 + $0x108] sm:$0xff]
  %v78 = vld [vmem:[%s0 + $0x110] sm:$0xff]
  %v79 = vld [vmem:[%s0 + $0x118] sm:$0xff]
  %v80 = vld [vmem:[%s0 + $0x120] sm:$0xff]
  %v81 = vld [vmem:[%s0 + $0x128] sm:$0xff]
  %v82 = vld [vmem:[%s0 + $0x130] sm:$0xff]
  %v83 = vld [vmem:[%s0 + $0x138] sm:$0xff]
  %v84 = vld [vmem:[%s0 + $0x140] sm:$0xff]
  %v85 = vld [vmem:[%s0 + $0x148] sm:$0xff]
  %v86 = vld [vmem:[%s0 + $0x150] sm:$0xff]
  %v87 = vld [vmem:[%s0 + $0x158] sm:$0xff]
  %v88 = vld [vmem:[%s0 + $0x160] sm:$0xff]
  %v89 = vld [vmem:[%s0 + $0x168] sm:$0xff]
  %v90 = vld [vmem:[%s0 + $0x170] sm:$0xff]
  %v91 = vld [vmem:[%s0 + $0x178] sm:$0xff]
  %v92 = vld [vmem:[%s0 + $0x180] sm:$0xff]
  %v93 = vld [vmem:[%s0 + $0x188] sm:$0xff]
  %v94 = vld [vmem:[%s0 + $0x190] sm:$0xff]
  %v95 = vld [vmem:[%s0 + $0x198] sm:$0xff]
  %v96 = vld [vmem:[%s0 + $0x1a0] sm:$0xff]
  %v97 = vld [vmem:[%s0 + $0x1a8] sm:$0xff]
  %v98 = vld [vmem:[%s0 + $0x1b0] sm:$0xff]
  %v99 = vld [vmem:[%s0 + $0x1b8] sm:$0xff]
  %v100 = vld [vmem:[%s0 + $0x1c0] sm:$0xff]
  %v101 = vld [vmem:[%s0 + $0x1c8] sm:$0xff]
  %v102 = vld [vmem:[%s0 + $0x1d0] sm:$0xff]
  %v103 = vld [vmem:[%s0 + $0x1d8] sm:$0xff]
  %v104 = vld [vmem:[%s0 + $0x1e0] sm:$0xff]
  %v105 = vld [vmem:[%s0 + $0x1e8] sm:$0xff]
  %v106 = vld [vmem:[%s0 + $0x1f0] sm:$0xff]
  %v107 = vld [vmem:[%s0 + $0x1f8] sm:$0xff]
  %v108 = vld [vmem:[%s1] sm:$0xff]
  %vm109 = vcmask 64512
  %v111 = vsel %vm109, %v44, 0
  %v114 = vsel %vm109, %v45, 0
  %v117 = vsel %vm109, %v46, 0
  %v120 = vsel %vm109, %v47, 0
  %v123 = vsel %vm109, %v48, 0
  %v126 = vsel %vm109, %v49, 0
  %v129 = vsel %vm109, %v50, 0
  %v132 = vsel %vm109, %v51, 0
  %v135 = vsel %vm109, %v52, 0
  %v138 = vsel %vm109, %v53, 0
  %v141 = vsel %vm109, %v54, 0
  %v144 = vsel %vm109, %v55, 0
  %v147 = vsel %vm109, %v56, 0
  %v150 = vsel %vm109, %v57, 0
  %v153 = vsel %vm109, %v58, 0
  %v156 = vsel %vm109, %v59, 0
  %v159 = vsel %vm109, %v60, 0
  %v162 = vsel %vm109, %v61, 0
  %v165 = vsel %vm109, %v62, 0
  %v168 = vsel %vm109, %v63, 0
  %v171 = vsel %vm109, %v64, 0
  %v174 = vsel %vm109, %v65, 0
  %v177 = vsel %vm109, %v66, 0
  %v180 = vsel %vm109, %v67, 0
  %v183 = vsel %vm109, %v68, 0
  %v186 = vsel %vm109, %v69, 0
  %v189 = vsel %vm109, %v70, 0
  %v192 = vsel %vm109, %v71, 0
  %v195 = vsel %vm109, %v72, 0
  %v198 = vsel %vm109, %v73, 0
  %v201 = vsel %vm109, %v74, 0
  %v204 = vsel %vm109, %v75, 0
  %v207 = vsel %vm109, %v76, 0
  %v210 = vsel %vm109, %v77, 0
  %v213 = vsel %vm109, %v78, 0
  %v216 = vsel %vm109, %v79, 0
  %v219 = vsel %vm109, %v80, 0
  %v222 = vsel %vm109, %v81, 0
  %v225 = vsel %vm109, %v82, 0
  %v228 = vsel %vm109, %v83, 0
  %v231 = vsel %vm109, %v84, 0
  %v234 = vsel %vm109, %v85, 0
  %v237 = vsel %vm109, %v86, 0
  %v240 = vsel %vm109, %v87, 0
  %v243 = vsel %vm109, %v88, 0
  %v246 = vsel %vm109, %v89, 0
  %v249 = vsel %vm109, %v90, 0
  %v252 = vsel %vm109, %v91, 0
  %v255 = vsel %vm109, %v92, 0
  %v258 = vsel %vm109, %v93, 0
  %v261 = vsel %vm109, %v94, 0
  %v264 = vsel %vm109, %v95, 0
  %v267 = vsel %vm109, %v96, 0
  %v270 = vsel %vm109, %v97, 0
  %v273 = vsel %vm109, %v98, 0
  %v276 = vsel %vm109, %v99, 0
  %v279 = vsel %vm109, %v100, 0
  %v282 = vsel %vm109, %v101, 0
  %v285 = vsel %vm109, %v102, 0
  %v288 = vsel %vm109, %v103, 0
  %v291 = vsel %vm109, %v104, 0
  %v294 = vsel %vm109, %v105, 0
  %v297 = vsel %vm109, %v106, 0
  %v300 = vsel %vm109, %v107, 0
  %302 = vmatprep.subr.mxu0 0.0
  %303 = vmatpush1.msra.mxu0 %v108
  %304 = vmatprep.subr.mxu0 0.0
  %305 = vmatpush1.msra.mxu0 0.0
  %306 = vmatprep.subr.mxu0 0.0
  %307 = vmatpush1.msra.mxu0 0.0
  %308 = vmatprep.subr.mxu0 0.0
  %309 = vmatpush1.msra.mxu0 0.0
  %310 = vmatprep.subr.mxu0 0.0
  %311 = vmatpush1.msra.mxu0 0.0
  %312 = vmatprep.subr.mxu0 0.0
  %313 = vmatpush1.msra.mxu0 0.0
  %314 = vmatprep.subr.mxu0 0.0
  %315 = vmatpush1.msra.mxu0 0.0
  %316 = vmatprep.subr.mxu0 0.0
  %317 = vmatpush1.msra.mxu0 0.0
  %318 = vmatprep.subr.mxu0 0.0
  %319 = vmatpush1.msra.mxu0 0.0
  %320 = vmatprep.subr.mxu0 0.0
  %321 = vmatpush1.msra.mxu0 0.0
  %322 = vmatprep.subr.mxu0 0.0
  %323 = vmatpush1.msra.mxu0 0.0
  %324 = vmatprep.subr.mxu0 0.0
  %325 = vmatpush1.msra.mxu0 0.0
  %326 = vmatprep.subr.mxu0 0.0
  %327 = vmatpush1.msra.mxu0 0.0
  %328 = vmatprep.subr.mxu0 0.0
  %329 = vmatpush1.msra.mxu0 0.0
  %330 = vmatprep.subr.mxu0 0.0
  %331 = vmatpush1.msra.mxu0 0.0
  %332 = vmatprep.subr.mxu0 0.0
  %333 = vmatpush1.msra.mxu0 0.0
  %334 = vmatprep.subr.mxu0 0.0
  %335 = vmatpush1.msra.mxu0 0.0
  %336 = vmatprep.subr.mxu0 0.0
  %337 = vmatpush1.msra.mxu0 0.0
  %338 = vmatprep.subr.mxu0 0.0
  %339 = vmatpush1.msra.mxu0 0.0
  %340 = vmatprep.subr.mxu0 0.0
  %341 = vmatpush1.msra.mxu0 0.0
  %342 = vmatprep.subr.mxu0 0.0
  %343 = vmatpush1.msra.mxu0 0.0
  %344 = vmatprep.subr.mxu0 0.0
  %345 = vmatpush1.msra.mxu0 0.0
  %346 = vmatprep.subr.mxu0 0.0
  %347 = vmatpush1.msra.mxu0 0.0
  %348 = vmatprep.subr.mxu0 0.0
  %349 = vmatpush1.msra.mxu0 0.0
  %350 = vmatprep.subr.mxu0 0.0
  %351 = vmatpush1.msra.mxu0 0.0
  %352 = vmatprep.subr.mxu0 0.0
  %353 = vmatpush1.msra.mxu0 0.0
  %354 = vmatprep.subr.mxu0 0.0
  %355 = vmatpush1.msra.mxu0 0.0
  %356 = vmatprep.subr.mxu0 0.0
  %357 = vmatpush1.msra.mxu0 0.0
  %358 = vmatprep.subr.mxu0 0.0
  %359 = vmatpush1.msra.mxu0 0.0
  %360 = vmatprep.subr.mxu0 0.0
  %361 = vmatpush1.msra.mxu0 0.0
  %362 = vmatprep.subr.mxu0 0.0
  %363 = vmatpush1.msra.mxu0 0.0
  %364 = vmatprep.subr.mxu0 0.0
  %365 = vmatpush1.msra.mxu0 0.0
  %366 = vmatprep.mubr.f32.mxu0 0.0
  %367 = vmatmul.mubr.f32.gmra.mrb[0].mxu0 %v111
  %v368 = vpop.f32.mrb[0].mxu0
  %v369 = vadd.f32 0.0, %v368
  %v370 = vpop.f32.mrb[0].mxu0
  %371 = vmatprep.mubr.f32.mxu0 0.0
  %372 = vmatmul.mubr.f32.gmra.mrb[0].mxu0 %v114
  %v373 = vpop.f32.mrb[0].mxu0
  %v374 = vadd.f32 0.0, %v373
  %v375 = vpop.f32.mrb[0].mxu0
  %376 = vmatprep.mubr.f32.mxu0 0.0
  %377 = vmatmul.mubr.f32.gmra.mrb[0].mxu0 %v117
  %v378 = vpop.f32.mrb[0].mxu0
  %v379 = vadd.f32 0.0, %v378
  %v380 = vpop.f32.mrb[0].mxu0
  %381 = vmatprep.mubr.f32.mxu0 0.0
  %382 = vmatmul.mubr.f32.gmra.mrb[0].mxu0 %v120
  %v383 = vpop.f32.mrb[0].mxu0
  %v384 = vadd.f32 0.0, %v383
  %v385 = vpop.f32.mrb[0].mxu0
  %386 = vmatprep.mubr.f32.mxu0 0.0
  %387 = vmatmul.mubr.f32.gmra.mrb[0].mxu0 %v123
  %v388 = vpop.f32.mrb[0].mxu0
  %v389 = vadd.f32 0.0, %v388
  %v390 = vpop.f32.mrb[0].mxu0
  %391 = vmatprep.mubr.f32.mxu0 0.0
  %392 = vmatmul.mubr.f32.gmra.mrb[0].mxu0 %v126
  %v393 = vpop.f32.mrb[0].mxu0
  %v394 = vadd.f32 0.0, %v393
  %v395 = vpop.f32.mrb[0].mxu0
  %396 = vmatprep.mubr.f32.mxu0 0.0
  %397 = vmatmul.mubr.f32.gmra.mrb[0].mxu0 %v129
  %v398 = vpop.f32.mrb[0].mxu0
  %v399 = vadd.f32 0.0, %v398
  %v400 = vpop.f32.mrb[0].mxu0
  %401 = vmatprep.mubr.f32.mxu0 0.0
  %402 = vmatmul.mubr.f32.gmra.mrb[0].mxu0 %v132
  %v403 = vpop.f32.mrb[0].mxu0
  %v404 = vadd.f32 0.0, %v403
  %v405 = vpop.f32.mrb[0].mxu0
  %406 = vmatprep.mubr.f32.mxu0 0.0
  %407 = vmatmul.mubr.f32.gmra.mrb[0].mxu0 %v135
  %v408 = vpop.f32.mrb[0].mxu0
  %v409 = vadd.f32 0.0, %v408
  %v410 = vpop.f32.mrb[0].mxu0
  %411 = vmatprep.mubr.f32.mxu0 0.0
  %412 = vmatmul.mubr.f32.gmra.mrb[0].mxu0 %v138
  %v413 = vpop.f32.mrb[0].mxu0
  %v414 = vadd.f32 0.0, %v413
  %v415 = vpop.f32.mrb[0].mxu0
  %416 = vmatprep.mubr.f32.mxu0 0.0
  %417 = vmatmul.mubr.f32.gmra.mrb[0].mxu0 %v141
  %v418 = vpop.f32.mrb[0].mxu0
  %v419 = vadd.f32 0.0, %v418
  %v420 = vpop.f32.mrb[0].mxu0
  %421 = vmatprep.mubr.f32.mxu0 0.0
  %422 = vmatmul.mubr.f32.gmra.mrb[0].mxu0 %v144
  %v423 = vpop.f32.mrb[0].mxu0
  %v424 = vadd.f32 0.0, %v423
  %v425 = vpop.f32.mrb[0].mxu0
  %426 = vmatprep.mubr.f32.mxu0 0.0
  %427 = vmatmul.mubr.f32.gmra.mrb[0].mxu0 %v147
  %v428 = vpop.f32.mrb[0].mxu0
  %v429 = vadd.f32 0.0, %v428
  %v430 = vpop.f32.mrb[0].mxu0
  %431 = vmatprep.mubr.f32.mxu0 0.0
  %432 = vmatmul.mubr.f32.gmra.mrb[0].mxu0 %v150
  %v433 = vpop.f32.mrb[0].mxu0
  %v434 = vadd.f32 0.0, %v433
  %v435 = vpop.f32.mrb[0].mxu0
  %436 = vmatprep.mubr.f32.mxu0 0.0
  %437 = vmatmul.mubr.f32.gmra.mrb[0].mxu0 %v153
  %v438 = vpop.f32.mrb[0].mxu0
  %v439 = vadd.f32 0.0, %v438
  %v440 = vpop.f32.mrb[0].mxu0
  %441 = vmatprep.mubr.f32.mxu0 0.0
  %442 = vmatmul.mubr.f32.gmra.mrb[0].mxu0 %v156
  %v443 = vpop.f32.mrb[0].mxu0
  %v444 = vadd.f32 0.0, %v443
  %v445 = vpop.f32.mrb[0].mxu0
  %446 = vmatprep.mubr.f32.mxu0 0.0
  %447 = vmatmul.mubr.f32.gmra.mrb[0].mxu0 %v159
  %v448 = vpop.f32.mrb[0].mxu0
  %v449 = vadd.f32 0.0, %v448
  %v450 = vpop.f32.mrb[0].mxu0
  %451 = vmatprep.mubr.f32.mxu0 0.0
  %452 = vmatmul.mubr.f32.gmra.mrb[0].mxu0 %v162
  %v453 = vpop.f32.mrb[0].mxu0
  %v454 = vadd.f32 0.0, %v453
  %v455 = vpop.f32.mrb[0].mxu0
  %456 = vmatprep.mubr.f32.mxu0 0.0
  %457 = vmatmul.mubr.f32.gmra.mrb[0].mxu0 %v165
  %v458 = vpop.f32.mrb[0].mxu0
  %v459 = vadd.f32 0.0, %v458
  %v460 = vpop.f32.mrb[0].mxu0
  %461 = vmatprep.mubr.f32.mxu0 0.0
  %462 = vmatmul.mubr.f32.gmra.mrb[0].mxu0 %v168
  %v463 = vpop.f32.mrb[0].mxu0
  %v464 = vadd.f32 0.0, %v463
  %v465 = vpop.f32.mrb[0].mxu0
  %466 = vmatprep.mubr.f32.mxu0 0.0
  %467 = vmatmul.mubr.f32.gmra.mrb[0].mxu0 %v171
  %v468 = vpop.f32.mrb[0].mxu0
  %v469 = vadd.f32 0.0, %v468
  %v470 = vpop.f32.mrb[0].mxu0
  %471 = vmatprep.mubr.f32.mxu0 0.0
  %472 = vmatmul.mubr.f32.gmra.mrb[0].mxu0 %v174
  %v473 = vpop.f32.mrb[0].mxu0
  %v474 = vadd.f32 0.0, %v473
  %v475 = vpop.f32.mrb[0].mxu0
  %476 = vmatprep.mubr.f32.mxu0 0.0
  %477 = vmatmul.mubr.f32.gmra.mrb[0].mxu0 %v177
  %v478 = vpop.f32.mrb[0].mxu0
  %v479 = vadd.f32 0.0, %v478
  %v480 = vpop.f32.mrb[0].mxu0
  %481 = vmatprep.mubr.f32.mxu0 0.0
  %482 = vmatmul.mubr.f32.gmra.mrb[0].mxu0 %v180
  %v483 = vpop.f32.mrb[0].mxu0
  %v484 = vadd.f32 0.0, %v483
  %v485 = vpop.f32.mrb[0].mxu0
  %486 = vmatprep.mubr.f32.mxu0 0.0
  %487 = vmatmul.mubr.f32.gmra.mrb[0].mxu0 %v183
  %v488 = vpop.f32.mrb[0].mxu0
  %v489 = vadd.f32 0.0, %v488
  %v490 = vpop.f32.mrb[0].mxu0
  %491 = vmatprep.mubr.f32.mxu0 0.0
  %492 = vmatmul.mubr.f32.gmra.mrb[0].mxu0 %v186
  %v493 = vpop.f32.mrb[0].mxu0
  %v494 = vadd.f32 0.0, %v493
  %v495 = vpop.f32.mrb[0].mxu0
  %496 = vmatprep.mubr.f32.mxu0 0.0
  %497 = vmatmul.mubr.f32.gmra.mrb[0].mxu0 %v189
  %v498 = vpop.f32.mrb[0].mxu0
  %v499 = vadd.f32 0.0, %v498
  %v500 = vpop.f32.mrb[0].mxu0
  %501 = vmatprep.mubr.f32.mxu0 0.0
  %502 = vmatmul.mubr.f32.gmra.mrb[0].mxu0 %v192
  %v503 = vpop.f32.mrb[0].mxu0
  %v504 = vadd.f32 0.0, %v503
  %v505 = vpop.f32.mrb[0].mxu0
  %506 = vmatprep.mubr.f32.mxu0 0.0
  %507 = vmatmul.mubr.f32.gmra.mrb[0].mxu0 %v195
  %v508 = vpop.f32.mrb[0].mxu0
  %v509 = vadd.f32 0.0, %v508
  %v510 = vpop.f32.mrb[0].mxu0
  %511 = vmatprep.mubr.f32.mxu0 0.0
  %512 = vmatmul.mubr.f32.gmra.mrb[0].mxu0 %v198
  %v513 = vpop.f32.mrb[0].mxu0
  %v514 = vadd.f32 0.0, %v513
  %v515 = vpop.f32.mrb[0].mxu0
  %516 = vmatprep.mubr.f32.mxu0 0.0
  %517 = vmatmul.mubr.f32.gmra.mrb[0].mxu0 %v201
  %v518 = vpop.f32.mrb[0].mxu0
  %v519 = vadd.f32 0.0, %v518
  %v520 = vpop.f32.mrb[0].mxu0
  %521 = vmatprep.mubr.f32.mxu0 0.0
  %522 = vmatmul.mubr.f32.gmra.mrb[0].mxu0 %v204
  %v523 = vpop.f32.mrb[0].mxu0
  %v524 = vadd.f32 0.0, %v523
  %v525 = vpop.f32.mrb[0].mxu0
  %526 = vmatprep.mubr.f32.mxu0 0.0
  %527 = vmatmul.mubr.f32.gmra.mrb[0].mxu0 %v207
  %v528 = vpop.f32.mrb[0].mxu0
  %v529 = vadd.f32 0.0, %v528
  %v530 = vpop.f32.mrb[0].mxu0
  %531 = vmatprep.mubr.f32.mxu0 0.0
  %532 = vmatmul.mubr.f32.gmra.mrb[0].mxu0 %v210
  %v533 = vpop.f32.mrb[0].mxu0
  %v534 = vadd.f32 0.0, %v533
  %v535 = vpop.f32.mrb[0].mxu0
  %536 = vmatprep.mubr.f32.mxu0 0.0
  %537 = vmatmul.mubr.f32.gmra.mrb[0].mxu0 %v213
  %v538 = vpop.f32.mrb[0].mxu0
  %v539 = vadd.f32 0.0, %v538
  %v540 = vpop.f32.mrb[0].mxu0
  %541 = vmatprep.mubr.f32.mxu0 0.0
  %542 = vmatmul.mubr.f32.gmra.mrb[0].mxu0 %v216
  %v543 = vpop.f32.mrb[0].mxu0
  %v544 = vadd.f32 0.0, %v543
  %v545 = vpop.f32.mrb[0].mxu0
  %546 = vmatprep.mubr.f32.mxu0 0.0
  %547 = vmatmul.mubr.f32.gmra.mrb[0].mxu0 %v219
  %v548 = vpop.f32.mrb[0].mxu0
  %v549 = vadd.f32 0.0, %v548
  %v550 = vpop.f32.mrb[0].mxu0
  %551 = vmatprep.mubr.f32.mxu0 0.0
  %552 = vmatmul.mubr.f32.gmra.mrb[0].mxu0 %v222
  %v553 = vpop.f32.mrb[0].mxu0
  %v554 = vadd.f32 0.0, %v553
  %v555 = vpop.f32.mrb[0].mxu0
  %556 = vmatprep.mubr.f32.mxu0 0.0
  %557 = vmatmul.mubr.f32.gmra.mrb[0].mxu0 %v225
  %v558 = vpop.f32.mrb[0].mxu0
  %v559 = vadd.f32 0.0, %v558
  %v560 = vpop.f32.mrb[0].mxu0
  %561 = vmatprep.mubr.f32.mxu0 0.0
  %562 = vmatmul.mubr.f32.gmra.mrb[0].mxu0 %v228
  %v563 = vpop.f32.mrb[0].mxu0
  %v564 = vadd.f32 0.0, %v563
  %v565 = vpop.f32.mrb[0].mxu0
  %566 = vmatprep.mubr.f32.mxu0 0.0
  %567 = vmatmul.mubr.f32.gmra.mrb[0].mxu0 %v231
  %v568 = vpop.f32.mrb[0].mxu0
  %v569 = vadd.f32 0.0, %v568
  %v570 = vpop.f32.mrb[0].mxu0
  %571 = vmatprep.mubr.f32.mxu0 0.0
  %572 = vmatmul.mubr.f32.gmra.mrb[0].mxu0 %v234
  %v573 = vpop.f32.mrb[0].mxu0
  %v574 = vadd.f32 0.0, %v573
  %v575 = vpop.f32.mrb[0].mxu0
  %576 = vmatprep.mubr.f32.mxu0 0.0
  %577 = vmatmul.mubr.f32.gmra.mrb[0].mxu0 %v237
  %v578 = vpop.f32.mrb[0].mxu0
  %v579 = vadd.f32 0.0, %v578
  %v580 = vpop.f32.mrb[0].mxu0
  %581 = vmatprep.mubr.f32.mxu0 0.0
  %582 = vmatmul.mubr.f32.gmra.mrb[0].mxu0 %v240
  %v583 = vpop.f32.mrb[0].mxu0
  %v584 = vadd.f32 0.0, %v583
  %v585 = vpop.f32.mrb[0].mxu0
  %586 = vmatprep.mubr.f32.mxu0 0.0
  %587 = vmatmul.mubr.f32.gmra.mrb[0].mxu0 %v243
  %v588 = vpop.f32.mrb[0].mxu0
  %v589 = vadd.f32 0.0, %v588
  %v590 = vpop.f32.mrb[0].mxu0
  %591 = vmatprep.mubr.f32.mxu0 0.0
  %592 = vmatmul.mubr.f32.gmra.mrb[0].mxu0 %v246
  %v593 = vpop.f32.mrb[0].mxu0
  %v594 = vadd.f32 0.0, %v593
  %v595 = vpop.f32.mrb[0].mxu0
  %596 = vmatprep.mubr.f32.mxu0 0.0
  %597 = vmatmul.mubr.f32.gmra.mrb[0].mxu0 %v249
  %v598 = vpop.f32.mrb[0].mxu0
  %v599 = vadd.f32 0.0, %v598
  %v600 = vpop.f32.mrb[0].mxu0
  %601 = vmatprep.mubr.f32.mxu0 0.0
  %602 = vmatmul.mubr.f32.gmra.mrb[0].mxu0 %v252
  %v603 = vpop.f32.mrb[0].mxu0
  %v604 = vadd.f32 0.0, %v603
  %v605 = vpop.f32.mrb[0].mxu0
  %606 = vmatprep.mubr.f32.mxu0 0.0
  %607 = vmatmul.mubr.f32.gmra.mrb[0].mxu0 %v255
  %v608 = vpop.f32.mrb[0].mxu0
  %v609 = vadd.f32 0.0, %v608
  %v610 = vpop.f32.mrb[0].mxu0
  %611 = vmatprep.mubr.f32.mxu0 0.0
  %612 = vmatmul.mubr.f32.gmra.mrb[0].mxu0 %v258
  %v613 = vpop.f32.mrb[0].mxu0
  %v614 = vadd.f32 0.0, %v613
  %v615 = vpop.f32.mrb[0].mxu0
  %616 = vmatprep.mubr.f32.mxu0 0.0
  %617 = vmatmul.mubr.f32.gmra.mrb[0].mxu0 %v261
  %v618 = vpop.f32.mrb[0].mxu0
  %v619 = vadd.f32 0.0, %v618
  %v620 = vpop.f32.mrb[0].mxu0
  %621 = vmatprep.mubr.f32.mxu0 0.0
  %622 = vmatmul.mubr.f32.gmra.mrb[0].mxu0 %v264
  %v623 = vpop.f32.mrb[0].mxu0
  %v624 = vadd.f32 0.0, %v623
  %v625 = vpop.f32.mrb[0].mxu0
  %626 = vmatprep.mubr.f32.mxu0 0.0
  %627 = vmatmul.mubr.f32.gmra.mrb[0].mxu0 %v267
  %v628 = vpop.f32.mrb[0].mxu0
  %v629 = vadd.f32 0.0, %v628
  %v630 = vpop.f32.mrb[0].mxu0
  %631 = vmatprep.mubr.f32.mxu0 0.0
  %632 = vmatmul.mubr.f32.gmra.mrb[0].mxu0 %v270
  %v633 = vpop.f32.mrb[0].mxu0
  %v634 = vadd.f32 0.0, %v633
  %v635 = vpop.f32.mrb[0].mxu0
  %636 = vmatprep.mubr.f32.mxu0 0.0
  %637 = vmatmul.mubr.f32.gmra.mrb[0].mxu0 %v273
  %v638 = vpop.f32.mrb[0].mxu0
  %v639 = vadd.f32 0.0, %v638
  %v640 = vpop.f32.mrb[0].mxu0
  %641 = vmatprep.mubr.f32.mxu0 0.0
  %642 = vmatmul.mubr.f32.gmra.mrb[0].mxu0 %v276
  %v643 = vpop.f32.mrb[0].mxu0
  %v644 = vadd.f32 0.0, %v643
  %v645 = vpop.f32.mrb[0].mxu0
  %646 = vmatprep.mubr.f32.mxu0 0.0
  %647 = vmatmul.mubr.f32.gmra.mrb[0].mxu0 %v279
  %v648 = vpop.f32.mrb[0].mxu0
  %v649 = vadd.f32 0.0, %v648
  %v650 = vpop.f32.mrb[0].mxu0
  %651 = vmatprep.mubr.f32.mxu0 0.0
  %652 = vmatmul.mubr.f32.gmra.mrb[0].mxu0 %v282
  %v653 = vpop.f32.mrb[0].mxu0
  %v654 = vadd.f32 0.0, %v653
  %v655 = vpop.f32.mrb[0].mxu0
  %656 = vmatprep.mubr.f32.mxu0 0.0
  %657 = vmatmul.mubr.f32.gmra.mrb[0].mxu0 %v285
  %v658 = vpop.f32.mrb[0].mxu0
  %v659 = vadd.f32 0.0, %v658
  %v660 = vpop.f32.mrb[0].mxu0
  %661 = vmatprep.mubr.f32.mxu0 0.0
  %662 = vmatmul.mubr.f32.gmra.mrb[0].mxu0 %v288
  %v663 = vpop.f32.mrb[0].mxu0
  %v664 = vadd.f32 0.0, %v663
  %v665 = vpop.f32.mrb[0].mxu0
  %666 = vmatprep.mubr.f32.mxu0 0.0
  %667 = vmatmul.mubr.f32.gmra.mrb[0].mxu0 %v291
  %v668 = vpop.f32.mrb[0].mxu0
  %v669 = vadd.f32 0.0, %v668
  %v670 = vpop.f32.mrb[0].mxu0
  %671 = vmatprep.mubr.f32.mxu0 0.0
  %672 = vmatmul.mubr.f32.gmra.mrb[0].mxu0 %v294
  %v673 = vpop.f32.mrb[0].mxu0
  %v674 = vadd.f32 0.0, %v673
  %v675 = vpop.f32.mrb[0].mxu0
  %676 = vmatprep.mubr.f32.mxu0 0.0
  %677 = vmatmul.mubr.f32.gmra.mrb[0].mxu0 %v297
  %v678 = vpop.f32.mrb[0].mxu0
  %v679 = vadd.f32 0.0, %v678
  %v680 = vpop.f32.mrb[0].mxu0
  %681 = vmatprep.mubr.f32.mxu0 0.0
  %682 = vmatmul.mubr.f32.gmra.mrb[0].mxu0 %v300
  %v683 = vpop.f32.mrb[0].mxu0
  %v684 = vadd.f32 0.0, %v683
  %v685 = vpop.f32.mrb[0].mxu0
  %686 = vdwg.mxu0
  %v687 = vld [vmem:[%s2] sm:$0x1]
  %v689 = vlaneseq
  %v690 = vshrl.u32 %v689, 7
  %v691 = vsub.s32 0, %v690
  %v692 = vrot.slane %v687, %v691
  %v694 = vmul.f32 %v369, %v692
  %v695 = vmul.f32 %v374, %v692
  %v696 = vmul.f32 %v379, %v692
  %v697 = vmul.f32 %v384, %v692
  %v698 = vmul.f32 %v389, %v692
  %v699 = vmul.f32 %v394, %v692
  %v700 = vmul.f32 %v399, %v692
  %v701 = vmul.f32 %v404, %v692
  %v702 = vmul.f32 %v409, %v692
  %v703 = vmul.f32 %v414, %v692
  %v704 = vmul.f32 %v419, %v692
  %v705 = vmul.f32 %v424, %v692
  %v706 = vmul.f32 %v429, %v692
  %v707 = vmul.f32 %v434, %v692
  %v708 = vmul.f32 %v439, %v692
  %v709 = vmul.f32 %v444, %v692
  %v710 = vmul.f32 %v449, %v692
  %v711 = vmul.f32 %v454, %v692
  %v712 = vmul.f32 %v459, %v692
  %v713 = vmul.f32 %v464, %v692
  %v714 = vmul.f32 %v469, %v692
  %v715 = vmul.f32 %v474, %v692
  %v716 = vmul.f32 %v479, %v692
  %v717 = vmul.f32 %v484, %v692
  %v718 = vmul.f32 %v489, %v692
  %v719 = vmul.f32 %v494, %v692
  %v720 = vmul.f32 %v499, %v692
  %v721 = vmul.f32 %v504, %v692
  %v722 = vmul.f32 %v509, %v692
  %v723 = vmul.f32 %v514, %v692
  %v724 = vmul.f32 %v519, %v692
  %v725 = vmul.f32 %v524, %v692
  %v726 = vmul.f32 %v529, %v692
  %v727 = vmul.f32 %v534, %v692
  %v728 = vmul.f32 %v539, %v692
  %v729 = vmul.f32 %v544, %v692
  %v730 = vmul.f32 %v549, %v692
  %v731 = vmul.f32 %v554, %v692
  %v732 = vmul.f32 %v559, %v692
  %v733 = vmul.f32 %v564, %v692
  %v734 = vmul.f32 %v569, %v692
  %v735 = vmul.f32 %v574, %v692
  %v736 = vmul.f32 %v579, %v692
  %v737 = vmul.f32 %v584, %v692
  %v738 = vmul.f32 %v589, %v692
  %v739 = vmul.f32 %v594, %v692
  %v740 = vmul.f32 %v599, %v692
  %v741 = vmul.f32 %v604, %v692
  %v742 = vmul.f32 %v609, %v692
  %v743 = vmul.f32 %v614, %v692
  %v744 = vmul.f32 %v619, %v692
  %v745 = vmul.f32 %v624, %v692
  %v746 = vmul.f32 %v629, %v692
  %v747 = vmul.f32 %v634, %v692
  %v748 = vmul.f32 %v639, %v692
  %v749 = vmul.f32 %v644, %v692
  %v750 = vmul.f32 %v649, %v692
  %v751 = vmul.f32 %v654, %v692
  %v752 = vmul.f32 %v659, %v692
  %v753 = vmul.f32 %v664, %v692
  %v754 = vmul.f32 %v669, %v692
  %v755 = vmul.f32 %v674, %v692
  %v756 = vmul.f32 %v679, %v692
  %v757 = vmul.f32 %v684, %v692
  %v758 = vld [vmem:[%s3] sm:$0x1]
  %v760 = vlaneseq
  %v761 = vshrl.u32 %v760, 7
  %v762 = vsub.s32 0, %v761
  %v763 = vrot.slane %v758, %v762
  %v765 = vadd.f32 %v694, %v763
  %v766 = vadd.f32 %v695, %v763
  %v767 = vadd.f32 %v696, %v763
  %v768 = vadd.f32 %v697, %v763
  %v769 = vadd.f32 %v698, %v763
  %v770 = vadd.f32 %v699, %v763
  %v771 = vadd.f32 %v700, %v763
  %v772 = vadd.f32 %v701, %v763
  %v773 = vadd.f32 %v702, %v763
  %v774 = vadd.f32 %v703, %v763
  %v775 = vadd.f32 %v704, %v763
  %v776 = vadd.f32 %v705, %v763
  %v777 = vadd.f32 %v706, %v763
  %v778 = vadd.f32 %v707, %v763
  %v779 = vadd.f32 %v708, %v763
  %v780 = vadd.f32 %v709, %v763
  %v781 = vadd.f32 %v710, %v763
  %v782 = vadd.f32 %v711, %v763
  %v783 = vadd.f32 %v712, %v763
  %v784 = vadd.f32 %v713, %v763
  %v785 = vadd.f32 %v714, %v763
  %v786 = vadd.f32 %v715, %v763
  %v787 = vadd.f32 %v716, %v763
  %v788 = vadd.f32 %v717, %v763
  %v789 = vadd.f32 %v718, %v763
  %v790 = vadd.f32 %v719, %v763
  %v791 = vadd.f32 %v720, %v763
  %v792 = vadd.f32 %v721, %v763
  %v793 = vadd.f32 %v722, %v763
  %v794 = vadd.f32 %v723, %v763
  %v795 = vadd.f32 %v724, %v763
  %v796 = vadd.f32 %v725, %v763
  %v797 = vadd.f32 %v726, %v763
  %v798 = vadd.f32 %v727, %v763
  %v799 = vadd.f32 %v728, %v763
  %v800 = vadd.f32 %v729, %v763
  %v801 = vadd.f32 %v730, %v763
  %v802 = vadd.f32 %v731, %v763
  %v803 = vadd.f32 %v732, %v763
  %v804 = vadd.f32 %v733, %v763
  %v805 = vadd.f32 %v734, %v763
  %v806 = vadd.f32 %v735, %v763
  %v807 = vadd.f32 %v736, %v763
  %v808 = vadd.f32 %v737, %v763
  %v809 = vadd.f32 %v738, %v763
  %v810 = vadd.f32 %v739, %v763
  %v811 = vadd.f32 %v740, %v763
  %v812 = vadd.f32 %v741, %v763
  %v813 = vadd.f32 %v742, %v763
  %v814 = vadd.f32 %v743, %v763
  %v815 = vadd.f32 %v744, %v763
  %v816 = vadd.f32 %v745, %v763
  %v817 = vadd.f32 %v746, %v763
  %v818 = vadd.f32 %v747, %v763
  %v819 = vadd.f32 %v748, %v763
  %v820 = vadd.f32 %v749, %v763
  %v821 = vadd.f32 %v750, %v763
  %v822 = vadd.f32 %v751, %v763
  %v823 = vadd.f32 %v752, %v763
  %v824 = vadd.f32 %v753, %v763
  %v825 = vadd.f32 %v754, %v763
  %v826 = vadd.f32 %v755, %v763
  %v827 = vadd.f32 %v756, %v763
  %v828 = vadd.f32 %v757, %v763
  %v829 = vmax.f32 %v765, 0.0
  %v830 = vmax.f32 %v766, 0.0
  %v831 = vmax.f32 %v767, 0.0
  %v832 = vmax.f32 %v768, 0.0
  %v833 = vmax.f32 %v769, 0.0
  %v834 = vmax.f32 %v770, 0.0
  %v835 = vmax.f32 %v771, 0.0
  %v836 = vmax.f32 %v772, 0.0
  %v837 = vmax.f32 %v773, 0.0
  %v838 = vmax.f32 %v774, 0.0
  %v839 = vmax.f32 %v775, 0.0
  %v840 = vmax.f32 %v776, 0.0
  %v841 = vmax.f32 %v777, 0.0
  %v842 = vmax.f32 %v778, 0.0
  %v843 = vmax.f32 %v779, 0.0
  %v844 = vmax.f32 %v780, 0.0
  %v845 = vmax.f32 %v781, 0.0
  %v846 = vmax.f32 %v782, 0.0
  %v847 = vmax.f32 %v783, 0.0
  %v848 = vmax.f32 %v784, 0.0
  %v849 = vmax.f32 %v785, 0.0
  %v850 = vmax.f32 %v786, 0.0
  %v851 = vmax.f32 %v787, 0.0
  %v852 = vmax.f32 %v788, 0.0
  %v853 = vmax.f32 %v789, 0.0
  %v854 = vmax.f32 %v790, 0.0
  %v855 = vmax.f32 %v791, 0.0
  %v856 = vmax.f32 %v792, 0.0
  %v857 = vmax.f32 %v793, 0.0
  %v858 = vmax.f32 %v794, 0.0
  %v859 = vmax.f32 %v795, 0.0
  %v860 = vmax.f32 %v796, 0.0
  %v861 = vmax.f32 %v797, 0.0
  %v862 = vmax.f32 %v798, 0.0
  %v863 = vmax.f32 %v799, 0.0
  %v864 = vmax.f32 %v800, 0.0
  %v865 = vmax.f32 %v801, 0.0
  %v866 = vmax.f32 %v802, 0.0
  %v867 = vmax.f32 %v803, 0.0
  %v868 = vmax.f32 %v804, 0.0
  %v869 = vmax.f32 %v805, 0.0
  %v870 = vmax.f32 %v806, 0.0
  %v871 = vmax.f32 %v807, 0.0
  %v872 = vmax.f32 %v808, 0.0
  %v873 = vmax.f32 %v809, 0.0
  %v874 = vmax.f32 %v810, 0.0
  %v875 = vmax.f32 %v811, 0.0
  %v876 = vmax.f32 %v812, 0.0
  %v877 = vmax.f32 %v813, 0.0
  %v878 = vmax.f32 %v814, 0.0
  %v879 = vmax.f32 %v815, 0.0
  %v880 = vmax.f32 %v816, 0.0
  %v881 = vmax.f32 %v817, 0.0
  %v882 = vmax.f32 %v818, 0.0
  %v883 = vmax.f32 %v819, 0.0
  %v884 = vmax.f32 %v820, 0.0
  %v885 = vmax.f32 %v821, 0.0
  %v886 = vmax.f32 %v822, 0.0
  %v887 = vmax.f32 %v823, 0.0
  %v888 = vmax.f32 %v824, 0.0
  %v889 = vmax.f32 %v825, 0.0
  %v890 = vmax.f32 %v826, 0.0
  %v891 = vmax.f32 %v827, 0.0
  %v892 = vmax.f32 %v828, 0.0
  %893 = vst.msk [vmem:[#allocation2] sm:$0xff] %vm109, 0.0
  %894 = vst.msk [vmem:[#allocation2 + $0x8] sm:$0xff] %vm109, 0.0
  %vm895 = vcmask 58368
  %896 = vst.msk [vmem:[#allocation2 + $0x10] sm:$0x3] %vm895, 0.0
  %897 = vst.msk [vmem:[#allocation2 + $0x1b0] sm:$0xff] %vm109, 0.0
  %898 = vst.msk [vmem:[#allocation2 + $0x1b8] sm:$0xff] %vm109, 0.0
  %899 = vst.msk [vmem:[#allocation2 + $0x1c0] sm:$0x3] %vm895, 0.0
  %s900 = scalar_lea.vmem [#allocation2], 408
  %901 = vst.msk [vmem:[%s900] sm:$0xff] %vm109, 0.0
  %902 = vst.msk [vmem:[%s900 + $0x8] sm:$0xff] %vm109, 0.0
  %903 = vst.msk [vmem:[%s900 + $0x10] sm:$0x3] %vm895, 0.0
  %904 = vst.msk [vmem:[%s900 + $0x1b0] sm:$0xff] %vm109, 0.0
  %905 = vst.msk [vmem:[%s900 + $0x1b8] sm:$0xff] %vm109, 0.0
  %906 = vst.msk [vmem:[%s900 + $0x1c0] sm:$0x3] %vm895, 0.0
  %vm907 = vcmask 57344
  %908 = vst.msk [vmem:[#allocation2] sm:$0x1] %vm907, 0.0
  %909 = vst.msk [vmem:[#allocation2 + $0x18] sm:$0x1] %vm907, 0.0
  %910 = vst.msk [vmem:[#allocation2 + $0x30] sm:$0x1] %vm907, 0.0
  %911 = vst.msk [vmem:[#allocation2 + $0x48] sm:$0x1] %vm907, 0.0
  %912 = vst.msk [vmem:[#allocation2 + $0x60] sm:$0x1] %vm907, 0.0
  %913 = vst.msk [vmem:[#allocation2 + $0x78] sm:$0x1] %vm907, 0.0
  %914 = vst.msk [vmem:[#allocation2 + $0x90] sm:$0x1] %vm907, 0.0
  %915 = vst.msk [vmem:[#allocation2 + $0xa8] sm:$0x1] %vm907, 0.0
  %916 = vst.msk [vmem:[#allocation2 + $0xc0] sm:$0x1] %vm907, 0.0
  %917 = vst.msk [vmem:[#allocation2 + $0xd8] sm:$0x1] %vm907, 0.0
  %918 = vst.msk [vmem:[#allocation2 + $0xf0] sm:$0x1] %vm907, 0.0
  %919 = vst.msk [vmem:[#allocation2 + $0x108] sm:$0x1] %vm907, 0.0
  %920 = vst.msk [vmem:[#allocation2 + $0x120] sm:$0x1] %vm907, 0.0
  %921 = vst.msk [vmem:[#allocation2 + $0x138] sm:$0x1] %vm907, 0.0
  %922 = vst.msk [vmem:[#allocation2 + $0x150] sm:$0x1] %vm907, 0.0
  %923 = vst.msk [vmem:[#allocation2 + $0x168] sm:$0x1] %vm907, 0.0
  %924 = vst.msk [vmem:[#allocation2 + $0x180] sm:$0x1] %vm907, 0.0
  %925 = vst.msk [vmem:[#allocation2 + $0x198] sm:$0x1] %vm907, 0.0
  %926 = vst.msk [vmem:[#allocation2 + $0x1b0] sm:$0x1] %vm907, 0.0
  %927 = vst.msk [vmem:[#allocation2 + $0x1c8] sm:$0x1] %vm907, 0.0
  %928 = vst.msk [vmem:[#allocation2 + $0x1e0] sm:$0x1] %vm907, 0.0
  %929 = vst.msk [vmem:[#allocation2 + $0x1f8] sm:$0x1] %vm907, 0.0
  %930 = vst.msk [vmem:[#allocation2 + $0x210] sm:$0x1] %vm907, 0.0
  %931 = vst.msk [vmem:[#allocation2 + $0x228] sm:$0x1] %vm907, 0.0
  %932 = vst.msk [vmem:[#allocation2 + $0x240] sm:$0x1] %vm907, 0.0
  %933 = vst.msk [vmem:[#allocation2 + $0x258] sm:$0x1] %vm907, 0.0
  %934 = vst.msk [vmem:[#allocation2 + $0x270] sm:$0x1] %vm907, 0.0
  %935 = vst.msk [vmem:[#allocation2 + $0x288] sm:$0x1] %vm907, 0.0
  %936 = vst.msk [vmem:[#allocation2 + $0x2a0] sm:$0x1] %vm907, 0.0
  %937 = vst.msk [vmem:[#allocation2 + $0x2b8] sm:$0x1] %vm907, 0.0
  %938 = vst.msk [vmem:[#allocation2 + $0x2d0] sm:$0x1] %vm907, 0.0
  %939 = vst.msk [vmem:[#allocation2 + $0x2e8] sm:$0x1] %vm907, 0.0
  %940 = vst.msk [vmem:[#allocation2 + $0x300] sm:$0x1] %vm907, 0.0
  %941 = vst.msk [vmem:[#allocation2 + $0x318] sm:$0x1] %vm907, 0.0
  %942 = vst.msk [vmem:[#allocation2 + $0x330] sm:$0x1] %vm907, 0.0
  %943 = vst.msk [vmem:[#allocation2 + $0x348] sm:$0x1] %vm907, 0.0
  %944 = vst.msk [vmem:[#allocation2 + $0x11] sm:$0x1] %vm907, 0.0
  %945 = vst.msk [vmem:[#allocation2 + $0x29] sm:$0x1] %vm907, 0.0
  %946 = vst.msk [vmem:[#allocation2 + $0x41] sm:$0x1] %vm907, 0.0
  %947 = vst.msk [vmem:[#allocation2 + $0x59] sm:$0x1] %vm907, 0.0
  %948 = vst.msk [vmem:[#allocation2 + $0x71] sm:$0x1] %vm907, 0.0
  %949 = vst.msk [vmem:[#allocation2 + $0x89] sm:$0x1] %vm907, 0.0
  %950 = vst.msk [vmem:[#allocation2 + $0xa1] sm:$0x1] %vm907, 0.0
  %951 = vst.msk [vmem:[#allocation2 + $0xb9] sm:$0x1] %vm907, 0.0
  %952 = vst.msk [vmem:[#allocation2 + $0xd1] sm:$0x1] %vm907, 0.0
  %953 = vst.msk [vmem:[#allocation2 + $0xe9] sm:$0x1] %vm907, 0.0
  %954 = vst.msk [vmem:[#allocation2 + $0x101] sm:$0x1] %vm907, 0.0
  %955 = vst.msk [vmem:[#allocation2 + $0x119] sm:$0x1] %vm907, 0.0
  %956 = vst.msk [vmem:[#allocation2 + $0x131] sm:$0x1] %vm907, 0.0
  %957 = vst.msk [vmem:[#allocation2 + $0x149] sm:$0x1] %vm907, 0.0
  %958 = vst.msk [vmem:[#allocation2 + $0x161] sm:$0x1] %vm907, 0.0
  %959 = vst.msk [vmem:[#allocation2 + $0x179] sm:$0x1] %vm907, 0.0
  %960 = vst.msk [vmem:[#allocation2 + $0x191] sm:$0x1] %vm907, 0.0
  %961 = vst.msk [vmem:[#allocation2 + $0x1a9] sm:$0x1] %vm907, 0.0
  %962 = vst.msk [vmem:[#allocation2 + $0x1c1] sm:$0x1] %vm907, 0.0
  %963 = vst.msk [vmem:[#allocation2 + $0x1d9] sm:$0x1] %vm907, 0.0
  %964 = vst.msk [vmem:[#allocation2 + $0x1f1] sm:$0x1] %vm907, 0.0
  %965 = vst.msk [vmem:[#allocation2 + $0x209] sm:$0x1] %vm907, 0.0
  %966 = vst.msk [vmem:[#allocation2 + $0x221] sm:$0x1] %vm907, 0.0
  %967 = vst.msk [vmem:[#allocation2 + $0x239] sm:$0x1] %vm907, 0.0
  %968 = vst.msk [vmem:[#allocation2 + $0x251] sm:$0x1] %vm907, 0.0
  %969 = vst.msk [vmem:[#allocation2 + $0x269] sm:$0x1] %vm907, 0.0
  %970 = vst.msk [vmem:[#allocation2 + $0x281] sm:$0x1] %vm907, 0.0
  %971 = vst.msk [vmem:[#allocation2 + $0x299] sm:$0x1] %vm907, 0.0
  %972 = vst.msk [vmem:[#allocation2 + $0x2b1] sm:$0x1] %vm907, 0.0
  %973 = vst.msk [vmem:[#allocation2 + $0x2c9] sm:$0x1] %vm907, 0.0
  %974 = vst.msk [vmem:[#allocation2 + $0x2e1] sm:$0x1] %vm907, 0.0
  %975 = vst.msk [vmem:[#allocation2 + $0x2f9] sm:$0x1] %vm907, 0.0
  %976 = vst.msk [vmem:[#allocation2 + $0x311] sm:$0x1] %vm907, 0.0
  %977 = vst.msk [vmem:[#allocation2 + $0x329] sm:$0x1] %vm907, 0.0
  %978 = vst.msk [vmem:[#allocation2 + $0x341] sm:$0x1] %vm907, 0.0
  %979 = vst.msk [vmem:[#allocation2 + $0x359] sm:$0x1] %vm907, 0.0
  %s980 = scalar_lea.vmem [#allocation2], 24
  %981 = vst.msk [vmem:[%s980 + $0x1] sm:$0xff] %vm109, %v829
  %982 = vst.msk [vmem:[%s980 + $0x9] sm:$0xff] %vm109, %v830
  %983 = vst.msk [vmem:[%s980 + $0x19] sm:$0xff] %vm109, %v831
  %984 = vst.msk [vmem:[%s980 + $0x21] sm:$0xff] %vm109, %v832
  %985 = vst.msk [vmem:[%s980 + $0x31] sm:$0xff] %vm109, %v833
  %986 = vst.msk [vmem:[%s980 + $0x39] sm:$0xff] %vm109, %v834
  %987 = vst.msk [vmem:[%s980 + $0x49] sm:$0xff] %vm109, %v835
  %988 = vst.msk [vmem:[%s980 + $0x51] sm:$0xff] %vm109, %v836
  %989 = vst.msk [vmem:[%s980 + $0x61] sm:$0xff] %vm109, %v837
  %990 = vst.msk [vmem:[%s980 + $0x69] sm:$0xff] %vm109, %v838
  %991 = vst.msk [vmem:[%s980 + $0x79] sm:$0xff] %vm109, %v839
  %992 = vst.msk [vmem:[%s980 + $0x81] sm:$0xff] %vm109, %v840
  %993 = vst.msk [vmem:[%s980 + $0x91] sm:$0xff] %vm109, %v841
  %994 = vst.msk [vmem:[%s980 + $0x99] sm:$0xff] %vm109, %v842
  %995 = vst.msk [vmem:[%s980 + $0xa9] sm:$0xff] %vm109, %v843
  %996 = vst.msk [vmem:[%s980 + $0xb1] sm:$0xff] %vm109, %v844
  %997 = vst.msk [vmem:[%s980 + $0xc1] sm:$0xff] %vm109, %v845
  %998 = vst.msk [vmem:[%s980 + $0xc9] sm:$0xff] %vm109, %v846
  %999 = vst.msk [vmem:[%s980 + $0xd9] sm:$0xff] %vm109, %v847
  %1000 = vst.msk [vmem:[%s980 + $0xe1] sm:$0xff] %vm109, %v848
  %1001 = vst.msk [vmem:[%s980 + $0xf1] sm:$0xff] %vm109, %v849
  %1002 = vst.msk [vmem:[%s980 + $0xf9] sm:$0xff] %vm109, %v850
  %1003 = vst.msk [vmem:[%s980 + $0x109] sm:$0xff] %vm109, %v851
  %1004 = vst.msk [vmem:[%s980 + $0x111] sm:$0xff] %vm109, %v852
  %1005 = vst.msk [vmem:[%s980 + $0x121] sm:$0xff] %vm109, %v853
  %1006 = vst.msk [vmem:[%s980 + $0x129] sm:$0xff] %vm109, %v854
  %1007 = vst.msk [vmem:[%s980 + $0x139] sm:$0xff] %vm109, %v855
  %1008 = vst.msk [vmem:[%s980 + $0x141] sm:$0xff] %vm109, %v856
  %1009 = vst.msk [vmem:[%s980 + $0x151] sm:$0xff] %vm109, %v857
  %1010 = vst.msk [vmem:[%s980 + $0x159] sm:$0xff] %vm109, %v858
  %1011 = vst.msk [vmem:[%s980 + $0x169] sm:$0xff] %vm109, %v859
  %1012 = vst.msk [vmem:[%s980 + $0x171] sm:$0xff] %vm109, %v860
  %1013 = vst.msk [vmem:[%s980 + $0x1b1] sm:$0xff] %vm109, %v861
  %1014 = vst.msk [vmem:[%s980 + $0x1b9] sm:$0xff] %vm109, %v862
  %1015 = vst.msk [vmem:[%s980 + $0x1c9] sm:$0xff] %vm109, %v863
  %1016 = vst.msk [vmem:[%s980 + $0x1d1] sm:$0xff] %vm109, %v864
  %1017 = vst.msk [vmem:[%s980 + $0x1e1] sm:$0xff] %vm109, %v865
  %1018 = vst.msk [vmem:[%s980 + $0x1e9] sm:$0xff] %vm109, %v866
  %1019 = vst.msk [vmem:[%s980 + $0x1f9] sm:$0xff] %vm109, %v867
  %1020 = vst.msk [vmem:[%s980 + $0x201] sm:$0xff] %vm109, %v868
  %1021 = vst.msk [vmem:[%s980 + $0x211] sm:$0xff] %vm109, %v869
  %1022 = vst.msk [vmem:[%s980 + $0x219] sm:$0xff] %vm109, %v870
  %1023 = vst.msk [vmem:[%s980 + $0x229] sm:$0xff] %vm109, %v871
  %1024 = vst.msk [vmem:[%s980 + $0x231] sm:$0xff] %vm109, %v872
  %1025 = vst.msk [vmem:[%s980 + $0x241] sm:$0xff] %vm109, %v873
  %1026 = vst.msk [vmem:[%s980 + $0x249] sm:$0xff] %vm109, %v874
  %1027 = vst.msk [vmem:[%s980 + $0x259] sm:$0xff] %vm109, %v875
  %1028 = vst.msk [vmem:[%s980 + $0x261] sm:$0xff] %vm109, %v876
  %1029 = vst.msk [vmem:[%s980 + $0x271] sm:$0xff] %vm109, %v877
  %1030 = vst.msk [vmem:[%s980 + $0x279] sm:$0xff] %vm109, %v878
  %1031 = vst.msk [vmem:[%s980 + $0x289] sm:$0xff] %vm109, %v879
  %1032 = vst.msk [vmem:[%s980 + $0x291] sm:$0xff] %vm109, %v880
  %1033 = vst.msk [vmem:[%s980 + $0x2a1] sm:$0xff] %vm109, %v881
  %1034 = vst.msk [vmem:[%s980 + $0x2a9] sm:$0xff] %vm109, %v882
  %1035 = vst.msk [vmem:[%s980 + $0x2b9] sm:$0xff] %vm109, %v883
  %1036 = vst.msk [vmem:[%s980 + $0x2c1] sm:$0xff] %vm109, %v884
  %1037 = vst.msk [vmem:[%s980 + $0x2d1] sm:$0xff] %vm109, %v885
  %1038 = vst.msk [vmem:[%s980 + $0x2d9] sm:$0xff] %vm109, %v886
  %1039 = vst.msk [vmem:[%s980 + $0x2e9] sm:$0xff] %vm109, %v887
  %1040 = vst.msk [vmem:[%s980 + $0x2f1] sm:$0xff] %vm109, %v888
  %1041 = vst.msk [vmem:[%s980 + $0x301] sm:$0xff] %vm109, %v889
  %1042 = vst.msk [vmem:[%s980 + $0x309] sm:$0xff] %vm109, %v890
  %1043 = vst.msk [vmem:[%s980 + $0x319] sm:$0xff] %vm109, %v891
  %1044 = vst.msk [vmem:[%s980 + $0x321] sm:$0xff] %vm109, %v892
  %v1045 = vld [vmem:[#allocation2] sm:$0xff]
  %v1046 = vld [vmem:[#allocation2 + $0x8] sm:$0xff]
  %v1047 = vld [vmem:[#allocation2 + $0x18] sm:$0xff]
  %v1048 = vld [vmem:[#allocation2 + $0x20] sm:$0xff]
  %v1049 = vld [vmem:[#allocation2 + $0x30] sm:$0xff]
  %v1050 = vld [vmem:[#allocation2 + $0x38] sm:$0xff]
  %v1051 = vld [vmem:[#allocation2 + $0x48] sm:$0xff]
  %v1052 = vld [vmem:[#allocation2 + $0x50] sm:$0xff]
  %v1053 = vld [vmem:[#allocation2 + $0x60] sm:$0xff]
  %v1054 = vld [vmem:[#allocation2 + $0x68] sm:$0xff]
  %v1055 = vld [vmem:[#allocation2 + $0x78] sm:$0xff]
  %v1056 = vld [vmem:[#allocation2 + $0x80] sm:$0xff]
  %v1057 = vld [vmem:[#allocation2 + $0x90] sm:$0xff]
  %v1058 = vld [vmem:[#allocation2 + $0x98] sm:$0xff]
  %v1059 = vld [vmem:[#allocation2 + $0xa8] sm:$0xff]
  %v1060 = vld [vmem:[#allocation2 + $0xb0] sm:$0xff]
  %v1061 = vld [vmem:[#allocation2 + $0xc0] sm:$0xff]
  %v1062 = vld [vmem:[#allocation2 + $0xc8] sm:$0xff]
  %v1063 = vld [vmem:[#allocation2 + $0xd8] sm:$0xff]
  %v1064 = vld [vmem:[#allocation2 + $0xe0] sm:$0xff]
  %v1065 = vld [vmem:[#allocation2 + $0xf0] sm:$0xff]
  %v1066 = vld [vmem:[#allocation2 + $0xf8] sm:$0xff]
  %v1067 = vld [vmem:[#allocation2 + $0x108] sm:$0xff]
  %v1068 = vld [vmem:[#allocation2 + $0x110] sm:$0xff]
  %v1069 = vld [vmem:[#allocation2 + $0x120] sm:$0xff]
  %v1070 = vld [vmem:[#allocation2 + $0x128] sm:$0xff]
  %v1071 = vld [vmem:[#allocation2 + $0x138] sm:$0xff]
  %v1072 = vld [vmem:[#allocation2 + $0x140] sm:$0xff]
  %v1073 = vld [vmem:[#allocation2 + $0x150] sm:$0xff]
  %v1074 = vld [vmem:[#allocation2 + $0x158] sm:$0xff]
  %v1075 = vld [vmem:[#allocation2 + $0x168] sm:$0xff]
  %v1076 = vld [vmem:[#allocation2 + $0x170] sm:$0xff]
  %v1077 = vld [vmem:[#allocation2 + $0x1b0] sm:$0xff]
  %v1078 = vld [vmem:[#allocation2 + $0x1b8] sm:$0xff]
  %v1079 = vld [vmem:[#allocation2 + $0x1c8] sm:$0xff]
  %v1080 = vld [vmem:[#allocation2 + $0x1d0] sm:$0xff]
  %v1081 = vld [vmem:[#allocation2 + $0x1e0] sm:$0xff]
  %v1082 = vld [vmem:[#allocation2 + $0x1e8] sm:$0xff]
  %v1083 = vld [vmem:[#allocation2 + $0x1f8] sm:$0xff]
  %v1084 = vld [vmem:[#allocation2 + $0x200] sm:$0xff]
  %v1085 = vld [vmem:[#allocation2 + $0x210] sm:$0xff]
  %v1086 = vld [vmem:[#allocation2 + $0x218] sm:$0xff]
  %v1087 = vld [vmem:[#allocation2 + $0x228] sm:$0xff]
  %v1088 = vld [vmem:[#allocation2 + $0x230] sm:$0xff]
  %v1089 = vld [vmem:[#allocation2 + $0x240] sm:$0xff]
  %v1090 = vld [vmem:[#allocation2 + $0x248] sm:$0xff]
  %v1091 = vld [vmem:[#allocation2 + $0x258] sm:$0xff]
  %v1092 = vld [vmem:[#allocation2 + $0x260] sm:$0xff]
  %v1093 = vld [vmem:[#allocation2 + $0x270] sm:$0xff]
  %v1094 = vld [vmem:[#allocation2 + $0x278] sm:$0xff]
  %v1095 = vld [vmem:[#allocation2 + $0x288] sm:$0xff]
  %v1096 = vld [vmem:[#allocation2 + $0x290] sm:$0xff]
  %v1097 = vld [vmem:[#allocation2 + $0x2a0] sm:$0xff]
  %v1098 = vld [vmem:[#allocation2 + $0x2a8] sm:$0xff]
  %v1099 = vld [vmem:[#allocation2 + $0x2b8] sm:$0xff]
  %v1100 = vld [vmem:[#allocation2 + $0x2c0] sm:$0xff]
  %v1101 = vld [vmem:[#allocation2 + $0x2d0] sm:$0xff]
  %v1102 = vld [vmem:[#allocation2 + $0x2d8] sm:$0xff]
  %v1103 = vld [vmem:[#allocation2 + $0x2e8] sm:$0xff]
  %v1104 = vld [vmem:[#allocation2 + $0x2f0] sm:$0xff]
  %v1105 = vld [vmem:[#allocation2 + $0x300] sm:$0xff]
  %v1106 = vld [vmem:[#allocation2 + $0x308] sm:$0xff]
  %v1107 = vld [vmem:[#allocation2 + $0x318] sm:$0xff]
  %v1108 = vld [vmem:[#allocation2 + $0x320] sm:$0xff]
  %1109 = vst.msk [vmem:[#allocation3] sm:$0xff] %vm109, %v1045
  %1110 = vst.msk [vmem:[#allocation3 + $0x8] sm:$0xff] %vm109, %v1046
  %1111 = vst.msk [vmem:[#allocation3 + $0x10] sm:$0xff] %vm109, %v1047
  %1112 = vst.msk [vmem:[#allocation3 + $0x18] sm:$0xff] %vm109, %v1048
  %1113 = vst.msk [vmem:[#allocation3 + $0x20] sm:$0xff] %vm109, %v1049
  %1114 = vst.msk [vmem:[#allocation3 + $0x28] sm:$0xff] %vm109, %v1050
  %1115 = vst.msk [vmem:[#allocation3 + $0x30] sm:$0xff] %vm109, %v1051
  %1116 = vst.msk [vmem:[#allocation3 + $0x38] sm:$0xff] %vm109, %v1052
  %1117 = vst.msk [vmem:[#allocation3 + $0x40] sm:$0xff] %vm109, %v1053
  %1118 = vst.msk [vmem:[#allocation3 + $0x48] sm:$0xff] %vm109, %v1054
  %1119 = vst.msk [vmem:[#allocation3 + $0x50] sm:$0xff] %vm109, %v1055
  %1120 = vst.msk [vmem:[#allocation3 + $0x58] sm:$0xff] %vm109, %v1056
  %1121 = vst.msk [vmem:[#allocation3 + $0x60] sm:$0xff] %vm109, %v1057
  %1122 = vst.msk [vmem:[#allocation3 + $0x68] sm:$0xff] %vm109, %v1058
  %1123 = vst.msk [vmem:[#allocation3 + $0x70] sm:$0xff] %vm109, %v1059
  %1124 = vst.msk [vmem:[#allocation3 + $0x78] sm:$0xff] %vm109, %v1060
  %1125 = vst.msk [vmem:[#allocation3 + $0x80] sm:$0xff] %vm109, %v1061
  %1126 = vst.msk [vmem:[#allocation3 + $0x88] sm:$0xff] %vm109, %v1062
  %1127 = vst.msk [vmem:[#allocation3 + $0x90] sm:$0xff] %vm109, %v1063
  %1128 = vst.msk [vmem:[#allocation3 + $0x98] sm:$0xff] %vm109, %v1064
  %1129 = vst.msk [vmem:[#allocation3 + $0xa0] sm:$0xff] %vm109, %v1065
  %1130 = vst.msk [vmem:[#allocation3 + $0xa8] sm:$0xff] %vm109, %v1066
  %1131 = vst.msk [vmem:[#allocation3 + $0xb0] sm:$0xff] %vm109, %v1067
  %1132 = vst.msk [vmem:[#allocation3 + $0xb8] sm:$0xff] %vm109, %v1068
  %1133 = vst.msk [vmem:[#allocation3 + $0xc0] sm:$0xff] %vm109, %v1069
  %1134 = vst.msk [vmem:[#allocation3 + $0xc8] sm:$0xff] %vm109, %v1070
  %1135 = vst.msk [vmem:[#allocation3 + $0xd0] sm:$0xff] %vm109, %v1071
  %1136 = vst.msk [vmem:[#allocation3 + $0xd8] sm:$0xff] %vm109, %v1072
  %1137 = vst.msk [vmem:[#allocation3 + $0xe0] sm:$0xff] %vm109, %v1073
  %1138 = vst.msk [vmem:[#allocation3 + $0xe8] sm:$0xff] %vm109, %v1074
  %1139 = vst.msk [vmem:[#allocation3 + $0xf0] sm:$0xff] %vm109, %v1075
  %1140 = vst.msk [vmem:[#allocation3 + $0xf8] sm:$0xff] %vm109, %v1076
  %1141 = vst.msk [vmem:[#allocation3 + $0x100] sm:$0xff] %vm109, %v1077
  %1142 = vst.msk [vmem:[#allocation3 + $0x108] sm:$0xff] %vm109, %v1078
  %1143 = vst.msk [vmem:[#allocation3 + $0x110] sm:$0xff] %vm109, %v1079
  %1144 = vst.msk [vmem:[#allocation3 + $0x118] sm:$0xff] %vm109, %v1080
  %1145 = vst.msk [vmem:[#allocation3 + $0x120] sm:$0xff] %vm109, %v1081
  %1146 = vst.msk [vmem:[#allocation3 + $0x128] sm:$0xff] %vm109, %v1082
  %1147 = vst.msk [vmem:[#allocation3 + $0x130] sm:$0xff] %vm109, %v1083
  %1148 = vst.msk [vmem:[#allocation3 + $0x138] sm:$0xff] %vm109, %v1084
  %1149 = vst.msk [vmem:[#allocation3 + $0x140] sm:$0xff] %vm109, %v1085
  %1150 = vst.msk [vmem:[#allocation3 + $0x148] sm:$0xff] %vm109, %v1086
  %1151 = vst.msk [vmem:[#allocation3 + $0x150] sm:$0xff] %vm109, %v1087
  %1152 = vst.msk [vmem:[#allocation3 + $0x158] sm:$0xff] %vm109, %v1088
  %1153 = vst.msk [vmem:[#allocation3 + $0x160] sm:$0xff] %vm109, %v1089
  %1154 = vst.msk [vmem:[#allocation3 + $0x168] sm:$0xff] %vm109, %v1090
  %1155 = vst.msk [vmem:[#allocation3 + $0x170] sm:$0xff] %vm109, %v1091
  %1156 = vst.msk [vmem:[#allocation3 + $0x178] sm:$0xff] %vm109, %v1092
  %1157 = vst.msk [vmem:[#allocation3 + $0x180] sm:$0xff] %vm109, %v1093
  %1158 = vst.msk [vmem:[#allocation3 + $0x188] sm:$0xff] %vm109, %v1094
  %1159 = vst.msk [vmem:[#allocation3 + $0x190] sm:$0xff] %vm109, %v1095
  %1160 = vst.msk [vmem:[#allocation3 + $0x198] sm:$0xff] %vm109, %v1096
  %1161 = vst.msk [vmem:[#allocation3 + $0x1a0] sm:$0xff] %vm109, %v1097
  %1162 = vst.msk [vmem:[#allocation3 + $0x1a8] sm:$0xff] %vm109, %v1098
  %1163 = vst.msk [vmem:[#allocation3 + $0x1b0] sm:$0xff] %vm109, %v1099
  %1164 = vst.msk [vmem:[#allocation3 + $0x1b8] sm:$0xff] %vm109, %v1100
  %1165 = vst.msk [vmem:[#allocation3 + $0x1c0] sm:$0xff] %vm109, %v1101
  %1166 = vst.msk [vmem:[#allocation3 + $0x1c8] sm:$0xff] %vm109, %v1102
  %1167 = vst.msk [vmem:[#allocation3 + $0x1d0] sm:$0xff] %vm109, %v1103
  %1168 = vst.msk [vmem:[#allocation3 + $0x1d8] sm:$0xff] %vm109, %v1104
  %1169 = vst.msk [vmem:[#allocation3 + $0x1e0] sm:$0xff] %vm109, %v1105
  %1170 = vst.msk [vmem:[#allocation3 + $0x1e8] sm:$0xff] %vm109, %v1106
  %1171 = vst.msk [vmem:[#allocation3 + $0x1f0] sm:$0xff] %vm109, %v1107
  %1172 = vst.msk [vmem:[#allocation3 + $0x1f8] sm:$0xff] %vm109, %v1108
  %v1173 = vld [vmem:[#allocation2 + $0x1] sm:$0xff]
  %v1174 = vld [vmem:[#allocation2 + $0x9] sm:$0xff]
  %v1175 = vld [vmem:[#allocation2 + $0x19] sm:$0xff]
  %v1176 = vld [vmem:[#allocation2 + $0x21] sm:$0xff]
  %v1177 = vld [vmem:[#allocation2 + $0x31] sm:$0xff]
  %v1178 = vld [vmem:[#allocation2 + $0x39] sm:$0xff]
  %v1179 = vld [vmem:[#allocation2 + $0x49] sm:$0xff]
  %v1180 = vld [vmem:[#allocation2 + $0x51] sm:$0xff]
  %v1181 = vld [vmem:[#allocation2 + $0x61] sm:$0xff]
  %v1182 = vld [vmem:[#allocation2 + $0x69] sm:$0xff]
  %v1183 = vld [vmem:[#allocation2 + $0x79] sm:$0xff]
  %v1184 = vld [vmem:[#allocation2 + $0x81] sm:$0xff]
  %v1185 = vld [vmem:[#allocation2 + $0x91] sm:$0xff]
  %v1186 = vld [vmem:[#allocation2 + $0x99] sm:$0xff]
  %v1187 = vld [vmem:[#allocation2 + $0xa9] sm:$0xff]
  %v1188 = vld [vmem:[#allocation2 + $0xb1] sm:$0xff]
  %v1189 = vld [vmem:[#allocation2 + $0xc1] sm:$0xff]
  %v1190 = vld [vmem:[#allocation2 + $0xc9] sm:$0xff]
  %v1191 = vld [vmem:[#allocation2 + $0xd9] sm:$0xff]
  %v1192 = vld [vmem:[#allocation2 + $0xe1] sm:$0xff]
  %v1193 = vld [vmem:[#allocation2 + $0xf1] sm:$0xff]
  %v1194 = vld [vmem:[#allocation2 + $0xf9] sm:$0xff]
  %v1195 = vld [vmem:[#allocation2 + $0x109] sm:$0xff]
  %v1196 = vld [vmem:[#allocation2 + $0x111] sm:$0xff]
  %v1197 = vld [vmem:[#allocation2 + $0x121] sm:$0xff]
  %v1198 = vld [vmem:[#allocation2 + $0x129] sm:$0xff]
  %v1199 = vld [vmem:[#allocation2 + $0x139] sm:$0xff]
  %v1200 = vld [vmem:[#allocation2 + $0x141] sm:$0xff]
  %v1201 = vld [vmem:[#allocation2 + $0x151] sm:$0xff]
  %v1202 = vld [vmem:[#allocation2 + $0x159] sm:$0xff]
  %v1203 = vld [vmem:[#allocation2 + $0x169] sm:$0xff]
  %v1204 = vld [vmem:[#allocation2 + $0x171] sm:$0xff]
  %v1205 = vld [vmem:[#allocation2 + $0x1b1] sm:$0xff]
  %v1206 = vld [vmem:[#allocation2 + $0x1b9] sm:$0xff]
  %v1207 = vld [vmem:[#allocation2 + $0x1c9] sm:$0xff]
  %v1208 = vld [vmem:[#allocation2 + $0x1d1] sm:$0xff]
  %v1209 = vld [vmem:[#allocation2 + $0x1e1] sm:$0xff]
  %v1210 = vld [vmem:[#allocation2 + $0x1e9] sm:$0xff]
  %v1211 = vld [vmem:[#allocation2 + $0x1f9] sm:$0xff]
  %v1212 = vld [vmem:[#allocation2 + $0x201] sm:$0xff]
  %v1213 = vld [vmem:[#allocation2 + $0x211] sm:$0xff]
  %v1214 = vld [vmem:[#allocation2 + $0x219] sm:$0xff]
  %v1215 = vld [vmem:[#allocation2 + $0x229] sm:$0xff]
  %v1216 = vld [vmem:[#allocation2 + $0x231] sm:$0xff]
  %v1217 = vld [vmem:[#allocation2 + $0x241] sm:$0xff]
  %v1218 = vld [vmem:[#allocation2 + $0x249] sm:$0xff]
  %v1219 = vld [vmem:[#allocation2 + $0x259] sm:$0xff]
  %v1220 = vld [vmem:[#allocation2 + $0x261] sm:$0xff]
  %v1221 = vld [vmem:[#allocation2 + $0x271] sm:$0xff]
  %v1222 = vld [vmem:[#allocation2 + $0x279] sm:$0xff]
  %v1223 = vld [vmem:[#allocation2 + $0x289] sm:$0xff]
  %v1224 = vld [vmem:[#allocation2 + $0x291] sm:$0xff]
  %v1225 = vld [vmem:[#allocation2 + $0x2a1] sm:$0xff]
  %v1226 = vld [vmem:[#allocation2 + $0x2a9] sm:$0xff]
  %v1227 = vld [vmem:[#allocation2 + $0x2b9] sm:$0xff]
  %v1228 = vld [vmem:[#allocation2 + $0x2c1] sm:$0xff]
  %v1229 = vld [vmem:[#allocation2 + $0x2d1] sm:$0xff]
  %v1230 = vld [vmem:[#allocation2 + $0x2d9] sm:$0xff]
  %v1231 = vld [vmem:[#allocation2 + $0x2e9] sm:$0xff]
  %v1232 = vld [vmem:[#allocation2 + $0x2f1] sm:$0xff]
  %v1233 = vld [vmem:[#allocation2 + $0x301] sm:$0xff]
  %v1234 = vld [vmem:[#allocation2 + $0x309] sm:$0xff]
  %v1235 = vld [vmem:[#allocation2 + $0x319] sm:$0xff]
  %v1236 = vld [vmem:[#allocation2 + $0x321] sm:$0xff]
  %1301 = vrot.lane.b32.xlu0 %v1173, 8
  %v1302 = vpop.permute.xlu0 %1301
  %1303 = vrot.lane.b32.xlu0 %v1174, 8
  %v1304 = vpop.permute.xlu0 %1303
  %1305 = vrot.lane.b32.xlu0 %v1175, 8
  %v1306 = vpop.permute.xlu0 %1305
  %1307 = vrot.lane.b32.xlu0 %v1176, 8
  %v1308 = vpop.permute.xlu0 %1307
  %1309 = vrot.lane.b32.xlu0 %v1177, 8
  %v1310 = vpop.permute.xlu0 %1309
  %1311 = vrot.lane.b32.xlu0 %v1178, 8
  %v1312 = vpop.permute.xlu0 %1311
  %1313 = vrot.lane.b32.xlu0 %v1179, 8
  %v1314 = vpop.permute.xlu0 %1313
  %1315 = vrot.lane.b32.xlu0 %v1180, 8
  %v1316 = vpop.permute.xlu0 %1315
  %1317 = vrot.lane.b32.xlu0 %v1181, 8
  %v1318 = vpop.permute.xlu0 %1317
  %1319 = vrot.lane.b32.xlu0 %v1182, 8
  %v1320 = vpop.permute.xlu0 %1319
  %1321 = vrot.lane.b32.xlu0 %v1183, 8
  %v1322 = vpop.permute.xlu0 %1321
  %1323 = vrot.lane.b32.xlu0 %v1184, 8
  %v1324 = vpop.permute.xlu0 %1323
  %1325 = vrot.lane.b32.xlu0 %v1185, 8
  %v1326 = vpop.permute.xlu0 %1325
  %1327 = vrot.lane.b32.xlu0 %v1186, 8
  %v1328 = vpop.permute.xlu0 %1327
  %1329 = vrot.lane.b32.xlu0 %v1187, 8
  %v1330 = vpop.permute.xlu0 %1329
  %1331 = vrot.lane.b32.xlu0 %v1188, 8
  %v1332 = vpop.permute.xlu0 %1331
  %1333 = vrot.lane.b32.xlu0 %v1189, 8
  %v1334 = vpop.permute.xlu0 %1333
  %1335 = vrot.lane.b32.xlu0 %v1190, 8
  %v1336 = vpop.permute.xlu0 %1335
  %1337 = vrot.lane.b32.xlu0 %v1191, 8
  %v1338 = vpop.permute.xlu0 %1337
  %1339 = vrot.lane.b32.xlu0 %v1192, 8
  %v1340 = vpop.permute.xlu0 %1339
  %1341 = vrot.lane.b32.xlu0 %v1193, 8
  %v1342 = vpop.permute.xlu0 %1341
  %1343 = vrot.lane.b32.xlu0 %v1194, 8
  %v1344 = vpop.permute.xlu0 %1343
  %1345 = vrot.lane.b32.xlu0 %v1195, 8
  %v1346 = vpop.permute.xlu0 %1345
  %1347 = vrot.lane.b32.xlu0 %v1196, 8
  %v1348 = vpop.permute.xlu0 %1347
  %1349 = vrot.lane.b32.xlu0 %v1197, 8
  %v1350 = vpop.permute.xlu0 %1349
  %1351 = vrot.lane.b32.xlu0 %v1198, 8
  %v1352 = vpop.permute.xlu0 %1351
  %1353 = vrot.lane.b32.xlu0 %v1199, 8
  %v1354 = vpop.permute.xlu0 %1353
  %1355 = vrot.lane.b32.xlu0 %v1200, 8
  %v1356 = vpop.permute.xlu0 %1355
  %1357 = vrot.lane.b32.xlu0 %v1201, 8
  %v1358 = vpop.permute.xlu0 %1357
  %1359 = vrot.lane.b32.xlu0 %v1202, 8
  %v1360 = vpop.permute.xlu0 %1359
  %1361 = vrot.lane.b32.xlu0 %v1203, 8
  %v1362 = vpop.permute.xlu0 %1361
  %1363 = vrot.lane.b32.xlu0 %v1204, 8
  %v1364 = vpop.permute.xlu0 %1363
  %1365 = vrot.lane.b32.xlu0 %v1205, 8
  %v1366 = vpop.permute.xlu0 %1365
  %1367 = vrot.lane.b32.xlu0 %v1206, 8
  %v1368 = vpop.permute.xlu0 %1367
  %1369 = vrot.lane.b32.xlu0 %v1207, 8
  %v1370 = vpop.permute.xlu0 %1369
  %1371 = vrot.lane.b32.xlu0 %v1208, 8
  %v1372 = vpop.permute.xlu0 %1371
  %1373 = vrot.lane.b32.xlu0 %v1209, 8
  %v1374 = vpop.permute.xlu0 %1373
  %1375 = vrot.lane.b32.xlu0 %v1210, 8
  %v1376 = vpop.permute.xlu0 %1375
  %1377 = vrot.lane.b32.xlu0 %v1211, 8
  %v1378 = vpop.permute.xlu0 %1377
  %1379 = vrot.lane.b32.xlu0 %v1212, 8
  %v1380 = vpop.permute.xlu0 %1379
  %1381 = vrot.lane.b32.xlu0 %v1213, 8
  %v1382 = vpop.permute.xlu0 %1381
  %1383 = vrot.lane.b32.xlu0 %v1214, 8
  %v1384 = vpop.permute.xlu0 %1383
  %1385 = vrot.lane.b32.xlu0 %v1215, 8
  %v1386 = vpop.permute.xlu0 %1385
  %1387 = vrot.lane.b32.xlu0 %v1216, 8
  %v1388 = vpop.permute.xlu0 %1387
  %1389 = vrot.lane.b32.xlu0 %v1217, 8
  %v1390 = vpop.permute.xlu0 %1389
  %1391 = vrot.lane.b32.xlu0 %v1218, 8
  %v1392 = vpop.permute.xlu0 %1391
  %1393 = vrot.lane.b32.xlu0 %v1219, 8
  %v1394 = vpop.permute.xlu0 %1393
  %1395 = vrot.lane.b32.xlu0 %v1220, 8
  %v1396 = vpop.permute.xlu0 %1395
  %1397 = vrot.lane.b32.xlu0 %v1221, 8
  %v1398 = vpop.permute.xlu0 %1397
  %1399 = vrot.lane.b32.xlu0 %v1222, 8
  %v1400 = vpop.permute.xlu0 %1399
  %1401 = vrot.lane.b32.xlu0 %v1223, 8
  %v1402 = vpop.permute.xlu0 %1401
  %1403 = vrot.lane.b32.xlu0 %v1224, 8
  %v1404 = vpop.permute.xlu0 %1403
  %1405 = vrot.lane.b32.xlu0 %v1225, 8
  %v1406 = vpop.permute.xlu0 %1405
  %1407 = vrot.lane.b32.xlu0 %v1226, 8
  %v1408 = vpop.permute.xlu0 %1407
  %1409 = vrot.lane.b32.xlu0 %v1227, 8
  %v1410 = vpop.permute.xlu0 %1409
  %1411 = vrot.lane.b32.xlu0 %v1228, 8
  %v1412 = vpop.permute.xlu0 %1411
  %1413 = vrot.lane.b32.xlu0 %v1229, 8
  %v1414 = vpop.permute.xlu0 %1413
  %1415 = vrot.lane.b32.xlu0 %v1230, 8
  %v1416 = vpop.permute.xlu0 %1415
  %1417 = vrot.lane.b32.xlu0 %v1231, 8
  %v1418 = vpop.permute.xlu0 %1417
  %1419 = vrot.lane.b32.xlu0 %v1232, 8
  %v1420 = vpop.permute.xlu0 %1419
  %1421 = vrot.lane.b32.xlu0 %v1233, 8
  %v1422 = vpop.permute.xlu0 %1421
  %1423 = vrot.lane.b32.xlu0 %v1234, 8
  %v1424 = vpop.permute.xlu0 %1423
  %1425 = vrot.lane.b32.xlu0 %v1235, 8
  %v1426 = vpop.permute.xlu0 %1425
  %1427 = vrot.lane.b32.xlu0 %v1236, 8
  %v1428 = vpop.permute.xlu0 %1427
  %vm1493 = vcmask 130112
  %1494 = vst.msk [vmem:[#allocation3] sm:$0xff] %vm1493, %v1302
  %1495 = vst.msk [vmem:[#allocation3 + $0x8] sm:$0xff] %vm1493, %v1304
  %1496 = vst.msk [vmem:[#allocation3 + $0x10] sm:$0xff] %vm1493, %v1306
  %1497 = vst.msk [vmem:[#allocation3 + $0x18] sm:$0xff] %vm1493, %v1308
  %1498 = vst.msk [vmem:[#allocation3 + $0x20] sm:$0xff] %vm1493, %v1310
  %1499 = vst.msk [vmem:[#allocation3 + $0x28] sm:$0xff] %vm1493, %v1312
  %1500 = vst.msk [vmem:[#allocation3 + $0x30] sm:$0xff] %vm1493, %v1314
  %1501 = vst.msk [vmem:[#allocation3 + $0x38] sm:$0xff] %vm1493, %v1316
  %1502 = vst.msk [vmem:[#allocation3 + $0x40] sm:$0xff] %vm1493, %v1318
  %1503 = vst.msk [vmem:[#allocation3 + $0x48] sm:$0xff] %vm1493, %v1320
  %1504 = vst.msk [vmem:[#allocation3 + $0x50] sm:$0xff] %vm1493, %v1322
  %1505 = vst.msk [vmem:[#allocation3 + $0x58] sm:$0xff] %vm1493, %v1324
  %1506 = vst.msk [vmem:[#allocation3 + $0x60] sm:$0xff] %vm1493, %v1326
  %1507 = vst.msk [vmem:[#allocation3 + $0x68] sm:$0xff] %vm1493, %v1328
  %1508 = vst.msk [vmem:[#allocation3 + $0x70] sm:$0xff] %vm1493, %v1330
  %1509 = vst.msk [vmem:[#allocation3 + $0x78] sm:$0xff] %vm1493, %v1332
  %1510 = vst.msk [vmem:[#allocation3 + $0x80] sm:$0xff] %vm1493, %v1334
  %1511 = vst.msk [vmem:[#allocation3 + $0x88] sm:$0xff] %vm1493, %v1336
  %1512 = vst.msk [vmem:[#allocation3 + $0x90] sm:$0xff] %vm1493, %v1338
  %1513 = vst.msk [vmem:[#allocation3 + $0x98] sm:$0xff] %vm1493, %v1340
  %1514 = vst.msk [vmem:[#allocation3 + $0xa0] sm:$0xff] %vm1493, %v1342
  %1515 = vst.msk [vmem:[#allocation3 + $0xa8] sm:$0xff] %vm1493, %v1344
  %1516 = vst.msk [vmem:[#allocation3 + $0xb0] sm:$0xff] %vm1493, %v1346
  %1517 = vst.msk [vmem:[#allocation3 + $0xb8] sm:$0xff] %vm1493, %v1348
  %1518 = vst.msk [vmem:[#allocation3 + $0xc0] sm:$0xff] %vm1493, %v1350
  %1519 = vst.msk [vmem:[#allocation3 + $0xc8] sm:$0xff] %vm1493, %v1352
  %1520 = vst.msk [vmem:[#allocation3 + $0xd0] sm:$0xff] %vm1493, %v1354
  %1521 = vst.msk [vmem:[#allocation3 + $0xd8] sm:$0xff] %vm1493, %v1356
  %1522 = vst.msk [vmem:[#allocation3 + $0xe0] sm:$0xff] %vm1493, %v1358
  %1523 = vst.msk [vmem:[#allocation3 + $0xe8] sm:$0xff] %vm1493, %v1360
  %1524 = vst.msk [vmem:[#allocation3 + $0xf0] sm:$0xff] %vm1493, %v1362
  %1525 = vst.msk [vmem:[#allocation3 + $0xf8] sm:$0xff] %vm1493, %v1364
  %1526 = vst.msk [vmem:[#allocation3 + $0x100] sm:$0xff] %vm1493, %v1366
  %1527 = vst.msk [vmem:[#allocation3 + $0x108] sm:$0xff] %vm1493, %v1368
  %1528 = vst.msk [vmem:[#allocation3 + $0x110] sm:$0xff] %vm1493, %v1370
  %1529 = vst.msk [vmem:[#allocation3 + $0x118] sm:$0xff] %vm1493, %v1372
  %1530 = vst.msk [vmem:[#allocation3 + $0x120] sm:$0xff] %vm1493, %v1374
  %1531 = vst.msk [vmem:[#allocation3 + $0x128] sm:$0xff] %vm1493, %v1376
  %1532 = vst.msk [vmem:[#allocation3 + $0x130] sm:$0xff] %vm1493, %v1378
  %1533 = vst.msk [vmem:[#allocation3 + $0x138] sm:$0xff] %vm1493, %v1380
  %1534 = vst.msk [vmem:[#allocation3 + $0x140] sm:$0xff] %vm1493, %v1382
  %1535 = vst.msk [vmem:[#allocation3 + $0x148] sm:$0xff] %vm1493, %v1384
  %1536 = vst.msk [vmem:[#allocation3 + $0x150] sm:$0xff] %vm1493, %v1386
  %1537 = vst.msk [vmem:[#allocation3 + $0x158] sm:$0xff] %vm1493, %v1388
  %1538 = vst.msk [vmem:[#allocation3 + $0x160] sm:$0xff] %vm1493, %v1390
  %1539 = vst.msk [vmem:[#allocation3 + $0x168] sm:$0xff] %vm1493, %v1392
  %1540 = vst.msk [vmem:[#allocation3 + $0x170] sm:$0xff] %vm1493, %v1394
  %1541 = vst.msk [vmem:[#allocation3 + $0x178] sm:$0xff] %vm1493, %v1396
  %1542 = vst.msk [vmem:[#allocation3 + $0x180] sm:$0xff] %vm1493, %v1398
  %1543 = vst.msk [vmem:[#allocation3 + $0x188] sm:$0xff] %vm1493, %v1400
  %1544 = vst.msk [vmem:[#allocation3 + $0x190] sm:$0xff] %vm1493, %v1402
  %1545 = vst.msk [vmem:[#allocation3 + $0x198] sm:$0xff] %vm1493, %v1404
  %1546 = vst.msk [vmem:[#allocation3 + $0x1a0] sm:$0xff] %vm1493, %v1406
  %1547 = vst.msk [vmem:[#allocation3 + $0x1a8] sm:$0xff] %vm1493, %v1408
  %1548 = vst.msk [vmem:[#allocation3 + $0x1b0] sm:$0xff] %vm1493, %v1410
  %1549 = vst.msk [vmem:[#allocation3 + $0x1b8] sm:$0xff] %vm1493, %v1412
  %1550 = vst.msk [vmem:[#allocation3 + $0x1c0] sm:$0xff] %vm1493, %v1414
  %1551 = vst.msk [vmem:[#allocation3 + $0x1c8] sm:$0xff] %vm1493, %v1416
  %1552 = vst.msk [vmem:[#allocation3 + $0x1d0] sm:$0xff] %vm1493, %v1418
  %1553 = vst.msk [vmem:[#allocation3 + $0x1d8] sm:$0xff] %vm1493, %v1420
  %1554 = vst.msk [vmem:[#allocation3 + $0x1e0] sm:$0xff] %vm1493, %v1422
  %1555 = vst.msk [vmem:[#allocation3 + $0x1e8] sm:$0xff] %vm1493, %v1424
  %1556 = vst.msk [vmem:[#allocation3 + $0x1f0] sm:$0xff] %vm1493, %v1426
  %1557 = vst.msk [vmem:[#allocation3 + $0x1f8] sm:$0xff] %vm1493, %v1428
  %v1558 = vld [vmem:[#allocation2 + $0x2] sm:$0xff]
  %v1559 = vld [vmem:[#allocation2 + $0xa] sm:$0xff]
  %v1560 = vld [vmem:[#allocation2 + $0x1a] sm:$0xff]
  %v1561 = vld [vmem:[#allocation2 + $0x22] sm:$0xff]
  %v1562 = vld [vmem:[#allocation2 + $0x32] sm:$0xff]
  %v1563 = vld [vmem:[#allocation2 + $0x3a] sm:$0xff]
  %v1564 = vld [vmem:[#allocation2 + $0x4a] sm:$0xff]
  %v1565 = vld [vmem:[#allocation2 + $0x52] sm:$0xff]
  %v1566 = vld [vmem:[#allocation2 + $0x62] sm:$0xff]
  %v1567 = vld [vmem:[#allocation2 + $0x6a] sm:$0xff]
  %v1568 = vld [vmem:[#allocation2 + $0x7a] sm:$0xff]
  %v1569 = vld [vmem:[#allocation2 + $0x82] sm:$0xff]
  %v1570 = vld [vmem:[#allocation2 + $0x92] sm:$0xff]
  %v1571 = vld [vmem:[#allocation2 + $0x9a] sm:$0xff]
  %v1572 = vld [vmem:[#allocation2 + $0xaa] sm:$0xff]
  %v1573 = vld [vmem:[#allocation2 + $0xb2] sm:$0xff]
  %v1574 = vld [vmem:[#allocation2 + $0xc2] sm:$0xff]
  %v1575 = vld [vmem:[#allocation2 + $0xca] sm:$0xff]
  %v1576 = vld [vmem:[#allocation2 + $0xda] sm:$0xff]
  %v1577 = vld [vmem:[#allocation2 + $0xe2] sm:$0xff]
  %v1578 = vld [vmem:[#allocation2 + $0xf2] sm:$0xff]
  %v1579 = vld [vmem:[#allocation2 + $0xfa] sm:$0xff]
  %v1580 = vld [vmem:[#allocation2 + $0x10a] sm:$0xff]
  %v1581 = vld [vmem:[#allocation2 + $0x112] sm:$0xff]
  %v1582 = vld [vmem:[#allocation2 + $0x122] sm:$0xff]
  %v1583 = vld [vmem:[#allocation2 + $0x12a] sm:$0xff]
  %v1584 = vld [vmem:[#allocation2 + $0x13a] sm:$0xff]
  %v1585 = vld [vmem:[#allocation2 + $0x142] sm:$0xff]
  %v1586 = vld [vmem:[#allocation2 + $0x152] sm:$0xff]
  %v1587 = vld [vmem:[#allocation2 + $0x15a] sm:$0xff]
  %v1588 = vld [vmem:[#allocation2 + $0x16a] sm:$0xff]
  %v1589 = vld [vmem:[#allocation2 + $0x172] sm:$0xff]
  %v1590 = vld [vmem:[#allocation2 + $0x1b2] sm:$0xff]
  %v1591 = vld [vmem:[#allocation2 + $0x1ba] sm:$0xff]
  %v1592 = vld [vmem:[#allocation2 + $0x1ca] sm:$0xff]
  %v1593 = vld [vmem:[#allocation2 + $0x1d2] sm:$0xff]
  %v1594 = vld [vmem:[#allocation2 + $0x1e2] sm:$0xff]
  %v1595 = vld [vmem:[#allocation2 + $0x1ea] sm:$0xff]
  %v1596 = vld [vmem:[#allocation2 + $0x1fa] sm:$0xff]
  %v1597 = vld [vmem:[#allocation2 + $0x202] sm:$0xff]
  %v1598 = vld [vmem:[#allocation2 + $0x212] sm:$0xff]
  %v1599 = vld [vmem:[#allocation2 + $0x21a] sm:$0xff]
  %v1600 = vld [vmem:[#allocation2 + $0x22a] sm:$0xff]
  %v1601 = vld [vmem:[#allocation2 + $0x232] sm:$0xff]
  %v1602 = vld [vmem:[#allocation2 + $0x242] sm:$0xff]
  %v1603 = vld [vmem:[#allocation2 + $0x24a] sm:$0xff]
  %v1604 = vld [vmem:[#allocation2 + $0x25a] sm:$0xff]
  %v1605 = vld [vmem:[#allocation2 + $0x262] sm:$0xff]
  %v1606 = vld [vmem:[#allocation2 + $0x272] sm:$0xff]
  %v1607 = vld [vmem:[#allocation2 + $0x27a] sm:$0xff]
  %v1608 = vld [vmem:[#allocation2 + $0x28a] sm:$0xff]
  %v1609 = vld [vmem:[#allocation2 + $0x292] sm:$0xff]
  %v1610 = vld [vmem:[#allocation2 + $0x2a2] sm:$0xff]
  %v1611 = vld [vmem:[#allocation2 + $0x2aa] sm:$0xff]
  %v1612 = vld [vmem:[#allocation2 + $0x2ba] sm:$0xff]
  %v1613 = vld [vmem:[#allocation2 + $0x2c2] sm:$0xff]
  %v1614 = vld [vmem:[#allocation2 + $0x2d2] sm:$0xff]
  %v1615 = vld [vmem:[#allocation2 + $0x2da] sm:$0xff]
  %v1616 = vld [vmem:[#allocation2 + $0x2ea] sm:$0xff]
  %v1617 = vld [vmem:[#allocation2 + $0x2f2] sm:$0xff]
  %v1618 = vld [vmem:[#allocation2 + $0x302] sm:$0xff]
  %v1619 = vld [vmem:[#allocation2 + $0x30a] sm:$0xff]
  %v1620 = vld [vmem:[#allocation2 + $0x31a] sm:$0xff]
  %v1621 = vld [vmem:[#allocation2 + $0x322] sm:$0xff]
  %1686 = vrot.lane.b32.xlu0 %v1558, 16
  %v1687 = vpop.permute.xlu0 %1686
  %1688 = vrot.lane.b32.xlu0 %v1559, 16
  %v1689 = vpop.permute.xlu0 %1688
  %1690 = vrot.lane.b32.xlu0 %v1560, 16
  %v1691 = vpop.permute.xlu0 %1690
  %1692 = vrot.lane.b32.xlu0 %v1561, 16
  %v1693 = vpop.permute.xlu0 %1692
  %1694 = vrot.lane.b32.xlu0 %v1562, 16
  %v1695 = vpop.permute.xlu0 %1694
  %1696 = vrot.lane.b32.xlu0 %v1563, 16
  %v1697 = vpop.permute.xlu0 %1696
  %1698 = vrot.lane.b32.xlu0 %v1564, 16
  %v1699 = vpop.permute.xlu0 %1698
  %1700 = vrot.lane.b32.xlu0 %v1565, 16
  %v1701 = vpop.permute.xlu0 %1700
  %1702 = vrot.lane.b32.xlu0 %v1566, 16
  %v1703 = vpop.permute.xlu0 %1702
  %1704 = vrot.lane.b32.xlu0 %v1567, 16
  %v1705 = vpop.permute.xlu0 %1704
  %1706 = vrot.lane.b32.xlu0 %v1568, 16
  %v1707 = vpop.permute.xlu0 %1706
  %1708 = vrot.lane.b32.xlu0 %v1569, 16
  %v1709 = vpop.permute.xlu0 %1708
  %1710 = vrot.lane.b32.xlu0 %v1570, 16
  %v1711 = vpop.permute.xlu0 %1710
  %1712 = vrot.lane.b32.xlu0 %v1571, 16
  %v1713 = vpop.permute.xlu0 %1712
  %1714 = vrot.lane.b32.xlu0 %v1572, 16
  %v1715 = vpop.permute.xlu0 %1714
  %1716 = vrot.lane.b32.xlu0 %v1573, 16
  %v1717 = vpop.permute.xlu0 %1716
  %1718 = vrot.lane.b32.xlu0 %v1574, 16
  %v1719 = vpop.permute.xlu0 %1718
  %1720 = vrot.lane.b32.xlu0 %v1575, 16
  %v1721 = vpop.permute.xlu0 %1720
  %1722 = vrot.lane.b32.xlu0 %v1576, 16
  %v1723 = vpop.permute.xlu0 %1722
  %1724 = vrot.lane.b32.xlu0 %v1577, 16
  %v1725 = vpop.permute.xlu0 %1724
  %1726 = vrot.lane.b32.xlu0 %v1578, 16
  %v1727 = vpop.permute.xlu0 %1726
  %1728 = vrot.lane.b32.xlu0 %v1579, 16
  %v1729 = vpop.permute.xlu0 %1728
  %1730 = vrot.lane.b32.xlu0 %v1580, 16
  %v1731 = vpop.permute.xlu0 %1730
  %1732 = vrot.lane.b32.xlu0 %v1581, 16
  %v1733 = vpop.permute.xlu0 %1732
  %1734 = vrot.lane.b32.xlu0 %v1582, 16
  %v1735 = vpop.permute.xlu0 %1734
  %1736 = vrot.lane.b32.xlu0 %v1583, 16
  %v1737 = vpop.permute.xlu0 %1736
  %1738 = vrot.lane.b32.xlu0 %v1584, 16
  %v1739 = vpop.permute.xlu0 %1738
  %1740 = vrot.lane.b32.xlu0 %v1585, 16
  %v1741 = vpop.permute.xlu0 %1740
  %1742 = vrot.lane.b32.xlu0 %v1586, 16
  %v1743 = vpop.permute.xlu0 %1742
  %1744 = vrot.lane.b32.xlu0 %v1587, 16
  %v1745 = vpop.permute.xlu0 %1744
  %1746 = vrot.lane.b32.xlu0 %v1588, 16
  %v1747 = vpop.permute.xlu0 %1746
  %1748 = vrot.lane.b32.xlu0 %v1589, 16
  %v1749 = vpop.permute.xlu0 %1748
  %1750 = vrot.lane.b32.xlu0 %v1590, 16
  %v1751 = vpop.permute.xlu0 %1750
  %1752 = vrot.lane.b32.xlu0 %v1591, 16
  %v1753 = vpop.permute.xlu0 %1752
  %1754 = vrot.lane.b32.xlu0 %v1592, 16
  %v1755 = vpop.permute.xlu0 %1754
  %1756 = vrot.lane.b32.xlu0 %v1593, 16
  %v1757 = vpop.permute.xlu0 %1756
  %1758 = vrot.lane.b32.xlu0 %v1594, 16
  %v1759 = vpop.permute.xlu0 %1758
  %1760 = vrot.lane.b32.xlu0 %v1595, 16
  %v1761 = vpop.permute.xlu0 %1760
  %1762 = vrot.lane.b32.xlu0 %v1596, 16
  %v1763 = vpop.permute.xlu0 %1762
  %1764 = vrot.lane.b32.xlu0 %v1597, 16
  %v1765 = vpop.permute.xlu0 %1764
  %1766 = vrot.lane.b32.xlu0 %v1598, 16
  %v1767 = vpop.permute.xlu0 %1766
  %1768 = vrot.lane.b32.xlu0 %v1599, 16
  %v1769 = vpop.permute.xlu0 %1768
  %1770 = vrot.lane.b32.xlu0 %v1600, 16
  %v1771 = vpop.permute.xlu0 %1770
  %1772 = vrot.lane.b32.xlu0 %v1601, 16
  %v1773 = vpop.permute.xlu0 %1772
  %1774 = vrot.lane.b32.xlu0 %v1602, 16
  %v1775 = vpop.permute.xlu0 %1774
  %1776 = vrot.lane.b32.xlu0 %v1603, 16
  %v1777 = vpop.permute.xlu0 %1776
  %1778 = vrot.lane.b32.xlu0 %v1604, 16
  %v1779 = vpop.permute.xlu0 %1778
  %1780 = vrot.lane.b32.xlu0 %v1605, 16
  %v1781 = vpop.permute.xlu0 %1780
  %1782 = vrot.lane.b32.xlu0 %v1606, 16
  %v1783 = vpop.permute.xlu0 %1782
  %1784 = vrot.lane.b32.xlu0 %v1607, 16
  %v1785 = vpop.permute.xlu0 %1784
  %1786 = vrot.lane.b32.xlu0 %v1608, 16
  %v1787 = vpop.permute.xlu0 %1786
  %1788 = vrot.lane.b32.xlu0 %v1609, 16
  %v1789 = vpop.permute.xlu0 %1788
  %1790 = vrot.lane.b32.xlu0 %v1610, 16
  %v1791 = vpop.permute.xlu0 %1790
  %1792 = vrot.lane.b32.xlu0 %v1611, 16
  %v1793 = vpop.permute.xlu0 %1792
  %1794 = vrot.lane.b32.xlu0 %v1612, 16
  %v1795 = vpop.permute.xlu0 %1794
  %1796 = vrot.lane.b32.xlu0 %v1613, 16
  %v1797 = vpop.permute.xlu0 %1796
  %1798 = vrot.lane.b32.xlu0 %v1614, 16
  %v1799 = vpop.permute.xlu0 %1798
  %1800 = vrot.lane.b32.xlu0 %v1615, 16
  %v1801 = vpop.permute.xlu0 %1800
  %1802 = vrot.lane.b32.xlu0 %v1616, 16
  %v1803 = vpop.permute.xlu0 %1802
  %1804 = vrot.lane.b32.xlu0 %v1617, 16
  %v1805 = vpop.permute.xlu0 %1804
  %1806 = vrot.lane.b32.xlu0 %v1618, 16
  %v1807 = vpop.permute.xlu0 %1806
  %1808 = vrot.lane.b32.xlu0 %v1619, 16
  %v1809 = vpop.permute.xlu0 %1808
  %1810 = vrot.lane.b32.xlu0 %v1620, 16
  %v1811 = vpop.permute.xlu0 %1810
  %1812 = vrot.lane.b32.xlu0 %v1621, 16
  %v1813 = vpop.permute.xlu0 %1812
  %vm1878 = vcmask 195712
  %1879 = vst.msk [vmem:[#allocation3] sm:$0xff] %vm1878, %v1687
  %1880 = vst.msk [vmem:[#allocation3 + $0x8] sm:$0xff] %vm1878, %v1689
  %1881 = vst.msk [vmem:[#allocation3 + $0x10] sm:$0xff] %vm1878, %v1691
  %1882 = vst.msk [vmem:[#allocation3 + $0x18] sm:$0xff] %vm1878, %v1693
  %1883 = vst.msk [vmem:[#allocation3 + $0x20] sm:$0xff] %vm1878, %v1695
  %1884 = vst.msk [vmem:[#allocation3 + $0x28] sm:$0xff] %vm1878, %v1697
  %1885 = vst.msk [vmem:[#allocation3 + $0x30] sm:$0xff] %vm1878, %v1699
  %1886 = vst.msk [vmem:[#allocation3 + $0x38] sm:$0xff] %vm1878, %v1701
  %1887 = vst.msk [vmem:[#allocation3 + $0x40] sm:$0xff] %vm1878, %v1703
  %1888 = vst.msk [vmem:[#allocation3 + $0x48] sm:$0xff] %vm1878, %v1705
  %1889 = vst.msk [vmem:[#allocation3 + $0x50] sm:$0xff] %vm1878, %v1707
  %1890 = vst.msk [vmem:[#allocation3 + $0x58] sm:$0xff] %vm1878, %v1709
  %1891 = vst.msk [vmem:[#allocation3 + $0x60] sm:$0xff] %vm1878, %v1711
  %1892 = vst.msk [vmem:[#allocation3 + $0x68] sm:$0xff] %vm1878, %v1713
  %1893 = vst.msk [vmem:[#allocation3 + $0x70] sm:$0xff] %vm1878, %v1715
  %1894 = vst.msk [vmem:[#allocation3 + $0x78] sm:$0xff] %vm1878, %v1717
  %1895 = vst.msk [vmem:[#allocation3 + $0x80] sm:$0xff] %vm1878, %v1719
  %1896 = vst.msk [vmem:[#allocation3 + $0x88] sm:$0xff] %vm1878, %v1721
  %1897 = vst.msk [vmem:[#allocation3 + $0x90] sm:$0xff] %vm1878, %v1723
  %1898 = vst.msk [vmem:[#allocation3 + $0x98] sm:$0xff] %vm1878, %v1725
  %1899 = vst.msk [vmem:[#allocation3 + $0xa0] sm:$0xff] %vm1878, %v1727
  %1900 = vst.msk [vmem:[#allocation3 + $0xa8] sm:$0xff] %vm1878, %v1729
  %1901 = vst.msk [vmem:[#allocation3 + $0xb0] sm:$0xff] %vm1878, %v1731
  %1902 = vst.msk [vmem:[#allocation3 + $0xb8] sm:$0xff] %vm1878, %v1733
  %1903 = vst.msk [vmem:[#allocation3 + $0xc0] sm:$0xff] %vm1878, %v1735
  %1904 = vst.msk [vmem:[#allocation3 + $0xc8] sm:$0xff] %vm1878, %v1737
  %1905 = vst.msk [vmem:[#allocation3 + $0xd0] sm:$0xff] %vm1878, %v1739
  %1906 = vst.msk [vmem:[#allocation3 + $0xd8] sm:$0xff] %vm1878, %v1741
  %1907 = vst.msk [vmem:[#allocation3 + $0xe0] sm:$0xff] %vm1878, %v1743
  %1908 = vst.msk [vmem:[#allocation3 + $0xe8] sm:$0xff] %vm1878, %v1745
  %1909 = vst.msk [vmem:[#allocation3 + $0xf0] sm:$0xff] %vm1878, %v1747
  %1910 = vst.msk [vmem:[#allocation3 + $0xf8] sm:$0xff] %vm1878, %v1749
  %1911 = vst.msk [vmem:[#allocation3 + $0x100] sm:$0xff] %vm1878, %v1751
  %1912 = vst.msk [vmem:[#allocation3 + $0x108] sm:$0xff] %vm1878, %v1753
  %1913 = vst.msk [vmem:[#allocation3 + $0x110] sm:$0xff] %vm1878, %v1755
  %1914 = vst.msk [vmem:[#allocation3 + $0x118] sm:$0xff] %vm1878, %v1757
  %1915 = vst.msk [vmem:[#allocation3 + $0x120] sm:$0xff] %vm1878, %v1759
  %1916 = vst.msk [vmem:[#allocation3 + $0x128] sm:$0xff] %vm1878, %v1761
  %1917 = vst.msk [vmem:[#allocation3 + $0x130] sm:$0xff] %vm1878, %v1763
  %1918 = vst.msk [vmem:[#allocation3 + $0x138] sm:$0xff] %vm1878, %v1765
  %1919 = vst.msk [vmem:[#allocation3 + $0x140] sm:$0xff] %vm1878, %v1767
  %1920 = vst.msk [vmem:[#allocation3 + $0x148] sm:$0xff] %vm1878, %v1769
  %1921 = vst.msk [vmem:[#allocation3 + $0x150] sm:$0xff] %vm1878, %v1771
  %1922 = vst.msk [vmem:[#allocation3 + $0x158] sm:$0xff] %vm1878, %v1773
  %1923 = vst.msk [vmem:[#allocation3 + $0x160] sm:$0xff] %vm1878, %v1775
  %1924 = vst.msk [vmem:[#allocation3 + $0x168] sm:$0xff] %vm1878, %v1777
  %1925 = vst.msk [vmem:[#allocation3 + $0x170] sm:$0xff] %vm1878, %v1779
  %1926 = vst.msk [vmem:[#allocation3 + $0x178] sm:$0xff] %vm1878, %v1781
  %1927 = vst.msk [vmem:[#allocation3 + $0x180] sm:$0xff] %vm1878, %v1783
  %1928 = vst.msk [vmem:[#allocation3 + $0x188] sm:$0xff] %vm1878, %v1785
  %1929 = vst.msk [vmem:[#allocation3 + $0x190] sm:$0xff] %vm1878, %v1787
  %1930 = vst.msk [vmem:[#allocation3 + $0x198] sm:$0xff] %vm1878, %v1789
  %1931 = vst.msk [vmem:[#allocation3 + $0x1a0] sm:$0xff] %vm1878, %v1791
  %1932 = vst.msk [vmem:[#allocation3 + $0x1a8] sm:$0xff] %vm1878, %v1793
  %1933 = vst.msk [vmem:[#allocation3 + $0x1b0] sm:$0xff] %vm1878, %v1795
  %1934 = vst.msk [vmem:[#allocation3 + $0x1b8] sm:$0xff] %vm1878, %v1797
  %1935 = vst.msk [vmem:[#allocation3 + $0x1c0] sm:$0xff] %vm1878, %v1799
  %1936 = vst.msk [vmem:[#allocation3 + $0x1c8] sm:$0xff] %vm1878, %v1801
  %1937 = vst.msk [vmem:[#allocation3 + $0x1d0] sm:$0xff] %vm1878, %v1803
  %1938 = vst.msk [vmem:[#allocation3 + $0x1d8] sm:$0xff] %vm1878, %v1805
  %1939 = vst.msk [vmem:[#allocation3 + $0x1e0] sm:$0xff] %vm1878, %v1807
  %1940 = vst.msk [vmem:[#allocation3 + $0x1e8] sm:$0xff] %vm1878, %v1809
  %1941 = vst.msk [vmem:[#allocation3 + $0x1f0] sm:$0xff] %vm1878, %v1811
  %1942 = vst.msk [vmem:[#allocation3 + $0x1f8] sm:$0xff] %vm1878, %v1813
  %v1943 = vld [vmem:[%s980] sm:$0xff]
  %v1944 = vld [vmem:[%s980 + $0x8] sm:$0xff]
  %v1945 = vld [vmem:[%s980 + $0x18] sm:$0xff]
  %v1946 = vld [vmem:[%s980 + $0x20] sm:$0xff]
  %v1947 = vld [vmem:[%s980 + $0x30] sm:$0xff]
  %v1948 = vld [vmem:[%s980 + $0x38] sm:$0xff]
  %v1949 = vld [vmem:[%s980 + $0x48] sm:$0xff]
  %v1950 = vld [vmem:[%s980 + $0x50] sm:$0xff]
  %v1951 = vld [vmem:[%s980 + $0x60] sm:$0xff]
  %v1952 = vld [vmem:[%s980 + $0x68] sm:$0xff]
  %v1953 = vld [vmem:[%s980 + $0x78] sm:$0xff]
  %v1954 = vld [vmem:[%s980 + $0x80] sm:$0xff]
  %v1955 = vld [vmem:[%s980 + $0x90] sm:$0xff]
  %v1956 = vld [vmem:[%s980 + $0x98] sm:$0xff]
  %v1957 = vld [vmem:[%s980 + $0xa8] sm:$0xff]
  %v1958 = vld [vmem:[%s980 + $0xb0] sm:$0xff]
  %v1959 = vld [vmem:[%s980 + $0xc0] sm:$0xff]
  %v1960 = vld [vmem:[%s980 + $0xc8] sm:$0xff]
  %v1961 = vld [vmem:[%s980 + $0xd8] sm:$0xff]
  %v1962 = vld [vmem:[%s980 + $0xe0] sm:$0xff]
  %v1963 = vld [vmem:[%s980 + $0xf0] sm:$0xff]
  %v1964 = vld [vmem:[%s980 + $0xf8] sm:$0xff]
  %v1965 = vld [vmem:[%s980 + $0x108] sm:$0xff]
  %v1966 = vld [vmem:[%s980 + $0x110] sm:$0xff]
  %v1967 = vld [vmem:[%s980 + $0x120] sm:$0xff]
  %v1968 = vld [vmem:[%s980 + $0x128] sm:$0xff]
  %v1969 = vld [vmem:[%s980 + $0x138] sm:$0xff]
  %v1970 = vld [vmem:[%s980 + $0x140] sm:$0xff]
  %v1971 = vld [vmem:[%s980 + $0x150] sm:$0xff]
  %v1972 = vld [vmem:[%s980 + $0x158] sm:$0xff]
  %v1973 = vld [vmem:[%s980 + $0x168] sm:$0xff]
  %v1974 = vld [vmem:[%s980 + $0x170] sm:$0xff]
  %v1975 = vld [vmem:[%s980 + $0x1b0] sm:$0xff]
  %v1976 = vld [vmem:[%s980 + $0x1b8] sm:$0xff]
  %v1977 = vld [vmem:[%s980 + $0x1c8] sm:$0xff]
  %v1978 = vld [vmem:[%s980 + $0x1d0] sm:$0xff]
  %v1979 = vld [vmem:[%s980 + $0x1e0] sm:$0xff]
  %v1980 = vld [vmem:[%s980 + $0x1e8] sm:$0xff]
  %v1981 = vld [vmem:[%s980 + $0x1f8] sm:$0xff]
  %v1982 = vld [vmem:[%s980 + $0x200] sm:$0xff]
  %v1983 = vld [vmem:[%s980 + $0x210] sm:$0xff]
  %v1984 = vld [vmem:[%s980 + $0x218] sm:$0xff]
  %v1985 = vld [vmem:[%s980 + $0x228] sm:$0xff]
  %v1986 = vld [vmem:[%s980 + $0x230] sm:$0xff]
  %v1987 = vld [vmem:[%s980 + $0x240] sm:$0xff]
  %v1988 = vld [vmem:[%s980 + $0x248] sm:$0xff]
  %v1989 = vld [vmem:[%s980 + $0x258] sm:$0xff]
  %v1990 = vld [vmem:[%s980 + $0x260] sm:$0xff]
  %v1991 = vld [vmem:[%s980 + $0x270] sm:$0xff]
  %v1992 = vld [vmem:[%s980 + $0x278] sm:$0xff]
  %v1993 = vld [vmem:[%s980 + $0x288] sm:$0xff]
  %v1994 = vld [vmem:[%s980 + $0x290] sm:$0xff]
  %v1995 = vld [vmem:[%s980 + $0x2a0] sm:$0xff]
  %v1996 = vld [vmem:[%s980 + $0x2a8] sm:$0xff]
  %v1997 = vld [vmem:[%s980 + $0x2b8] sm:$0xff]
  %v1998 = vld [vmem:[%s980 + $0x2c0] sm:$0xff]
  %v1999 = vld [vmem:[%s980 + $0x2d0] sm:$0xff]
  %v2000 = vld [vmem:[%s980 + $0x2d8] sm:$0xff]
  %v2001 = vld [vmem:[%s980 + $0x2e8] sm:$0xff]
  %v2002 = vld [vmem:[%s980 + $0x2f0] sm:$0xff]
  %v2003 = vld [vmem:[%s980 + $0x300] sm:$0xff]
  %v2004 = vld [vmem:[%s980 + $0x308] sm:$0xff]
  %v2005 = vld [vmem:[%s980 + $0x318] sm:$0xff]
  %v2006 = vld [vmem:[%s980 + $0x320] sm:$0xff]
  %2071 = vrot.lane.b32.xlu0 %v1943, 24
  %v2072 = vpop.permute.xlu0 %2071
  %2073 = vrot.lane.b32.xlu0 %v1944, 24
  %v2074 = vpop.permute.xlu0 %2073
  %2075 = vrot.lane.b32.xlu0 %v1945, 24
  %v2076 = vpop.permute.xlu0 %2075
  %2077 = vrot.lane.b32.xlu0 %v1946, 24
  %v2078 = vpop.permute.xlu0 %2077
  %2079 = vrot.lane.b32.xlu0 %v1947, 24
  %v2080 = vpop.permute.xlu0 %2079
  %2081 = vrot.lane.b32.xlu0 %v1948, 24
  %v2082 = vpop.permute.xlu0 %2081
  %2083 = vrot.lane.b32.xlu0 %v1949, 24
  %v2084 = vpop.permute.xlu0 %2083
  %2085 = vrot.lane.b32.xlu0 %v1950, 24
  %v2086 = vpop.permute.xlu0 %2085
  %2087 = vrot.lane.b32.xlu0 %v1951, 24
  %v2088 = vpop.permute.xlu0 %2087
  %2089 = vrot.lane.b32.xlu0 %v1952, 24
  %v2090 = vpop.permute.xlu0 %2089
  %2091 = vrot.lane.b32.xlu0 %v1953, 24
  %v2092 = vpop.permute.xlu0 %2091
  %2093 = vrot.lane.b32.xlu0 %v1954, 24
  %v2094 = vpop.permute.xlu0 %2093
  %2095 = vrot.lane.b32.xlu0 %v1955, 24
  %v2096 = vpop.permute.xlu0 %2095
  %2097 = vrot.lane.b32.xlu0 %v1956, 24
  %v2098 = vpop.permute.xlu0 %2097
  %2099 = vrot.lane.b32.xlu0 %v1957, 24
  %v2100 = vpop.permute.xlu0 %2099
  %2101 = vrot.lane.b32.xlu0 %v1958, 24
  %v2102 = vpop.permute.xlu0 %2101
  %2103 = vrot.lane.b32.xlu0 %v1959, 24
  %v2104 = vpop.permute.xlu0 %2103
  %2105 = vrot.lane.b32.xlu0 %v1960, 24
  %v2106 = vpop.permute.xlu0 %2105
  %2107 = vrot.lane.b32.xlu0 %v1961, 24
  %v2108 = vpop.permute.xlu0 %2107
  %2109 = vrot.lane.b32.xlu0 %v1962, 24
  %v2110 = vpop.permute.xlu0 %2109
  %2111 = vrot.lane.b32.xlu0 %v1963, 24
  %v2112 = vpop.permute.xlu0 %2111
  %2113 = vrot.lane.b32.xlu0 %v1964, 24
  %v2114 = vpop.permute.xlu0 %2113
  %2115 = vrot.lane.b32.xlu0 %v1965, 24
  %v2116 = vpop.permute.xlu0 %2115
  %2117 = vrot.lane.b32.xlu0 %v1966, 24
  %v2118 = vpop.permute.xlu0 %2117
  %2119 = vrot.lane.b32.xlu0 %v1967, 24
  %v2120 = vpop.permute.xlu0 %2119
  %2121 = vrot.lane.b32.xlu0 %v1968, 24
  %v2122 = vpop.permute.xlu0 %2121
  %2123 = vrot.lane.b32.xlu0 %v1969, 24
  %v2124 = vpop.permute.xlu0 %2123
  %2125 = vrot.lane.b32.xlu0 %v1970, 24
  %v2126 = vpop.permute.xlu0 %2125
  %2127 = vrot.lane.b32.xlu0 %v1971, 24
  %v2128 = vpop.permute.xlu0 %2127
  %2129 = vrot.lane.b32.xlu0 %v1972, 24
  %v2130 = vpop.permute.xlu0 %2129
  %2131 = vrot.lane.b32.xlu0 %v1973, 24
  %v2132 = vpop.permute.xlu0 %2131
  %2133 = vrot.lane.b32.xlu0 %v1974, 24
  %v2134 = vpop.permute.xlu0 %2133
  %2135 = vrot.lane.b32.xlu0 %v1975, 24
  %v2136 = vpop.permute.xlu0 %2135
  %2137 = vrot.lane.b32.xlu0 %v1976, 24
  %v2138 = vpop.permute.xlu0 %2137
  %2139 = vrot.lane.b32.xlu0 %v1977, 24
  %v2140 = vpop.permute.xlu0 %2139
  %2141 = vrot.lane.b32.xlu0 %v1978, 24
  %v2142 = vpop.permute.xlu0 %2141
  %2143 = vrot.lane.b32.xlu0 %v1979, 24
  %v2144 = vpop.permute.xlu0 %2143
  %2145 = vrot.lane.b32.xlu0 %v1980, 24
  %v2146 = vpop.permute.xlu0 %2145
  %2147 = vrot.lane.b32.xlu0 %v1981, 24
  %v2148 = vpop.permute.xlu0 %2147
  %2149 = vrot.lane.b32.xlu0 %v1982, 24
  %v2150 = vpop.permute.xlu0 %2149
  %2151 = vrot.lane.b32.xlu0 %v1983, 24
  %v2152 = vpop.permute.xlu0 %2151
  %2153 = vrot.lane.b32.xlu0 %v1984, 24
  %v2154 = vpop.permute.xlu0 %2153
  %2155 = vrot.lane.b32.xlu0 %v1985, 24
  %v2156 = vpop.permute.xlu0 %2155
  %2157 = vrot.lane.b32.xlu0 %v1986, 24
  %v2158 = vpop.permute.xlu0 %2157
  %2159 = vrot.lane.b32.xlu0 %v1987, 24
  %v2160 = vpop.permute.xlu0 %2159
  %2161 = vrot.lane.b32.xlu0 %v1988, 24
  %v2162 = vpop.permute.xlu0 %2161
  %2163 = vrot.lane.b32.xlu0 %v1989, 24
  %v2164 = vpop.permute.xlu0 %2163
  %2165 = vrot.lane.b32.xlu0 %v1990, 24
  %v2166 = vpop.permute.xlu0 %2165
  %2167 = vrot.lane.b32.xlu0 %v1991, 24
  %v2168 = vpop.permute.xlu0 %2167
  %2169 = vrot.lane.b32.xlu0 %v1992, 24
  %v2170 = vpop.permute.xlu0 %2169
  %2171 = vrot.lane.b32.xlu0 %v1993, 24
  %v2172 = vpop.permute.xlu0 %2171
  %2173 = vrot.lane.b32.xlu0 %v1994, 24
  %v2174 = vpop.permute.xlu0 %2173
  %2175 = vrot.lane.b32.xlu0 %v1995, 24
  %v2176 = vpop.permute.xlu0 %2175
  %2177 = vrot.lane.b32.xlu0 %v1996, 24
  %v2178 = vpop.permute.xlu0 %2177
  %2179 = vrot.lane.b32.xlu0 %v1997, 24
  %v2180 = vpop.permute.xlu0 %2179
  %2181 = vrot.lane.b32.xlu0 %v1998, 24
  %v2182 = vpop.permute.xlu0 %2181
  %2183 = vrot.lane.b32.xlu0 %v1999, 24
  %v2184 = vpop.permute.xlu0 %2183
  %2185 = vrot.lane.b32.xlu0 %v2000, 24
  %v2186 = vpop.permute.xlu0 %2185
  %2187 = vrot.lane.b32.xlu0 %v2001, 24
  %v2188 = vpop.permute.xlu0 %2187
  %2189 = vrot.lane.b32.xlu0 %v2002, 24
  %v2190 = vpop.permute.xlu0 %2189
  %2191 = vrot.lane.b32.xlu0 %v2003, 24
  %v2192 = vpop.permute.xlu0 %2191
  %2193 = vrot.lane.b32.xlu0 %v2004, 24
  %v2194 = vpop.permute.xlu0 %2193
  %2195 = vrot.lane.b32.xlu0 %v2005, 24
  %v2196 = vpop.permute.xlu0 %2195
  %2197 = vrot.lane.b32.xlu0 %v2006, 24
  %v2198 = vpop.permute.xlu0 %2197
  %vm2263 = vcmask 261312
  %2264 = vst.msk [vmem:[#allocation3] sm:$0xff] %vm2263, %v2072
  %2265 = vst.msk [vmem:[#allocation3 + $0x8] sm:$0xff] %vm2263, %v2074
  %2266 = vst.msk [vmem:[#allocation3 + $0x10] sm:$0xff] %vm2263, %v2076
  %2267 = vst.msk [vmem:[#allocation3 + $0x18] sm:$0xff] %vm2263, %v2078
  %2268 = vst.msk [vmem:[#allocation3 + $0x20] sm:$0xff] %vm2263, %v2080
  %2269 = vst.msk [vmem:[#allocation3 + $0x28] sm:$0xff] %vm2263, %v2082
  %2270 = vst.msk [vmem:[#allocation3 + $0x30] sm:$0xff] %vm2263, %v2084
  %2271 = vst.msk [vmem:[#allocation3 + $0x38] sm:$0xff] %vm2263, %v2086
  %2272 = vst.msk [vmem:[#allocation3 + $0x40] sm:$0xff] %vm2263, %v2088
  %2273 = vst.msk [vmem:[#allocation3 + $0x48] sm:$0xff] %vm2263, %v2090
  %2274 = vst.msk [vmem:[#allocation3 + $0x50] sm:$0xff] %vm2263, %v2092
  %2275 = vst.msk [vmem:[#allocation3 + $0x58] sm:$0xff] %vm2263, %v2094
  %2276 = vst.msk [vmem:[#allocation3 + $0x60] sm:$0xff] %vm2263, %v2096
  %2277 = vst.msk [vmem:[#allocation3 + $0x68] sm:$0xff] %vm2263, %v2098
  %2278 = vst.msk [vmem:[#allocation3 + $0x70] sm:$0xff] %vm2263, %v2100
  %2279 = vst.msk [vmem:[#allocation3 + $0x78] sm:$0xff] %vm2263, %v2102
  %2280 = vst.msk [vmem:[#allocation3 + $0x80] sm:$0xff] %vm2263, %v2104
  %2281 = vst.msk [vmem:[#allocation3 + $0x88] sm:$0xff] %vm2263, %v2106
  %2282 = vst.msk [vmem:[#allocation3 + $0x90] sm:$0xff] %vm2263, %v2108
  %2283 = vst.msk [vmem:[#allocation3 + $0x98] sm:$0xff] %vm2263, %v2110
  %2284 = vst.msk [vmem:[#allocation3 + $0xa0] sm:$0xff] %vm2263, %v2112
  %2285 = vst.msk [vmem:[#allocation3 + $0xa8] sm:$0xff] %vm2263, %v2114
  %2286 = vst.msk [vmem:[#allocation3 + $0xb0] sm:$0xff] %vm2263, %v2116
  %2287 = vst.msk [vmem:[#allocation3 + $0xb8] sm:$0xff] %vm2263, %v2118
  %2288 = vst.msk [vmem:[#allocation3 + $0xc0] sm:$0xff] %vm2263, %v2120
  %2289 = vst.msk [vmem:[#allocation3 + $0xc8] sm:$0xff] %vm2263, %v2122
  %2290 = vst.msk [vmem:[#allocation3 + $0xd0] sm:$0xff] %vm2263, %v2124
  %2291 = vst.msk [vmem:[#allocation3 + $0xd8] sm:$0xff] %vm2263, %v2126
  %2292 = vst.msk [vmem:[#allocation3 + $0xe0] sm:$0xff] %vm2263, %v2128
  %2293 = vst.msk [vmem:[#allocation3 + $0xe8] sm:$0xff] %vm2263, %v2130
  %2294 = vst.msk [vmem:[#allocation3 + $0xf0] sm:$0xff] %vm2263, %v2132
  %2295 = vst.msk [vmem:[#allocation3 + $0xf8] sm:$0xff] %vm2263, %v2134
  %2296 = vst.msk [vmem:[#allocation3 + $0x100] sm:$0xff] %vm2263, %v2136
  %2297 = vst.msk [vmem:[#allocation3 + $0x108] sm:$0xff] %vm2263, %v2138
  %2298 = vst.msk [vmem:[#allocation3 + $0x110] sm:$0xff] %vm2263, %v2140
  %2299 = vst.msk [vmem:[#allocation3 + $0x118] sm:$0xff] %vm2263, %v2142
  %2300 = vst.msk [vmem:[#allocation3 + $0x120] sm:$0xff] %vm2263, %v2144
  %2301 = vst.msk [vmem:[#allocation3 + $0x128] sm:$0xff] %vm2263, %v2146
  %2302 = vst.msk [vmem:[#allocation3 + $0x130] sm:$0xff] %vm2263, %v2148
  %2303 = vst.msk [vmem:[#allocation3 + $0x138] sm:$0xff] %vm2263, %v2150
  %2304 = vst.msk [vmem:[#allocation3 + $0x140] sm:$0xff] %vm2263, %v2152
  %2305 = vst.msk [vmem:[#allocation3 + $0x148] sm:$0xff] %vm2263, %v2154
  %2306 = vst.msk [vmem:[#allocation3 + $0x150] sm:$0xff] %vm2263, %v2156
  %2307 = vst.msk [vmem:[#allocation3 + $0x158] sm:$0xff] %vm2263, %v2158
  %2308 = vst.msk [vmem:[#allocation3 + $0x160] sm:$0xff] %vm2263, %v2160
  %2309 = vst.msk [vmem:[#allocation3 + $0x168] sm:$0xff] %vm2263, %v2162
  %2310 = vst.msk [vmem:[#allocation3 + $0x170] sm:$0xff] %vm2263, %v2164
  %2311 = vst.msk [vmem:[#allocation3 + $0x178] sm:$0xff] %vm2263, %v2166
  %2312 = vst.msk [vmem:[#allocation3 + $0x180] sm:$0xff] %vm2263, %v2168
  %2313 = vst.msk [vmem:[#allocation3 + $0x188] sm:$0xff] %vm2263, %v2170
  %2314 = vst.msk [vmem:[#allocation3 + $0x190] sm:$0xff] %vm2263, %v2172
  %2315 = vst.msk [vmem:[#allocation3 + $0x198] sm:$0xff] %vm2263, %v2174
  %2316 = vst.msk [vmem:[#allocation3 + $0x1a0] sm:$0xff] %vm2263, %v2176
  %2317 = vst.msk [vmem:[#allocation3 + $0x1a8] sm:$0xff] %vm2263, %v2178
  %2318 = vst.msk [vmem:[#allocation3 + $0x1b0] sm:$0xff] %vm2263, %v2180
  %2319 = vst.msk [vmem:[#allocation3 + $0x1b8] sm:$0xff] %vm2263, %v2182
  %2320 = vst.msk [vmem:[#allocation3 + $0x1c0] sm:$0xff] %vm2263, %v2184
  %2321 = vst.msk [vmem:[#allocation3 + $0x1c8] sm:$0xff] %vm2263, %v2186
  %2322 = vst.msk [vmem:[#allocation3 + $0x1d0] sm:$0xff] %vm2263, %v2188
  %2323 = vst.msk [vmem:[#allocation3 + $0x1d8] sm:$0xff] %vm2263, %v2190
  %2324 = vst.msk [vmem:[#allocation3 + $0x1e0] sm:$0xff] %vm2263, %v2192
  %2325 = vst.msk [vmem:[#allocation3 + $0x1e8] sm:$0xff] %vm2263, %v2194
  %2326 = vst.msk [vmem:[#allocation3 + $0x1f0] sm:$0xff] %vm2263, %v2196
  %2327 = vst.msk [vmem:[#allocation3 + $0x1f8] sm:$0xff] %vm2263, %v2198
  %v2328 = vld [vmem:[%s980 + $0x1] sm:$0xff]
  %v2329 = vld [vmem:[%s980 + $0x9] sm:$0xff]
  %v2330 = vld [vmem:[%s980 + $0x19] sm:$0xff]
  %v2331 = vld [vmem:[%s980 + $0x21] sm:$0xff]
  %v2332 = vld [vmem:[%s980 + $0x31] sm:$0xff]
  %v2333 = vld [vmem:[%s980 + $0x39] sm:$0xff]
  %v2334 = vld [vmem:[%s980 + $0x49] sm:$0xff]
  %v2335 = vld [vmem:[%s980 + $0x51] sm:$0xff]
  %v2336 = vld [vmem:[%s980 + $0x61] sm:$0xff]
  %v2337 = vld [vmem:[%s980 + $0x69] sm:$0xff]
  %v2338 = vld [vmem:[%s980 + $0x79] sm:$0xff]
  %v2339 = vld [vmem:[%s980 + $0x81] sm:$0xff]
  %v2340 = vld [vmem:[%s980 + $0x91] sm:$0xff]
  %v2341 = vld [vmem:[%s980 + $0x99] sm:$0xff]
  %v2342 = vld [vmem:[%s980 + $0xa9] sm:$0xff]
  %v2343 = vld [vmem:[%s980 + $0xb1] sm:$0xff]
  %v2344 = vld [vmem:[%s980 + $0xc1] sm:$0xff]
  %v2345 = vld [vmem:[%s980 + $0xc9] sm:$0xff]
  %v2346 = vld [vmem:[%s980 + $0xd9] sm:$0xff]
  %v2347 = vld [vmem:[%s980 + $0xe1] sm:$0xff]
  %v2348 = vld [vmem:[%s980 + $0xf1] sm:$0xff]
  %v2349 = vld [vmem:[%s980 + $0xf9] sm:$0xff]
  %v2350 = vld [vmem:[%s980 + $0x109] sm:$0xff]
  %v2351 = vld [vmem:[%s980 + $0x111] sm:$0xff]
  %v2352 = vld [vmem:[%s980 + $0x121] sm:$0xff]
  %v2353 = vld [vmem:[%s980 + $0x129] sm:$0xff]
  %v2354 = vld [vmem:[%s980 + $0x139] sm:$0xff]
  %v2355 = vld [vmem:[%s980 + $0x141] sm:$0xff]
  %v2356 = vld [vmem:[%s980 + $0x151] sm:$0xff]
  %v2357 = vld [vmem:[%s980 + $0x159] sm:$0xff]
  %v2358 = vld [vmem:[%s980 + $0x169] sm:$0xff]
  %v2359 = vld [vmem:[%s980 + $0x171] sm:$0xff]
  %v2360 = vld [vmem:[%s980 + $0x1b1] sm:$0xff]
  %v2361 = vld [vmem:[%s980 + $0x1b9] sm:$0xff]
  %v2362 = vld [vmem:[%s980 + $0x1c9] sm:$0xff]
  %v2363 = vld [vmem:[%s980 + $0x1d1] sm:$0xff]
  %v2364 = vld [vmem:[%s980 + $0x1e1] sm:$0xff]
  %v2365 = vld [vmem:[%s980 + $0x1e9] sm:$0xff]
  %v2366 = vld [vmem:[%s980 + $0x1f9] sm:$0xff]
  %v2367 = vld [vmem:[%s980 + $0x201] sm:$0xff]
  %v2368 = vld [vmem:[%s980 + $0x211] sm:$0xff]
  %v2369 = vld [vmem:[%s980 + $0x219] sm:$0xff]
  %v2370 = vld [vmem:[%s980 + $0x229] sm:$0xff]
  %v2371 = vld [vmem:[%s980 + $0x231] sm:$0xff]
  %v2372 = vld [vmem:[%s980 + $0x241] sm:$0xff]
  %v2373 = vld [vmem:[%s980 + $0x249] sm:$0xff]
  %v2374 = vld [vmem:[%s980 + $0x259] sm:$0xff]
  %v2375 = vld [vmem:[%s980 + $0x261] sm:$0xff]
  %v2376 = vld [vmem:[%s980 + $0x271] sm:$0xff]
  %v2377 = vld [vmem:[%s980 + $0x279] sm:$0xff]
  %v2378 = vld [vmem:[%s980 + $0x289] sm:$0xff]
  %v2379 = vld [vmem:[%s980 + $0x291] sm:$0xff]
  %v2380 = vld [vmem:[%s980 + $0x2a1] sm:$0xff]
  %v2381 = vld [vmem:[%s980 + $0x2a9] sm:$0xff]
  %v2382 = vld [vmem:[%s980 + $0x2b9] sm:$0xff]
  %v2383 = vld [vmem:[%s980 + $0x2c1] sm:$0xff]
  %v2384 = vld [vmem:[%s980 + $0x2d1] sm:$0xff]
  %v2385 = vld [vmem:[%s980 + $0x2d9] sm:$0xff]
  %v2386 = vld [vmem:[%s980 + $0x2e9] sm:$0xff]
  %v2387 = vld [vmem:[%s980 + $0x2f1] sm:$0xff]
  %v2388 = vld [vmem:[%s980 + $0x301] sm:$0xff]
  %v2389 = vld [vmem:[%s980 + $0x309] sm:$0xff]
  %v2390 = vld [vmem:[%s980 + $0x319] sm:$0xff]
  %v2391 = vld [vmem:[%s980 + $0x321] sm:$0xff]
  %2456 = vrot.lane.b32.xlu0 %v2328, 32
  %v2457 = vpop.permute.xlu0 %2456
  %2458 = vrot.lane.b32.xlu0 %v2329, 32
  %v2459 = vpop.permute.xlu0 %2458
  %2460 = vrot.lane.b32.xlu0 %v2330, 32
  %v2461 = vpop.permute.xlu0 %2460
  %2462 = vrot.lane.b32.xlu0 %v2331, 32
  %v2463 = vpop.permute.xlu0 %2462
  %2464 = vrot.lane.b32.xlu0 %v2332, 32
  %v2465 = vpop.permute.xlu0 %2464
  %2466 = vrot.lane.b32.xlu0 %v2333, 32
  %v2467 = vpop.permute.xlu0 %2466
  %2468 = vrot.lane.b32.xlu0 %v2334, 32
  %v2469 = vpop.permute.xlu0 %2468
  %2470 = vrot.lane.b32.xlu0 %v2335, 32
  %v2471 = vpop.permute.xlu0 %2470
  %2472 = vrot.lane.b32.xlu0 %v2336, 32
  %v2473 = vpop.permute.xlu0 %2472
  %2474 = vrot.lane.b32.xlu0 %v2337, 32
  %v2475 = vpop.permute.xlu0 %2474
  %2476 = vrot.lane.b32.xlu0 %v2338, 32
  %v2477 = vpop.permute.xlu0 %2476
  %2478 = vrot.lane.b32.xlu0 %v2339, 32
  %v2479 = vpop.permute.xlu0 %2478
  %2480 = vrot.lane.b32.xlu0 %v2340, 32
  %v2481 = vpop.permute.xlu0 %2480
  %2482 = vrot.lane.b32.xlu0 %v2341, 32
  %v2483 = vpop.permute.xlu0 %2482
  %2484 = vrot.lane.b32.xlu0 %v2342, 32
  %v2485 = vpop.permute.xlu0 %2484
  %2486 = vrot.lane.b32.xlu0 %v2343, 32
  %v2487 = vpop.permute.xlu0 %2486
  %2488 = vrot.lane.b32.xlu0 %v2344, 32
  %v2489 = vpop.permute.xlu0 %2488
  %2490 = vrot.lane.b32.xlu0 %v2345, 32
  %v2491 = vpop.permute.xlu0 %2490
  %2492 = vrot.lane.b32.xlu0 %v2346, 32
  %v2493 = vpop.permute.xlu0 %2492
  %2494 = vrot.lane.b32.xlu0 %v2347, 32
  %v2495 = vpop.permute.xlu0 %2494
  %2496 = vrot.lane.b32.xlu0 %v2348, 32
  %v2497 = vpop.permute.xlu0 %2496
  %2498 = vrot.lane.b32.xlu0 %v2349, 32
  %v2499 = vpop.permute.xlu0 %2498
  %2500 = vrot.lane.b32.xlu0 %v2350, 32
  %v2501 = vpop.permute.xlu0 %2500
  %2502 = vrot.lane.b32.xlu0 %v2351, 32
  %v2503 = vpop.permute.xlu0 %2502
  %2504 = vrot.lane.b32.xlu0 %v2352, 32
  %v2505 = vpop.permute.xlu0 %2504
  %2506 = vrot.lane.b32.xlu0 %v2353, 32
  %v2507 = vpop.permute.xlu0 %2506
  %2508 = vrot.lane.b32.xlu0 %v2354, 32
  %v2509 = vpop.permute.xlu0 %2508
  %2510 = vrot.lane.b32.xlu0 %v2355, 32
  %v2511 = vpop.permute.xlu0 %2510
  %2512 = vrot.lane.b32.xlu0 %v2356, 32
  %v2513 = vpop.permute.xlu0 %2512
  %2514 = vrot.lane.b32.xlu0 %v2357, 32
  %v2515 = vpop.permute.xlu0 %2514
  %2516 = vrot.lane.b32.xlu0 %v2358, 32
  %v2517 = vpop.permute.xlu0 %2516
  %2518 = vrot.lane.b32.xlu0 %v2359, 32
  %v2519 = vpop.permute.xlu0 %2518
  %2520 = vrot.lane.b32.xlu0 %v2360, 32
  %v2521 = vpop.permute.xlu0 %2520
  %2522 = vrot.lane.b32.xlu0 %v2361, 32
  %v2523 = vpop.permute.xlu0 %2522
  %2524 = vrot.lane.b32.xlu0 %v2362, 32
  %v2525 = vpop.permute.xlu0 %2524
  %2526 = vrot.lane.b32.xlu0 %v2363, 32
  %v2527 = vpop.permute.xlu0 %2526
  %2528 = vrot.lane.b32.xlu0 %v2364, 32
  %v2529 = vpop.permute.xlu0 %2528
  %2530 = vrot.lane.b32.xlu0 %v2365, 32
  %v2531 = vpop.permute.xlu0 %2530
  %2532 = vrot.lane.b32.xlu0 %v2366, 32
  %v2533 = vpop.permute.xlu0 %2532
  %2534 = vrot.lane.b32.xlu0 %v2367, 32
  %v2535 = vpop.permute.xlu0 %2534
  %2536 = vrot.lane.b32.xlu0 %v2368, 32
  %v2537 = vpop.permute.xlu0 %2536
  %2538 = vrot.lane.b32.xlu0 %v2369, 32
  %v2539 = vpop.permute.xlu0 %2538
  %2540 = vrot.lane.b32.xlu0 %v2370, 32
  %v2541 = vpop.permute.xlu0 %2540
  %2542 = vrot.lane.b32.xlu0 %v2371, 32
  %v2543 = vpop.permute.xlu0 %2542
  %2544 = vrot.lane.b32.xlu0 %v2372, 32
  %v2545 = vpop.permute.xlu0 %2544
  %2546 = vrot.lane.b32.xlu0 %v2373, 32
  %v2547 = vpop.permute.xlu0 %2546
  %2548 = vrot.lane.b32.xlu0 %v2374, 32
  %v2549 = vpop.permute.xlu0 %2548
  %2550 = vrot.lane.b32.xlu0 %v2375, 32
  %v2551 = vpop.permute.xlu0 %2550
  %2552 = vrot.lane.b32.xlu0 %v2376, 32
  %v2553 = vpop.permute.xlu0 %2552
  %2554 = vrot.lane.b32.xlu0 %v2377, 32
  %v2555 = vpop.permute.xlu0 %2554
  %2556 = vrot.lane.b32.xlu0 %v2378, 32
  %v2557 = vpop.permute.xlu0 %2556
  %2558 = vrot.lane.b32.xlu0 %v2379, 32
  %v2559 = vpop.permute.xlu0 %2558
  %2560 = vrot.lane.b32.xlu0 %v2380, 32
  %v2561 = vpop.permute.xlu0 %2560
  %2562 = vrot.lane.b32.xlu0 %v2381, 32
  %v2563 = vpop.permute.xlu0 %2562
  %2564 = vrot.lane.b32.xlu0 %v2382, 32
  %v2565 = vpop.permute.xlu0 %2564
  %2566 = vrot.lane.b32.xlu0 %v2383, 32
  %v2567 = vpop.permute.xlu0 %2566
  %2568 = vrot.lane.b32.xlu0 %v2384, 32
  %v2569 = vpop.permute.xlu0 %2568
  %2570 = vrot.lane.b32.xlu0 %v2385, 32
  %v2571 = vpop.permute.xlu0 %2570
  %2572 = vrot.lane.b32.xlu0 %v2386, 32
  %v2573 = vpop.permute.xlu0 %2572
  %2574 = vrot.lane.b32.xlu0 %v2387, 32
  %v2575 = vpop.permute.xlu0 %2574
  %2576 = vrot.lane.b32.xlu0 %v2388, 32
  %v2577 = vpop.permute.xlu0 %2576
  %2578 = vrot.lane.b32.xlu0 %v2389, 32
  %v2579 = vpop.permute.xlu0 %2578
  %2580 = vrot.lane.b32.xlu0 %v2390, 32
  %v2581 = vpop.permute.xlu0 %2580
  %2582 = vrot.lane.b32.xlu0 %v2391, 32
  %v2583 = vpop.permute.xlu0 %2582
  %vm2648 = vcmask 326912
  %2649 = vst.msk [vmem:[#allocation3] sm:$0xff] %vm2648, %v2457
  %2650 = vst.msk [vmem:[#allocation3 + $0x8] sm:$0xff] %vm2648, %v2459
  %2651 = vst.msk [vmem:[#allocation3 + $0x10] sm:$0xff] %vm2648, %v2461
  %2652 = vst.msk [vmem:[#allocation3 + $0x18] sm:$0xff] %vm2648, %v2463
  %2653 = vst.msk [vmem:[#allocation3 + $0x20] sm:$0xff] %vm2648, %v2465
  %2654 = vst.msk [vmem:[#allocation3 + $0x28] sm:$0xff] %vm2648, %v2467
  %2655 = vst.msk [vmem:[#allocation3 + $0x30] sm:$0xff] %vm2648, %v2469
  %2656 = vst.msk [vmem:[#allocation3 + $0x38] sm:$0xff] %vm2648, %v2471
  %2657 = vst.msk [vmem:[#allocation3 + $0x40] sm:$0xff] %vm2648, %v2473
  %2658 = vst.msk [vmem:[#allocation3 + $0x48] sm:$0xff] %vm2648, %v2475
  %2659 = vst.msk [vmem:[#allocation3 + $0x50] sm:$0xff] %vm2648, %v2477
  %2660 = vst.msk [vmem:[#allocation3 + $0x58] sm:$0xff] %vm2648, %v2479
  %2661 = vst.msk [vmem:[#allocation3 + $0x60] sm:$0xff] %vm2648, %v2481
  %2662 = vst.msk [vmem:[#allocation3 + $0x68] sm:$0xff] %vm2648, %v2483
  %2663 = vst.msk [vmem:[#allocation3 + $0x70] sm:$0xff] %vm2648, %v2485
  %2664 = vst.msk [vmem:[#allocation3 + $0x78] sm:$0xff] %vm2648, %v2487
  %2665 = vst.msk [vmem:[#allocation3 + $0x80] sm:$0xff] %vm2648, %v2489
  %2666 = vst.msk [vmem:[#allocation3 + $0x88] sm:$0xff] %vm2648, %v2491
  %2667 = vst.msk [vmem:[#allocation3 + $0x90] sm:$0xff] %vm2648, %v2493
  %2668 = vst.msk [vmem:[#allocation3 + $0x98] sm:$0xff] %vm2648, %v2495
  %2669 = vst.msk [vmem:[#allocation3 + $0xa0] sm:$0xff] %vm2648, %v2497
  %2670 = vst.msk [vmem:[#allocation3 + $0xa8] sm:$0xff] %vm2648, %v2499
  %2671 = vst.msk [vmem:[#allocation3 + $0xb0] sm:$0xff] %vm2648, %v2501
  %2672 = vst.msk [vmem:[#allocation3 + $0xb8] sm:$0xff] %vm2648, %v2503
  %2673 = vst.msk [vmem:[#allocation3 + $0xc0] sm:$0xff] %vm2648, %v2505
  %2674 = vst.msk [vmem:[#allocation3 + $0xc8] sm:$0xff] %vm2648, %v2507
  %2675 = vst.msk [vmem:[#allocation3 + $0xd0] sm:$0xff] %vm2648, %v2509
  %2676 = vst.msk [vmem:[#allocation3 + $0xd8] sm:$0xff] %vm2648, %v2511
  %2677 = vst.msk [vmem:[#allocation3 + $0xe0] sm:$0xff] %vm2648, %v2513
  %2678 = vst.msk [vmem:[#allocation3 + $0xe8] sm:$0xff] %vm2648, %v2515
  %2679 = vst.msk [vmem:[#allocation3 + $0xf0] sm:$0xff] %vm2648, %v2517
  %2680 = vst.msk [vmem:[#allocation3 + $0xf8] sm:$0xff] %vm2648, %v2519
  %2681 = vst.msk [vmem:[#allocation3 + $0x100] sm:$0xff] %vm2648, %v2521
  %2682 = vst.msk [vmem:[#allocation3 + $0x108] sm:$0xff] %vm2648, %v2523
  %2683 = vst.msk [vmem:[#allocation3 + $0x110] sm:$0xff] %vm2648, %v2525
  %2684 = vst.msk [vmem:[#allocation3 + $0x118] sm:$0xff] %vm2648, %v2527
  %2685 = vst.msk [vmem:[#allocation3 + $0x120] sm:$0xff] %vm2648, %v2529
  %2686 = vst.msk [vmem:[#allocation3 + $0x128] sm:$0xff] %vm2648, %v2531
  %2687 = vst.msk [vmem:[#allocation3 + $0x130] sm:$0xff] %vm2648, %v2533
  %2688 = vst.msk [vmem:[#allocation3 + $0x138] sm:$0xff] %vm2648, %v2535
  %2689 = vst.msk [vmem:[#allocation3 + $0x140] sm:$0xff] %vm2648, %v2537
  %2690 = vst.msk [vmem:[#allocation3 + $0x148] sm:$0xff] %vm2648, %v2539
  %2691 = vst.msk [vmem:[#allocation3 + $0x150] sm:$0xff] %vm2648, %v2541
  %2692 = vst.msk [vmem:[#allocation3 + $0x158] sm:$0xff] %vm2648, %v2543
  %2693 = vst.msk [vmem:[#allocation3 + $0x160] sm:$0xff] %vm2648, %v2545
  %2694 = vst.msk [vmem:[#allocation3 + $0x168] sm:$0xff] %vm2648, %v2547
  %2695 = vst.msk [vmem:[#allocation3 + $0x170] sm:$0xff] %vm2648, %v2549
  %2696 = vst.msk [vmem:[#allocation3 + $0x178] sm:$0xff] %vm2648, %v2551
  %2697 = vst.msk [vmem:[#allocation3 + $0x180] sm:$0xff] %vm2648, %v2553
  %2698 = vst.msk [vmem:[#allocation3 + $0x188] sm:$0xff] %vm2648, %v2555
  %2699 = vst.msk [vmem:[#allocation3 + $0x190] sm:$0xff] %vm2648, %v2557
  %2700 = vst.msk [vmem:[#allocation3 + $0x198] sm:$0xff] %vm2648, %v2559
  %2701 = vst.msk [vmem:[#allocation3 + $0x1a0] sm:$0xff] %vm2648, %v2561
  %2702 = vst.msk [vmem:[#allocation3 + $0x1a8] sm:$0xff] %vm2648, %v2563
  %2703 = vst.msk [vmem:[#allocation3 + $0x1b0] sm:$0xff] %vm2648, %v2565
  %2704 = vst.msk [vmem:[#allocation3 + $0x1b8] sm:$0xff] %vm2648, %v2567
  %2705 = vst.msk [vmem:[#allocation3 + $0x1c0] sm:$0xff] %vm2648, %v2569
  %2706 = vst.msk [vmem:[#allocation3 + $0x1c8] sm:$0xff] %vm2648, %v2571
  %2707 = vst.msk [vmem:[#allocation3 + $0x1d0] sm:$0xff] %vm2648, %v2573
  %2708 = vst.msk [vmem:[#allocation3 + $0x1d8] sm:$0xff] %vm2648, %v2575
  %2709 = vst.msk [vmem:[#allocation3 + $0x1e0] sm:$0xff] %vm2648, %v2577
  %2710 = vst.msk [vmem:[#allocation3 + $0x1e8] sm:$0xff] %vm2648, %v2579
  %2711 = vst.msk [vmem:[#allocation3 + $0x1f0] sm:$0xff] %vm2648, %v2581
  %2712 = vst.msk [vmem:[#allocation3 + $0x1f8] sm:$0xff] %vm2648, %v2583
  %v2713 = vld [vmem:[%s980 + $0x2] sm:$0xff]
  %v2714 = vld [vmem:[%s980 + $0xa] sm:$0xff]
  %v2715 = vld [vmem:[%s980 + $0x1a] sm:$0xff]
  %v2716 = vld [vmem:[%s980 + $0x22] sm:$0xff]
  %v2717 = vld [vmem:[%s980 + $0x32] sm:$0xff]
  %v2718 = vld [vmem:[%s980 + $0x3a] sm:$0xff]
  %v2719 = vld [vmem:[%s980 + $0x4a] sm:$0xff]
  %v2720 = vld [vmem:[%s980 + $0x52] sm:$0xff]
  %v2721 = vld [vmem:[%s980 + $0x62] sm:$0xff]
  %v2722 = vld [vmem:[%s980 + $0x6a] sm:$0xff]
  %v2723 = vld [vmem:[%s980 + $0x7a] sm:$0xff]
  %v2724 = vld [vmem:[%s980 + $0x82] sm:$0xff]
  %v2725 = vld [vmem:[%s980 + $0x92] sm:$0xff]
  %v2726 = vld [vmem:[%s980 + $0x9a] sm:$0xff]
  %v2727 = vld [vmem:[%s980 + $0xaa] sm:$0xff]
  %v2728 = vld [vmem:[%s980 + $0xb2] sm:$0xff]
  %v2729 = vld [vmem:[%s980 + $0xc2] sm:$0xff]
  %v2730 = vld [vmem:[%s980 + $0xca] sm:$0xff]
  %v2731 = vld [vmem:[%s980 + $0xda] sm:$0xff]
  %v2732 = vld [vmem:[%s980 + $0xe2] sm:$0xff]
  %v2733 = vld [vmem:[%s980 + $0xf2] sm:$0xff]
  %v2734 = vld [vmem:[%s980 + $0xfa] sm:$0xff]
  %v2735 = vld [vmem:[%s980 + $0x10a] sm:$0xff]
  %v2736 = vld [vmem:[%s980 + $0x112] sm:$0xff]
  %v2737 = vld [vmem:[%s980 + $0x122] sm:$0xff]
  %v2738 = vld [vmem:[%s980 + $0x12a] sm:$0xff]
  %v2739 = vld [vmem:[%s980 + $0x13a] sm:$0xff]
  %v2740 = vld [vmem:[%s980 + $0x142] sm:$0xff]
  %v2741 = vld [vmem:[%s980 + $0x152] sm:$0xff]
  %v2742 = vld [vmem:[%s980 + $0x15a] sm:$0xff]
  %v2743 = vld [vmem:[%s980 + $0x16a] sm:$0xff]
  %v2744 = vld [vmem:[%s980 + $0x172] sm:$0xff]
  %v2745 = vld [vmem:[%s980 + $0x1b2] sm:$0xff]
  %v2746 = vld [vmem:[%s980 + $0x1ba] sm:$0xff]
  %v2747 = vld [vmem:[%s980 + $0x1ca] sm:$0xff]
  %v2748 = vld [vmem:[%s980 + $0x1d2] sm:$0xff]
  %v2749 = vld [vmem:[%s980 + $0x1e2] sm:$0xff]
  %v2750 = vld [vmem:[%s980 + $0x1ea] sm:$0xff]
  %v2751 = vld [vmem:[%s980 + $0x1fa] sm:$0xff]
  %v2752 = vld [vmem:[%s980 + $0x202] sm:$0xff]
  %v2753 = vld [vmem:[%s980 + $0x212] sm:$0xff]
  %v2754 = vld [vmem:[%s980 + $0x21a] sm:$0xff]
  %v2755 = vld [vmem:[%s980 + $0x22a] sm:$0xff]
  %v2756 = vld [vmem:[%s980 + $0x232] sm:$0xff]
  %v2757 = vld [vmem:[%s980 + $0x242] sm:$0xff]
  %v2758 = vld [vmem:[%s980 + $0x24a] sm:$0xff]
  %v2759 = vld [vmem:[%s980 + $0x25a] sm:$0xff]
  %v2760 = vld [vmem:[%s980 + $0x262] sm:$0xff]
  %v2761 = vld [vmem:[%s980 + $0x272] sm:$0xff]
  %v2762 = vld [vmem:[%s980 + $0x27a] sm:$0xff]
  %v2763 = vld [vmem:[%s980 + $0x28a] sm:$0xff]
  %v2764 = vld [vmem:[%s980 + $0x292] sm:$0xff]
  %v2765 = vld [vmem:[%s980 + $0x2a2] sm:$0xff]
  %v2766 = vld [vmem:[%s980 + $0x2aa] sm:$0xff]
  %v2767 = vld [vmem:[%s980 + $0x2ba] sm:$0xff]
  %v2768 = vld [vmem:[%s980 + $0x2c2] sm:$0xff]
  %v2769 = vld [vmem:[%s980 + $0x2d2] sm:$0xff]
  %v2770 = vld [vmem:[%s980 + $0x2da] sm:$0xff]
  %v2771 = vld [vmem:[%s980 + $0x2ea] sm:$0xff]
  %v2772 = vld [vmem:[%s980 + $0x2f2] sm:$0xff]
  %v2773 = vld [vmem:[%s980 + $0x302] sm:$0xff]
  %v2774 = vld [vmem:[%s980 + $0x30a] sm:$0xff]
  %v2775 = vld [vmem:[%s980 + $0x31a] sm:$0xff]
  %v2776 = vld [vmem:[%s980 + $0x322] sm:$0xff]
  %2841 = vrot.lane.b32.xlu0 %v2713, 40
  %v2842 = vpop.permute.xlu0 %2841
  %2843 = vrot.lane.b32.xlu0 %v2714, 40
  %v2844 = vpop.permute.xlu0 %2843
  %2845 = vrot.lane.b32.xlu0 %v2715, 40
  %v2846 = vpop.permute.xlu0 %2845
  %2847 = vrot.lane.b32.xlu0 %v2716, 40
  %v2848 = vpop.permute.xlu0 %2847
  %2849 = vrot.lane.b32.xlu0 %v2717, 40
  %v2850 = vpop.permute.xlu0 %2849
  %2851 = vrot.lane.b32.xlu0 %v2718, 40
  %v2852 = vpop.permute.xlu0 %2851
  %2853 = vrot.lane.b32.xlu0 %v2719, 40
  %v2854 = vpop.permute.xlu0 %2853
  %2855 = vrot.lane.b32.xlu0 %v2720, 40
  %v2856 = vpop.permute.xlu0 %2855
  %2857 = vrot.lane.b32.xlu0 %v2721, 40
  %v2858 = vpop.permute.xlu0 %2857
  %2859 = vrot.lane.b32.xlu0 %v2722, 40
  %v2860 = vpop.permute.xlu0 %2859
  %2861 = vrot.lane.b32.xlu0 %v2723, 40
  %v2862 = vpop.permute.xlu0 %2861
  %2863 = vrot.lane.b32.xlu0 %v2724, 40
  %v2864 = vpop.permute.xlu0 %2863
  %2865 = vrot.lane.b32.xlu0 %v2725, 40
  %v2866 = vpop.permute.xlu0 %2865
  %2867 = vrot.lane.b32.xlu0 %v2726, 40
  %v2868 = vpop.permute.xlu0 %2867
  %2869 = vrot.lane.b32.xlu0 %v2727, 40
  %v2870 = vpop.permute.xlu0 %2869
  %2871 = vrot.lane.b32.xlu0 %v2728, 40
  %v2872 = vpop.permute.xlu0 %2871
  %2873 = vrot.lane.b32.xlu0 %v2729, 40
  %v2874 = vpop.permute.xlu0 %2873
  %2875 = vrot.lane.b32.xlu0 %v2730, 40
  %v2876 = vpop.permute.xlu0 %2875
  %2877 = vrot.lane.b32.xlu0 %v2731, 40
  %v2878 = vpop.permute.xlu0 %2877
  %2879 = vrot.lane.b32.xlu0 %v2732, 40
  %v2880 = vpop.permute.xlu0 %2879
  %2881 = vrot.lane.b32.xlu0 %v2733, 40
  %v2882 = vpop.permute.xlu0 %2881
  %2883 = vrot.lane.b32.xlu0 %v2734, 40
  %v2884 = vpop.permute.xlu0 %2883
  %2885 = vrot.lane.b32.xlu0 %v2735, 40
  %v2886 = vpop.permute.xlu0 %2885
  %2887 = vrot.lane.b32.xlu0 %v2736, 40
  %v2888 = vpop.permute.xlu0 %2887
  %2889 = vrot.lane.b32.xlu0 %v2737, 40
  %v2890 = vpop.permute.xlu0 %2889
  %2891 = vrot.lane.b32.xlu0 %v2738, 40
  %v2892 = vpop.permute.xlu0 %2891
  %2893 = vrot.lane.b32.xlu0 %v2739, 40
  %v2894 = vpop.permute.xlu0 %2893
  %2895 = vrot.lane.b32.xlu0 %v2740, 40
  %v2896 = vpop.permute.xlu0 %2895
  %2897 = vrot.lane.b32.xlu0 %v2741, 40
  %v2898 = vpop.permute.xlu0 %2897
  %2899 = vrot.lane.b32.xlu0 %v2742, 40
  %v2900 = vpop.permute.xlu0 %2899
  %2901 = vrot.lane.b32.xlu0 %v2743, 40
  %v2902 = vpop.permute.xlu0 %2901
  %2903 = vrot.lane.b32.xlu0 %v2744, 40
  %v2904 = vpop.permute.xlu0 %2903
  %2905 = vrot.lane.b32.xlu0 %v2745, 40
  %v2906 = vpop.permute.xlu0 %2905
  %2907 = vrot.lane.b32.xlu0 %v2746, 40
  %v2908 = vpop.permute.xlu0 %2907
  %2909 = vrot.lane.b32.xlu0 %v2747, 40
  %v2910 = vpop.permute.xlu0 %2909
  %2911 = vrot.lane.b32.xlu0 %v2748, 40
  %v2912 = vpop.permute.xlu0 %2911
  %2913 = vrot.lane.b32.xlu0 %v2749, 40
  %v2914 = vpop.permute.xlu0 %2913
  %2915 = vrot.lane.b32.xlu0 %v2750, 40
  %v2916 = vpop.permute.xlu0 %2915
  %2917 = vrot.lane.b32.xlu0 %v2751, 40
  %v2918 = vpop.permute.xlu0 %2917
  %2919 = vrot.lane.b32.xlu0 %v2752, 40
  %v2920 = vpop.permute.xlu0 %2919
  %2921 = vrot.lane.b32.xlu0 %v2753, 40
  %v2922 = vpop.permute.xlu0 %2921
  %2923 = vrot.lane.b32.xlu0 %v2754, 40
  %v2924 = vpop.permute.xlu0 %2923
  %2925 = vrot.lane.b32.xlu0 %v2755, 40
  %v2926 = vpop.permute.xlu0 %2925
  %2927 = vrot.lane.b32.xlu0 %v2756, 40
  %v2928 = vpop.permute.xlu0 %2927
  %2929 = vrot.lane.b32.xlu0 %v2757, 40
  %v2930 = vpop.permute.xlu0 %2929
  %2931 = vrot.lane.b32.xlu0 %v2758, 40
  %v2932 = vpop.permute.xlu0 %2931
  %2933 = vrot.lane.b32.xlu0 %v2759, 40
  %v2934 = vpop.permute.xlu0 %2933
  %2935 = vrot.lane.b32.xlu0 %v2760, 40
  %v2936 = vpop.permute.xlu0 %2935
  %2937 = vrot.lane.b32.xlu0 %v2761, 40
  %v2938 = vpop.permute.xlu0 %2937
  %2939 = vrot.lane.b32.xlu0 %v2762, 40
  %v2940 = vpop.permute.xlu0 %2939
  %2941 = vrot.lane.b32.xlu0 %v2763, 40
  %v2942 = vpop.permute.xlu0 %2941
  %2943 = vrot.lane.b32.xlu0 %v2764, 40
  %v2944 = vpop.permute.xlu0 %2943
  %2945 = vrot.lane.b32.xlu0 %v2765, 40
  %v2946 = vpop.permute.xlu0 %2945
  %2947 = vrot.lane.b32.xlu0 %v2766, 40
  %v2948 = vpop.permute.xlu0 %2947
  %2949 = vrot.lane.b32.xlu0 %v2767, 40
  %v2950 = vpop.permute.xlu0 %2949
  %2951 = vrot.lane.b32.xlu0 %v2768, 40
  %v2952 = vpop.permute.xlu0 %2951
  %2953 = vrot.lane.b32.xlu0 %v2769, 40
  %v2954 = vpop.permute.xlu0 %2953
  %2955 = vrot.lane.b32.xlu0 %v2770, 40
  %v2956 = vpop.permute.xlu0 %2955
  %2957 = vrot.lane.b32.xlu0 %v2771, 40
  %v2958 = vpop.permute.xlu0 %2957
  %2959 = vrot.lane.b32.xlu0 %v2772, 40
  %v2960 = vpop.permute.xlu0 %2959
  %2961 = vrot.lane.b32.xlu0 %v2773, 40
  %v2962 = vpop.permute.xlu0 %2961
  %2963 = vrot.lane.b32.xlu0 %v2774, 40
  %v2964 = vpop.permute.xlu0 %2963
  %2965 = vrot.lane.b32.xlu0 %v2775, 40
  %v2966 = vpop.permute.xlu0 %2965
  %2967 = vrot.lane.b32.xlu0 %v2776, 40
  %v2968 = vpop.permute.xlu0 %2967
  %vm3033 = vcmask 392512
  %3034 = vst.msk [vmem:[#allocation3] sm:$0xff] %vm3033, %v2842
  %3035 = vst.msk [vmem:[#allocation3 + $0x8] sm:$0xff] %vm3033, %v2844
  %3036 = vst.msk [vmem:[#allocation3 + $0x10] sm:$0xff] %vm3033, %v2846
  %3037 = vst.msk [vmem:[#allocation3 + $0x18] sm:$0xff] %vm3033, %v2848
  %3038 = vst.msk [vmem:[#allocation3 + $0x20] sm:$0xff] %vm3033, %v2850
  %3039 = vst.msk [vmem:[#allocation3 + $0x28] sm:$0xff] %vm3033, %v2852
  %3040 = vst.msk [vmem:[#allocation3 + $0x30] sm:$0xff] %vm3033, %v2854
  %3041 = vst.msk [vmem:[#allocation3 + $0x38] sm:$0xff] %vm3033, %v2856
  %3042 = vst.msk [vmem:[#allocation3 + $0x40] sm:$0xff] %vm3033, %v2858
  %3043 = vst.msk [vmem:[#allocation3 + $0x48] sm:$0xff] %vm3033, %v2860
  %3044 = vst.msk [vmem:[#allocation3 + $0x50] sm:$0xff] %vm3033, %v2862
  %3045 = vst.msk [vmem:[#allocation3 + $0x58] sm:$0xff] %vm3033, %v2864
  %3046 = vst.msk [vmem:[#allocation3 + $0x60] sm:$0xff] %vm3033, %v2866
  %3047 = vst.msk [vmem:[#allocation3 + $0x68] sm:$0xff] %vm3033, %v2868
  %3048 = vst.msk [vmem:[#allocation3 + $0x70] sm:$0xff] %vm3033, %v2870
  %3049 = vst.msk [vmem:[#allocation3 + $0x78] sm:$0xff] %vm3033, %v2872
  %3050 = vst.msk [vmem:[#allocation3 + $0x80] sm:$0xff] %vm3033, %v2874
  %3051 = vst.msk [vmem:[#allocation3 + $0x88] sm:$0xff] %vm3033, %v2876
  %3052 = vst.msk [vmem:[#allocation3 + $0x90] sm:$0xff] %vm3033, %v2878
  %3053 = vst.msk [vmem:[#allocation3 + $0x98] sm:$0xff] %vm3033, %v2880
  %3054 = vst.msk [vmem:[#allocation3 + $0xa0] sm:$0xff] %vm3033, %v2882
  %3055 = vst.msk [vmem:[#allocation3 + $0xa8] sm:$0xff] %vm3033, %v2884
  %3056 = vst.msk [vmem:[#allocation3 + $0xb0] sm:$0xff] %vm3033, %v2886
  %3057 = vst.msk [vmem:[#allocation3 + $0xb8] sm:$0xff] %vm3033, %v2888
  %3058 = vst.msk [vmem:[#allocation3 + $0xc0] sm:$0xff] %vm3033, %v2890
  %3059 = vst.msk [vmem:[#allocation3 + $0xc8] sm:$0xff] %vm3033, %v2892
  %3060 = vst.msk [vmem:[#allocation3 + $0xd0] sm:$0xff] %vm3033, %v2894
  %3061 = vst.msk [vmem:[#allocation3 + $0xd8] sm:$0xff] %vm3033, %v2896
  %3062 = vst.msk [vmem:[#allocation3 + $0xe0] sm:$0xff] %vm3033, %v2898
  %3063 = vst.msk [vmem:[#allocation3 + $0xe8] sm:$0xff] %vm3033, %v2900
  %3064 = vst.msk [vmem:[#allocation3 + $0xf0] sm:$0xff] %vm3033, %v2902
  %3065 = vst.msk [vmem:[#allocation3 + $0xf8] sm:$0xff] %vm3033, %v2904
  %3066 = vst.msk [vmem:[#allocation3 + $0x100] sm:$0xff] %vm3033, %v2906
  %3067 = vst.msk [vmem:[#allocation3 + $0x108] sm:$0xff] %vm3033, %v2908
  %3068 = vst.msk [vmem:[#allocation3 + $0x110] sm:$0xff] %vm3033, %v2910
  %3069 = vst.msk [vmem:[#allocation3 + $0x118] sm:$0xff] %vm3033, %v2912
  %3070 = vst.msk [vmem:[#allocation3 + $0x120] sm:$0xff] %vm3033, %v2914
  %3071 = vst.msk [vmem:[#allocation3 + $0x128] sm:$0xff] %vm3033, %v2916
  %3072 = vst.msk [vmem:[#allocation3 + $0x130] sm:$0xff] %vm3033, %v2918
  %3073 = vst.msk [vmem:[#allocation3 + $0x138] sm:$0xff] %vm3033, %v2920
  %3074 = vst.msk [vmem:[#allocation3 + $0x140] sm:$0xff] %vm3033, %v2922
  %3075 = vst.msk [vmem:[#allocation3 + $0x148] sm:$0xff] %vm3033, %v2924
  %3076 = vst.msk [vmem:[#allocation3 + $0x150] sm:$0xff] %vm3033, %v2926
  %3077 = vst.msk [vmem:[#allocation3 + $0x158] sm:$0xff] %vm3033, %v2928
  %3078 = vst.msk [vmem:[#allocation3 + $0x160] sm:$0xff] %vm3033, %v2930
  %3079 = vst.msk [vmem:[#allocation3 + $0x168] sm:$0xff] %vm3033, %v2932
  %3080 = vst.msk [vmem:[#allocation3 + $0x170] sm:$0xff] %vm3033, %v2934
  %3081 = vst.msk [vmem:[#allocation3 + $0x178] sm:$0xff] %vm3033, %v2936
  %3082 = vst.msk [vmem:[#allocation3 + $0x180] sm:$0xff] %vm3033, %v2938
  %3083 = vst.msk [vmem:[#allocation3 + $0x188] sm:$0xff] %vm3033, %v2940
  %3084 = vst.msk [vmem:[#allocation3 + $0x190] sm:$0xff] %vm3033, %v2942
  %3085 = vst.msk [vmem:[#allocation3 + $0x198] sm:$0xff] %vm3033, %v2944
  %3086 = vst.msk [vmem:[#allocation3 + $0x1a0] sm:$0xff] %vm3033, %v2946
  %3087 = vst.msk [vmem:[#allocation3 + $0x1a8] sm:$0xff] %vm3033, %v2948
  %3088 = vst.msk [vmem:[#allocation3 + $0x1b0] sm:$0xff] %vm3033, %v2950
  %3089 = vst.msk [vmem:[#allocation3 + $0x1b8] sm:$0xff] %vm3033, %v2952
  %3090 = vst.msk [vmem:[#allocation3 + $0x1c0] sm:$0xff] %vm3033, %v2954
  %3091 = vst.msk [vmem:[#allocation3 + $0x1c8] sm:$0xff] %vm3033, %v2956
  %3092 = vst.msk [vmem:[#allocation3 + $0x1d0] sm:$0xff] %vm3033, %v2958
  %3093 = vst.msk [vmem:[#allocation3 + $0x1d8] sm:$0xff] %vm3033, %v2960
  %3094 = vst.msk [vmem:[#allocation3 + $0x1e0] sm:$0xff] %vm3033, %v2962
  %3095 = vst.msk [vmem:[#allocation3 + $0x1e8] sm:$0xff] %vm3033, %v2964
  %3096 = vst.msk [vmem:[#allocation3 + $0x1f0] sm:$0xff] %vm3033, %v2966
  %3097 = vst.msk [vmem:[#allocation3 + $0x1f8] sm:$0xff] %vm3033, %v2968
  %s3098 = scalar_lea.vmem [#allocation2], 48
  %v3099 = vld [vmem:[%s3098] sm:$0xff]
  %v3100 = vld [vmem:[%s3098 + $0x8] sm:$0xff]
  %v3101 = vld [vmem:[%s3098 + $0x18] sm:$0xff]
  %v3102 = vld [vmem:[%s3098 + $0x20] sm:$0xff]
  %v3103 = vld [vmem:[%s3098 + $0x30] sm:$0xff]
  %v3104 = vld [vmem:[%s3098 + $0x38] sm:$0xff]
  %v3105 = vld [vmem:[%s3098 + $0x48] sm:$0xff]
  %v3106 = vld [vmem:[%s3098 + $0x50] sm:$0xff]
  %v3107 = vld [vmem:[%s3098 + $0x60] sm:$0xff]
  %v3108 = vld [vmem:[%s3098 + $0x68] sm:$0xff]
  %v3109 = vld [vmem:[%s3098 + $0x78] sm:$0xff]
  %v3110 = vld [vmem:[%s3098 + $0x80] sm:$0xff]
  %v3111 = vld [vmem:[%s3098 + $0x90] sm:$0xff]
  %v3112 = vld [vmem:[%s3098 + $0x98] sm:$0xff]
  %v3113 = vld [vmem:[%s3098 + $0xa8] sm:$0xff]
  %v3114 = vld [vmem:[%s3098 + $0xb0] sm:$0xff]
  %v3115 = vld [vmem:[%s3098 + $0xc0] sm:$0xff]
  %v3116 = vld [vmem:[%s3098 + $0xc8] sm:$0xff]
  %v3117 = vld [vmem:[%s3098 + $0xd8] sm:$0xff]
  %v3118 = vld [vmem:[%s3098 + $0xe0] sm:$0xff]
  %v3119 = vld [vmem:[%s3098 + $0xf0] sm:$0xff]
  %v3120 = vld [vmem:[%s3098 + $0xf8] sm:$0xff]
  %v3121 = vld [vmem:[%s3098 + $0x108] sm:$0xff]
  %v3122 = vld [vmem:[%s3098 + $0x110] sm:$0xff]
  %v3123 = vld [vmem:[%s3098 + $0x120] sm:$0xff]
  %v3124 = vld [vmem:[%s3098 + $0x128] sm:$0xff]
  %v3125 = vld [vmem:[%s3098 + $0x138] sm:$0xff]
  %v3126 = vld [vmem:[%s3098 + $0x140] sm:$0xff]
  %v3127 = vld [vmem:[%s3098 + $0x150] sm:$0xff]
  %v3128 = vld [vmem:[%s3098 + $0x158] sm:$0xff]
  %v3129 = vld [vmem:[%s3098 + $0x168] sm:$0xff]
  %v3130 = vld [vmem:[%s3098 + $0x170] sm:$0xff]
  %v3131 = vld [vmem:[%s3098 + $0x1b0] sm:$0xff]
  %v3132 = vld [vmem:[%s3098 + $0x1b8] sm:$0xff]
  %v3133 = vld [vmem:[%s3098 + $0x1c8] sm:$0xff]
  %v3134 = vld [vmem:[%s3098 + $0x1d0] sm:$0xff]
  %v3135 = vld [vmem:[%s3098 + $0x1e0] sm:$0xff]
  %v3136 = vld [vmem:[%s3098 + $0x1e8] sm:$0xff]
  %v3137 = vld [vmem:[%s3098 + $0x1f8] sm:$0xff]
  %v3138 = vld [vmem:[%s3098 + $0x200] sm:$0xff]
  %v3139 = vld [vmem:[%s3098 + $0x210] sm:$0xff]
  %v3140 = vld [vmem:[%s3098 + $0x218] sm:$0xff]
  %v3141 = vld [vmem:[%s3098 + $0x228] sm:$0xff]
  %v3142 = vld [vmem:[%s3098 + $0x230] sm:$0xff]
  %v3143 = vld [vmem:[%s3098 + $0x240] sm:$0xff]
  %v3144 = vld [vmem:[%s3098 + $0x248] sm:$0xff]
  %v3145 = vld [vmem:[%s3098 + $0x258] sm:$0xff]
  %v3146 = vld [vmem:[%s3098 + $0x260] sm:$0xff]
  %v3147 = vld [vmem:[%s3098 + $0x270] sm:$0xff]
  %v3148 = vld [vmem:[%s3098 + $0x278] sm:$0xff]
  %v3149 = vld [vmem:[%s3098 + $0x288] sm:$0xff]
  %v3150 = vld [vmem:[%s3098 + $0x290] sm:$0xff]
  %v3151 = vld [vmem:[%s3098 + $0x2a0] sm:$0xff]
  %v3152 = vld [vmem:[%s3098 + $0x2a8] sm:$0xff]
  %v3153 = vld [vmem:[%s3098 + $0x2b8] sm:$0xff]
  %v3154 = vld [vmem:[%s3098 + $0x2c0] sm:$0xff]
  %v3155 = vld [vmem:[%s3098 + $0x2d0] sm:$0xff]
  %v3156 = vld [vmem:[%s3098 + $0x2d8] sm:$0xff]
  %v3157 = vld [vmem:[%s3098 + $0x2e8] sm:$0xff]
  %v3158 = vld [vmem:[%s3098 + $0x2f0] sm:$0xff]
  %v3159 = vld [vmem:[%s3098 + $0x300] sm:$0xff]
  %v3160 = vld [vmem:[%s3098 + $0x308] sm:$0xff]
  %v3161 = vld [vmem:[%s3098 + $0x318] sm:$0xff]
  %v3162 = vld [vmem:[%s3098 + $0x320] sm:$0xff]
  %3227 = vrot.lane.b32.xlu0 %v3099, 48
  %v3228 = vpop.permute.xlu0 %3227
  %3229 = vrot.lane.b32.xlu0 %v3100, 48
  %v3230 = vpop.permute.xlu0 %3229
  %3231 = vrot.lane.b32.xlu0 %v3101, 48
  %v3232 = vpop.permute.xlu0 %3231
  %3233 = vrot.lane.b32.xlu0 %v3102, 48
  %v3234 = vpop.permute.xlu0 %3233
  %3235 = vrot.lane.b32.xlu0 %v3103, 48
  %v3236 = vpop.permute.xlu0 %3235
  %3237 = vrot.lane.b32.xlu0 %v3104, 48
  %v3238 = vpop.permute.xlu0 %3237
  %3239 = vrot.lane.b32.xlu0 %v3105, 48
  %v3240 = vpop.permute.xlu0 %3239
  %3241 = vrot.lane.b32.xlu0 %v3106, 48
  %v3242 = vpop.permute.xlu0 %3241
  %3243 = vrot.lane.b32.xlu0 %v3107, 48
  %v3244 = vpop.permute.xlu0 %3243
  %3245 = vrot.lane.b32.xlu0 %v3108, 48
  %v3246 = vpop.permute.xlu0 %3245
  %3247 = vrot.lane.b32.xlu0 %v3109, 48
  %v3248 = vpop.permute.xlu0 %3247
  %3249 = vrot.lane.b32.xlu0 %v3110, 48
  %v3250 = vpop.permute.xlu0 %3249
  %3251 = vrot.lane.b32.xlu0 %v3111, 48
  %v3252 = vpop.permute.xlu0 %3251
  %3253 = vrot.lane.b32.xlu0 %v3112, 48
  %v3254 = vpop.permute.xlu0 %3253
  %3255 = vrot.lane.b32.xlu0 %v3113, 48
  %v3256 = vpop.permute.xlu0 %3255
  %3257 = vrot.lane.b32.xlu0 %v3114, 48
  %v3258 = vpop.permute.xlu0 %3257
  %3259 = vrot.lane.b32.xlu0 %v3115, 48
  %v3260 = vpop.permute.xlu0 %3259
  %3261 = vrot.lane.b32.xlu0 %v3116, 48
  %v3262 = vpop.permute.xlu0 %3261
  %3263 = vrot.lane.b32.xlu0 %v3117, 48
  %v3264 = vpop.permute.xlu0 %3263
  %3265 = vrot.lane.b32.xlu0 %v3118, 48
  %v3266 = vpop.permute.xlu0 %3265
  %3267 = vrot.lane.b32.xlu0 %v3119, 48
  %v3268 = vpop.permute.xlu0 %3267
  %3269 = vrot.lane.b32.xlu0 %v3120, 48
  %v3270 = vpop.permute.xlu0 %3269
  %3271 = vrot.lane.b32.xlu0 %v3121, 48
  %v3272 = vpop.permute.xlu0 %3271
  %3273 = vrot.lane.b32.xlu0 %v3122, 48
  %v3274 = vpop.permute.xlu0 %3273
  %3275 = vrot.lane.b32.xlu0 %v3123, 48
  %v3276 = vpop.permute.xlu0 %3275
  %3277 = vrot.lane.b32.xlu0 %v3124, 48
  %v3278 = vpop.permute.xlu0 %3277
  %3279 = vrot.lane.b32.xlu0 %v3125, 48
  %v3280 = vpop.permute.xlu0 %3279
  %3281 = vrot.lane.b32.xlu0 %v3126, 48
  %v3282 = vpop.permute.xlu0 %3281
  %3283 = vrot.lane.b32.xlu0 %v3127, 48
  %v3284 = vpop.permute.xlu0 %3283
  %3285 = vrot.lane.b32.xlu0 %v3128, 48
  %v3286 = vpop.permute.xlu0 %3285
  %3287 = vrot.lane.b32.xlu0 %v3129, 48
  %v3288 = vpop.permute.xlu0 %3287
  %3289 = vrot.lane.b32.xlu0 %v3130, 48
  %v3290 = vpop.permute.xlu0 %3289
  %3291 = vrot.lane.b32.xlu0 %v3131, 48
  %v3292 = vpop.permute.xlu0 %3291
  %3293 = vrot.lane.b32.xlu0 %v3132, 48
  %v3294 = vpop.permute.xlu0 %3293
  %3295 = vrot.lane.b32.xlu0 %v3133, 48
  %v3296 = vpop.permute.xlu0 %3295
  %3297 = vrot.lane.b32.xlu0 %v3134, 48
  %v3298 = vpop.permute.xlu0 %3297
  %3299 = vrot.lane.b32.xlu0 %v3135, 48
  %v3300 = vpop.permute.xlu0 %3299
  %3301 = vrot.lane.b32.xlu0 %v3136, 48
  %v3302 = vpop.permute.xlu0 %3301
  %3303 = vrot.lane.b32.xlu0 %v3137, 48
  %v3304 = vpop.permute.xlu0 %3303
  %3305 = vrot.lane.b32.xlu0 %v3138, 48
  %v3306 = vpop.permute.xlu0 %3305
  %3307 = vrot.lane.b32.xlu0 %v3139, 48
  %v3308 = vpop.permute.xlu0 %3307
  %3309 = vrot.lane.b32.xlu0 %v3140, 48
  %v3310 = vpop.permute.xlu0 %3309
  %3311 = vrot.lane.b32.xlu0 %v3141, 48
  %v3312 = vpop.permute.xlu0 %3311
  %3313 = vrot.lane.b32.xlu0 %v3142, 48
  %v3314 = vpop.permute.xlu0 %3313
  %3315 = vrot.lane.b32.xlu0 %v3143, 48
  %v3316 = vpop.permute.xlu0 %3315
  %3317 = vrot.lane.b32.xlu0 %v3144, 48
  %v3318 = vpop.permute.xlu0 %3317
  %3319 = vrot.lane.b32.xlu0 %v3145, 48
  %v3320 = vpop.permute.xlu0 %3319
  %3321 = vrot.lane.b32.xlu0 %v3146, 48
  %v3322 = vpop.permute.xlu0 %3321
  %3323 = vrot.lane.b32.xlu0 %v3147, 48
  %v3324 = vpop.permute.xlu0 %3323
  %3325 = vrot.lane.b32.xlu0 %v3148, 48
  %v3326 = vpop.permute.xlu0 %3325
  %3327 = vrot.lane.b32.xlu0 %v3149, 48
  %v3328 = vpop.permute.xlu0 %3327
  %3329 = vrot.lane.b32.xlu0 %v3150, 48
  %v3330 = vpop.permute.xlu0 %3329
  %3331 = vrot.lane.b32.xlu0 %v3151, 48
  %v3332 = vpop.permute.xlu0 %3331
  %3333 = vrot.lane.b32.xlu0 %v3152, 48
  %v3334 = vpop.permute.xlu0 %3333
  %3335 = vrot.lane.b32.xlu0 %v3153, 48
  %v3336 = vpop.permute.xlu0 %3335
  %3337 = vrot.lane.b32.xlu0 %v3154, 48
  %v3338 = vpop.permute.xlu0 %3337
  %3339 = vrot.lane.b32.xlu0 %v3155, 48
  %v3340 = vpop.permute.xlu0 %3339
  %3341 = vrot.lane.b32.xlu0 %v3156, 48
  %v3342 = vpop.permute.xlu0 %3341
  %3343 = vrot.lane.b32.xlu0 %v3157, 48
  %v3344 = vpop.permute.xlu0 %3343
  %3345 = vrot.lane.b32.xlu0 %v3158, 48
  %v3346 = vpop.permute.xlu0 %3345
  %3347 = vrot.lane.b32.xlu0 %v3159, 48
  %v3348 = vpop.permute.xlu0 %3347
  %3349 = vrot.lane.b32.xlu0 %v3160, 48
  %v3350 = vpop.permute.xlu0 %3349
  %3351 = vrot.lane.b32.xlu0 %v3161, 48
  %v3352 = vpop.permute.xlu0 %3351
  %3353 = vrot.lane.b32.xlu0 %v3162, 48
  %v3354 = vpop.permute.xlu0 %3353
  %vm3419 = vcmask 458112
  %3420 = vst.msk [vmem:[#allocation3] sm:$0xff] %vm3419, %v3228
  %3421 = vst.msk [vmem:[#allocation3 + $0x8] sm:$0xff] %vm3419, %v3230
  %3422 = vst.msk [vmem:[#allocation3 + $0x10] sm:$0xff] %vm3419, %v3232
  %3423 = vst.msk [vmem:[#allocation3 + $0x18] sm:$0xff] %vm3419, %v3234
  %3424 = vst.msk [vmem:[#allocation3 + $0x20] sm:$0xff] %vm3419, %v3236
  %3425 = vst.msk [vmem:[#allocation3 + $0x28] sm:$0xff] %vm3419, %v3238
  %3426 = vst.msk [vmem:[#allocation3 + $0x30] sm:$0xff] %vm3419, %v3240
  %3427 = vst.msk [vmem:[#allocation3 + $0x38] sm:$0xff] %vm3419, %v3242
  %3428 = vst.msk [vmem:[#allocation3 + $0x40] sm:$0xff] %vm3419, %v3244
  %3429 = vst.msk [vmem:[#allocation3 + $0x48] sm:$0xff] %vm3419, %v3246
  %3430 = vst.msk [vmem:[#allocation3 + $0x50] sm:$0xff] %vm3419, %v3248
  %3431 = vst.msk [vmem:[#allocation3 + $0x58] sm:$0xff] %vm3419, %v3250
  %3432 = vst.msk [vmem:[#allocation3 + $0x60] sm:$0xff] %vm3419, %v3252
  %3433 = vst.msk [vmem:[#allocation3 + $0x68] sm:$0xff] %vm3419, %v3254
  %3434 = vst.msk [vmem:[#allocation3 + $0x70] sm:$0xff] %vm3419, %v3256
  %3435 = vst.msk [vmem:[#allocation3 + $0x78] sm:$0xff] %vm3419, %v3258
  %3436 = vst.msk [vmem:[#allocation3 + $0x80] sm:$0xff] %vm3419, %v3260
  %3437 = vst.msk [vmem:[#allocation3 + $0x88] sm:$0xff] %vm3419, %v3262
  %3438 = vst.msk [vmem:[#allocation3 + $0x90] sm:$0xff] %vm3419, %v3264
  %3439 = vst.msk [vmem:[#allocation3 + $0x98] sm:$0xff] %vm3419, %v3266
  %3440 = vst.msk [vmem:[#allocation3 + $0xa0] sm:$0xff] %vm3419, %v3268
  %3441 = vst.msk [vmem:[#allocation3 + $0xa8] sm:$0xff] %vm3419, %v3270
  %3442 = vst.msk [vmem:[#allocation3 + $0xb0] sm:$0xff] %vm3419, %v3272
  %3443 = vst.msk [vmem:[#allocation3 + $0xb8] sm:$0xff] %vm3419, %v3274
  %3444 = vst.msk [vmem:[#allocation3 + $0xc0] sm:$0xff] %vm3419, %v3276
  %3445 = vst.msk [vmem:[#allocation3 + $0xc8] sm:$0xff] %vm3419, %v3278
  %3446 = vst.msk [vmem:[#allocation3 + $0xd0] sm:$0xff] %vm3419, %v3280
  %3447 = vst.msk [vmem:[#allocation3 + $0xd8] sm:$0xff] %vm3419, %v3282
  %3448 = vst.msk [vmem:[#allocation3 + $0xe0] sm:$0xff] %vm3419, %v3284
  %3449 = vst.msk [vmem:[#allocation3 + $0xe8] sm:$0xff] %vm3419, %v3286
  %3450 = vst.msk [vmem:[#allocation3 + $0xf0] sm:$0xff] %vm3419, %v3288
  %3451 = vst.msk [vmem:[#allocation3 + $0xf8] sm:$0xff] %vm3419, %v3290
  %3452 = vst.msk [vmem:[#allocation3 + $0x100] sm:$0xff] %vm3419, %v3292
  %3453 = vst.msk [vmem:[#allocation3 + $0x108] sm:$0xff] %vm3419, %v3294
  %3454 = vst.msk [vmem:[#allocation3 + $0x110] sm:$0xff] %vm3419, %v3296
  %3455 = vst.msk [vmem:[#allocation3 + $0x118] sm:$0xff] %vm3419, %v3298
  %3456 = vst.msk [vmem:[#allocation3 + $0x120] sm:$0xff] %vm3419, %v3300
  %3457 = vst.msk [vmem:[#allocation3 + $0x128] sm:$0xff] %vm3419, %v3302
  %3458 = vst.msk [vmem:[#allocation3 + $0x130] sm:$0xff] %vm3419, %v3304
  %3459 = vst.msk [vmem:[#allocation3 + $0x138] sm:$0xff] %vm3419, %v3306
  %3460 = vst.msk [vmem:[#allocation3 + $0x140] sm:$0xff] %vm3419, %v3308
  %3461 = vst.msk [vmem:[#allocation3 + $0x148] sm:$0xff] %vm3419, %v3310
  %3462 = vst.msk [vmem:[#allocation3 + $0x150] sm:$0xff] %vm3419, %v3312
  %3463 = vst.msk [vmem:[#allocation3 + $0x158] sm:$0xff] %vm3419, %v3314
  %3464 = vst.msk [vmem:[#allocation3 + $0x160] sm:$0xff] %vm3419, %v3316
  %3465 = vst.msk [vmem:[#allocation3 + $0x168] sm:$0xff] %vm3419, %v3318
  %3466 = vst.msk [vmem:[#allocation3 + $0x170] sm:$0xff] %vm3419, %v3320
  %3467 = vst.msk [vmem:[#allocation3 + $0x178] sm:$0xff] %vm3419, %v3322
  %3468 = vst.msk [vmem:[#allocation3 + $0x180] sm:$0xff] %vm3419, %v3324
  %3469 = vst.msk [vmem:[#allocation3 + $0x188] sm:$0xff] %vm3419, %v3326
  %3470 = vst.msk [vmem:[#allocation3 + $0x190] sm:$0xff] %vm3419, %v3328
  %3471 = vst.msk [vmem:[#allocation3 + $0x198] sm:$0xff] %vm3419, %v3330
  %3472 = vst.msk [vmem:[#allocation3 + $0x1a0] sm:$0xff] %vm3419, %v3332
  %3473 = vst.msk [vmem:[#allocation3 + $0x1a8] sm:$0xff] %vm3419, %v3334
  %3474 = vst.msk [vmem:[#allocation3 + $0x1b0] sm:$0xff] %vm3419, %v3336
  %3475 = vst.msk [vmem:[#allocation3 + $0x1b8] sm:$0xff] %vm3419, %v3338
  %3476 = vst.msk [vmem:[#allocation3 + $0x1c0] sm:$0xff] %vm3419, %v3340
  %3477 = vst.msk [vmem:[#allocation3 + $0x1c8] sm:$0xff] %vm3419, %v3342
  %3478 = vst.msk [vmem:[#allocation3 + $0x1d0] sm:$0xff] %vm3419, %v3344
  %3479 = vst.msk [vmem:[#allocation3 + $0x1d8] sm:$0xff] %vm3419, %v3346
  %3480 = vst.msk [vmem:[#allocation3 + $0x1e0] sm:$0xff] %vm3419, %v3348
  %3481 = vst.msk [vmem:[#allocation3 + $0x1e8] sm:$0xff] %vm3419, %v3350
  %3482 = vst.msk [vmem:[#allocation3 + $0x1f0] sm:$0xff] %vm3419, %v3352
  %3483 = vst.msk [vmem:[#allocation3 + $0x1f8] sm:$0xff] %vm3419, %v3354
  %v3484 = vld [vmem:[%s3098 + $0x1] sm:$0xff]
  %v3485 = vld [vmem:[%s3098 + $0x9] sm:$0xff]
  %v3486 = vld [vmem:[%s3098 + $0x19] sm:$0xff]
  %v3487 = vld [vmem:[%s3098 + $0x21] sm:$0xff]
  %v3488 = vld [vmem:[%s3098 + $0x31] sm:$0xff]
  %v3489 = vld [vmem:[%s3098 + $0x39] sm:$0xff]
  %v3490 = vld [vmem:[%s3098 + $0x49] sm:$0xff]
  %v3491 = vld [vmem:[%s3098 + $0x51] sm:$0xff]
  %v3492 = vld [vmem:[%s3098 + $0x61] sm:$0xff]
  %v3493 = vld [vmem:[%s3098 + $0x69] sm:$0xff]
  %v3494 = vld [vmem:[%s3098 + $0x79] sm:$0xff]
  %v3495 = vld [vmem:[%s3098 + $0x81] sm:$0xff]
  %v3496 = vld [vmem:[%s3098 + $0x91] sm:$0xff]
  %v3497 = vld [vmem:[%s3098 + $0x99] sm:$0xff]
  %v3498 = vld [vmem:[%s3098 + $0xa9] sm:$0xff]
  %v3499 = vld [vmem:[%s3098 + $0xb1] sm:$0xff]
  %v3500 = vld [vmem:[%s3098 + $0xc1] sm:$0xff]
  %v3501 = vld [vmem:[%s3098 + $0xc9] sm:$0xff]
  %v3502 = vld [vmem:[%s3098 + $0xd9] sm:$0xff]
  %v3503 = vld [vmem:[%s3098 + $0xe1] sm:$0xff]
  %v3504 = vld [vmem:[%s3098 + $0xf1] sm:$0xff]
  %v3505 = vld [vmem:[%s3098 + $0xf9] sm:$0xff]
  %v3506 = vld [vmem:[%s3098 + $0x109] sm:$0xff]
  %v3507 = vld [vmem:[%s3098 + $0x111] sm:$0xff]
  %v3508 = vld [vmem:[%s3098 + $0x121] sm:$0xff]
  %v3509 = vld [vmem:[%s3098 + $0x129] sm:$0xff]
  %v3510 = vld [vmem:[%s3098 + $0x139] sm:$0xff]
  %v3511 = vld [vmem:[%s3098 + $0x141] sm:$0xff]
  %v3512 = vld [vmem:[%s3098 + $0x151] sm:$0xff]
  %v3513 = vld [vmem:[%s3098 + $0x159] sm:$0xff]
  %v3514 = vld [vmem:[%s3098 + $0x169] sm:$0xff]
  %v3515 = vld [vmem:[%s3098 + $0x171] sm:$0xff]
  %v3516 = vld [vmem:[%s3098 + $0x1b1] sm:$0xff]
  %v3517 = vld [vmem:[%s3098 + $0x1b9] sm:$0xff]
  %v3518 = vld [vmem:[%s3098 + $0x1c9] sm:$0xff]
  %v3519 = vld [vmem:[%s3098 + $0x1d1] sm:$0xff]
  %v3520 = vld [vmem:[%s3098 + $0x1e1] sm:$0xff]
  %v3521 = vld [vmem:[%s3098 + $0x1e9] sm:$0xff]
  %v3522 = vld [vmem:[%s3098 + $0x1f9] sm:$0xff]
  %v3523 = vld [vmem:[%s3098 + $0x201] sm:$0xff]
  %v3524 = vld [vmem:[%s3098 + $0x211] sm:$0xff]
  %v3525 = vld [vmem:[%s3098 + $0x219] sm:$0xff]
  %v3526 = vld [vmem:[%s3098 + $0x229] sm:$0xff]
  %v3527 = vld [vmem:[%s3098 + $0x231] sm:$0xff]
  %v3528 = vld [vmem:[%s3098 + $0x241] sm:$0xff]
  %v3529 = vld [vmem:[%s3098 + $0x249] sm:$0xff]
  %v3530 = vld [vmem:[%s3098 + $0x259] sm:$0xff]
  %v3531 = vld [vmem:[%s3098 + $0x261] sm:$0xff]
  %v3532 = vld [vmem:[%s3098 + $0x271] sm:$0xff]
  %v3533 = vld [vmem:[%s3098 + $0x279] sm:$0xff]
  %v3534 = vld [vmem:[%s3098 + $0x289] sm:$0xff]
  %v3535 = vld [vmem:[%s3098 + $0x291] sm:$0xff]
  %v3536 = vld [vmem:[%s3098 + $0x2a1] sm:$0xff]
  %v3537 = vld [vmem:[%s3098 + $0x2a9] sm:$0xff]
  %v3538 = vld [vmem:[%s3098 + $0x2b9] sm:$0xff]
  %v3539 = vld [vmem:[%s3098 + $0x2c1] sm:$0xff]
  %v3540 = vld [vmem:[%s3098 + $0x2d1] sm:$0xff]
  %v3541 = vld [vmem:[%s3098 + $0x2d9] sm:$0xff]
  %v3542 = vld [vmem:[%s3098 + $0x2e9] sm:$0xff]
  %v3543 = vld [vmem:[%s3098 + $0x2f1] sm:$0xff]
  %v3544 = vld [vmem:[%s3098 + $0x301] sm:$0xff]
  %v3545 = vld [vmem:[%s3098 + $0x309] sm:$0xff]
  %v3546 = vld [vmem:[%s3098 + $0x319] sm:$0xff]
  %v3547 = vld [vmem:[%s3098 + $0x321] sm:$0xff]
  %3612 = vrot.lane.b32.xlu0 %v3484, 56
  %v3613 = vpop.permute.xlu0 %3612
  %3614 = vrot.lane.b32.xlu0 %v3485, 56
  %v3615 = vpop.permute.xlu0 %3614
  %3616 = vrot.lane.b32.xlu0 %v3486, 56
  %v3617 = vpop.permute.xlu0 %3616
  %3618 = vrot.lane.b32.xlu0 %v3487, 56
  %v3619 = vpop.permute.xlu0 %3618
  %3620 = vrot.lane.b32.xlu0 %v3488, 56
  %v3621 = vpop.permute.xlu0 %3620
  %3622 = vrot.lane.b32.xlu0 %v3489, 56
  %v3623 = vpop.permute.xlu0 %3622
  %3624 = vrot.lane.b32.xlu0 %v3490, 56
  %v3625 = vpop.permute.xlu0 %3624
  %3626 = vrot.lane.b32.xlu0 %v3491, 56
  %v3627 = vpop.permute.xlu0 %3626
  %3628 = vrot.lane.b32.xlu0 %v3492, 56
  %v3629 = vpop.permute.xlu0 %3628
  %3630 = vrot.lane.b32.xlu0 %v3493, 56
  %v3631 = vpop.permute.xlu0 %3630
  %3632 = vrot.lane.b32.xlu0 %v3494, 56
  %v3633 = vpop.permute.xlu0 %3632
  %3634 = vrot.lane.b32.xlu0 %v3495, 56
  %v3635 = vpop.permute.xlu0 %3634
  %3636 = vrot.lane.b32.xlu0 %v3496, 56
  %v3637 = vpop.permute.xlu0 %3636
  %3638 = vrot.lane.b32.xlu0 %v3497, 56
  %v3639 = vpop.permute.xlu0 %3638
  %3640 = vrot.lane.b32.xlu0 %v3498, 56
  %v3641 = vpop.permute.xlu0 %3640
  %3642 = vrot.lane.b32.xlu0 %v3499, 56
  %v3643 = vpop.permute.xlu0 %3642
  %3644 = vrot.lane.b32.xlu0 %v3500, 56
  %v3645 = vpop.permute.xlu0 %3644
  %3646 = vrot.lane.b32.xlu0 %v3501, 56
  %v3647 = vpop.permute.xlu0 %3646
  %3648 = vrot.lane.b32.xlu0 %v3502, 56
  %v3649 = vpop.permute.xlu0 %3648
  %3650 = vrot.lane.b32.xlu0 %v3503, 56
  %v3651 = vpop.permute.xlu0 %3650
  %3652 = vrot.lane.b32.xlu0 %v3504, 56
  %v3653 = vpop.permute.xlu0 %3652
  %3654 = vrot.lane.b32.xlu0 %v3505, 56
  %v3655 = vpop.permute.xlu0 %3654
  %3656 = vrot.lane.b32.xlu0 %v3506, 56
  %v3657 = vpop.permute.xlu0 %3656
  %3658 = vrot.lane.b32.xlu0 %v3507, 56
  %v3659 = vpop.permute.xlu0 %3658
  %3660 = vrot.lane.b32.xlu0 %v3508, 56
  %v3661 = vpop.permute.xlu0 %3660
  %3662 = vrot.lane.b32.xlu0 %v3509, 56
  %v3663 = vpop.permute.xlu0 %3662
  %3664 = vrot.lane.b32.xlu0 %v3510, 56
  %v3665 = vpop.permute.xlu0 %3664
  %3666 = vrot.lane.b32.xlu0 %v3511, 56
  %v3667 = vpop.permute.xlu0 %3666
  %3668 = vrot.lane.b32.xlu0 %v3512, 56
  %v3669 = vpop.permute.xlu0 %3668
  %3670 = vrot.lane.b32.xlu0 %v3513, 56
  %v3671 = vpop.permute.xlu0 %3670
  %3672 = vrot.lane.b32.xlu0 %v3514, 56
  %v3673 = vpop.permute.xlu0 %3672
  %3674 = vrot.lane.b32.xlu0 %v3515, 56
  %v3675 = vpop.permute.xlu0 %3674
  %3676 = vrot.lane.b32.xlu0 %v3516, 56
  %v3677 = vpop.permute.xlu0 %3676
  %3678 = vrot.lane.b32.xlu0 %v3517, 56
  %v3679 = vpop.permute.xlu0 %3678
  %3680 = vrot.lane.b32.xlu0 %v3518, 56
  %v3681 = vpop.permute.xlu0 %3680
  %3682 = vrot.lane.b32.xlu0 %v3519, 56
  %v3683 = vpop.permute.xlu0 %3682
  %3684 = vrot.lane.b32.xlu0 %v3520, 56
  %v3685 = vpop.permute.xlu0 %3684
  %3686 = vrot.lane.b32.xlu0 %v3521, 56
  %v3687 = vpop.permute.xlu0 %3686
  %3688 = vrot.lane.b32.xlu0 %v3522, 56
  %v3689 = vpop.permute.xlu0 %3688
  %3690 = vrot.lane.b32.xlu0 %v3523, 56
  %v3691 = vpop.permute.xlu0 %3690
  %3692 = vrot.lane.b32.xlu0 %v3524, 56
  %v3693 = vpop.permute.xlu0 %3692
  %3694 = vrot.lane.b32.xlu0 %v3525, 56
  %v3695 = vpop.permute.xlu0 %3694
  %3696 = vrot.lane.b32.xlu0 %v3526, 56
  %v3697 = vpop.permute.xlu0 %3696
  %3698 = vrot.lane.b32.xlu0 %v3527, 56
  %v3699 = vpop.permute.xlu0 %3698
  %3700 = vrot.lane.b32.xlu0 %v3528, 56
  %v3701 = vpop.permute.xlu0 %3700
  %3702 = vrot.lane.b32.xlu0 %v3529, 56
  %v3703 = vpop.permute.xlu0 %3702
  %3704 = vrot.lane.b32.xlu0 %v3530, 56
  %v3705 = vpop.permute.xlu0 %3704
  %3706 = vrot.lane.b32.xlu0 %v3531, 56
  %v3707 = vpop.permute.xlu0 %3706
  %3708 = vrot.lane.b32.xlu0 %v3532, 56
  %v3709 = vpop.permute.xlu0 %3708
  %3710 = vrot.lane.b32.xlu0 %v3533, 56
  %v3711 = vpop.permute.xlu0 %3710
  %3712 = vrot.lane.b32.xlu0 %v3534, 56
  %v3713 = vpop.permute.xlu0 %3712
  %3714 = vrot.lane.b32.xlu0 %v3535, 56
  %v3715 = vpop.permute.xlu0 %3714
  %3716 = vrot.lane.b32.xlu0 %v3536, 56
  %v3717 = vpop.permute.xlu0 %3716
  %3718 = vrot.lane.b32.xlu0 %v3537, 56
  %v3719 = vpop.permute.xlu0 %3718
  %3720 = vrot.lane.b32.xlu0 %v3538, 56
  %v3721 = vpop.permute.xlu0 %3720
  %3722 = vrot.lane.b32.xlu0 %v3539, 56
  %v3723 = vpop.permute.xlu0 %3722
  %3724 = vrot.lane.b32.xlu0 %v3540, 56
  %v3725 = vpop.permute.xlu0 %3724
  %3726 = vrot.lane.b32.xlu0 %v3541, 56
  %v3727 = vpop.permute.xlu0 %3726
  %3728 = vrot.lane.b32.xlu0 %v3542, 56
  %v3729 = vpop.permute.xlu0 %3728
  %3730 = vrot.lane.b32.xlu0 %v3543, 56
  %v3731 = vpop.permute.xlu0 %3730
  %3732 = vrot.lane.b32.xlu0 %v3544, 56
  %v3733 = vpop.permute.xlu0 %3732
  %3734 = vrot.lane.b32.xlu0 %v3545, 56
  %v3735 = vpop.permute.xlu0 %3734
  %3736 = vrot.lane.b32.xlu0 %v3546, 56
  %v3737 = vpop.permute.xlu0 %3736
  %3738 = vrot.lane.b32.xlu0 %v3547, 56
  %v3739 = vpop.permute.xlu0 %3738
  %vm3804 = vcmask 523712
  %3805 = vst.msk [vmem:[#allocation3] sm:$0xff] %vm3804, %v3613
  %3806 = vst.msk [vmem:[#allocation3 + $0x8] sm:$0xff] %vm3804, %v3615
  %3807 = vst.msk [vmem:[#allocation3 + $0x10] sm:$0xff] %vm3804, %v3617
  %3808 = vst.msk [vmem:[#allocation3 + $0x18] sm:$0xff] %vm3804, %v3619
  %3809 = vst.msk [vmem:[#allocation3 + $0x20] sm:$0xff] %vm3804, %v3621
  %3810 = vst.msk [vmem:[#allocation3 + $0x28] sm:$0xff] %vm3804, %v3623
  %3811 = vst.msk [vmem:[#allocation3 + $0x30] sm:$0xff] %vm3804, %v3625
  %3812 = vst.msk [vmem:[#allocation3 + $0x38] sm:$0xff] %vm3804, %v3627
  %3813 = vst.msk [vmem:[#allocation3 + $0x40] sm:$0xff] %vm3804, %v3629
  %3814 = vst.msk [vmem:[#allocation3 + $0x48] sm:$0xff] %vm3804, %v3631
  %3815 = vst.msk [vmem:[#allocation3 + $0x50] sm:$0xff] %vm3804, %v3633
  %3816 = vst.msk [vmem:[#allocation3 + $0x58] sm:$0xff] %vm3804, %v3635
  %3817 = vst.msk [vmem:[#allocation3 + $0x60] sm:$0xff] %vm3804, %v3637
  %3818 = vst.msk [vmem:[#allocation3 + $0x68] sm:$0xff] %vm3804, %v3639
  %3819 = vst.msk [vmem:[#allocation3 + $0x70] sm:$0xff] %vm3804, %v3641
  %3820 = vst.msk [vmem:[#allocation3 + $0x78] sm:$0xff] %vm3804, %v3643
  %3821 = vst.msk [vmem:[#allocation3 + $0x80] sm:$0xff] %vm3804, %v3645
  %3822 = vst.msk [vmem:[#allocation3 + $0x88] sm:$0xff] %vm3804, %v3647
  %3823 = vst.msk [vmem:[#allocation3 + $0x90] sm:$0xff] %vm3804, %v3649
  %3824 = vst.msk [vmem:[#allocation3 + $0x98] sm:$0xff] %vm3804, %v3651
  %3825 = vst.msk [vmem:[#allocation3 + $0xa0] sm:$0xff] %vm3804, %v3653
  %3826 = vst.msk [vmem:[#allocation3 + $0xa8] sm:$0xff] %vm3804, %v3655
  %3827 = vst.msk [vmem:[#allocation3 + $0xb0] sm:$0xff] %vm3804, %v3657
  %3828 = vst.msk [vmem:[#allocation3 + $0xb8] sm:$0xff] %vm3804, %v3659
  %3829 = vst.msk [vmem:[#allocation3 + $0xc0] sm:$0xff] %vm3804, %v3661
  %3830 = vst.msk [vmem:[#allocation3 + $0xc8] sm:$0xff] %vm3804, %v3663
  %3831 = vst.msk [vmem:[#allocation3 + $0xd0] sm:$0xff] %vm3804, %v3665
  %3832 = vst.msk [vmem:[#allocation3 + $0xd8] sm:$0xff] %vm3804, %v3667
  %3833 = vst.msk [vmem:[#allocation3 + $0xe0] sm:$0xff] %vm3804, %v3669
  %3834 = vst.msk [vmem:[#allocation3 + $0xe8] sm:$0xff] %vm3804, %v3671
  %3835 = vst.msk [vmem:[#allocation3 + $0xf0] sm:$0xff] %vm3804, %v3673
  %3836 = vst.msk [vmem:[#allocation3 + $0xf8] sm:$0xff] %vm3804, %v3675
  %3837 = vst.msk [vmem:[#allocation3 + $0x100] sm:$0xff] %vm3804, %v3677
  %3838 = vst.msk [vmem:[#allocation3 + $0x108] sm:$0xff] %vm3804, %v3679
  %3839 = vst.msk [vmem:[#allocation3 + $0x110] sm:$0xff] %vm3804, %v3681
  %3840 = vst.msk [vmem:[#allocation3 + $0x118] sm:$0xff] %vm3804, %v3683
  %3841 = vst.msk [vmem:[#allocation3 + $0x120] sm:$0xff] %vm3804, %v3685
  %3842 = vst.msk [vmem:[#allocation3 + $0x128] sm:$0xff] %vm3804, %v3687
  %3843 = vst.msk [vmem:[#allocation3 + $0x130] sm:$0xff] %vm3804, %v3689
  %3844 = vst.msk [vmem:[#allocation3 + $0x138] sm:$0xff] %vm3804, %v3691
  %3845 = vst.msk [vmem:[#allocation3 + $0x140] sm:$0xff] %vm3804, %v3693
  %3846 = vst.msk [vmem:[#allocation3 + $0x148] sm:$0xff] %vm3804, %v3695
  %3847 = vst.msk [vmem:[#allocation3 + $0x150] sm:$0xff] %vm3804, %v3697
  %3848 = vst.msk [vmem:[#allocation3 + $0x158] sm:$0xff] %vm3804, %v3699
  %3849 = vst.msk [vmem:[#allocation3 + $0x160] sm:$0xff] %vm3804, %v3701
  %3850 = vst.msk [vmem:[#allocation3 + $0x168] sm:$0xff] %vm3804, %v3703
  %3851 = vst.msk [vmem:[#allocation3 + $0x170] sm:$0xff] %vm3804, %v3705
  %3852 = vst.msk [vmem:[#allocation3 + $0x178] sm:$0xff] %vm3804, %v3707
  %3853 = vst.msk [vmem:[#allocation3 + $0x180] sm:$0xff] %vm3804, %v3709
  %3854 = vst.msk [vmem:[#allocation3 + $0x188] sm:$0xff] %vm3804, %v3711
  %3855 = vst.msk [vmem:[#allocation3 + $0x190] sm:$0xff] %vm3804, %v3713
  %3856 = vst.msk [vmem:[#allocation3 + $0x198] sm:$0xff] %vm3804, %v3715
  %3857 = vst.msk [vmem:[#allocation3 + $0x1a0] sm:$0xff] %vm3804, %v3717
  %3858 = vst.msk [vmem:[#allocation3 + $0x1a8] sm:$0xff] %vm3804, %v3719
  %3859 = vst.msk [vmem:[#allocation3 + $0x1b0] sm:$0xff] %vm3804, %v3721
  %3860 = vst.msk [vmem:[#allocation3 + $0x1b8] sm:$0xff] %vm3804, %v3723
  %3861 = vst.msk [vmem:[#allocation3 + $0x1c0] sm:$0xff] %vm3804, %v3725
  %3862 = vst.msk [vmem:[#allocation3 + $0x1c8] sm:$0xff] %vm3804, %v3727
  %3863 = vst.msk [vmem:[#allocation3 + $0x1d0] sm:$0xff] %vm3804, %v3729
  %3864 = vst.msk [vmem:[#allocation3 + $0x1d8] sm:$0xff] %vm3804, %v3731
  %3865 = vst.msk [vmem:[#allocation3 + $0x1e0] sm:$0xff] %vm3804, %v3733
  %3866 = vst.msk [vmem:[#allocation3 + $0x1e8] sm:$0xff] %vm3804, %v3735
  %3867 = vst.msk [vmem:[#allocation3 + $0x1f0] sm:$0xff] %vm3804, %v3737
  %3868 = vst.msk [vmem:[#allocation3 + $0x1f8] sm:$0xff] %vm3804, %v3739
  %v3869 = vld [vmem:[%s3098 + $0x2] sm:$0xff]
  %v3870 = vld [vmem:[%s3098 + $0xa] sm:$0xff]
  %v3871 = vld [vmem:[%s3098 + $0x1a] sm:$0xff]
  %v3872 = vld [vmem:[%s3098 + $0x22] sm:$0xff]
  %v3873 = vld [vmem:[%s3098 + $0x32] sm:$0xff]
  %v3874 = vld [vmem:[%s3098 + $0x3a] sm:$0xff]
  %v3875 = vld [vmem:[%s3098 + $0x4a] sm:$0xff]
  %v3876 = vld [vmem:[%s3098 + $0x52] sm:$0xff]
  %v3877 = vld [vmem:[%s3098 + $0x62] sm:$0xff]
  %v3878 = vld [vmem:[%s3098 + $0x6a] sm:$0xff]
  %v3879 = vld [vmem:[%s3098 + $0x7a] sm:$0xff]
  %v3880 = vld [vmem:[%s3098 + $0x82] sm:$0xff]
  %v3881 = vld [vmem:[%s3098 + $0x92] sm:$0xff]
  %v3882 = vld [vmem:[%s3098 + $0x9a] sm:$0xff]
  %v3883 = vld [vmem:[%s3098 + $0xaa] sm:$0xff]
  %v3884 = vld [vmem:[%s3098 + $0xb2] sm:$0xff]
  %v3885 = vld [vmem:[%s3098 + $0xc2] sm:$0xff]
  %v3886 = vld [vmem:[%s3098 + $0xca] sm:$0xff]
  %v3887 = vld [vmem:[%s3098 + $0xda] sm:$0xff]
  %v3888 = vld [vmem:[%s3098 + $0xe2] sm:$0xff]
  %v3889 = vld [vmem:[%s3098 + $0xf2] sm:$0xff]
  %v3890 = vld [vmem:[%s3098 + $0xfa] sm:$0xff]
  %v3891 = vld [vmem:[%s3098 + $0x10a] sm:$0xff]
  %v3892 = vld [vmem:[%s3098 + $0x112] sm:$0xff]
  %v3893 = vld [vmem:[%s3098 + $0x122] sm:$0xff]
  %v3894 = vld [vmem:[%s3098 + $0x12a] sm:$0xff]
  %v3895 = vld [vmem:[%s3098 + $0x13a] sm:$0xff]
  %v3896 = vld [vmem:[%s3098 + $0x142] sm:$0xff]
  %v3897 = vld [vmem:[%s3098 + $0x152] sm:$0xff]
  %v3898 = vld [vmem:[%s3098 + $0x15a] sm:$0xff]
  %v3899 = vld [vmem:[%s3098 + $0x16a] sm:$0xff]
  %v3900 = vld [vmem:[%s3098 + $0x172] sm:$0xff]
  %v3901 = vld [vmem:[%s3098 + $0x1b2] sm:$0xff]
  %v3902 = vld [vmem:[%s3098 + $0x1ba] sm:$0xff]
  %v3903 = vld [vmem:[%s3098 + $0x1ca] sm:$0xff]
  %v3904 = vld [vmem:[%s3098 + $0x1d2] sm:$0xff]
  %v3905 = vld [vmem:[%s3098 + $0x1e2] sm:$0xff]
  %v3906 = vld [vmem:[%s3098 + $0x1ea] sm:$0xff]
  %v3907 = vld [vmem:[%s3098 + $0x1fa] sm:$0xff]
  %v3908 = vld [vmem:[%s3098 + $0x202] sm:$0xff]
  %v3909 = vld [vmem:[%s3098 + $0x212] sm:$0xff]
  %v3910 = vld [vmem:[%s3098 + $0x21a] sm:$0xff]
  %v3911 = vld [vmem:[%s3098 + $0x22a] sm:$0xff]
  %v3912 = vld [vmem:[%s3098 + $0x232] sm:$0xff]
  %v3913 = vld [vmem:[%s3098 + $0x242] sm:$0xff]
  %v3914 = vld [vmem:[%s3098 + $0x24a] sm:$0xff]
  %v3915 = vld [vmem:[%s3098 + $0x25a] sm:$0xff]
  %v3916 = vld [vmem:[%s3098 + $0x262] sm:$0xff]
  %v3917 = vld [vmem:[%s3098 + $0x272] sm:$0xff]
  %v3918 = vld [vmem:[%s3098 + $0x27a] sm:$0xff]
  %v3919 = vld [vmem:[%s3098 + $0x28a] sm:$0xff]
  %v3920 = vld [vmem:[%s3098 + $0x292] sm:$0xff]
  %v3921 = vld [vmem:[%s3098 + $0x2a2] sm:$0xff]
  %v3922 = vld [vmem:[%s3098 + $0x2aa] sm:$0xff]
  %v3923 = vld [vmem:[%s3098 + $0x2ba] sm:$0xff]
  %v3924 = vld [vmem:[%s3098 + $0x2c2] sm:$0xff]
  %v3925 = vld [vmem:[%s3098 + $0x2d2] sm:$0xff]
  %v3926 = vld [vmem:[%s3098 + $0x2da] sm:$0xff]
  %v3927 = vld [vmem:[%s3098 + $0x2ea] sm:$0xff]
  %v3928 = vld [vmem:[%s3098 + $0x2f2] sm:$0xff]
  %v3929 = vld [vmem:[%s3098 + $0x302] sm:$0xff]
  %v3930 = vld [vmem:[%s3098 + $0x30a] sm:$0xff]
  %v3931 = vld [vmem:[%s3098 + $0x31a] sm:$0xff]
  %v3932 = vld [vmem:[%s3098 + $0x322] sm:$0xff]
  %3997 = vrot.lane.b32.xlu0 %v3869, 64
  %v3998 = vpop.permute.xlu0 %3997
  %3999 = vrot.lane.b32.xlu0 %v3870, 64
  %v4000 = vpop.permute.xlu0 %3999
  %4001 = vrot.lane.b32.xlu0 %v3871, 64
  %v4002 = vpop.permute.xlu0 %4001
  %4003 = vrot.lane.b32.xlu0 %v3872, 64
  %v4004 = vpop.permute.xlu0 %4003
  %4005 = vrot.lane.b32.xlu0 %v3873, 64
  %v4006 = vpop.permute.xlu0 %4005
  %4007 = vrot.lane.b32.xlu0 %v3874, 64
  %v4008 = vpop.permute.xlu0 %4007
  %4009 = vrot.lane.b32.xlu0 %v3875, 64
  %v4010 = vpop.permute.xlu0 %4009
  %4011 = vrot.lane.b32.xlu0 %v3876, 64
  %v4012 = vpop.permute.xlu0 %4011
  %4013 = vrot.lane.b32.xlu0 %v3877, 64
  %v4014 = vpop.permute.xlu0 %4013
  %4015 = vrot.lane.b32.xlu0 %v3878, 64
  %v4016 = vpop.permute.xlu0 %4015
  %4017 = vrot.lane.b32.xlu0 %v3879, 64
  %v4018 = vpop.permute.xlu0 %4017
  %4019 = vrot.lane.b32.xlu0 %v3880, 64
  %v4020 = vpop.permute.xlu0 %4019
  %4021 = vrot.lane.b32.xlu0 %v3881, 64
  %v4022 = vpop.permute.xlu0 %4021
  %4023 = vrot.lane.b32.xlu0 %v3882, 64
  %v4024 = vpop.permute.xlu0 %4023
  %4025 = vrot.lane.b32.xlu0 %v3883, 64
  %v4026 = vpop.permute.xlu0 %4025
  %4027 = vrot.lane.b32.xlu0 %v3884, 64
  %v4028 = vpop.permute.xlu0 %4027
  %4029 = vrot.lane.b32.xlu0 %v3885, 64
  %v4030 = vpop.permute.xlu0 %4029
  %4031 = vrot.lane.b32.xlu0 %v3886, 64
  %v4032 = vpop.permute.xlu0 %4031
  %4033 = vrot.lane.b32.xlu0 %v3887, 64
  %v4034 = vpop.permute.xlu0 %4033
  %4035 = vrot.lane.b32.xlu0 %v3888, 64
  %v4036 = vpop.permute.xlu0 %4035
  %4037 = vrot.lane.b32.xlu0 %v3889, 64
  %v4038 = vpop.permute.xlu0 %4037
  %4039 = vrot.lane.b32.xlu0 %v3890, 64
  %v4040 = vpop.permute.xlu0 %4039
  %4041 = vrot.lane.b32.xlu0 %v3891, 64
  %v4042 = vpop.permute.xlu0 %4041
  %4043 = vrot.lane.b32.xlu0 %v3892, 64
  %v4044 = vpop.permute.xlu0 %4043
  %4045 = vrot.lane.b32.xlu0 %v3893, 64
  %v4046 = vpop.permute.xlu0 %4045
  %4047 = vrot.lane.b32.xlu0 %v3894, 64
  %v4048 = vpop.permute.xlu0 %4047
  %4049 = vrot.lane.b32.xlu0 %v3895, 64
  %v4050 = vpop.permute.xlu0 %4049
  %4051 = vrot.lane.b32.xlu0 %v3896, 64
  %v4052 = vpop.permute.xlu0 %4051
  %4053 = vrot.lane.b32.xlu0 %v3897, 64
  %v4054 = vpop.permute.xlu0 %4053
  %4055 = vrot.lane.b32.xlu0 %v3898, 64
  %v4056 = vpop.permute.xlu0 %4055
  %4057 = vrot.lane.b32.xlu0 %v3899, 64
  %v4058 = vpop.permute.xlu0 %4057
  %4059 = vrot.lane.b32.xlu0 %v3900, 64
  %v4060 = vpop.permute.xlu0 %4059
  %4061 = vrot.lane.b32.xlu0 %v3901, 64
  %v4062 = vpop.permute.xlu0 %4061
  %4063 = vrot.lane.b32.xlu0 %v3902, 64
  %v4064 = vpop.permute.xlu0 %4063
  %4065 = vrot.lane.b32.xlu0 %v3903, 64
  %v4066 = vpop.permute.xlu0 %4065
  %4067 = vrot.lane.b32.xlu0 %v3904, 64
  %v4068 = vpop.permute.xlu0 %4067
  %4069 = vrot.lane.b32.xlu0 %v3905, 64
  %v4070 = vpop.permute.xlu0 %4069
  %4071 = vrot.lane.b32.xlu0 %v3906, 64
  %v4072 = vpop.permute.xlu0 %4071
  %4073 = vrot.lane.b32.xlu0 %v3907, 64
  %v4074 = vpop.permute.xlu0 %4073
  %4075 = vrot.lane.b32.xlu0 %v3908, 64
  %v4076 = vpop.permute.xlu0 %4075
  %4077 = vrot.lane.b32.xlu0 %v3909, 64
  %v4078 = vpop.permute.xlu0 %4077
  %4079 = vrot.lane.b32.xlu0 %v3910, 64
  %v4080 = vpop.permute.xlu0 %4079
  %4081 = vrot.lane.b32.xlu0 %v3911, 64
  %v4082 = vpop.permute.xlu0 %4081
  %4083 = vrot.lane.b32.xlu0 %v3912, 64
  %v4084 = vpop.permute.xlu0 %4083
  %4085 = vrot.lane.b32.xlu0 %v3913, 64
  %v4086 = vpop.permute.xlu0 %4085
  %4087 = vrot.lane.b32.xlu0 %v3914, 64
  %v4088 = vpop.permute.xlu0 %4087
  %4089 = vrot.lane.b32.xlu0 %v3915, 64
  %v4090 = vpop.permute.xlu0 %4089
  %4091 = vrot.lane.b32.xlu0 %v3916, 64
  %v4092 = vpop.permute.xlu0 %4091
  %4093 = vrot.lane.b32.xlu0 %v3917, 64
  %v4094 = vpop.permute.xlu0 %4093
  %4095 = vrot.lane.b32.xlu0 %v3918, 64
  %v4096 = vpop.permute.xlu0 %4095
  %4097 = vrot.lane.b32.xlu0 %v3919, 64
  %v4098 = vpop.permute.xlu0 %4097
  %4099 = vrot.lane.b32.xlu0 %v3920, 64
  %v4100 = vpop.permute.xlu0 %4099
  %4101 = vrot.lane.b32.xlu0 %v3921, 64
  %v4102 = vpop.permute.xlu0 %4101
  %4103 = vrot.lane.b32.xlu0 %v3922, 64
  %v4104 = vpop.permute.xlu0 %4103
  %4105 = vrot.lane.b32.xlu0 %v3923, 64
  %v4106 = vpop.permute.xlu0 %4105
  %4107 = vrot.lane.b32.xlu0 %v3924, 64
  %v4108 = vpop.permute.xlu0 %4107
  %4109 = vrot.lane.b32.xlu0 %v3925, 64
  %v4110 = vpop.permute.xlu0 %4109
  %4111 = vrot.lane.b32.xlu0 %v3926, 64
  %v4112 = vpop.permute.xlu0 %4111
  %4113 = vrot.lane.b32.xlu0 %v3927, 64
  %v4114 = vpop.permute.xlu0 %4113
  %4115 = vrot.lane.b32.xlu0 %v3928, 64
  %v4116 = vpop.permute.xlu0 %4115
  %4117 = vrot.lane.b32.xlu0 %v3929, 64
  %v4118 = vpop.permute.xlu0 %4117
  %4119 = vrot.lane.b32.xlu0 %v3930, 64
  %v4120 = vpop.permute.xlu0 %4119
  %4121 = vrot.lane.b32.xlu0 %v3931, 64
  %v4122 = vpop.permute.xlu0 %4121
  %4123 = vrot.lane.b32.xlu0 %v3932, 64
  %v4124 = vpop.permute.xlu0 %4123
  %vm4189 = vcmask 589312
  %4190 = vst.msk [vmem:[#allocation3] sm:$0xff] %vm4189, %v3998
  %4191 = vst.msk [vmem:[#allocation3 + $0x8] sm:$0xff] %vm4189, %v4000
  %4192 = vst.msk [vmem:[#allocation3 + $0x10] sm:$0xff] %vm4189, %v4002
  %4193 = vst.msk [vmem:[#allocation3 + $0x18] sm:$0xff] %vm4189, %v4004
  %4194 = vst.msk [vmem:[#allocation3 + $0x20] sm:$0xff] %vm4189, %v4006
  %4195 = vst.msk [vmem:[#allocation3 + $0x28] sm:$0xff] %vm4189, %v4008
  %4196 = vst.msk [vmem:[#allocation3 + $0x30] sm:$0xff] %vm4189, %v4010
  %4197 = vst.msk [vmem:[#allocation3 + $0x38] sm:$0xff] %vm4189, %v4012
  %4198 = vst.msk [vmem:[#allocation3 + $0x40] sm:$0xff] %vm4189, %v4014
  %4199 = vst.msk [vmem:[#allocation3 + $0x48] sm:$0xff] %vm4189, %v4016
  %4200 = vst.msk [vmem:[#allocation3 + $0x50] sm:$0xff] %vm4189, %v4018
  %4201 = vst.msk [vmem:[#allocation3 + $0x58] sm:$0xff] %vm4189, %v4020
  %4202 = vst.msk [vmem:[#allocation3 + $0x60] sm:$0xff] %vm4189, %v4022
  %4203 = vst.msk [vmem:[#allocation3 + $0x68] sm:$0xff] %vm4189, %v4024
  %4204 = vst.msk [vmem:[#allocation3 + $0x70] sm:$0xff] %vm4189, %v4026
  %4205 = vst.msk [vmem:[#allocation3 + $0x78] sm:$0xff] %vm4189, %v4028
  %4206 = vst.msk [vmem:[#allocation3 + $0x80] sm:$0xff] %vm4189, %v4030
  %4207 = vst.msk [vmem:[#allocation3 + $0x88] sm:$0xff] %vm4189, %v4032
  %4208 = vst.msk [vmem:[#allocation3 + $0x90] sm:$0xff] %vm4189, %v4034
  %4209 = vst.msk [vmem:[#allocation3 + $0x98] sm:$0xff] %vm4189, %v4036
  %4210 = vst.msk [vmem:[#allocation3 + $0xa0] sm:$0xff] %vm4189, %v4038
  %4211 = vst.msk [vmem:[#allocation3 + $0xa8] sm:$0xff] %vm4189, %v4040
  %4212 = vst.msk [vmem:[#allocation3 + $0xb0] sm:$0xff] %vm4189, %v4042
  %4213 = vst.msk [vmem:[#allocation3 + $0xb8] sm:$0xff] %vm4189, %v4044
  %4214 = vst.msk [vmem:[#allocation3 + $0xc0] sm:$0xff] %vm4189, %v4046
  %4215 = vst.msk [vmem:[#allocation3 + $0xc8] sm:$0xff] %vm4189, %v4048
  %4216 = vst.msk [vmem:[#allocation3 + $0xd0] sm:$0xff] %vm4189, %v4050
  %4217 = vst.msk [vmem:[#allocation3 + $0xd8] sm:$0xff] %vm4189, %v4052
  %4218 = vst.msk [vmem:[#allocation3 + $0xe0] sm:$0xff] %vm4189, %v4054
  %4219 = vst.msk [vmem:[#allocation3 + $0xe8] sm:$0xff] %vm4189, %v4056
  %4220 = vst.msk [vmem:[#allocation3 + $0xf0] sm:$0xff] %vm4189, %v4058
  %4221 = vst.msk [vmem:[#allocation3 + $0xf8] sm:$0xff] %vm4189, %v4060
  %4222 = vst.msk [vmem:[#allocation3 + $0x100] sm:$0xff] %vm4189, %v4062
  %4223 = vst.msk [vmem:[#allocation3 + $0x108] sm:$0xff] %vm4189, %v4064
  %4224 = vst.msk [vmem:[#allocation3 + $0x110] sm:$0xff] %vm4189, %v4066
  %4225 = vst.msk [vmem:[#allocation3 + $0x118] sm:$0xff] %vm4189, %v4068
  %4226 = vst.msk [vmem:[#allocation3 + $0x120] sm:$0xff] %vm4189, %v4070
  %4227 = vst.msk [vmem:[#allocation3 + $0x128] sm:$0xff] %vm4189, %v4072
  %4228 = vst.msk [vmem:[#allocation3 + $0x130] sm:$0xff] %vm4189, %v4074
  %4229 = vst.msk [vmem:[#allocation3 + $0x138] sm:$0xff] %vm4189, %v4076
  %4230 = vst.msk [vmem:[#allocation3 + $0x140] sm:$0xff] %vm4189, %v4078
  %4231 = vst.msk [vmem:[#allocation3 + $0x148] sm:$0xff] %vm4189, %v4080
  %4232 = vst.msk [vmem:[#allocation3 + $0x150] sm:$0xff] %vm4189, %v4082
  %4233 = vst.msk [vmem:[#allocation3 + $0x158] sm:$0xff] %vm4189, %v4084
  %4234 = vst.msk [vmem:[#allocation3 + $0x160] sm:$0xff] %vm4189, %v4086
  %4235 = vst.msk [vmem:[#allocation3 + $0x168] sm:$0xff] %vm4189, %v4088
  %4236 = vst.msk [vmem:[#allocation3 + $0x170] sm:$0xff] %vm4189, %v4090
  %4237 = vst.msk [vmem:[#allocation3 + $0x178] sm:$0xff] %vm4189, %v4092
  %4238 = vst.msk [vmem:[#allocation3 + $0x180] sm:$0xff] %vm4189, %v4094
  %4239 = vst.msk [vmem:[#allocation3 + $0x188] sm:$0xff] %vm4189, %v4096
  %4240 = vst.msk [vmem:[#allocation3 + $0x190] sm:$0xff] %vm4189, %v4098
  %4241 = vst.msk [vmem:[#allocation3 + $0x198] sm:$0xff] %vm4189, %v4100
  %4242 = vst.msk [vmem:[#allocation3 + $0x1a0] sm:$0xff] %vm4189, %v4102
  %4243 = vst.msk [vmem:[#allocation3 + $0x1a8] sm:$0xff] %vm4189, %v4104
  %4244 = vst.msk [vmem:[#allocation3 + $0x1b0] sm:$0xff] %vm4189, %v4106
  %4245 = vst.msk [vmem:[#allocation3 + $0x1b8] sm:$0xff] %vm4189, %v4108
  %4246 = vst.msk [vmem:[#allocation3 + $0x1c0] sm:$0xff] %vm4189, %v4110
  %4247 = vst.msk [vmem:[#allocation3 + $0x1c8] sm:$0xff] %vm4189, %v4112
  %4248 = vst.msk [vmem:[#allocation3 + $0x1d0] sm:$0xff] %vm4189, %v4114
  %4249 = vst.msk [vmem:[#allocation3 + $0x1d8] sm:$0xff] %vm4189, %v4116
  %4250 = vst.msk [vmem:[#allocation3 + $0x1e0] sm:$0xff] %vm4189, %v4118
  %4251 = vst.msk [vmem:[#allocation3 + $0x1e8] sm:$0xff] %vm4189, %v4120
  %4252 = vst.msk [vmem:[#allocation3 + $0x1f0] sm:$0xff] %vm4189, %v4122
  %4253 = vst.msk [vmem:[#allocation3 + $0x1f8] sm:$0xff] %vm4189, %v4124
  %v4254 = vld [vmem:[#allocation3] sm:$0xff]
  %v4255 = vld [vmem:[#allocation3 + $0x8] sm:$0xff]
  %v4256 = vld [vmem:[#allocation3 + $0x10] sm:$0xff]
  %v4257 = vld [vmem:[#allocation3 + $0x18] sm:$0xff]
  %v4258 = vld [vmem:[#allocation3 + $0x20] sm:$0xff]
  %v4259 = vld [vmem:[#allocation3 + $0x28] sm:$0xff]
  %v4260 = vld [vmem:[#allocation3 + $0x30] sm:$0xff]
  %v4261 = vld [vmem:[#allocation3 + $0x38] sm:$0xff]
  %v4262 = vld [vmem:[#allocation3 + $0x40] sm:$0xff]
  %v4263 = vld [vmem:[#allocation3 + $0x48] sm:$0xff]
  %v4264 = vld [vmem:[#allocation3 + $0x50] sm:$0xff]
  %v4265 = vld [vmem:[#allocation3 + $0x58] sm:$0xff]
  %v4266 = vld [vmem:[#allocation3 + $0x60] sm:$0xff]
  %v4267 = vld [vmem:[#allocation3 + $0x68] sm:$0xff]
  %v4268 = vld [vmem:[#allocation3 + $0x70] sm:$0xff]
  %v4269 = vld [vmem:[#allocation3 + $0x78] sm:$0xff]
  %v4270 = vld [vmem:[#allocation3 + $0x80] sm:$0xff]
  %v4271 = vld [vmem:[#allocation3 + $0x88] sm:$0xff]
  %v4272 = vld [vmem:[#allocation3 + $0x90] sm:$0xff]
  %v4273 = vld [vmem:[#allocation3 + $0x98] sm:$0xff]
  %v4274 = vld [vmem:[#allocation3 + $0xa0] sm:$0xff]
  %v4275 = vld [vmem:[#allocation3 + $0xa8] sm:$0xff]
  %v4276 = vld [vmem:[#allocation3 + $0xb0] sm:$0xff]
  %v4277 = vld [vmem:[#allocation3 + $0xb8] sm:$0xff]
  %v4278 = vld [vmem:[#allocation3 + $0xc0] sm:$0xff]
  %v4279 = vld [vmem:[#allocation3 + $0xc8] sm:$0xff]
  %v4280 = vld [vmem:[#allocation3 + $0xd0] sm:$0xff]
  %v4281 = vld [vmem:[#allocation3 + $0xd8] sm:$0xff]
  %v4282 = vld [vmem:[#allocation3 + $0xe0] sm:$0xff]
  %v4283 = vld [vmem:[#allocation3 + $0xe8] sm:$0xff]
  %v4284 = vld [vmem:[#allocation3 + $0xf0] sm:$0xff]
  %v4285 = vld [vmem:[#allocation3 + $0xf8] sm:$0xff]
  %v4286 = vld [vmem:[#allocation3 + $0x100] sm:$0xff]
  %v4287 = vld [vmem:[#allocation3 + $0x108] sm:$0xff]
  %v4288 = vld [vmem:[#allocation3 + $0x110] sm:$0xff]
  %v4289 = vld [vmem:[#allocation3 + $0x118] sm:$0xff]
  %v4290 = vld [vmem:[#allocation3 + $0x120] sm:$0xff]
  %v4291 = vld [vmem:[#allocation3 + $0x128] sm:$0xff]
  %v4292 = vld [vmem:[#allocation3 + $0x130] sm:$0xff]
  %v4293 = vld [vmem:[#allocation3 + $0x138] sm:$0xff]
  %v4294 = vld [vmem:[#allocation3 + $0x140] sm:$0xff]
  %v4295 = vld [vmem:[#allocation3 + $0x148] sm:$0xff]
  %v4296 = vld [vmem:[#allocation3 + $0x150] sm:$0xff]
  %v4297 = vld [vmem:[#allocation3 + $0x158] sm:$0xff]
  %v4298 = vld [vmem:[#allocation3 + $0x160] sm:$0xff]
  %v4299 = vld [vmem:[#allocation3 + $0x168] sm:$0xff]
  %v4300 = vld [vmem:[#allocation3 + $0x170] sm:$0xff]
  %v4301 = vld [vmem:[#allocation3 + $0x178] sm:$0xff]
  %v4302 = vld [vmem:[#allocation3 + $0x180] sm:$0xff]
  %v4303 = vld [vmem:[#allocation3 + $0x188] sm:$0xff]
  %v4304 = vld [vmem:[#allocation3 + $0x190] sm:$0xff]
  %v4305 = vld [vmem:[#allocation3 + $0x198] sm:$0xff]
  %v4306 = vld [vmem:[#allocation3 + $0x1a0] sm:$0xff]
  %v4307 = vld [vmem:[#allocation3 + $0x1a8] sm:$0xff]
  %v4308 = vld [vmem:[#allocation3 + $0x1b0] sm:$0xff]
  %v4309 = vld [vmem:[#allocation3 + $0x1b8] sm:$0xff]
  %v4310 = vld [vmem:[#allocation3 + $0x1c0] sm:$0xff]
  %v4311 = vld [vmem:[#allocation3 + $0x1c8] sm:$0xff]
  %v4312 = vld [vmem:[#allocation3 + $0x1d0] sm:$0xff]
  %v4313 = vld [vmem:[#allocation3 + $0x1d8] sm:$0xff]
  %v4314 = vld [vmem:[#allocation3 + $0x1e0] sm:$0xff]
  %v4315 = vld [vmem:[#allocation3 + $0x1e8] sm:$0xff]
  %v4316 = vld [vmem:[#allocation3 + $0x1f0] sm:$0xff]
  %v4317 = vld [vmem:[#allocation3 + $0x1f8] sm:$0xff]
  %v4318 = vld [vmem:[%s4] sm:$0xff]
  %v4319 = vld [vmem:[%s4 + $0x8] sm:$0xff]
  %v4320 = vld [vmem:[%s4 + $0x10] sm:$0xff]
  %v4321 = vld [vmem:[%s4 + $0x18] sm:$0xff]
  %v4322 = vld [vmem:[%s4 + $0x20] sm:$0xff]
  %v4323 = vld [vmem:[%s4 + $0x28] sm:$0xff]
  %v4324 = vld [vmem:[%s4 + $0x30] sm:$0xff]
  %v4325 = vld [vmem:[%s4 + $0x38] sm:$0xff]
  %v4326 = vld [vmem:[%s4 + $0x40] sm:$0xff]
  %vm4327 = vcmask 588800
  %v4329 = vsel %vm4327, %v4254, 0
  %v4332 = vsel %vm4327, %v4255, 0
  %v4335 = vsel %vm4327, %v4256, 0
  %v4338 = vsel %vm4327, %v4257, 0
  %v4341 = vsel %vm4327, %v4258, 0
  %v4344 = vsel %vm4327, %v4259, 0
  %v4347 = vsel %vm4327, %v4260, 0
  %v4350 = vsel %vm4327, %v4261, 0
  %v4353 = vsel %vm4327, %v4262, 0
  %v4356 = vsel %vm4327, %v4263, 0
  %v4359 = vsel %vm4327, %v4264, 0
  %v4362 = vsel %vm4327, %v4265, 0
  %v4365 = vsel %vm4327, %v4266, 0
  %v4368 = vsel %vm4327, %v4267, 0
  %v4371 = vsel %vm4327, %v4268, 0
  %v4374 = vsel %vm4327, %v4269, 0
  %v4377 = vsel %vm4327, %v4270, 0
  %v4380 = vsel %vm4327, %v4271, 0
  %v4383 = vsel %vm4327, %v4272, 0
  %v4386 = vsel %vm4327, %v4273, 0
  %v4389 = vsel %vm4327, %v4274, 0
  %v4392 = vsel %vm4327, %v4275, 0
  %v4395 = vsel %vm4327, %v4276, 0
  %v4398 = vsel %vm4327, %v4277, 0
  %v4401 = vsel %vm4327, %v4278, 0
  %v4404 = vsel %vm4327, %v4279, 0
  %v4407 = vsel %vm4327, %v4280, 0
  %v4410 = vsel %vm4327, %v4281, 0
  %v4413 = vsel %vm4327, %v4282, 0
  %v4416 = vsel %vm4327, %v4283, 0
  %v4419 = vsel %vm4327, %v4284, 0
  %v4422 = vsel %vm4327, %v4285, 0
  %v4425 = vsel %vm4327, %v4286, 0
  %v4428 = vsel %vm4327, %v4287, 0
  %v4431 = vsel %vm4327, %v4288, 0
  %v4434 = vsel %vm4327, %v4289, 0
  %v4437 = vsel %vm4327, %v4290, 0
  %v4440 = vsel %vm4327, %v4291, 0
  %v4443 = vsel %vm4327, %v4292, 0
  %v4446 = vsel %vm4327, %v4293, 0
  %v4449 = vsel %vm4327, %v4294, 0
  %v4452 = vsel %vm4327, %v4295, 0
  %v4455 = vsel %vm4327, %v4296, 0
  %v4458 = vsel %vm4327, %v4297, 0
  %v4461 = vsel %vm4327, %v4298, 0
  %v4464 = vsel %vm4327, %v4299, 0
  %v4467 = vsel %vm4327, %v4300, 0
  %v4470 = vsel %vm4327, %v4301, 0
  %v4473 = vsel %vm4327, %v4302, 0
  %v4476 = vsel %vm4327, %v4303, 0
  %v4479 = vsel %vm4327, %v4304, 0
  %v4482 = vsel %vm4327, %v4305, 0
  %v4485 = vsel %vm4327, %v4306, 0
  %v4488 = vsel %vm4327, %v4307, 0
  %v4491 = vsel %vm4327, %v4308, 0
  %v4494 = vsel %vm4327, %v4309, 0
  %v4497 = vsel %vm4327, %v4310, 0
  %v4500 = vsel %vm4327, %v4311, 0
  %v4503 = vsel %vm4327, %v4312, 0
  %v4506 = vsel %vm4327, %v4313, 0
  %v4509 = vsel %vm4327, %v4314, 0
  %v4512 = vsel %vm4327, %v4315, 0
  %v4515 = vsel %vm4327, %v4316, 0
  %v4518 = vsel %vm4327, %v4317, 0
  %4520 = vmatprep.subr.mxu0 0.0
  %4521 = vmatpush1.msra.mxu0 %v4318
  %4522 = vmatprep.subr.mxu0 0.0
  %4523 = vmatpush1.msra.mxu0 %v4319
  %4524 = vmatprep.subr.mxu0 0.0
  %4525 = vmatpush1.msra.mxu0 %v4320
  %4526 = vmatprep.subr.mxu0 0.0
  %4527 = vmatpush1.msra.mxu0 %v4321
  %4528 = vmatprep.subr.mxu0 0.0
  %4529 = vmatpush1.msra.mxu0 %v4322
  %4530 = vmatprep.subr.mxu0 0.0
  %4531 = vmatpush1.msra.mxu0 %v4323
  %4532 = vmatprep.subr.mxu0 0.0
  %4533 = vmatpush1.msra.mxu0 %v4324
  %4534 = vmatprep.subr.mxu0 0.0
  %4535 = vmatpush1.msra.mxu0 %v4325
  %4536 = vmatprep.subr.mxu0 0.0
  %4537 = vmatpush1.msra.mxu0 %v4326
  %4538 = vmatprep.subr.mxu0 0.0
  %4539 = vmatpush1.msra.mxu0 0.0
  %4540 = vmatprep.subr.mxu0 0.0
  %4541 = vmatpush1.msra.mxu0 0.0
  %4542 = vmatprep.subr.mxu0 0.0
  %4543 = vmatpush1.msra.mxu0 0.0
  %4544 = vmatprep.subr.mxu0 0.0
  %4545 = vmatpush1.msra.mxu0 0.0
  %4546 = vmatprep.subr.mxu0 0.0
  %4547 = vmatpush1.msra.mxu0 0.0
  %4548 = vmatprep.subr.mxu0 0.0
  %4549 = vmatpush1.msra.mxu0 0.0
  %4550 = vmatprep.subr.mxu0 0.0
  %4551 = vmatpush1.msra.mxu0 0.0
  %4552 = vmatprep.subr.mxu0 0.0
  %4553 = vmatpush1.msra.mxu0 0.0
  %4554 = vmatprep.subr.mxu0 0.0
  %4555 = vmatpush1.msra.mxu0 0.0
  %4556 = vmatprep.subr.mxu0 0.0
  %4557 = vmatpush1.msra.mxu0 0.0
  %4558 = vmatprep.subr.mxu0 0.0
  %4559 = vmatpush1.msra.mxu0 0.0
  %4560 = vmatprep.subr.mxu0 0.0
  %4561 = vmatpush1.msra.mxu0 0.0
  %4562 = vmatprep.subr.mxu0 0.0
  %4563 = vmatpush1.msra.mxu0 0.0
  %4564 = vmatprep.subr.mxu0 0.0
  %4565 = vmatpush1.msra.mxu0 0.0
  %4566 = vmatprep.subr.mxu0 0.0
  %4567 = vmatpush1.msra.mxu0 0.0
  %4568 = vmatprep.subr.mxu0 0.0
  %4569 = vmatpush1.msra.mxu0 0.0
  %4570 = vmatprep.subr.mxu0 0.0
  %4571 = vmatpush1.msra.mxu0 0.0
  %4572 = vmatprep.subr.mxu0 0.0
  %4573 = vmatpush1.msra.mxu0 0.0
  %4574 = vmatprep.subr.mxu0 0.0
  %4575 = vmatpush1.msra.mxu0 0.0
  %4576 = vmatprep.subr.mxu0 0.0
  %4577 = vmatpush1.msra.mxu0 0.0
  %4578 = vmatprep.subr.mxu0 0.0
  %4579 = vmatpush1.msra.mxu0 0.0
  %4580 = vmatprep.subr.mxu0 0.0
  %4581 = vmatpush1.msra.mxu0 0.0
  %4582 = vmatprep.subr.mxu0 0.0
  %4583 = vmatpush1.msra.mxu0 0.0
  %4584 = vmatprep.mubr.f32.mxu0 0.0
  %4585 = vmatmul.mubr.f32.gmra.mrb[0].mxu0 %v4329
  %v4586 = vpop.f32.mrb[0].mxu0
  %v4587 = vadd.f32 0.0, %v4586
  %v4588 = vpop.f32.mrb[0].mxu0
  %4589 = vmatprep.mubr.f32.mxu0 0.0
  %4590 = vmatmul.mubr.f32.gmra.mrb[0].mxu0 %v4332
  %v4591 = vpop.f32.mrb[0].mxu0
  %v4592 = vadd.f32 0.0, %v4591
  %v4593 = vpop.f32.mrb[0].mxu0
  %4594 = vmatprep.mubr.f32.mxu0 0.0
  %4595 = vmatmul.mubr.f32.gmra.mrb[0].mxu0 %v4335
  %v4596 = vpop.f32.mrb[0].mxu0
  %v4597 = vadd.f32 0.0, %v4596
  %v4598 = vpop.f32.mrb[0].mxu0
  %4599 = vmatprep.mubr.f32.mxu0 0.0
  %4600 = vmatmul.mubr.f32.gmra.mrb[0].mxu0 %v4338
  %v4601 = vpop.f32.mrb[0].mxu0
  %v4602 = vadd.f32 0.0, %v4601
  %v4603 = vpop.f32.mrb[0].mxu0
  %4604 = vmatprep.mubr.f32.mxu0 0.0
  %4605 = vmatmul.mubr.f32.gmra.mrb[0].mxu0 %v4341
  %v4606 = vpop.f32.mrb[0].mxu0
  %v4607 = vadd.f32 0.0, %v4606
  %v4608 = vpop.f32.mrb[0].mxu0
  %4609 = vmatprep.mubr.f32.mxu0 0.0
  %4610 = vmatmul.mubr.f32.gmra.mrb[0].mxu0 %v4344
  %v4611 = vpop.f32.mrb[0].mxu0
  %v4612 = vadd.f32 0.0, %v4611
  %v4613 = vpop.f32.mrb[0].mxu0
  %4614 = vmatprep.mubr.f32.mxu0 0.0
  %4615 = vmatmul.mubr.f32.gmra.mrb[0].mxu0 %v4347
  %v4616 = vpop.f32.mrb[0].mxu0
  %v4617 = vadd.f32 0.0, %v4616
  %v4618 = vpop.f32.mrb[0].mxu0
  %4619 = vmatprep.mubr.f32.mxu0 0.0
  %4620 = vmatmul.mubr.f32.gmra.mrb[0].mxu0 %v4350
  %v4621 = vpop.f32.mrb[0].mxu0
  %v4622 = vadd.f32 0.0, %v4621
  %v4623 = vpop.f32.mrb[0].mxu0
  %4624 = vmatprep.mubr.f32.mxu0 0.0
  %4625 = vmatmul.mubr.f32.gmra.mrb[0].mxu0 %v4353
  %v4626 = vpop.f32.mrb[0].mxu0
  %v4627 = vadd.f32 0.0, %v4626
  %v4628 = vpop.f32.mrb[0].mxu0
  %4629 = vmatprep.mubr.f32.mxu0 0.0
  %4630 = vmatmul.mubr.f32.gmra.mrb[0].mxu0 %v4356
  %v4631 = vpop.f32.mrb[0].mxu0
  %v4632 = vadd.f32 0.0, %v4631
  %v4633 = vpop.f32.mrb[0].mxu0
  %4634 = vmatprep.mubr.f32.mxu0 0.0
  %4635 = vmatmul.mubr.f32.gmra.mrb[0].mxu0 %v4359
  %v4636 = vpop.f32.mrb[0].mxu0
  %v4637 = vadd.f32 0.0, %v4636
  %v4638 = vpop.f32.mrb[0].mxu0
  %4639 = vmatprep.mubr.f32.mxu0 0.0
  %4640 = vmatmul.mubr.f32.gmra.mrb[0].mxu0 %v4362
  %v4641 = vpop.f32.mrb[0].mxu0
  %v4642 = vadd.f32 0.0, %v4641
  %v4643 = vpop.f32.mrb[0].mxu0
  %4644 = vmatprep.mubr.f32.mxu0 0.0
  %4645 = vmatmul.mubr.f32.gmra.mrb[0].mxu0 %v4365
  %v4646 = vpop.f32.mrb[0].mxu0
  %v4647 = vadd.f32 0.0, %v4646
  %v4648 = vpop.f32.mrb[0].mxu0
  %4649 = vmatprep.mubr.f32.mxu0 0.0
  %4650 = vmatmul.mubr.f32.gmra.mrb[0].mxu0 %v4368
  %v4651 = vpop.f32.mrb[0].mxu0
  %v4652 = vadd.f32 0.0, %v4651
  %v4653 = vpop.f32.mrb[0].mxu0
  %4654 = vmatprep.mubr.f32.mxu0 0.0
  %4655 = vmatmul.mubr.f32.gmra.mrb[0].mxu0 %v4371
  %v4656 = vpop.f32.mrb[0].mxu0
  %v4657 = vadd.f32 0.0, %v4656
  %v4658 = vpop.f32.mrb[0].mxu0
  %4659 = vmatprep.mubr.f32.mxu0 0.0
  %4660 = vmatmul.mubr.f32.gmra.mrb[0].mxu0 %v4374
  %v4661 = vpop.f32.mrb[0].mxu0
  %v4662 = vadd.f32 0.0, %v4661
  %v4663 = vpop.f32.mrb[0].mxu0
  %4664 = vmatprep.mubr.f32.mxu0 0.0
  %4665 = vmatmul.mubr.f32.gmra.mrb[0].mxu0 %v4377
  %v4666 = vpop.f32.mrb[0].mxu0
  %v4667 = vadd.f32 0.0, %v4666
  %v4668 = vpop.f32.mrb[0].mxu0
  %4669 = vmatprep.mubr.f32.mxu0 0.0
  %4670 = vmatmul.mubr.f32.gmra.mrb[0].mxu0 %v4380
  %v4671 = vpop.f32.mrb[0].mxu0
  %v4672 = vadd.f32 0.0, %v4671
  %v4673 = vpop.f32.mrb[0].mxu0
  %4674 = vmatprep.mubr.f32.mxu0 0.0
  %4675 = vmatmul.mubr.f32.gmra.mrb[0].mxu0 %v4383
  %v4676 = vpop.f32.mrb[0].mxu0
  %v4677 = vadd.f32 0.0, %v4676
  %v4678 = vpop.f32.mrb[0].mxu0
  %4679 = vmatprep.mubr.f32.mxu0 0.0
  %4680 = vmatmul.mubr.f32.gmra.mrb[0].mxu0 %v4386
  %v4681 = vpop.f32.mrb[0].mxu0
  %v4682 = vadd.f32 0.0, %v4681
  %v4683 = vpop.f32.mrb[0].mxu0
  %4684 = vmatprep.mubr.f32.mxu0 0.0
  %4685 = vmatmul.mubr.f32.gmra.mrb[0].mxu0 %v4389
  %v4686 = vpop.f32.mrb[0].mxu0
  %v4687 = vadd.f32 0.0, %v4686
  %v4688 = vpop.f32.mrb[0].mxu0
  %4689 = vmatprep.mubr.f32.mxu0 0.0
  %4690 = vmatmul.mubr.f32.gmra.mrb[0].mxu0 %v4392
  %v4691 = vpop.f32.mrb[0].mxu0
  %v4692 = vadd.f32 0.0, %v4691
  %v4693 = vpop.f32.mrb[0].mxu0
  %4694 = vmatprep.mubr.f32.mxu0 0.0
  %4695 = vmatmul.mubr.f32.gmra.mrb[0].mxu0 %v4395
  %v4696 = vpop.f32.mrb[0].mxu0
  %v4697 = vadd.f32 0.0, %v4696
  %v4698 = vpop.f32.mrb[0].mxu0
  %4699 = vmatprep.mubr.f32.mxu0 0.0
  %4700 = vmatmul.mubr.f32.gmra.mrb[0].mxu0 %v4398
  %v4701 = vpop.f32.mrb[0].mxu0
  %v4702 = vadd.f32 0.0, %v4701
  %v4703 = vpop.f32.mrb[0].mxu0
  %4704 = vmatprep.mubr.f32.mxu0 0.0
  %4705 = vmatmul.mubr.f32.gmra.mrb[0].mxu0 %v4401
  %v4706 = vpop.f32.mrb[0].mxu0
  %v4707 = vadd.f32 0.0, %v4706
  %v4708 = vpop.f32.mrb[0].mxu0
  %4709 = vmatprep.mubr.f32.mxu0 0.0
  %4710 = vmatmul.mubr.f32.gmra.mrb[0].mxu0 %v4404
  %v4711 = vpop.f32.mrb[0].mxu0
  %v4712 = vadd.f32 0.0, %v4711
  %v4713 = vpop.f32.mrb[0].mxu0
  %4714 = vmatprep.mubr.f32.mxu0 0.0
  %4715 = vmatmul.mubr.f32.gmra.mrb[0].mxu0 %v4407
  %v4716 = vpop.f32.mrb[0].mxu0
  %v4717 = vadd.f32 0.0, %v4716
  %v4718 = vpop.f32.mrb[0].mxu0
  %4719 = vmatprep.mubr.f32.mxu0 0.0
  %4720 = vmatmul.mubr.f32.gmra.mrb[0].mxu0 %v4410
  %v4721 = vpop.f32.mrb[0].mxu0
  %v4722 = vadd.f32 0.0, %v4721
  %v4723 = vpop.f32.mrb[0].mxu0
  %4724 = vmatprep.mubr.f32.mxu0 0.0
  %4725 = vmatmul.mubr.f32.gmra.mrb[0].mxu0 %v4413
  %v4726 = vpop.f32.mrb[0].mxu0
  %v4727 = vadd.f32 0.0, %v4726
  %v4728 = vpop.f32.mrb[0].mxu0
  %4729 = vmatprep.mubr.f32.mxu0 0.0
  %4730 = vmatmul.mubr.f32.gmra.mrb[0].mxu0 %v4416
  %v4731 = vpop.f32.mrb[0].mxu0
  %v4732 = vadd.f32 0.0, %v4731
  %v4733 = vpop.f32.mrb[0].mxu0
  %4734 = vmatprep.mubr.f32.mxu0 0.0
  %4735 = vmatmul.mubr.f32.gmra.mrb[0].mxu0 %v4419
  %v4736 = vpop.f32.mrb[0].mxu0
  %v4737 = vadd.f32 0.0, %v4736
  %v4738 = vpop.f32.mrb[0].mxu0
  %4739 = vmatprep.mubr.f32.mxu0 0.0
  %4740 = vmatmul.mubr.f32.gmra.mrb[0].mxu0 %v4422
  %v4741 = vpop.f32.mrb[0].mxu0
  %v4742 = vadd.f32 0.0, %v4741
  %v4743 = vpop.f32.mrb[0].mxu0
  %4744 = vmatprep.mubr.f32.mxu0 0.0
  %4745 = vmatmul.mubr.f32.gmra.mrb[0].mxu0 %v4425
  %v4746 = vpop.f32.mrb[0].mxu0
  %v4747 = vadd.f32 0.0, %v4746
  %v4748 = vpop.f32.mrb[0].mxu0
  %4749 = vmatprep.mubr.f32.mxu0 0.0
  %4750 = vmatmul.mubr.f32.gmra.mrb[0].mxu0 %v4428
  %v4751 = vpop.f32.mrb[0].mxu0
  %v4752 = vadd.f32 0.0, %v4751
  %v4753 = vpop.f32.mrb[0].mxu0
  %4754 = vmatprep.mubr.f32.mxu0 0.0
  %4755 = vmatmul.mubr.f32.gmra.mrb[0].mxu0 %v4431
  %v4756 = vpop.f32.mrb[0].mxu0
  %v4757 = vadd.f32 0.0, %v4756
  %v4758 = vpop.f32.mrb[0].mxu0
  %4759 = vmatprep.mubr.f32.mxu0 0.0
  %4760 = vmatmul.mubr.f32.gmra.mrb[0].mxu0 %v4434
  %v4761 = vpop.f32.mrb[0].mxu0
  %v4762 = vadd.f32 0.0, %v4761
  %v4763 = vpop.f32.mrb[0].mxu0
  %4764 = vmatprep.mubr.f32.mxu0 0.0
  %4765 = vmatmul.mubr.f32.gmra.mrb[0].mxu0 %v4437
  %v4766 = vpop.f32.mrb[0].mxu0
  %v4767 = vadd.f32 0.0, %v4766
  %v4768 = vpop.f32.mrb[0].mxu0
  %4769 = vmatprep.mubr.f32.mxu0 0.0
  %4770 = vmatmul.mubr.f32.gmra.mrb[0].mxu0 %v4440
  %v4771 = vpop.f32.mrb[0].mxu0
  %v4772 = vadd.f32 0.0, %v4771
  %v4773 = vpop.f32.mrb[0].mxu0
  %4774 = vmatprep.mubr.f32.mxu0 0.0
  %4775 = vmatmul.mubr.f32.gmra.mrb[0].mxu0 %v4443
  %v4776 = vpop.f32.mrb[0].mxu0
  %v4777 = vadd.f32 0.0, %v4776
  %v4778 = vpop.f32.mrb[0].mxu0
  %4779 = vmatprep.mubr.f32.mxu0 0.0
  %4780 = vmatmul.mubr.f32.gmra.mrb[0].mxu0 %v4446
  %v4781 = vpop.f32.mrb[0].mxu0
  %v4782 = vadd.f32 0.0, %v4781
  %v4783 = vpop.f32.mrb[0].mxu0
  %4784 = vmatprep.mubr.f32.mxu0 0.0
  %4785 = vmatmul.mubr.f32.gmra.mrb[0].mxu0 %v4449
  %v4786 = vpop.f32.mrb[0].mxu0
  %v4787 = vadd.f32 0.0, %v4786
  %v4788 = vpop.f32.mrb[0].mxu0
  %4789 = vmatprep.mubr.f32.mxu0 0.0
  %4790 = vmatmul.mubr.f32.gmra.mrb[0].mxu0 %v4452
  %v4791 = vpop.f32.mrb[0].mxu0
  %v4792 = vadd.f32 0.0, %v4791
  %v4793 = vpop.f32.mrb[0].mxu0
  %4794 = vmatprep.mubr.f32.mxu0 0.0
  %4795 = vmatmul.mubr.f32.gmra.mrb[0].mxu0 %v4455
  %v4796 = vpop.f32.mrb[0].mxu0
  %v4797 = vadd.f32 0.0, %v4796
  %v4798 = vpop.f32.mrb[0].mxu0
  %4799 = vmatprep.mubr.f32.mxu0 0.0
  %4800 = vmatmul.mubr.f32.gmra.mrb[0].mxu0 %v4458
  %v4801 = vpop.f32.mrb[0].mxu0
  %v4802 = vadd.f32 0.0, %v4801
  %v4803 = vpop.f32.mrb[0].mxu0
  %4804 = vmatprep.mubr.f32.mxu0 0.0
  %4805 = vmatmul.mubr.f32.gmra.mrb[0].mxu0 %v4461
  %v4806 = vpop.f32.mrb[0].mxu0
  %v4807 = vadd.f32 0.0, %v4806
  %v4808 = vpop.f32.mrb[0].mxu0
  %4809 = vmatprep.mubr.f32.mxu0 0.0
  %4810 = vmatmul.mubr.f32.gmra.mrb[0].mxu0 %v4464
  %v4811 = vpop.f32.mrb[0].mxu0
  %v4812 = vadd.f32 0.0, %v4811
  %v4813 = vpop.f32.mrb[0].mxu0
  %4814 = vmatprep.mubr.f32.mxu0 0.0
  %4815 = vmatmul.mubr.f32.gmra.mrb[0].mxu0 %v4467
  %v4816 = vpop.f32.mrb[0].mxu0
  %v4817 = vadd.f32 0.0, %v4816
  %v4818 = vpop.f32.mrb[0].mxu0
  %4819 = vmatprep.mubr.f32.mxu0 0.0
  %4820 = vmatmul.mubr.f32.gmra.mrb[0].mxu0 %v4470
  %v4821 = vpop.f32.mrb[0].mxu0
  %v4822 = vadd.f32 0.0, %v4821
  %v4823 = vpop.f32.mrb[0].mxu0
  %4824 = vmatprep.mubr.f32.mxu0 0.0
  %4825 = vmatmul.mubr.f32.gmra.mrb[0].mxu0 %v4473
  %v4826 = vpop.f32.mrb[0].mxu0
  %v4827 = vadd.f32 0.0, %v4826
  %v4828 = vpop.f32.mrb[0].mxu0
  %4829 = vmatprep.mubr.f32.mxu0 0.0
  %4830 = vmatmul.mubr.f32.gmra.mrb[0].mxu0 %v4476
  %v4831 = vpop.f32.mrb[0].mxu0
  %v4832 = vadd.f32 0.0, %v4831
  %v4833 = vpop.f32.mrb[0].mxu0
  %4834 = vmatprep.mubr.f32.mxu0 0.0
  %4835 = vmatmul.mubr.f32.gmra.mrb[0].mxu0 %v4479
  %v4836 = vpop.f32.mrb[0].mxu0
  %v4837 = vadd.f32 0.0, %v4836
  %v4838 = vpop.f32.mrb[0].mxu0
  %4839 = vmatprep.mubr.f32.mxu0 0.0
  %4840 = vmatmul.mubr.f32.gmra.mrb[0].mxu0 %v4482
  %v4841 = vpop.f32.mrb[0].mxu0
  %v4842 = vadd.f32 0.0, %v4841
  %v4843 = vpop.f32.mrb[0].mxu0
  %4844 = vmatprep.mubr.f32.mxu0 0.0
  %4845 = vmatmul.mubr.f32.gmra.mrb[0].mxu0 %v4485
  %v4846 = vpop.f32.mrb[0].mxu0
  %v4847 = vadd.f32 0.0, %v4846
  %v4848 = vpop.f32.mrb[0].mxu0
  %4849 = vmatprep.mubr.f32.mxu0 0.0
  %4850 = vmatmul.mubr.f32.gmra.mrb[0].mxu0 %v4488
  %v4851 = vpop.f32.mrb[0].mxu0
  %v4852 = vadd.f32 0.0, %v4851
  %v4853 = vpop.f32.mrb[0].mxu0
  %4854 = vmatprep.mubr.f32.mxu0 0.0
  %4855 = vmatmul.mubr.f32.gmra.mrb[0].mxu0 %v4491
  %v4856 = vpop.f32.mrb[0].mxu0
  %v4857 = vadd.f32 0.0, %v4856
  %v4858 = vpop.f32.mrb[0].mxu0
  %4859 = vmatprep.mubr.f32.mxu0 0.0
  %4860 = vmatmul.mubr.f32.gmra.mrb[0].mxu0 %v4494
  %v4861 = vpop.f32.mrb[0].mxu0
  %v4862 = vadd.f32 0.0, %v4861
  %v4863 = vpop.f32.mrb[0].mxu0
  %4864 = vmatprep.mubr.f32.mxu0 0.0
  %4865 = vmatmul.mubr.f32.gmra.mrb[0].mxu0 %v4497
  %v4866 = vpop.f32.mrb[0].mxu0
  %v4867 = vadd.f32 0.0, %v4866
  %v4868 = vpop.f32.mrb[0].mxu0
  %4869 = vmatprep.mubr.f32.mxu0 0.0
  %4870 = vmatmul.mubr.f32.gmra.mrb[0].mxu0 %v4500
  %v4871 = vpop.f32.mrb[0].mxu0
  %v4872 = vadd.f32 0.0, %v4871
  %v4873 = vpop.f32.mrb[0].mxu0
  %4874 = vmatprep.mubr.f32.mxu0 0.0
  %4875 = vmatmul.mubr.f32.gmra.mrb[0].mxu0 %v4503
  %v4876 = vpop.f32.mrb[0].mxu0
  %v4877 = vadd.f32 0.0, %v4876
  %v4878 = vpop.f32.mrb[0].mxu0
  %4879 = vmatprep.mubr.f32.mxu0 0.0
  %4880 = vmatmul.mubr.f32.gmra.mrb[0].mxu0 %v4506
  %v4881 = vpop.f32.mrb[0].mxu0
  %v4882 = vadd.f32 0.0, %v4881
  %v4883 = vpop.f32.mrb[0].mxu0
  %4884 = vmatprep.mubr.f32.mxu0 0.0
  %4885 = vmatmul.mubr.f32.gmra.mrb[0].mxu0 %v4509
  %v4886 = vpop.f32.mrb[0].mxu0
  %v4887 = vadd.f32 0.0, %v4886
  %v4888 = vpop.f32.mrb[0].mxu0
  %4889 = vmatprep.mubr.f32.mxu0 0.0
  %4890 = vmatmul.mubr.f32.gmra.mrb[0].mxu0 %v4512
  %v4891 = vpop.f32.mrb[0].mxu0
  %v4892 = vadd.f32 0.0, %v4891
  %v4893 = vpop.f32.mrb[0].mxu0
  %4894 = vmatprep.mubr.f32.mxu0 0.0
  %4895 = vmatmul.mubr.f32.gmra.mrb[0].mxu0 %v4515
  %v4896 = vpop.f32.mrb[0].mxu0
  %v4897 = vadd.f32 0.0, %v4896
  %v4898 = vpop.f32.mrb[0].mxu0
  %4899 = vmatprep.mubr.f32.mxu0 0.0
  %4900 = vmatmul.mubr.f32.gmra.mrb[0].mxu0 %v4518
  %v4901 = vpop.f32.mrb[0].mxu0
  %v4902 = vadd.f32 0.0, %v4901
  %v4903 = vpop.f32.mrb[0].mxu0
  %4904 = vdwg.mxu0
  %v4905 = vld [vmem:[%s5] sm:$0x1]
  %v4907 = vlaneseq
  %v4908 = vshrl.u32 %v4907, 7
  %v4909 = vsub.s32 0, %v4908
  %v4910 = vrot.slane %v4905, %v4909
  %v4912 = vmul.f32 %v4587, %v4910
  %v4913 = vmul.f32 %v4592, %v4910
  %v4914 = vmul.f32 %v4597, %v4910
  %v4915 = vmul.f32 %v4602, %v4910
  %v4916 = vmul.f32 %v4607, %v4910
  %v4917 = vmul.f32 %v4612, %v4910
  %v4918 = vmul.f32 %v4617, %v4910
  %v4919 = vmul.f32 %v4622, %v4910
  %v4920 = vmul.f32 %v4627, %v4910
  %v4921 = vmul.f32 %v4632, %v4910
  %v4922 = vmul.f32 %v4637, %v4910
  %v4923 = vmul.f32 %v4642, %v4910
  %v4924 = vmul.f32 %v4647, %v4910
  %v4925 = vmul.f32 %v4652, %v4910
  %v4926 = vmul.f32 %v4657, %v4910
  %v4927 = vmul.f32 %v4662, %v4910
  %v4928 = vmul.f32 %v4667, %v4910
  %v4929 = vmul.f32 %v4672, %v4910
  %v4930 = vmul.f32 %v4677, %v4910
  %v4931 = vmul.f32 %v4682, %v4910
  %v4932 = vmul.f32 %v4687, %v4910
  %v4933 = vmul.f32 %v4692, %v4910
  %v4934 = vmul.f32 %v4697, %v4910
  %v4935 = vmul.f32 %v4702, %v4910
  %v4936 = vmul.f32 %v4707, %v4910
  %v4937 = vmul.f32 %v4712, %v4910
  %v4938 = vmul.f32 %v4717, %v4910
  %v4939 = vmul.f32 %v4722, %v4910
  %v4940 = vmul.f32 %v4727, %v4910
  %v4941 = vmul.f32 %v4732, %v4910
  %v4942 = vmul.f32 %v4737, %v4910
  %v4943 = vmul.f32 %v4742, %v4910
  %v4944 = vmul.f32 %v4747, %v4910
  %v4945 = vmul.f32 %v4752, %v4910
  %v4946 = vmul.f32 %v4757, %v4910
  %v4947 = vmul.f32 %v4762, %v4910
  %v4948 = vmul.f32 %v4767, %v4910
  %v4949 = vmul.f32 %v4772, %v4910
  %v4950 = vmul.f32 %v4777, %v4910
  %v4951 = vmul.f32 %v4782, %v4910
  %v4952 = vmul.f32 %v4787, %v4910
  %v4953 = vmul.f32 %v4792, %v4910
  %v4954 = vmul.f32 %v4797, %v4910
  %v4955 = vmul.f32 %v4802, %v4910
  %v4956 = vmul.f32 %v4807, %v4910
  %v4957 = vmul.f32 %v4812, %v4910
  %v4958 = vmul.f32 %v4817, %v4910
  %v4959 = vmul.f32 %v4822, %v4910
  %v4960 = vmul.f32 %v4827, %v4910
  %v4961 = vmul.f32 %v4832, %v4910
  %v4962 = vmul.f32 %v4837, %v4910
  %v4963 = vmul.f32 %v4842, %v4910
  %v4964 = vmul.f32 %v4847, %v4910
  %v4965 = vmul.f32 %v4852, %v4910
  %v4966 = vmul.f32 %v4857, %v4910
  %v4967 = vmul.f32 %v4862, %v4910
  %v4968 = vmul.f32 %v4867, %v4910
  %v4969 = vmul.f32 %v4872, %v4910
  %v4970 = vmul.f32 %v4877, %v4910
  %v4971 = vmul.f32 %v4882, %v4910
  %v4972 = vmul.f32 %v4887, %v4910
  %v4973 = vmul.f32 %v4892, %v4910
  %v4974 = vmul.f32 %v4897, %v4910
  %v4975 = vmul.f32 %v4902, %v4910
  %v4976 = vld [vmem:[%s6] sm:$0x1]
  %v4978 = vlaneseq
  %v4979 = vshrl.u32 %v4978, 7
  %v4980 = vsub.s32 0, %v4979
  %v4981 = vrot.slane %v4976, %v4980
  %v4983 = vadd.f32 %v4912, %v4981
  %v4984 = vadd.f32 %v4913, %v4981
  %v4985 = vadd.f32 %v4914, %v4981
  %v4986 = vadd.f32 %v4915, %v4981
  %v4987 = vadd.f32 %v4916, %v4981
  %v4988 = vadd.f32 %v4917, %v4981
  %v4989 = vadd.f32 %v4918, %v4981
  %v4990 = vadd.f32 %v4919, %v4981
  %v4991 = vadd.f32 %v4920, %v4981
  %v4992 = vadd.f32 %v4921, %v4981
  %v4993 = vadd.f32 %v4922, %v4981
  %v4994 = vadd.f32 %v4923, %v4981
  %v4995 = vadd.f32 %v4924, %v4981
  %v4996 = vadd.f32 %v4925, %v4981
  %v4997 = vadd.f32 %v4926, %v4981
  %v4998 = vadd.f32 %v4927, %v4981
  %v4999 = vadd.f32 %v4928, %v4981
  %v5000 = vadd.f32 %v4929, %v4981
  %v5001 = vadd.f32 %v4930, %v4981
  %v5002 = vadd.f32 %v4931, %v4981
  %v5003 = vadd.f32 %v4932, %v4981
  %v5004 = vadd.f32 %v4933, %v4981
  %v5005 = vadd.f32 %v4934, %v4981
  %v5006 = vadd.f32 %v4935, %v4981
  %v5007 = vadd.f32 %v4936, %v4981
  %v5008 = vadd.f32 %v4937, %v4981
  %v5009 = vadd.f32 %v4938, %v4981
  %v5010 = vadd.f32 %v4939, %v4981
  %v5011 = vadd.f32 %v4940, %v4981
  %v5012 = vadd.f32 %v4941, %v4981
  %v5013 = vadd.f32 %v4942, %v4981
  %v5014 = vadd.f32 %v4943, %v4981
  %v5015 = vadd.f32 %v4944, %v4981
  %v5016 = vadd.f32 %v4945, %v4981
  %v5017 = vadd.f32 %v4946, %v4981
  %v5018 = vadd.f32 %v4947, %v4981
  %v5019 = vadd.f32 %v4948, %v4981
  %v5020 = vadd.f32 %v4949, %v4981
  %v5021 = vadd.f32 %v4950, %v4981
  %v5022 = vadd.f32 %v4951, %v4981
  %v5023 = vadd.f32 %v4952, %v4981
  %v5024 = vadd.f32 %v4953, %v4981
  %v5025 = vadd.f32 %v4954, %v4981
  %v5026 = vadd.f32 %v4955, %v4981
  %v5027 = vadd.f32 %v4956, %v4981
  %v5028 = vadd.f32 %v4957, %v4981
  %v5029 = vadd.f32 %v4958, %v4981
  %v5030 = vadd.f32 %v4959, %v4981
  %v5031 = vadd.f32 %v4960, %v4981
  %v5032 = vadd.f32 %v4961, %v4981
  %v5033 = vadd.f32 %v4962, %v4981
  %v5034 = vadd.f32 %v4963, %v4981
  %v5035 = vadd.f32 %v4964, %v4981
  %v5036 = vadd.f32 %v4965, %v4981
  %v5037 = vadd.f32 %v4966, %v4981
  %v5038 = vadd.f32 %v4967, %v4981
  %v5039 = vadd.f32 %v4968, %v4981
  %v5040 = vadd.f32 %v4969, %v4981
  %v5041 = vadd.f32 %v4970, %v4981
  %v5042 = vadd.f32 %v4971, %v4981
  %v5043 = vadd.f32 %v4972, %v4981
  %v5044 = vadd.f32 %v4973, %v4981
  %v5045 = vadd.f32 %v4974, %v4981
  %v5046 = vadd.f32 %v4975, %v4981
  %v5047 = vmax.f32 %v4983, 0.0
  %v5048 = vmax.f32 %v4984, 0.0
  %v5049 = vmax.f32 %v4985, 0.0
  %v5050 = vmax.f32 %v4986, 0.0
  %v5051 = vmax.f32 %v4987, 0.0
  %v5052 = vmax.f32 %v4988, 0.0
  %v5053 = vmax.f32 %v4989, 0.0
  %v5054 = vmax.f32 %v4990, 0.0
  %v5055 = vmax.f32 %v4991, 0.0
  %v5056 = vmax.f32 %v4992, 0.0
  %v5057 = vmax.f32 %v4993, 0.0
  %v5058 = vmax.f32 %v4994, 0.0
  %v5059 = vmax.f32 %v4995, 0.0
  %v5060 = vmax.f32 %v4996, 0.0
  %v5061 = vmax.f32 %v4997, 0.0
  %v5062 = vmax.f32 %v4998, 0.0
  %v5063 = vmax.f32 %v4999, 0.0
  %v5064 = vmax.f32 %v5000, 0.0
  %v5065 = vmax.f32 %v5001, 0.0
  %v5066 = vmax.f32 %v5002, 0.0
  %v5067 = vmax.f32 %v5003, 0.0
  %v5068 = vmax.f32 %v5004, 0.0
  %v5069 = vmax.f32 %v5005, 0.0
  %v5070 = vmax.f32 %v5006, 0.0
  %v5071 = vmax.f32 %v5007, 0.0
  %v5072 = vmax.f32 %v5008, 0.0
  %v5073 = vmax.f32 %v5009, 0.0
  %v5074 = vmax.f32 %v5010, 0.0
  %v5075 = vmax.f32 %v5011, 0.0
  %v5076 = vmax.f32 %v5012, 0.0
  %v5077 = vmax.f32 %v5013, 0.0
  %v5078 = vmax.f32 %v5014, 0.0
  %v5079 = vmax.f32 %v5015, 0.0
  %v5080 = vmax.f32 %v5016, 0.0
  %v5081 = vmax.f32 %v5017, 0.0
  %v5082 = vmax.f32 %v5018, 0.0
  %v5083 = vmax.f32 %v5019, 0.0
  %v5084 = vmax.f32 %v5020, 0.0
  %v5085 = vmax.f32 %v5021, 0.0
  %v5086 = vmax.f32 %v5022, 0.0
  %v5087 = vmax.f32 %v5023, 0.0
  %v5088 = vmax.f32 %v5024, 0.0
  %v5089 = vmax.f32 %v5025, 0.0
  %v5090 = vmax.f32 %v5026, 0.0
  %v5091 = vmax.f32 %v5027, 0.0
  %v5092 = vmax.f32 %v5028, 0.0
  %v5093 = vmax.f32 %v5029, 0.0
  %v5094 = vmax.f32 %v5030, 0.0
  %v5095 = vmax.f32 %v5031, 0.0
  %v5096 = vmax.f32 %v5032, 0.0
  %v5097 = vmax.f32 %v5033, 0.0
  %v5098 = vmax.f32 %v5034, 0.0
  %v5099 = vmax.f32 %v5035, 0.0
  %v5100 = vmax.f32 %v5036, 0.0
  %v5101 = vmax.f32 %v5037, 0.0
  %v5102 = vmax.f32 %v5038, 0.0
  %v5103 = vmax.f32 %v5039, 0.0
  %v5104 = vmax.f32 %v5040, 0.0
  %v5105 = vmax.f32 %v5041, 0.0
  %v5106 = vmax.f32 %v5042, 0.0
  %v5107 = vmax.f32 %v5043, 0.0
  %v5108 = vmax.f32 %v5044, 0.0
  %v5109 = vmax.f32 %v5045, 0.0
  %v5110 = vmax.f32 %v5046, 0.0
  %v5111 = vld [vmem:[%s7] sm:$0xff]
  %v5113 = vsel %vm109, %v5047, 0
  %v5116 = vsel %vm109, %v5048, 0
  %v5119 = vsel %vm109, %v5049, 0
  %v5122 = vsel %vm109, %v5050, 0
  %v5125 = vsel %vm109, %v5051, 0
  %v5128 = vsel %vm109, %v5052, 0
  %v5131 = vsel %vm109, %v5053, 0
  %v5134 = vsel %vm109, %v5054, 0
  %v5137 = vsel %vm109, %v5055, 0
  %v5140 = vsel %vm109, %v5056, 0
  %v5143 = vsel %vm109, %v5057, 0
  %v5146 = vsel %vm109, %v5058, 0
  %v5149 = vsel %vm109, %v5059, 0
  %v5152 = vsel %vm109, %v5060, 0
  %v5155 = vsel %vm109, %v5061, 0
  %v5158 = vsel %vm109, %v5062, 0
  %v5161 = vsel %vm109, %v5063, 0
  %v5164 = vsel %vm109, %v5064, 0
  %v5167 = vsel %vm109, %v5065, 0
  %v5170 = vsel %vm109, %v5066, 0
  %v5173 = vsel %vm109, %v5067, 0
  %v5176 = vsel %vm109, %v5068, 0
  %v5179 = vsel %vm109, %v5069, 0
  %v5182 = vsel %vm109, %v5070, 0
  %v5185 = vsel %vm109, %v5071, 0
  %v5188 = vsel %vm109, %v5072, 0
  %v5191 = vsel %vm109, %v5073, 0
  %v5194 = vsel %vm109, %v5074, 0
  %v5197 = vsel %vm109, %v5075, 0
  %v5200 = vsel %vm109, %v5076, 0
  %v5203 = vsel %vm109, %v5077, 0
  %v5206 = vsel %vm109, %v5078, 0
  %v5209 = vsel %vm109, %v5079, 0
  %v5212 = vsel %vm109, %v5080, 0
  %v5215 = vsel %vm109, %v5081, 0
  %v5218 = vsel %vm109, %v5082, 0
  %v5221 = vsel %vm109, %v5083, 0
  %v5224 = vsel %vm109, %v5084, 0
  %v5227 = vsel %vm109, %v5085, 0
  %v5230 = vsel %vm109, %v5086, 0
  %v5233 = vsel %vm109, %v5087, 0
  %v5236 = vsel %vm109, %v5088, 0
  %v5239 = vsel %vm109, %v5089, 0
  %v5242 = vsel %vm109, %v5090, 0
  %v5245 = vsel %vm109, %v5091, 0
  %v5248 = vsel %vm109, %v5092, 0
  %v5251 = vsel %vm109, %v5093, 0
  %v5254 = vsel %vm109, %v5094, 0
  %v5257 = vsel %vm109, %v5095, 0
  %v5260 = vsel %vm109, %v5096, 0
  %v5263 = vsel %vm109, %v5097, 0
  %v5266 = vsel %vm109, %v5098, 0
  %v5269 = vsel %vm109, %v5099, 0
  %v5272 = vsel %vm109, %v5100, 0
  %v5275 = vsel %vm109, %v5101, 0
  %v5278 = vsel %vm109, %v5102, 0
  %v5281 = vsel %vm109, %v5103, 0
  %v5284 = vsel %vm109, %v5104, 0
  %v5287 = vsel %vm109, %v5105, 0
  %v5290 = vsel %vm109, %v5106, 0
  %v5293 = vsel %vm109, %v5107, 0
  %v5296 = vsel %vm109, %v5108, 0
  %v5299 = vsel %vm109, %v5109, 0
  %v5302 = vsel %vm109, %v5110, 0
  %5304 = vmatprep.subr.mxu0 0.0
  %5305 = vmatpush1.msra.mxu0 %v5111
  %5306 = vmatprep.subr.mxu0 0.0
  %5307 = vmatpush1.msra.mxu0 0.0
  %5308 = vmatprep.subr.mxu0 0.0
  %5309 = vmatpush1.msra.mxu0 0.0
  %5310 = vmatprep.subr.mxu0 0.0
  %5311 = vmatpush1.msra.mxu0 0.0
  %5312 = vmatprep.subr.mxu0 0.0
  %5313 = vmatpush1.msra.mxu0 0.0
  %5314 = vmatprep.subr.mxu0 0.0
  %5315 = vmatpush1.msra.mxu0 0.0
  %5316 = vmatprep.subr.mxu0 0.0
  %5317 = vmatpush1.msra.mxu0 0.0
  %5318 = vmatprep.subr.mxu0 0.0
  %5319 = vmatpush1.msra.mxu0 0.0
  %5320 = vmatprep.subr.mxu0 0.0
  %5321 = vmatpush1.msra.mxu0 0.0
  %5322 = vmatprep.subr.mxu0 0.0
  %5323 = vmatpush1.msra.mxu0 0.0
  %5324 = vmatprep.subr.mxu0 0.0
  %5325 = vmatpush1.msra.mxu0 0.0
  %5326 = vmatprep.subr.mxu0 0.0
  %5327 = vmatpush1.msra.mxu0 0.0
  %5328 = vmatprep.subr.mxu0 0.0
  %5329 = vmatpush1.msra.mxu0 0.0
  %5330 = vmatprep.subr.mxu0 0.0
  %5331 = vmatpush1.msra.mxu0 0.0
  %5332 = vmatprep.subr.mxu0 0.0
  %5333 = vmatpush1.msra.mxu0 0.0
  %5334 = vmatprep.subr.mxu0 0.0
  %5335 = vmatpush1.msra.mxu0 0.0
  %5336 = vmatprep.subr.mxu0 0.0
  %5337 = vmatpush1.msra.mxu0 0.0
  %5338 = vmatprep.subr.mxu0 0.0
  %5339 = vmatpush1.msra.mxu0 0.0
  %5340 = vmatprep.subr.mxu0 0.0
  %5341 = vmatpush1.msra.mxu0 0.0
  %5342 = vmatprep.subr.mxu0 0.0
  %5343 = vmatpush1.msra.mxu0 0.0
  %5344 = vmatprep.subr.mxu0 0.0
  %5345 = vmatpush1.msra.mxu0 0.0
  %5346 = vmatprep.subr.mxu0 0.0
  %5347 = vmatpush1.msra.mxu0 0.0
  %5348 = vmatprep.subr.mxu0 0.0
  %5349 = vmatpush1.msra.mxu0 0.0
  %5350 = vmatprep.subr.mxu0 0.0
  %5351 = vmatpush1.msra.mxu0 0.0
  %5352 = vmatprep.subr.mxu0 0.0
  %5353 = vmatpush1.msra.mxu0 0.0
  %5354 = vmatprep.subr.mxu0 0.0
  %5355 = vmatpush1.msra.mxu0 0.0
  %5356 = vmatprep.subr.mxu0 0.0
  %5357 = vmatpush1.msra.mxu0 0.0
  %5358 = vmatprep.subr.mxu0 0.0
  %5359 = vmatpush1.msra.mxu0 0.0
  %5360 = vmatprep.subr.mxu0 0.0
  %5361 = vmatpush1.msra.mxu0 0.0
  %5362 = vmatprep.subr.mxu0 0.0
  %5363 = vmatpush1.msra.mxu0 0.0
  %5364 = vmatprep.subr.mxu0 0.0
  %5365 = vmatpush1.msra.mxu0 0.0
  %5366 = vmatprep.subr.mxu0 0.0
  %5367 = vmatpush1.msra.mxu0 0.0
  %5368 = vmatprep.mubr.f32.mxu0 0.0
  %5369 = vmatmul.mubr.f32.gmra.mrb[0].mxu0 %v5113
  %v5370 = vpop.f32.mrb[0].mxu0
  %v5371 = vadd.f32 0.0, %v5370
  %v5372 = vpop.f32.mrb[0].mxu0
  %5373 = vmatprep.mubr.f32.mxu0 0.0
  %5374 = vmatmul.mubr.f32.gmra.mrb[0].mxu0 %v5116
  %v5375 = vpop.f32.mrb[0].mxu0
  %v5376 = vadd.f32 0.0, %v5375
  %v5377 = vpop.f32.mrb[0].mxu0
  %5378 = vmatprep.mubr.f32.mxu0 0.0
  %5379 = vmatmul.mubr.f32.gmra.mrb[0].mxu0 %v5119
  %v5380 = vpop.f32.mrb[0].mxu0
  %v5381 = vadd.f32 0.0, %v5380
  %v5382 = vpop.f32.mrb[0].mxu0
  %5383 = vmatprep.mubr.f32.mxu0 0.0
  %5384 = vmatmul.mubr.f32.gmra.mrb[0].mxu0 %v5122
  %v5385 = vpop.f32.mrb[0].mxu0
  %v5386 = vadd.f32 0.0, %v5385
  %v5387 = vpop.f32.mrb[0].mxu0
  %5388 = vmatprep.mubr.f32.mxu0 0.0
  %5389 = vmatmul.mubr.f32.gmra.mrb[0].mxu0 %v5125
  %v5390 = vpop.f32.mrb[0].mxu0
  %v5391 = vadd.f32 0.0, %v5390
  %v5392 = vpop.f32.mrb[0].mxu0
  %5393 = vmatprep.mubr.f32.mxu0 0.0
  %5394 = vmatmul.mubr.f32.gmra.mrb[0].mxu0 %v5128
  %v5395 = vpop.f32.mrb[0].mxu0
  %v5396 = vadd.f32 0.0, %v5395
  %v5397 = vpop.f32.mrb[0].mxu0
  %5398 = vmatprep.mubr.f32.mxu0 0.0
  %5399 = vmatmul.mubr.f32.gmra.mrb[0].mxu0 %v5131
  %v5400 = vpop.f32.mrb[0].mxu0
  %v5401 = vadd.f32 0.0, %v5400
  %v5402 = vpop.f32.mrb[0].mxu0
  %5403 = vmatprep.mubr.f32.mxu0 0.0
  %5404 = vmatmul.mubr.f32.gmra.mrb[0].mxu0 %v5134
  %v5405 = vpop.f32.mrb[0].mxu0
  %v5406 = vadd.f32 0.0, %v5405
  %v5407 = vpop.f32.mrb[0].mxu0
  %5408 = vmatprep.mubr.f32.mxu0 0.0
  %5409 = vmatmul.mubr.f32.gmra.mrb[0].mxu0 %v5137
  %v5410 = vpop.f32.mrb[0].mxu0
  %v5411 = vadd.f32 0.0, %v5410
  %v5412 = vpop.f32.mrb[0].mxu0
  %5413 = vmatprep.mubr.f32.mxu0 0.0
  %5414 = vmatmul.mubr.f32.gmra.mrb[0].mxu0 %v5140
  %v5415 = vpop.f32.mrb[0].mxu0
  %v5416 = vadd.f32 0.0, %v5415
  %v5417 = vpop.f32.mrb[0].mxu0
  %5418 = vmatprep.mubr.f32.mxu0 0.0
  %5419 = vmatmul.mubr.f32.gmra.mrb[0].mxu0 %v5143
  %v5420 = vpop.f32.mrb[0].mxu0
  %v5421 = vadd.f32 0.0, %v5420
  %v5422 = vpop.f32.mrb[0].mxu0
  %5423 = vmatprep.mubr.f32.mxu0 0.0
  %5424 = vmatmul.mubr.f32.gmra.mrb[0].mxu0 %v5146
  %v5425 = vpop.f32.mrb[0].mxu0
  %v5426 = vadd.f32 0.0, %v5425
  %v5427 = vpop.f32.mrb[0].mxu0
  %5428 = vmatprep.mubr.f32.mxu0 0.0
  %5429 = vmatmul.mubr.f32.gmra.mrb[0].mxu0 %v5149
  %v5430 = vpop.f32.mrb[0].mxu0
  %v5431 = vadd.f32 0.0, %v5430
  %v5432 = vpop.f32.mrb[0].mxu0
  %5433 = vmatprep.mubr.f32.mxu0 0.0
  %5434 = vmatmul.mubr.f32.gmra.mrb[0].mxu0 %v5152
  %v5435 = vpop.f32.mrb[0].mxu0
  %v5436 = vadd.f32 0.0, %v5435
  %v5437 = vpop.f32.mrb[0].mxu0
  %5438 = vmatprep.mubr.f32.mxu0 0.0
  %5439 = vmatmul.mubr.f32.gmra.mrb[0].mxu0 %v5155
  %v5440 = vpop.f32.mrb[0].mxu0
  %v5441 = vadd.f32 0.0, %v5440
  %v5442 = vpop.f32.mrb[0].mxu0
  %5443 = vmatprep.mubr.f32.mxu0 0.0
  %5444 = vmatmul.mubr.f32.gmra.mrb[0].mxu0 %v5158
  %v5445 = vpop.f32.mrb[0].mxu0
  %v5446 = vadd.f32 0.0, %v5445
  %v5447 = vpop.f32.mrb[0].mxu0
  %5448 = vmatprep.mubr.f32.mxu0 0.0
  %5449 = vmatmul.mubr.f32.gmra.mrb[0].mxu0 %v5161
  %v5450 = vpop.f32.mrb[0].mxu0
  %v5451 = vadd.f32 0.0, %v5450
  %v5452 = vpop.f32.mrb[0].mxu0
  %5453 = vmatprep.mubr.f32.mxu0 0.0
  %5454 = vmatmul.mubr.f32.gmra.mrb[0].mxu0 %v5164
  %v5455 = vpop.f32.mrb[0].mxu0
  %v5456 = vadd.f32 0.0, %v5455
  %v5457 = vpop.f32.mrb[0].mxu0
  %5458 = vmatprep.mubr.f32.mxu0 0.0
  %5459 = vmatmul.mubr.f32.gmra.mrb[0].mxu0 %v5167
  %v5460 = vpop.f32.mrb[0].mxu0
  %v5461 = vadd.f32 0.0, %v5460
  %v5462 = vpop.f32.mrb[0].mxu0
  %5463 = vmatprep.mubr.f32.mxu0 0.0
  %5464 = vmatmul.mubr.f32.gmra.mrb[0].mxu0 %v5170
  %v5465 = vpop.f32.mrb[0].mxu0
  %v5466 = vadd.f32 0.0, %v5465
  %v5467 = vpop.f32.mrb[0].mxu0
  %5468 = vmatprep.mubr.f32.mxu0 0.0
  %5469 = vmatmul.mubr.f32.gmra.mrb[0].mxu0 %v5173
  %v5470 = vpop.f32.mrb[0].mxu0
  %v5471 = vadd.f32 0.0, %v5470
  %v5472 = vpop.f32.mrb[0].mxu0
  %5473 = vmatprep.mubr.f32.mxu0 0.0
  %5474 = vmatmul.mubr.f32.gmra.mrb[0].mxu0 %v5176
  %v5475 = vpop.f32.mrb[0].mxu0
  %v5476 = vadd.f32 0.0, %v5475
  %v5477 = vpop.f32.mrb[0].mxu0
  %5478 = vmatprep.mubr.f32.mxu0 0.0
  %5479 = vmatmul.mubr.f32.gmra.mrb[0].mxu0 %v5179
  %v5480 = vpop.f32.mrb[0].mxu0
  %v5481 = vadd.f32 0.0, %v5480
  %v5482 = vpop.f32.mrb[0].mxu0
  %5483 = vmatprep.mubr.f32.mxu0 0.0
  %5484 = vmatmul.mubr.f32.gmra.mrb[0].mxu0 %v5182
  %v5485 = vpop.f32.mrb[0].mxu0
  %v5486 = vadd.f32 0.0, %v5485
  %v5487 = vpop.f32.mrb[0].mxu0
  %5488 = vmatprep.mubr.f32.mxu0 0.0
  %5489 = vmatmul.mubr.f32.gmra.mrb[0].mxu0 %v5185
  %v5490 = vpop.f32.mrb[0].mxu0
  %v5491 = vadd.f32 0.0, %v5490
  %v5492 = vpop.f32.mrb[0].mxu0
  %5493 = vmatprep.mubr.f32.mxu0 0.0
  %5494 = vmatmul.mubr.f32.gmra.mrb[0].mxu0 %v5188
  %v5495 = vpop.f32.mrb[0].mxu0
  %v5496 = vadd.f32 0.0, %v5495
  %v5497 = vpop.f32.mrb[0].mxu0
  %5498 = vmatprep.mubr.f32.mxu0 0.0
  %5499 = vmatmul.mubr.f32.gmra.mrb[0].mxu0 %v5191
  %v5500 = vpop.f32.mrb[0].mxu0
  %v5501 = vadd.f32 0.0, %v5500
  %v5502 = vpop.f32.mrb[0].mxu0
  %5503 = vmatprep.mubr.f32.mxu0 0.0
  %5504 = vmatmul.mubr.f32.gmra.mrb[0].mxu0 %v5194
  %v5505 = vpop.f32.mrb[0].mxu0
  %v5506 = vadd.f32 0.0, %v5505
  %v5507 = vpop.f32.mrb[0].mxu0
  %5508 = vmatprep.mubr.f32.mxu0 0.0
  %5509 = vmatmul.mubr.f32.gmra.mrb[0].mxu0 %v5197
  %v5510 = vpop.f32.mrb[0].mxu0
  %v5511 = vadd.f32 0.0, %v5510
  %v5512 = vpop.f32.mrb[0].mxu0
  %5513 = vmatprep.mubr.f32.mxu0 0.0
  %5514 = vmatmul.mubr.f32.gmra.mrb[0].mxu0 %v5200
  %v5515 = vpop.f32.mrb[0].mxu0
  %v5516 = vadd.f32 0.0, %v5515
  %v5517 = vpop.f32.mrb[0].mxu0
  %5518 = vmatprep.mubr.f32.mxu0 0.0
  %5519 = vmatmul.mubr.f32.gmra.mrb[0].mxu0 %v5203
  %v5520 = vpop.f32.mrb[0].mxu0
  %v5521 = vadd.f32 0.0, %v5520
  %v5522 = vpop.f32.mrb[0].mxu0
  %5523 = vmatprep.mubr.f32.mxu0 0.0
  %5524 = vmatmul.mubr.f32.gmra.mrb[0].mxu0 %v5206
  %v5525 = vpop.f32.mrb[0].mxu0
  %v5526 = vadd.f32 0.0, %v5525
  %v5527 = vpop.f32.mrb[0].mxu0
  %5528 = vmatprep.mubr.f32.mxu0 0.0
  %5529 = vmatmul.mubr.f32.gmra.mrb[0].mxu0 %v5209
  %v5530 = vpop.f32.mrb[0].mxu0
  %v5531 = vadd.f32 0.0, %v5530
  %v5532 = vpop.f32.mrb[0].mxu0
  %5533 = vmatprep.mubr.f32.mxu0 0.0
  %5534 = vmatmul.mubr.f32.gmra.mrb[0].mxu0 %v5212
  %v5535 = vpop.f32.mrb[0].mxu0
  %v5536 = vadd.f32 0.0, %v5535
  %v5537 = vpop.f32.mrb[0].mxu0
  %5538 = vmatprep.mubr.f32.mxu0 0.0
  %5539 = vmatmul.mubr.f32.gmra.mrb[0].mxu0 %v5215
  %v5540 = vpop.f32.mrb[0].mxu0
  %v5541 = vadd.f32 0.0, %v5540
  %v5542 = vpop.f32.mrb[0].mxu0
  %5543 = vmatprep.mubr.f32.mxu0 0.0
  %5544 = vmatmul.mubr.f32.gmra.mrb[0].mxu0 %v5218
  %v5545 = vpop.f32.mrb[0].mxu0
  %v5546 = vadd.f32 0.0, %v5545
  %v5547 = vpop.f32.mrb[0].mxu0
  %5548 = vmatprep.mubr.f32.mxu0 0.0
  %5549 = vmatmul.mubr.f32.gmra.mrb[0].mxu0 %v5221
  %v5550 = vpop.f32.mrb[0].mxu0
  %v5551 = vadd.f32 0.0, %v5550
  %v5552 = vpop.f32.mrb[0].mxu0
  %5553 = vmatprep.mubr.f32.mxu0 0.0
  %5554 = vmatmul.mubr.f32.gmra.mrb[0].mxu0 %v5224
  %v5555 = vpop.f32.mrb[0].mxu0
  %v5556 = vadd.f32 0.0, %v5555
  %v5557 = vpop.f32.mrb[0].mxu0
  %5558 = vmatprep.mubr.f32.mxu0 0.0
  %5559 = vmatmul.mubr.f32.gmra.mrb[0].mxu0 %v5227
  %v5560 = vpop.f32.mrb[0].mxu0
  %v5561 = vadd.f32 0.0, %v5560
  %v5562 = vpop.f32.mrb[0].mxu0
  %5563 = vmatprep.mubr.f32.mxu0 0.0
  %5564 = vmatmul.mubr.f32.gmra.mrb[0].mxu0 %v5230
  %v5565 = vpop.f32.mrb[0].mxu0
  %v5566 = vadd.f32 0.0, %v5565
  %v5567 = vpop.f32.mrb[0].mxu0
  %5568 = vmatprep.mubr.f32.mxu0 0.0
  %5569 = vmatmul.mubr.f32.gmra.mrb[0].mxu0 %v5233
  %v5570 = vpop.f32.mrb[0].mxu0
  %v5571 = vadd.f32 0.0, %v5570
  %v5572 = vpop.f32.mrb[0].mxu0
  %5573 = vmatprep.mubr.f32.mxu0 0.0
  %5574 = vmatmul.mubr.f32.gmra.mrb[0].mxu0 %v5236
  %v5575 = vpop.f32.mrb[0].mxu0
  %v5576 = vadd.f32 0.0, %v5575
  %v5577 = vpop.f32.mrb[0].mxu0
  %5578 = vmatprep.mubr.f32.mxu0 0.0
  %5579 = vmatmul.mubr.f32.gmra.mrb[0].mxu0 %v5239
  %v5580 = vpop.f32.mrb[0].mxu0
  %v5581 = vadd.f32 0.0, %v5580
  %v5582 = vpop.f32.mrb[0].mxu0
  %5583 = vmatprep.mubr.f32.mxu0 0.0
  %5584 = vmatmul.mubr.f32.gmra.mrb[0].mxu0 %v5242
  %v5585 = vpop.f32.mrb[0].mxu0
  %v5586 = vadd.f32 0.0, %v5585
  %v5587 = vpop.f32.mrb[0].mxu0
  %5588 = vmatprep.mubr.f32.mxu0 0.0
  %5589 = vmatmul.mubr.f32.gmra.mrb[0].mxu0 %v5245
  %v5590 = vpop.f32.mrb[0].mxu0
  %v5591 = vadd.f32 0.0, %v5590
  %v5592 = vpop.f32.mrb[0].mxu0
  %5593 = vmatprep.mubr.f32.mxu0 0.0
  %5594 = vmatmul.mubr.f32.gmra.mrb[0].mxu0 %v5248
  %v5595 = vpop.f32.mrb[0].mxu0
  %v5596 = vadd.f32 0.0, %v5595
  %v5597 = vpop.f32.mrb[0].mxu0
  %5598 = vmatprep.mubr.f32.mxu0 0.0
  %5599 = vmatmul.mubr.f32.gmra.mrb[0].mxu0 %v5251
  %v5600 = vpop.f32.mrb[0].mxu0
  %v5601 = vadd.f32 0.0, %v5600
  %v5602 = vpop.f32.mrb[0].mxu0
  %5603 = vmatprep.mubr.f32.mxu0 0.0
  %5604 = vmatmul.mubr.f32.gmra.mrb[0].mxu0 %v5254
  %v5605 = vpop.f32.mrb[0].mxu0
  %v5606 = vadd.f32 0.0, %v5605
  %v5607 = vpop.f32.mrb[0].mxu0
  %5608 = vmatprep.mubr.f32.mxu0 0.0
  %5609 = vmatmul.mubr.f32.gmra.mrb[0].mxu0 %v5257
  %v5610 = vpop.f32.mrb[0].mxu0
  %v5611 = vadd.f32 0.0, %v5610
  %v5612 = vpop.f32.mrb[0].mxu0
  %5613 = vmatprep.mubr.f32.mxu0 0.0
  %5614 = vmatmul.mubr.f32.gmra.mrb[0].mxu0 %v5260
  %v5615 = vpop.f32.mrb[0].mxu0
  %v5616 = vadd.f32 0.0, %v5615
  %v5617 = vpop.f32.mrb[0].mxu0
  %5618 = vmatprep.mubr.f32.mxu0 0.0
  %5619 = vmatmul.mubr.f32.gmra.mrb[0].mxu0 %v5263
  %v5620 = vpop.f32.mrb[0].mxu0
  %v5621 = vadd.f32 0.0, %v5620
  %v5622 = vpop.f32.mrb[0].mxu0
  %5623 = vmatprep.mubr.f32.mxu0 0.0
  %5624 = vmatmul.mubr.f32.gmra.mrb[0].mxu0 %v5266
  %v5625 = vpop.f32.mrb[0].mxu0
  %v5626 = vadd.f32 0.0, %v5625
  %v5627 = vpop.f32.mrb[0].mxu0
  %5628 = vmatprep.mubr.f32.mxu0 0.0
  %5629 = vmatmul.mubr.f32.gmra.mrb[0].mxu0 %v5269
  %v5630 = vpop.f32.mrb[0].mxu0
  %v5631 = vadd.f32 0.0, %v5630
  %v5632 = vpop.f32.mrb[0].mxu0
  %5633 = vmatprep.mubr.f32.mxu0 0.0
  %5634 = vmatmul.mubr.f32.gmra.mrb[0].mxu0 %v5272
  %v5635 = vpop.f32.mrb[0].mxu0
  %v5636 = vadd.f32 0.0, %v5635
  %v5637 = vpop.f32.mrb[0].mxu0
  %5638 = vmatprep.mubr.f32.mxu0 0.0
  %5639 = vmatmul.mubr.f32.gmra.mrb[0].mxu0 %v5275
  %v5640 = vpop.f32.mrb[0].mxu0
  %v5641 = vadd.f32 0.0, %v5640
  %v5642 = vpop.f32.mrb[0].mxu0
  %5643 = vmatprep.mubr.f32.mxu0 0.0
  %5644 = vmatmul.mubr.f32.gmra.mrb[0].mxu0 %v5278
  %v5645 = vpop.f32.mrb[0].mxu0
  %v5646 = vadd.f32 0.0, %v5645
  %v5647 = vpop.f32.mrb[0].mxu0
  %5648 = vmatprep.mubr.f32.mxu0 0.0
  %5649 = vmatmul.mubr.f32.gmra.mrb[0].mxu0 %v5281
  %v5650 = vpop.f32.mrb[0].mxu0
  %v5651 = vadd.f32 0.0, %v5650
  %v5652 = vpop.f32.mrb[0].mxu0
  %5653 = vmatprep.mubr.f32.mxu0 0.0
  %5654 = vmatmul.mubr.f32.gmra.mrb[0].mxu0 %v5284
  %v5655 = vpop.f32.mrb[0].mxu0
  %v5656 = vadd.f32 0.0, %v5655
  %v5657 = vpop.f32.mrb[0].mxu0
  %5658 = vmatprep.mubr.f32.mxu0 0.0
  %5659 = vmatmul.mubr.f32.gmra.mrb[0].mxu0 %v5287
  %v5660 = vpop.f32.mrb[0].mxu0
  %v5661 = vadd.f32 0.0, %v5660
  %v5662 = vpop.f32.mrb[0].mxu0
  %5663 = vmatprep.mubr.f32.mxu0 0.0
  %5664 = vmatmul.mubr.f32.gmra.mrb[0].mxu0 %v5290
  %v5665 = vpop.f32.mrb[0].mxu0
  %v5666 = vadd.f32 0.0, %v5665
  %v5667 = vpop.f32.mrb[0].mxu0
  %5668 = vmatprep.mubr.f32.mxu0 0.0
  %5669 = vmatmul.mubr.f32.gmra.mrb[0].mxu0 %v5293
  %v5670 = vpop.f32.mrb[0].mxu0
  %v5671 = vadd.f32 0.0, %v5670
  %v5672 = vpop.f32.mrb[0].mxu0
  %5673 = vmatprep.mubr.f32.mxu0 0.0
  %5674 = vmatmul.mubr.f32.gmra.mrb[0].mxu0 %v5296
  %v5675 = vpop.f32.mrb[0].mxu0
  %v5676 = vadd.f32 0.0, %v5675
  %v5677 = vpop.f32.mrb[0].mxu0
  %5678 = vmatprep.mubr.f32.mxu0 0.0
  %5679 = vmatmul.mubr.f32.gmra.mrb[0].mxu0 %v5299
  %v5680 = vpop.f32.mrb[0].mxu0
  %v5681 = vadd.f32 0.0, %v5680
  %v5682 = vpop.f32.mrb[0].mxu0
  %5683 = vmatprep.mubr.f32.mxu0 0.0
  %5684 = vmatmul.mubr.f32.gmra.mrb[0].mxu0 %v5302
  %v5685 = vpop.f32.mrb[0].mxu0
  %v5686 = vadd.f32 0.0, %v5685
  %v5687 = vpop.f32.mrb[0].mxu0
  %5688 = vdwg.mxu0
  %v5689 = vld [vmem:[%s8] sm:$0x1]
  %v5691 = vlaneseq
  %v5692 = vshrl.u32 %v5691, 7
  %v5693 = vsub.s32 0, %v5692
  %v5694 = vrot.slane %v5689, %v5693
  %v5696 = vmul.f32 %v5371, %v5694
  %v5697 = vmul.f32 %v5376, %v5694
  %v5698 = vmul.f32 %v5381, %v5694
  %v5699 = vmul.f32 %v5386, %v5694
  %v5700 = vmul.f32 %v5391, %v5694
  %v5701 = vmul.f32 %v5396, %v5694
  %v5702 = vmul.f32 %v5401, %v5694
  %v5703 = vmul.f32 %v5406, %v5694
  %v5704 = vmul.f32 %v5411, %v5694
  %v5705 = vmul.f32 %v5416, %v5694
  %v5706 = vmul.f32 %v5421, %v5694
  %v5707 = vmul.f32 %v5426, %v5694
  %v5708 = vmul.f32 %v5431, %v5694
  %v5709 = vmul.f32 %v5436, %v5694
  %v5710 = vmul.f32 %v5441, %v5694
  %v5711 = vmul.f32 %v5446, %v5694
  %v5712 = vmul.f32 %v5451, %v5694
  %v5713 = vmul.f32 %v5456, %v5694
  %v5714 = vmul.f32 %v5461, %v5694
  %v5715 = vmul.f32 %v5466, %v5694
  %v5716 = vmul.f32 %v5471, %v5694
  %v5717 = vmul.f32 %v5476, %v5694
  %v5718 = vmul.f32 %v5481, %v5694
  %v5719 = vmul.f32 %v5486, %v5694
  %v5720 = vmul.f32 %v5491, %v5694
  %v5721 = vmul.f32 %v5496, %v5694
  %v5722 = vmul.f32 %v5501, %v5694
  %v5723 = vmul.f32 %v5506, %v5694
  %v5724 = vmul.f32 %v5511, %v5694
  %v5725 = vmul.f32 %v5516, %v5694
  %v5726 = vmul.f32 %v5521, %v5694
  %v5727 = vmul.f32 %v5526, %v5694
  %v5728 = vmul.f32 %v5531, %v5694
  %v5729 = vmul.f32 %v5536, %v5694
  %v5730 = vmul.f32 %v5541, %v5694
  %v5731 = vmul.f32 %v5546, %v5694
  %v5732 = vmul.f32 %v5551, %v5694
  %v5733 = vmul.f32 %v5556, %v5694
  %v5734 = vmul.f32 %v5561, %v5694
  %v5735 = vmul.f32 %v5566, %v5694
  %v5736 = vmul.f32 %v5571, %v5694
  %v5737 = vmul.f32 %v5576, %v5694
  %v5738 = vmul.f32 %v5581, %v5694
  %v5739 = vmul.f32 %v5586, %v5694
  %v5740 = vmul.f32 %v5591, %v5694
  %v5741 = vmul.f32 %v5596, %v5694
  %v5742 = vmul.f32 %v5601, %v5694
  %v5743 = vmul.f32 %v5606, %v5694
  %v5744 = vmul.f32 %v5611, %v5694
  %v5745 = vmul.f32 %v5616, %v5694
  %v5746 = vmul.f32 %v5621, %v5694
  %v5747 = vmul.f32 %v5626, %v5694
  %v5748 = vmul.f32 %v5631, %v5694
  %v5749 = vmul.f32 %v5636, %v5694
  %v5750 = vmul.f32 %v5641, %v5694
  %v5751 = vmul.f32 %v5646, %v5694
  %v5752 = vmul.f32 %v5651, %v5694
  %v5753 = vmul.f32 %v5656, %v5694
  %v5754 = vmul.f32 %v5661, %v5694
  %v5755 = vmul.f32 %v5666, %v5694
  %v5756 = vmul.f32 %v5671, %v5694
  %v5757 = vmul.f32 %v5676, %v5694
  %v5758 = vmul.f32 %v5681, %v5694
  %v5759 = vmul.f32 %v5686, %v5694
  %v5760 = vld [vmem:[%s9] sm:$0x1]
  %v5762 = vlaneseq
  %v5763 = vshrl.u32 %v5762, 7
  %v5764 = vsub.s32 0, %v5763
  %v5765 = vrot.slane %v5760, %v5764
  %v5767 = vadd.f32 %v5696, %v5765
  %v5768 = vadd.f32 %v5697, %v5765
  %v5769 = vadd.f32 %v5698, %v5765
  %v5770 = vadd.f32 %v5699, %v5765
  %v5771 = vadd.f32 %v5700, %v5765
  %v5772 = vadd.f32 %v5701, %v5765
  %v5773 = vadd.f32 %v5702, %v5765
  %v5774 = vadd.f32 %v5703, %v5765
  %v5775 = vadd.f32 %v5704, %v5765
  %v5776 = vadd.f32 %v5705, %v5765
  %v5777 = vadd.f32 %v5706, %v5765
  %v5778 = vadd.f32 %v5707, %v5765
  %v5779 = vadd.f32 %v5708, %v5765
  %v5780 = vadd.f32 %v5709, %v5765
  %v5781 = vadd.f32 %v5710, %v5765
  %v5782 = vadd.f32 %v5711, %v5765
  %v5783 = vadd.f32 %v5712, %v5765
  %v5784 = vadd.f32 %v5713, %v5765
  %v5785 = vadd.f32 %v5714, %v5765
  %v5786 = vadd.f32 %v5715, %v5765
  %v5787 = vadd.f32 %v5716, %v5765
  %v5788 = vadd.f32 %v5717, %v5765
  %v5789 = vadd.f32 %v5718, %v5765
  %v5790 = vadd.f32 %v5719, %v5765
  %v5791 = vadd.f32 %v5720, %v5765
  %v5792 = vadd.f32 %v5721, %v5765
  %v5793 = vadd.f32 %v5722, %v5765
  %v5794 = vadd.f32 %v5723, %v5765
  %v5795 = vadd.f32 %v5724, %v5765
  %v5796 = vadd.f32 %v5725, %v5765
  %v5797 = vadd.f32 %v5726, %v5765
  %v5798 = vadd.f32 %v5727, %v5765
  %v5799 = vadd.f32 %v5728, %v5765
  %v5800 = vadd.f32 %v5729, %v5765
  %v5801 = vadd.f32 %v5730, %v5765
  %v5802 = vadd.f32 %v5731, %v5765
  %v5803 = vadd.f32 %v5732, %v5765
  %v5804 = vadd.f32 %v5733, %v5765
  %v5805 = vadd.f32 %v5734, %v5765
  %v5806 = vadd.f32 %v5735, %v5765
  %v5807 = vadd.f32 %v5736, %v5765
  %v5808 = vadd.f32 %v5737, %v5765
  %v5809 = vadd.f32 %v5738, %v5765
  %v5810 = vadd.f32 %v5739, %v5765
  %v5811 = vadd.f32 %v5740, %v5765
  %v5812 = vadd.f32 %v5741, %v5765
  %v5813 = vadd.f32 %v5742, %v5765
  %v5814 = vadd.f32 %v5743, %v5765
  %v5815 = vadd.f32 %v5744, %v5765
  %v5816 = vadd.f32 %v5745, %v5765
  %v5817 = vadd.f32 %v5746, %v5765
  %v5818 = vadd.f32 %v5747, %v5765
  %v5819 = vadd.f32 %v5748, %v5765
  %v5820 = vadd.f32 %v5749, %v5765
  %v5821 = vadd.f32 %v5750, %v5765
  %v5822 = vadd.f32 %v5751, %v5765
  %v5823 = vadd.f32 %v5752, %v5765
  %v5824 = vadd.f32 %v5753, %v5765
  %v5825 = vadd.f32 %v5754, %v5765
  %v5826 = vadd.f32 %v5755, %v5765
  %v5827 = vadd.f32 %v5756, %v5765
  %v5828 = vadd.f32 %v5757, %v5765
  %v5829 = vadd.f32 %v5758, %v5765
  %v5830 = vadd.f32 %v5759, %v5765
  %v5831 = vld [vmem:[%s10] sm:$0xff]
  %5832 = vmatprep.subr.mxu0 0.0
  %5833 = vmatpush1.msra.mxu0 %v5831
  %5834 = vmatprep.subr.mxu0 0.0
  %5835 = vmatpush1.msra.mxu0 0.0
  %5836 = vmatprep.subr.mxu0 0.0
  %5837 = vmatpush1.msra.mxu0 0.0
  %5838 = vmatprep.subr.mxu0 0.0
  %5839 = vmatpush1.msra.mxu0 0.0
  %5840 = vmatprep.subr.mxu0 0.0
  %5841 = vmatpush1.msra.mxu0 0.0
  %5842 = vmatprep.subr.mxu0 0.0
  %5843 = vmatpush1.msra.mxu0 0.0
  %5844 = vmatprep.subr.mxu0 0.0
  %5845 = vmatpush1.msra.mxu0 0.0
  %5846 = vmatprep.subr.mxu0 0.0
  %5847 = vmatpush1.msra.mxu0 0.0
  %5848 = vmatprep.subr.mxu0 0.0
  %5849 = vmatpush1.msra.mxu0 0.0
  %5850 = vmatprep.subr.mxu0 0.0
  %5851 = vmatpush1.msra.mxu0 0.0
  %5852 = vmatprep.subr.mxu0 0.0
  %5853 = vmatpush1.msra.mxu0 0.0
  %5854 = vmatprep.subr.mxu0 0.0
  %5855 = vmatpush1.msra.mxu0 0.0
  %5856 = vmatprep.subr.mxu0 0.0
  %5857 = vmatpush1.msra.mxu0 0.0
  %5858 = vmatprep.subr.mxu0 0.0
  %5859 = vmatpush1.msra.mxu0 0.0
  %5860 = vmatprep.subr.mxu0 0.0
  %5861 = vmatpush1.msra.mxu0 0.0
  %5862 = vmatprep.subr.mxu0 0.0
  %5863 = vmatpush1.msra.mxu0 0.0
  %5864 = vmatprep.subr.mxu0 0.0
  %5865 = vmatpush1.msra.mxu0 0.0
  %5866 = vmatprep.subr.mxu0 0.0
  %5867 = vmatpush1.msra.mxu0 0.0
  %5868 = vmatprep.subr.mxu0 0.0
  %5869 = vmatpush1.msra.mxu0 0.0
  %5870 = vmatprep.subr.mxu0 0.0
  %5871 = vmatpush1.msra.mxu0 0.0
  %5872 = vmatprep.subr.mxu0 0.0
  %5873 = vmatpush1.msra.mxu0 0.0
  %5874 = vmatprep.subr.mxu0 0.0
  %5875 = vmatpush1.msra.mxu0 0.0
  %5876 = vmatprep.subr.mxu0 0.0
  %5877 = vmatpush1.msra.mxu0 0.0
  %5878 = vmatprep.subr.mxu0 0.0
  %5879 = vmatpush1.msra.mxu0 0.0
  %5880 = vmatprep.subr.mxu0 0.0
  %5881 = vmatpush1.msra.mxu0 0.0
  %5882 = vmatprep.subr.mxu0 0.0
  %5883 = vmatpush1.msra.mxu0 0.0
  %5884 = vmatprep.subr.mxu0 0.0
  %5885 = vmatpush1.msra.mxu0 0.0
  %5886 = vmatprep.subr.mxu0 0.0
  %5887 = vmatpush1.msra.mxu0 0.0
  %5888 = vmatprep.subr.mxu0 0.0
  %5889 = vmatpush1.msra.mxu0 0.0
  %5890 = vmatprep.subr.mxu0 0.0
  %5891 = vmatpush1.msra.mxu0 0.0
  %5892 = vmatprep.subr.mxu0 0.0
  %5893 = vmatpush1.msra.mxu0 0.0
  %5894 = vmatprep.subr.mxu0 0.0
  %5895 = vmatpush1.msra.mxu0 0.0
  %5896 = vmatprep.mubr.f32.mxu0 0.0
  %5897 = vmatmul.mubr.f32.gmra.mrb[0].mxu0 %v111
  %v5898 = vpop.f32.mrb[0].mxu0
  %v5899 = vadd.f32 0.0, %v5898
  %v5900 = vpop.f32.mrb[0].mxu0
  %5901 = vmatprep.mubr.f32.mxu0 0.0
  %5902 = vmatmul.mubr.f32.gmra.mrb[0].mxu0 %v114
  %v5903 = vpop.f32.mrb[0].mxu0
  %v5904 = vadd.f32 0.0, %v5903
  %v5905 = vpop.f32.mrb[0].mxu0
  %5906 = vmatprep.mubr.f32.mxu0 0.0
  %5907 = vmatmul.mubr.f32.gmra.mrb[0].mxu0 %v117
  %v5908 = vpop.f32.mrb[0].mxu0
  %v5909 = vadd.f32 0.0, %v5908
  %v5910 = vpop.f32.mrb[0].mxu0
  %5911 = vmatprep.mubr.f32.mxu0 0.0
  %5912 = vmatmul.mubr.f32.gmra.mrb[0].mxu0 %v120
  %v5913 = vpop.f32.mrb[0].mxu0
  %v5914 = vadd.f32 0.0, %v5913
  %v5915 = vpop.f32.mrb[0].mxu0
  %5916 = vmatprep.mubr.f32.mxu0 0.0
  %5917 = vmatmul.mubr.f32.gmra.mrb[0].mxu0 %v123
  %v5918 = vpop.f32.mrb[0].mxu0
  %v5919 = vadd.f32 0.0, %v5918
  %v5920 = vpop.f32.mrb[0].mxu0
  %5921 = vmatprep.mubr.f32.mxu0 0.0
  %5922 = vmatmul.mubr.f32.gmra.mrb[0].mxu0 %v126
  %v5923 = vpop.f32.mrb[0].mxu0
  %v5924 = vadd.f32 0.0, %v5923
  %v5925 = vpop.f32.mrb[0].mxu0
  %5926 = vmatprep.mubr.f32.mxu0 0.0
  %5927 = vmatmul.mubr.f32.gmra.mrb[0].mxu0 %v129
  %v5928 = vpop.f32.mrb[0].mxu0
  %v5929 = vadd.f32 0.0, %v5928
  %v5930 = vpop.f32.mrb[0].mxu0
  %5931 = vmatprep.mubr.f32.mxu0 0.0
  %5932 = vmatmul.mubr.f32.gmra.mrb[0].mxu0 %v132
  %v5933 = vpop.f32.mrb[0].mxu0
  %v5934 = vadd.f32 0.0, %v5933
  %v5935 = vpop.f32.mrb[0].mxu0
  %5936 = vmatprep.mubr.f32.mxu0 0.0
  %5937 = vmatmul.mubr.f32.gmra.mrb[0].mxu0 %v135
  %v5938 = vpop.f32.mrb[0].mxu0
  %v5939 = vadd.f32 0.0, %v5938
  %v5940 = vpop.f32.mrb[0].mxu0
  %5941 = vmatprep.mubr.f32.mxu0 0.0
  %5942 = vmatmul.mubr.f32.gmra.mrb[0].mxu0 %v138
  %v5943 = vpop.f32.mrb[0].mxu0
  %v5944 = vadd.f32 0.0, %v5943
  %v5945 = vpop.f32.mrb[0].mxu0
  %5946 = vmatprep.mubr.f32.mxu0 0.0
  %5947 = vmatmul.mubr.f32.gmra.mrb[0].mxu0 %v141
  %v5948 = vpop.f32.mrb[0].mxu0
  %v5949 = vadd.f32 0.0, %v5948
  %v5950 = vpop.f32.mrb[0].mxu0
  %5951 = vmatprep.mubr.f32.mxu0 0.0
  %5952 = vmatmul.mubr.f32.gmra.mrb[0].mxu0 %v144
  %v5953 = vpop.f32.mrb[0].mxu0
  %v5954 = vadd.f32 0.0, %v5953
  %v5955 = vpop.f32.mrb[0].mxu0
  %5956 = vmatprep.mubr.f32.mxu0 0.0
  %5957 = vmatmul.mubr.f32.gmra.mrb[0].mxu0 %v147
  %v5958 = vpop.f32.mrb[0].mxu0
  %v5959 = vadd.f32 0.0, %v5958
  %v5960 = vpop.f32.mrb[0].mxu0
  %5961 = vmatprep.mubr.f32.mxu0 0.0
  %5962 = vmatmul.mubr.f32.gmra.mrb[0].mxu0 %v150
  %v5963 = vpop.f32.mrb[0].mxu0
  %v5964 = vadd.f32 0.0, %v5963
  %v5965 = vpop.f32.mrb[0].mxu0
  %5966 = vmatprep.mubr.f32.mxu0 0.0
  %5967 = vmatmul.mubr.f32.gmra.mrb[0].mxu0 %v153
  %v5968 = vpop.f32.mrb[0].mxu0
  %v5969 = vadd.f32 0.0, %v5968
  %v5970 = vpop.f32.mrb[0].mxu0
  %5971 = vmatprep.mubr.f32.mxu0 0.0
  %5972 = vmatmul.mubr.f32.gmra.mrb[0].mxu0 %v156
  %v5973 = vpop.f32.mrb[0].mxu0
  %v5974 = vadd.f32 0.0, %v5973
  %v5975 = vpop.f32.mrb[0].mxu0
  %5976 = vmatprep.mubr.f32.mxu0 0.0
  %5977 = vmatmul.mubr.f32.gmra.mrb[0].mxu0 %v159
  %v5978 = vpop.f32.mrb[0].mxu0
  %v5979 = vadd.f32 0.0, %v5978
  %v5980 = vpop.f32.mrb[0].mxu0
  %5981 = vmatprep.mubr.f32.mxu0 0.0
  %5982 = vmatmul.mubr.f32.gmra.mrb[0].mxu0 %v162
  %v5983 = vpop.f32.mrb[0].mxu0
  %v5984 = vadd.f32 0.0, %v5983
  %v5985 = vpop.f32.mrb[0].mxu0
  %5986 = vmatprep.mubr.f32.mxu0 0.0
  %5987 = vmatmul.mubr.f32.gmra.mrb[0].mxu0 %v165
  %v5988 = vpop.f32.mrb[0].mxu0
  %v5989 = vadd.f32 0.0, %v5988
  %v5990 = vpop.f32.mrb[0].mxu0
  %5991 = vmatprep.mubr.f32.mxu0 0.0
  %5992 = vmatmul.mubr.f32.gmra.mrb[0].mxu0 %v168
  %v5993 = vpop.f32.mrb[0].mxu0
  %v5994 = vadd.f32 0.0, %v5993
  %v5995 = vpop.f32.mrb[0].mxu0
  %5996 = vmatprep.mubr.f32.mxu0 0.0
  %5997 = vmatmul.mubr.f32.gmra.mrb[0].mxu0 %v171
  %v5998 = vpop.f32.mrb[0].mxu0
  %v5999 = vadd.f32 0.0, %v5998
  %v6000 = vpop.f32.mrb[0].mxu0
  %6001 = vmatprep.mubr.f32.mxu0 0.0
  %6002 = vmatmul.mubr.f32.gmra.mrb[0].mxu0 %v174
  %v6003 = vpop.f32.mrb[0].mxu0
  %v6004 = vadd.f32 0.0, %v6003
  %v6005 = vpop.f32.mrb[0].mxu0
  %6006 = vmatprep.mubr.f32.mxu0 0.0
  %6007 = vmatmul.mubr.f32.gmra.mrb[0].mxu0 %v177
  %v6008 = vpop.f32.mrb[0].mxu0
  %v6009 = vadd.f32 0.0, %v6008
  %v6010 = vpop.f32.mrb[0].mxu0
  %6011 = vmatprep.mubr.f32.mxu0 0.0
  %6012 = vmatmul.mubr.f32.gmra.mrb[0].mxu0 %v180
  %v6013 = vpop.f32.mrb[0].mxu0
  %v6014 = vadd.f32 0.0, %v6013
  %v6015 = vpop.f32.mrb[0].mxu0
  %6016 = vmatprep.mubr.f32.mxu0 0.0
  %6017 = vmatmul.mubr.f32.gmra.mrb[0].mxu0 %v183
  %v6018 = vpop.f32.mrb[0].mxu0
  %v6019 = vadd.f32 0.0, %v6018
  %v6020 = vpop.f32.mrb[0].mxu0
  %6021 = vmatprep.mubr.f32.mxu0 0.0
  %6022 = vmatmul.mubr.f32.gmra.mrb[0].mxu0 %v186
  %v6023 = vpop.f32.mrb[0].mxu0
  %v6024 = vadd.f32 0.0, %v6023
  %v6025 = vpop.f32.mrb[0].mxu0
  %6026 = vmatprep.mubr.f32.mxu0 0.0
  %6027 = vmatmul.mubr.f32.gmra.mrb[0].mxu0 %v189
  %v6028 = vpop.f32.mrb[0].mxu0
  %v6029 = vadd.f32 0.0, %v6028
  %v6030 = vpop.f32.mrb[0].mxu0
  %6031 = vmatprep.mubr.f32.mxu0 0.0
  %6032 = vmatmul.mubr.f32.gmra.mrb[0].mxu0 %v192
  %v6033 = vpop.f32.mrb[0].mxu0
  %v6034 = vadd.f32 0.0, %v6033
  %v6035 = vpop.f32.mrb[0].mxu0
  %6036 = vmatprep.mubr.f32.mxu0 0.0
  %6037 = vmatmul.mubr.f32.gmra.mrb[0].mxu0 %v195
  %v6038 = vpop.f32.mrb[0].mxu0
  %v6039 = vadd.f32 0.0, %v6038
  %v6040 = vpop.f32.mrb[0].mxu0
  %6041 = vmatprep.mubr.f32.mxu0 0.0
  %6042 = vmatmul.mubr.f32.gmra.mrb[0].mxu0 %v198
  %v6043 = vpop.f32.mrb[0].mxu0
  %v6044 = vadd.f32 0.0, %v6043
  %v6045 = vpop.f32.mrb[0].mxu0
  %6046 = vmatprep.mubr.f32.mxu0 0.0
  %6047 = vmatmul.mubr.f32.gmra.mrb[0].mxu0 %v201
  %v6048 = vpop.f32.mrb[0].mxu0
  %v6049 = vadd.f32 0.0, %v6048
  %v6050 = vpop.f32.mrb[0].mxu0
  %6051 = vmatprep.mubr.f32.mxu0 0.0
  %6052 = vmatmul.mubr.f32.gmra.mrb[0].mxu0 %v204
  %v6053 = vpop.f32.mrb[0].mxu0
  %v6054 = vadd.f32 0.0, %v6053
  %v6055 = vpop.f32.mrb[0].mxu0
  %6056 = vmatprep.mubr.f32.mxu0 0.0
  %6057 = vmatmul.mubr.f32.gmra.mrb[0].mxu0 %v207
  %v6058 = vpop.f32.mrb[0].mxu0
  %v6059 = vadd.f32 0.0, %v6058
  %v6060 = vpop.f32.mrb[0].mxu0
  %6061 = vmatprep.mubr.f32.mxu0 0.0
  %6062 = vmatmul.mubr.f32.gmra.mrb[0].mxu0 %v210
  %v6063 = vpop.f32.mrb[0].mxu0
  %v6064 = vadd.f32 0.0, %v6063
  %v6065 = vpop.f32.mrb[0].mxu0
  %6066 = vmatprep.mubr.f32.mxu0 0.0
  %6067 = vmatmul.mubr.f32.gmra.mrb[0].mxu0 %v213
  %v6068 = vpop.f32.mrb[0].mxu0
  %v6069 = vadd.f32 0.0, %v6068
  %v6070 = vpop.f32.mrb[0].mxu0
  %6071 = vmatprep.mubr.f32.mxu0 0.0
  %6072 = vmatmul.mubr.f32.gmra.mrb[0].mxu0 %v216
  %v6073 = vpop.f32.mrb[0].mxu0
  %v6074 = vadd.f32 0.0, %v6073
  %v6075 = vpop.f32.mrb[0].mxu0
  %6076 = vmatprep.mubr.f32.mxu0 0.0
  %6077 = vmatmul.mubr.f32.gmra.mrb[0].mxu0 %v219
  %v6078 = vpop.f32.mrb[0].mxu0
  %v6079 = vadd.f32 0.0, %v6078
  %v6080 = vpop.f32.mrb[0].mxu0
  %6081 = vmatprep.mubr.f32.mxu0 0.0
  %6082 = vmatmul.mubr.f32.gmra.mrb[0].mxu0 %v222
  %v6083 = vpop.f32.mrb[0].mxu0
  %v6084 = vadd.f32 0.0, %v6083
  %v6085 = vpop.f32.mrb[0].mxu0
  %6086 = vmatprep.mubr.f32.mxu0 0.0
  %6087 = vmatmul.mubr.f32.gmra.mrb[0].mxu0 %v225
  %v6088 = vpop.f32.mrb[0].mxu0
  %v6089 = vadd.f32 0.0, %v6088
  %v6090 = vpop.f32.mrb[0].mxu0
  %6091 = vmatprep.mubr.f32.mxu0 0.0
  %6092 = vmatmul.mubr.f32.gmra.mrb[0].mxu0 %v228
  %v6093 = vpop.f32.mrb[0].mxu0
  %v6094 = vadd.f32 0.0, %v6093
  %v6095 = vpop.f32.mrb[0].mxu0
  %6096 = vmatprep.mubr.f32.mxu0 0.0
  %6097 = vmatmul.mubr.f32.gmra.mrb[0].mxu0 %v231
  %v6098 = vpop.f32.mrb[0].mxu0
  %v6099 = vadd.f32 0.0, %v6098
  %v6100 = vpop.f32.mrb[0].mxu0
  %6101 = vmatprep.mubr.f32.mxu0 0.0
  %6102 = vmatmul.mubr.f32.gmra.mrb[0].mxu0 %v234
  %v6103 = vpop.f32.mrb[0].mxu0
  %v6104 = vadd.f32 0.0, %v6103
  %v6105 = vpop.f32.mrb[0].mxu0
  %6106 = vmatprep.mubr.f32.mxu0 0.0
  %6107 = vmatmul.mubr.f32.gmra.mrb[0].mxu0 %v237
  %v6108 = vpop.f32.mrb[0].mxu0
  %v6109 = vadd.f32 0.0, %v6108
  %v6110 = vpop.f32.mrb[0].mxu0
  %6111 = vmatprep.mubr.f32.mxu0 0.0
  %6112 = vmatmul.mubr.f32.gmra.mrb[0].mxu0 %v240
  %v6113 = vpop.f32.mrb[0].mxu0
  %v6114 = vadd.f32 0.0, %v6113
  %v6115 = vpop.f32.mrb[0].mxu0
  %6116 = vmatprep.mubr.f32.mxu0 0.0
  %6117 = vmatmul.mubr.f32.gmra.mrb[0].mxu0 %v243
  %v6118 = vpop.f32.mrb[0].mxu0
  %v6119 = vadd.f32 0.0, %v6118
  %v6120 = vpop.f32.mrb[0].mxu0
  %6121 = vmatprep.mubr.f32.mxu0 0.0
  %6122 = vmatmul.mubr.f32.gmra.mrb[0].mxu0 %v246
  %v6123 = vpop.f32.mrb[0].mxu0
  %v6124 = vadd.f32 0.0, %v6123
  %v6125 = vpop.f32.mrb[0].mxu0
  %6126 = vmatprep.mubr.f32.mxu0 0.0
  %6127 = vmatmul.mubr.f32.gmra.mrb[0].mxu0 %v249
  %v6128 = vpop.f32.mrb[0].mxu0
  %v6129 = vadd.f32 0.0, %v6128
  %v6130 = vpop.f32.mrb[0].mxu0
  %6131 = vmatprep.mubr.f32.mxu0 0.0
  %6132 = vmatmul.mubr.f32.gmra.mrb[0].mxu0 %v252
  %v6133 = vpop.f32.mrb[0].mxu0
  %v6134 = vadd.f32 0.0, %v6133
  %v6135 = vpop.f32.mrb[0].mxu0
  %6136 = vmatprep.mubr.f32.mxu0 0.0
  %6137 = vmatmul.mubr.f32.gmra.mrb[0].mxu0 %v255
  %v6138 = vpop.f32.mrb[0].mxu0
  %v6139 = vadd.f32 0.0, %v6138
  %v6140 = vpop.f32.mrb[0].mxu0
  %6141 = vmatprep.mubr.f32.mxu0 0.0
  %6142 = vmatmul.mubr.f32.gmra.mrb[0].mxu0 %v258
  %v6143 = vpop.f32.mrb[0].mxu0
  %v6144 = vadd.f32 0.0, %v6143
  %v6145 = vpop.f32.mrb[0].mxu0
  %6146 = vmatprep.mubr.f32.mxu0 0.0
  %6147 = vmatmul.mubr.f32.gmra.mrb[0].mxu0 %v261
  %v6148 = vpop.f32.mrb[0].mxu0
  %v6149 = vadd.f32 0.0, %v6148
  %v6150 = vpop.f32.mrb[0].mxu0
  %6151 = vmatprep.mubr.f32.mxu0 0.0
  %6152 = vmatmul.mubr.f32.gmra.mrb[0].mxu0 %v264
  %v6153 = vpop.f32.mrb[0].mxu0
  %v6154 = vadd.f32 0.0, %v6153
  %v6155 = vpop.f32.mrb[0].mxu0
  %6156 = vmatprep.mubr.f32.mxu0 0.0
  %6157 = vmatmul.mubr.f32.gmra.mrb[0].mxu0 %v267
  %v6158 = vpop.f32.mrb[0].mxu0
  %v6159 = vadd.f32 0.0, %v6158
  %v6160 = vpop.f32.mrb[0].mxu0
  %6161 = vmatprep.mubr.f32.mxu0 0.0
  %6162 = vmatmul.mubr.f32.gmra.mrb[0].mxu0 %v270
  %v6163 = vpop.f32.mrb[0].mxu0
  %v6164 = vadd.f32 0.0, %v6163
  %v6165 = vpop.f32.mrb[0].mxu0
  %6166 = vmatprep.mubr.f32.mxu0 0.0
  %6167 = vmatmul.mubr.f32.gmra.mrb[0].mxu0 %v273
  %v6168 = vpop.f32.mrb[0].mxu0
  %v6169 = vadd.f32 0.0, %v6168
  %v6170 = vpop.f32.mrb[0].mxu0
  %6171 = vmatprep.mubr.f32.mxu0 0.0
  %6172 = vmatmul.mubr.f32.gmra.mrb[0].mxu0 %v276
  %v6173 = vpop.f32.mrb[0].mxu0
  %v6174 = vadd.f32 0.0, %v6173
  %v6175 = vpop.f32.mrb[0].mxu0
  %6176 = vmatprep.mubr.f32.mxu0 0.0
  %6177 = vmatmul.mubr.f32.gmra.mrb[0].mxu0 %v279
  %v6178 = vpop.f32.mrb[0].mxu0
  %v6179 = vadd.f32 0.0, %v6178
  %v6180 = vpop.f32.mrb[0].mxu0
  %6181 = vmatprep.mubr.f32.mxu0 0.0
  %6182 = vmatmul.mubr.f32.gmra.mrb[0].mxu0 %v282
  %v6183 = vpop.f32.mrb[0].mxu0
  %v6184 = vadd.f32 0.0, %v6183
  %v6185 = vpop.f32.mrb[0].mxu0
  %6186 = vmatprep.mubr.f32.mxu0 0.0
  %6187 = vmatmul.mubr.f32.gmra.mrb[0].mxu0 %v285
  %v6188 = vpop.f32.mrb[0].mxu0
  %v6189 = vadd.f32 0.0, %v6188
  %v6190 = vpop.f32.mrb[0].mxu0
  %6191 = vmatprep.mubr.f32.mxu0 0.0
  %6192 = vmatmul.mubr.f32.gmra.mrb[0].mxu0 %v288
  %v6193 = vpop.f32.mrb[0].mxu0
  %v6194 = vadd.f32 0.0, %v6193
  %v6195 = vpop.f32.mrb[0].mxu0
  %6196 = vmatprep.mubr.f32.mxu0 0.0
  %6197 = vmatmul.mubr.f32.gmra.mrb[0].mxu0 %v291
  %v6198 = vpop.f32.mrb[0].mxu0
  %v6199 = vadd.f32 0.0, %v6198
  %v6200 = vpop.f32.mrb[0].mxu0
  %6201 = vmatprep.mubr.f32.mxu0 0.0
  %6202 = vmatmul.mubr.f32.gmra.mrb[0].mxu0 %v294
  %v6203 = vpop.f32.mrb[0].mxu0
  %v6204 = vadd.f32 0.0, %v6203
  %v6205 = vpop.f32.mrb[0].mxu0
  %6206 = vmatprep.mubr.f32.mxu0 0.0
  %6207 = vmatmul.mubr.f32.gmra.mrb[0].mxu0 %v297
  %v6208 = vpop.f32.mrb[0].mxu0
  %v6209 = vadd.f32 0.0, %v6208
  %v6210 = vpop.f32.mrb[0].mxu0
  %6211 = vmatprep.mubr.f32.mxu0 0.0
  %6212 = vmatmul.mubr.f32.gmra.mrb[0].mxu0 %v300
  %v6213 = vpop.f32.mrb[0].mxu0
  %v6214 = vadd.f32 0.0, %v6213
  %v6215 = vpop.f32.mrb[0].mxu0
  %6216 = vdwg.mxu0
  %v6217 = vld [vmem:[%s11] sm:$0x1]
  %v6219 = vlaneseq
  %v6220 = vshrl.u32 %v6219, 7
  %v6221 = vsub.s32 0, %v6220
  %v6222 = vrot.slane %v6217, %v6221
  %v6224 = vmul.f32 %v5899, %v6222
  %v6225 = vmul.f32 %v5904, %v6222
  %v6226 = vmul.f32 %v5909, %v6222
  %v6227 = vmul.f32 %v5914, %v6222
  %v6228 = vmul.f32 %v5919, %v6222
  %v6229 = vmul.f32 %v5924, %v6222
  %v6230 = vmul.f32 %v5929, %v6222
  %v6231 = vmul.f32 %v5934, %v6222
  %v6232 = vmul.f32 %v5939, %v6222
  %v6233 = vmul.f32 %v5944, %v6222
  %v6234 = vmul.f32 %v5949, %v6222
  %v6235 = vmul.f32 %v5954, %v6222
  %v6236 = vmul.f32 %v5959, %v6222
  %v6237 = vmul.f32 %v5964, %v6222
  %v6238 = vmul.f32 %v5969, %v6222
  %v6239 = vmul.f32 %v5974, %v6222
  %v6240 = vmul.f32 %v5979, %v6222
  %v6241 = vmul.f32 %v5984, %v6222
  %v6242 = vmul.f32 %v5989, %v6222
  %v6243 = vmul.f32 %v5994, %v6222
  %v6244 = vmul.f32 %v5999, %v6222
  %v6245 = vmul.f32 %v6004, %v6222
  %v6246 = vmul.f32 %v6009, %v6222
  %v6247 = vmul.f32 %v6014, %v6222
  %v6248 = vmul.f32 %v6019, %v6222
  %v6249 = vmul.f32 %v6024, %v6222
  %v6250 = vmul.f32 %v6029, %v6222
  %v6251 = vmul.f32 %v6034, %v6222
  %v6252 = vmul.f32 %v6039, %v6222
  %v6253 = vmul.f32 %v6044, %v6222
  %v6254 = vmul.f32 %v6049, %v6222
  %v6255 = vmul.f32 %v6054, %v6222
  %v6256 = vmul.f32 %v6059, %v6222
  %v6257 = vmul.f32 %v6064, %v6222
  %v6258 = vmul.f32 %v6069, %v6222
  %v6259 = vmul.f32 %v6074, %v6222
  %v6260 = vmul.f32 %v6079, %v6222
  %v6261 = vmul.f32 %v6084, %v6222
  %v6262 = vmul.f32 %v6089, %v6222
  %v6263 = vmul.f32 %v6094, %v6222
  %v6264 = vmul.f32 %v6099, %v6222
  %v6265 = vmul.f32 %v6104, %v6222
  %v6266 = vmul.f32 %v6109, %v6222
  %v6267 = vmul.f32 %v6114, %v6222
  %v6268 = vmul.f32 %v6119, %v6222
  %v6269 = vmul.f32 %v6124, %v6222
  %v6270 = vmul.f32 %v6129, %v6222
  %v6271 = vmul.f32 %v6134, %v6222
  %v6272 = vmul.f32 %v6139, %v6222
  %v6273 = vmul.f32 %v6144, %v6222
  %v6274 = vmul.f32 %v6149, %v6222
  %v6275 = vmul.f32 %v6154, %v6222
  %v6276 = vmul.f32 %v6159, %v6222
  %v6277 = vmul.f32 %v6164, %v6222
  %v6278 = vmul.f32 %v6169, %v6222
  %v6279 = vmul.f32 %v6174, %v6222
  %v6280 = vmul.f32 %v6179, %v6222
  %v6281 = vmul.f32 %v6184, %v6222
  %v6282 = vmul.f32 %v6189, %v6222
  %v6283 = vmul.f32 %v6194, %v6222
  %v6284 = vmul.f32 %v6199, %v6222
  %v6285 = vmul.f32 %v6204, %v6222
  %v6286 = vmul.f32 %v6209, %v6222
  %v6287 = vmul.f32 %v6214, %v6222
  %v6288 = vld [vmem:[%s12] sm:$0x1]
  %v6290 = vlaneseq
  %v6291 = vshrl.u32 %v6290, 7
  %v6292 = vsub.s32 0, %v6291
  %v6293 = vrot.slane %v6288, %v6292
  %v6295 = vadd.f32 %v6224, %v6293
  %v6296 = vadd.f32 %v6225, %v6293
  %v6297 = vadd.f32 %v6226, %v6293
  %v6298 = vadd.f32 %v6227, %v6293
  %v6299 = vadd.f32 %v6228, %v6293
  %v6300 = vadd.f32 %v6229, %v6293
  %v6301 = vadd.f32 %v6230, %v6293
  %v6302 = vadd.f32 %v6231, %v6293
  %v6303 = vadd.f32 %v6232, %v6293
  %v6304 = vadd.f32 %v6233, %v6293
  %v6305 = vadd.f32 %v6234, %v6293
  %v6306 = vadd.f32 %v6235, %v6293
  %v6307 = vadd.f32 %v6236, %v6293
  %v6308 = vadd.f32 %v6237, %v6293
  %v6309 = vadd.f32 %v6238, %v6293
  %v6310 = vadd.f32 %v6239, %v6293
  %v6311 = vadd.f32 %v6240, %v6293
  %v6312 = vadd.f32 %v6241, %v6293
  %v6313 = vadd.f32 %v6242, %v6293
  %v6314 = vadd.f32 %v6243, %v6293
  %v6315 = vadd.f32 %v6244, %v6293
  %v6316 = vadd.f32 %v6245, %v6293
  %v6317 = vadd.f32 %v6246, %v6293
  %v6318 = vadd.f32 %v6247, %v6293
  %v6319 = vadd.f32 %v6248, %v6293
  %v6320 = vadd.f32 %v6249, %v6293
  %v6321 = vadd.f32 %v6250, %v6293
  %v6322 = vadd.f32 %v6251, %v6293
  %v6323 = vadd.f32 %v6252, %v6293
  %v6324 = vadd.f32 %v6253, %v6293
  %v6325 = vadd.f32 %v6254, %v6293
  %v6326 = vadd.f32 %v6255, %v6293
  %v6327 = vadd.f32 %v6256, %v6293
  %v6328 = vadd.f32 %v6257, %v6293
  %v6329 = vadd.f32 %v6258, %v6293
  %v6330 = vadd.f32 %v6259, %v6293
  %v6331 = vadd.f32 %v6260, %v6293
  %v6332 = vadd.f32 %v6261, %v6293
  %v6333 = vadd.f32 %v6262, %v6293
  %v6334 = vadd.f32 %v6263, %v6293
  %v6335 = vadd.f32 %v6264, %v6293
  %v6336 = vadd.f32 %v6265, %v6293
  %v6337 = vadd.f32 %v6266, %v6293
  %v6338 = vadd.f32 %v6267, %v6293
  %v6339 = vadd.f32 %v6268, %v6293
  %v6340 = vadd.f32 %v6269, %v6293
  %v6341 = vadd.f32 %v6270, %v6293
  %v6342 = vadd.f32 %v6271, %v6293
  %v6343 = vadd.f32 %v6272, %v6293
  %v6344 = vadd.f32 %v6273, %v6293
  %v6345 = vadd.f32 %v6274, %v6293
  %v6346 = vadd.f32 %v6275, %v6293
  %v6347 = vadd.f32 %v6276, %v6293
  %v6348 = vadd.f32 %v6277, %v6293
  %v6349 = vadd.f32 %v6278, %v6293
  %v6350 = vadd.f32 %v6279, %v6293
  %v6351 = vadd.f32 %v6280, %v6293
  %v6352 = vadd.f32 %v6281, %v6293
  %v6353 = vadd.f32 %v6282, %v6293
  %v6354 = vadd.f32 %v6283, %v6293
  %v6355 = vadd.f32 %v6284, %v6293
  %v6356 = vadd.f32 %v6285, %v6293
  %v6357 = vadd.f32 %v6286, %v6293
  %v6358 = vadd.f32 %v6287, %v6293
  %v6359 = vadd.f32 %v5767, %v6295
  %v6360 = vadd.f32 %v5768, %v6296
  %v6361 = vadd.f32 %v5769, %v6297
  %v6362 = vadd.f32 %v5770, %v6298
  %v6363 = vadd.f32 %v5771, %v6299
  %v6364 = vadd.f32 %v5772, %v6300
  %v6365 = vadd.f32 %v5773, %v6301
  %v6366 = vadd.f32 %v5774, %v6302
  %v6367 = vadd.f32 %v5775, %v6303
  %v6368 = vadd.f32 %v5776, %v6304
  %v6369 = vadd.f32 %v5777, %v6305
  %v6370 = vadd.f32 %v5778, %v6306
  %v6371 = vadd.f32 %v5779, %v6307
  %v6372 = vadd.f32 %v5780, %v6308
  %v6373 = vadd.f32 %v5781, %v6309
  %v6374 = vadd.f32 %v5782, %v6310
  %v6375 = vadd.f32 %v5783, %v6311
  %v6376 = vadd.f32 %v5784, %v6312
  %v6377 = vadd.f32 %v5785, %v6313
  %v6378 = vadd.f32 %v5786, %v6314
  %v6379 = vadd.f32 %v5787, %v6315
  %v6380 = vadd.f32 %v5788, %v6316
  %v6381 = vadd.f32 %v5789, %v6317
  %v6382 = vadd.f32 %v5790, %v6318
  %v6383 = vadd.f32 %v5791, %v6319
  %v6384 = vadd.f32 %v5792, %v6320
  %v6385 = vadd.f32 %v5793, %v6321
  %v6386 = vadd.f32 %v5794, %v6322
  %v6387 = vadd.f32 %v5795, %v6323
  %v6388 = vadd.f32 %v5796, %v6324
  %v6389 = vadd.f32 %v5797, %v6325
  %v6390 = vadd.f32 %v5798, %v6326
  %v6391 = vadd.f32 %v5799, %v6327
  %v6392 = vadd.f32 %v5800, %v6328
  %v6393 = vadd.f32 %v5801, %v6329
  %v6394 = vadd.f32 %v5802, %v6330
  %v6395 = vadd.f32 %v5803, %v6331
  %v6396 = vadd.f32 %v5804, %v6332
  %v6397 = vadd.f32 %v5805, %v6333
  %v6398 = vadd.f32 %v5806, %v6334
  %v6399 = vadd.f32 %v5807, %v6335
  %v6400 = vadd.f32 %v5808, %v6336
  %v6401 = vadd.f32 %v5809, %v6337
  %v6402 = vadd.f32 %v5810, %v6338
  %v6403 = vadd.f32 %v5811, %v6339
  %v6404 = vadd.f32 %v5812, %v6340
  %v6405 = vadd.f32 %v5813, %v6341
  %v6406 = vadd.f32 %v5814, %v6342
  %v6407 = vadd.f32 %v5815, %v6343
  %v6408 = vadd.f32 %v5816, %v6344
  %v6409 = vadd.f32 %v5817, %v6345
  %v6410 = vadd.f32 %v5818, %v6346
  %v6411 = vadd.f32 %v5819, %v6347
  %v6412 = vadd.f32 %v5820, %v6348
  %v6413 = vadd.f32 %v5821, %v6349
  %v6414 = vadd.f32 %v5822, %v6350
  %v6415 = vadd.f32 %v5823, %v6351
  %v6416 = vadd.f32 %v5824, %v6352
  %v6417 = vadd.f32 %v5825, %v6353
  %v6418 = vadd.f32 %v5826, %v6354
  %v6419 = vadd.f32 %v5827, %v6355
  %v6420 = vadd.f32 %v5828, %v6356
  %v6421 = vadd.f32 %v5829, %v6357
  %v6422 = vadd.f32 %v5830, %v6358
  %v6423 = vmax.f32 %v6359, 0.0
  %v6424 = vmax.f32 %v6360, 0.0
  %v6425 = vmax.f32 %v6361, 0.0
  %v6426 = vmax.f32 %v6362, 0.0
  %v6427 = vmax.f32 %v6363, 0.0
  %v6428 = vmax.f32 %v6364, 0.0
  %v6429 = vmax.f32 %v6365, 0.0
  %v6430 = vmax.f32 %v6366, 0.0
  %v6431 = vmax.f32 %v6367, 0.0
  %v6432 = vmax.f32 %v6368, 0.0
  %v6433 = vmax.f32 %v6369, 0.0
  %v6434 = vmax.f32 %v6370, 0.0
  %v6435 = vmax.f32 %v6371, 0.0
  %v6436 = vmax.f32 %v6372, 0.0
  %v6437 = vmax.f32 %v6373, 0.0
  %v6438 = vmax.f32 %v6374, 0.0
  %v6439 = vmax.f32 %v6375, 0.0
  %v6440 = vmax.f32 %v6376, 0.0
  %v6441 = vmax.f32 %v6377, 0.0
  %v6442 = vmax.f32 %v6378, 0.0
  %v6443 = vmax.f32 %v6379, 0.0
  %v6444 = vmax.f32 %v6380, 0.0
  %v6445 = vmax.f32 %v6381, 0.0
  %v6446 = vmax.f32 %v6382, 0.0
  %v6447 = vmax.f32 %v6383, 0.0
  %v6448 = vmax.f32 %v6384, 0.0
  %v6449 = vmax.f32 %v6385, 0.0
  %v6450 = vmax.f32 %v6386, 0.0
  %v6451 = vmax.f32 %v6387, 0.0
  %v6452 = vmax.f32 %v6388, 0.0
  %v6453 = vmax.f32 %v6389, 0.0
  %v6454 = vmax.f32 %v6390, 0.0
  %v6455 = vmax.f32 %v6391, 0.0
  %v6456 = vmax.f32 %v6392, 0.0
  %v6457 = vmax.f32 %v6393, 0.0
  %v6458 = vmax.f32 %v6394, 0.0
  %v6459 = vmax.f32 %v6395, 0.0
  %v6460 = vmax.f32 %v6396, 0.0
  %v6461 = vmax.f32 %v6397, 0.0
  %v6462 = vmax.f32 %v6398, 0.0
  %v6463 = vmax.f32 %v6399, 0.0
  %v6464 = vmax.f32 %v6400, 0.0
  %v6465 = vmax.f32 %v6401, 0.0
  %v6466 = vmax.f32 %v6402, 0.0
  %v6467 = vmax.f32 %v6403, 0.0
  %v6468 = vmax.f32 %v6404, 0.0
  %v6469 = vmax.f32 %v6405, 0.0
  %v6470 = vmax.f32 %v6406, 0.0
  %v6471 = vmax.f32 %v6407, 0.0
  %v6472 = vmax.f32 %v6408, 0.0
  %v6473 = vmax.f32 %v6409, 0.0
  %v6474 = vmax.f32 %v6410, 0.0
  %v6475 = vmax.f32 %v6411, 0.0
  %v6476 = vmax.f32 %v6412, 0.0
  %v6477 = vmax.f32 %v6413, 0.0
  %v6478 = vmax.f32 %v6414, 0.0
  %v6479 = vmax.f32 %v6415, 0.0
  %v6480 = vmax.f32 %v6416, 0.0
  %v6481 = vmax.f32 %v6417, 0.0
  %v6482 = vmax.f32 %v6418, 0.0
  %v6483 = vmax.f32 %v6419, 0.0
  %v6484 = vmax.f32 %v6420, 0.0
  %v6485 = vmax.f32 %v6421, 0.0
  %v6486 = vmax.f32 %v6422, 0.0
  %vm6487 = vcmask 261120
  %6488 = vst.msk [vmem:[%s13] sm:$0xff] %vm6487, %v6423
  %6489 = vst.msk [vmem:[%s13 + $0x8] sm:$0xff] %vm6487, %v6424
  %6490 = vst.msk [vmem:[%s13 + $0x10] sm:$0xff] %vm6487, %v6425
  %6491 = vst.msk [vmem:[%s13 + $0x18] sm:$0xff] %vm6487, %v6426
  %6492 = vst.msk [vmem:[%s13 + $0x20] sm:$0xff] %vm6487, %v6427
  %6493 = vst.msk [vmem:[%s13 + $0x28] sm:$0xff] %vm6487, %v6428
  %6494 = vst.msk [vmem:[%s13 + $0x30] sm:$0xff] %vm6487, %v6429
  %6495 = vst.msk [vmem:[%s13 + $0x38] sm:$0xff] %vm6487, %v6430
  %6496 = vst.msk [vmem:[%s13 + $0x40] sm:$0xff] %vm6487, %v6431
  %6497 = vst.msk [vmem:[%s13 + $0x48] sm:$0xff] %vm6487, %v6432
  %6498 = vst.msk [vmem:[%s13 + $0x50] sm:$0xff] %vm6487, %v6433
  %6499 = vst.msk [vmem:[%s13 + $0x58] sm:$0xff] %vm6487, %v6434
  %6500 = vst.msk [vmem:[%s13 + $0x60] sm:$0xff] %vm6487, %v6435
  %6501 = vst.msk [vmem:[%s13 + $0x68] sm:$0xff] %vm6487, %v6436
  %6502 = vst.msk [vmem:[%s13 + $0x70] sm:$0xff] %vm6487, %v6437
  %6503 = vst.msk [vmem:[%s13 + $0x78] sm:$0xff] %vm6487, %v6438
  %6504 = vst.msk [vmem:[%s13 + $0x80] sm:$0xff] %vm6487, %v6439
  %6505 = vst.msk [vmem:[%s13 + $0x88] sm:$0xff] %vm6487, %v6440
  %6506 = vst.msk [vmem:[%s13 + $0x90] sm:$0xff] %vm6487, %v6441
  %6507 = vst.msk [vmem:[%s13 + $0x98] sm:$0xff] %vm6487, %v6442
  %6508 = vst.msk [vmem:[%s13 + $0xa0] sm:$0xff] %vm6487, %v6443
  %6509 = vst.msk [vmem:[%s13 + $0xa8] sm:$0xff] %vm6487, %v6444
  %6510 = vst.msk [vmem:[%s13 + $0xb0] sm:$0xff] %vm6487, %v6445
  %6511 = vst.msk [vmem:[%s13 + $0xb8] sm:$0xff] %vm6487, %v6446
  %6512 = vst.msk [vmem:[%s13 + $0xc0] sm:$0xff] %vm6487, %v6447
  %6513 = vst.msk [vmem:[%s13 + $0xc8] sm:$0xff] %vm6487, %v6448
  %6514 = vst.msk [vmem:[%s13 + $0xd0] sm:$0xff] %vm6487, %v6449
  %6515 = vst.msk [vmem:[%s13 + $0xd8] sm:$0xff] %vm6487, %v6450
  %6516 = vst.msk [vmem:[%s13 + $0xe0] sm:$0xff] %vm6487, %v6451
  %6517 = vst.msk [vmem:[%s13 + $0xe8] sm:$0xff] %vm6487, %v6452
  %6518 = vst.msk [vmem:[%s13 + $0xf0] sm:$0xff] %vm6487, %v6453
  %6519 = vst.msk [vmem:[%s13 + $0xf8] sm:$0xff] %vm6487, %v6454
  %6520 = vst.msk [vmem:[%s13 + $0x100] sm:$0xff] %vm6487, %v6455
  %6521 = vst.msk [vmem:[%s13 + $0x108] sm:$0xff] %vm6487, %v6456
  %6522 = vst.msk [vmem:[%s13 + $0x110] sm:$0xff] %vm6487, %v6457
  %6523 = vst.msk [vmem:[%s13 + $0x118] sm:$0xff] %vm6487, %v6458
  %6524 = vst.msk [vmem:[%s13 + $0x120] sm:$0xff] %vm6487, %v6459
  %6525 = vst.msk [vmem:[%s13 + $0x128] sm:$0xff] %vm6487, %v6460
  %6526 = vst.msk [vmem:[%s13 + $0x130] sm:$0xff] %vm6487, %v6461
  %6527 = vst.msk [vmem:[%s13 + $0x138] sm:$0xff] %vm6487, %v6462
  %6528 = vst.msk [vmem:[%s13 + $0x140] sm:$0xff] %vm6487, %v6463
  %6529 = vst.msk [vmem:[%s13 + $0x148] sm:$0xff] %vm6487, %v6464
  %6530 = vst.msk [vmem:[%s13 + $0x150] sm:$0xff] %vm6487, %v6465
  %6531 = vst.msk [vmem:[%s13 + $0x158] sm:$0xff] %vm6487, %v6466
  %6532 = vst.msk [vmem:[%s13 + $0x160] sm:$0xff] %vm6487, %v6467
  %6533 = vst.msk [vmem:[%s13 + $0x168] sm:$0xff] %vm6487, %v6468
  %6534 = vst.msk [vmem:[%s13 + $0x170] sm:$0xff] %vm6487, %v6469
  %6535 = vst.msk [vmem:[%s13 + $0x178] sm:$0xff] %vm6487, %v6470
  %6536 = vst.msk [vmem:[%s13 + $0x180] sm:$0xff] %vm6487, %v6471
  %6537 = vst.msk [vmem:[%s13 + $0x188] sm:$0xff] %vm6487, %v6472
  %6538 = vst.msk [vmem:[%s13 + $0x190] sm:$0xff] %vm6487, %v6473
  %6539 = vst.msk [vmem:[%s13 + $0x198] sm:$0xff] %vm6487, %v6474
  %6540 = vst.msk [vmem:[%s13 + $0x1a0] sm:$0xff] %vm6487, %v6475
  %6541 = vst.msk [vmem:[%s13 + $0x1a8] sm:$0xff] %vm6487, %v6476
  %6542 = vst.msk [vmem:[%s13 + $0x1b0] sm:$0xff] %vm6487, %v6477
  %6543 = vst.msk [vmem:[%s13 + $0x1b8] sm:$0xff] %vm6487, %v6478
  %6544 = vst.msk [vmem:[%s13 + $0x1c0] sm:$0xff] %vm6487, %v6479
  %6545 = vst.msk [vmem:[%s13 + $0x1c8] sm:$0xff] %vm6487, %v6480
  %6546 = vst.msk [vmem:[%s13 + $0x1d0] sm:$0xff] %vm6487, %v6481
  %6547 = vst.msk [vmem:[%s13 + $0x1d8] sm:$0xff] %vm6487, %v6482
  %6548 = vst.msk [vmem:[%s13 + $0x1e0] sm:$0xff] %vm6487, %v6483
  %6549 = vst.msk [vmem:[%s13 + $0x1e8] sm:$0xff] %vm6487, %v6484
  %6550 = vst.msk [vmem:[%s13 + $0x1f0] sm:$0xff] %vm6487, %v6485
  %6551 = vst.msk [vmem:[%s13 + $0x1f8] sm:$0xff] %vm6487, %v6486
  // Predicated region
  $region54: #{tpu_custom_call.1} parent=0 // pred_check
    _
  $region55: #{tpu_custom_call.1} parent=0 // pred_check_branch
    %6553 = sbr.rel (0) target = $region57
  $region56: #{tpu_custom_call.1} parent=0 // pred_region
    _
  $region57: #{tpu_custom_call.1} parent=0 // pred_fallthru
    _
  // Predicated region
  $region58: #{tpu_custom_call.1} parent=0 // pred_check
    _
  $region59: #{tpu_custom_call.1} parent=0 // pred_check_branch
    %6555 = sbr.rel (0) target = $region61
  $region60: #{tpu_custom_call.1} parent=0 // pred_region
    _
  $region61: #{tpu_custom_call.1} parent=0 // pred_fallthru
    _

</llo_original>
